<compile_context>
chip_gen: v5e
topology: v5e:2x2
jax: 0.10.0
libtpu: 0.0.40
codegen_flags: <defaults>
</compile_context>

<pallas_src>
import functools

import jax
import jax.numpy as jnp
import numpy as np
from jax.experimental import pallas as pl
from jax.experimental.pallas import tpu as pltpu


# ----------------------------------------------------------------------------
# Pallas kernel: full GraphVAE forward (encoder MP rounds + reparam + pairwise
# decoder logits + Bernoulli log-probs + KL) in one VMEM-resident program.
# ----------------------------------------------------------------------------
def graphvae_kernel(
    scal_ref, nn_ref,                           # SMEM scalars
    x_ref, a_ref, eps_ref, pair_ref,            # VMEM node / pair tensors
    w_in_ref, b_in_ref, w_msg_ref, b_msg_ref,
    w_mu_ref, b_mu_ref, w_ls_ref, b_ls_ref, w_dec_ref,
    out_ref,
    *, num_mp_rounds,
):
    x = x_ref[...]                                  # [Np, Fp]  f32
    a = a_ref[...].astype(jnp.float32)              # [Np, Np]  bf16 -> f32 (exact 0/1)
    eps = eps_ref[...]                              # [Np, Dp]  f32

    # --- encoder: input projection + message passing rounds (MXU matmuls) ---
    h = jnp.maximum(
        jnp.dot(x, w_in_ref[...], preferred_element_type=jnp.float32)
        + b_in_ref[...],
        0.0,
    )  # [Np, Dp]
    for _ in range(num_mp_rounds):                  # fully unrolled (3 rounds)
        m = jnp.dot(a, h, preferred_element_type=jnp.float32)   # neighbor agg
        h = jnp.maximum(
            jnp.dot(m, w_msg_ref[...], preferred_element_type=jnp.float32)
            + b_msg_ref[...],
            0.0,
        )

    # --- Gaussian posterior heads + reparameterized sample -------------------
    mu = jnp.dot(h, w_mu_ref[...], preferred_element_type=jnp.float32) + b_mu_ref[...]
    logstd = jnp.dot(h, w_ls_ref[...], preferred_element_type=jnp.float32) + b_ls_ref[...]
    sigma = jnp.exp(logstd)
    z = mu + eps * sigma                            # [Np, Dp]

    # --- Bernoulli decoder on all node pairs: logit(u,v) = w . (z_u*z_v) + b --
    n_pairs = scal_ref[0, 0]
    n_true = scal_ref[0, 1]
    b_dec = scal_ref[0, 2]

    zw = z * w_dec_ref[...]                         # [Np, Dp] (padded dims are 0)

    # No explicit z.T: contract last dims of both operands directly on the MXU.
    logits = jax.lax.dot_general(
        zw, z,
        dimension_numbers=(((1,), (1,)), ((), ())),
        preferred_element_type=jnp.float32,
    ) + b_dec                                       # [Np, Np]

    # Numerically stable softplus (single EUP exp + log1p per element).
    sp = jnp.maximum(logits, 0.0) + jnp.log1p(jnp.exp(-jnp.abs(logits)))

    # sum over true edges of logits, via MXU:  sum(a*logits) = sum(zw*(a@z)) + b*|E|
    az = jnp.dot(a, z, preferred_element_type=jnp.float32)       # [Np, Dp]
    true_logit_sum = jnp.sum(zw * az) + b_dec * n_true

    # recon_sum = sum_true (logits - sp) + sum_false (-sp)
    #           = sum(a*logits) - sum(pair_mask * sp)
    pair = pair_ref[...].astype(jnp.float32)
    recon_sum = true_logit_sum - jnp.sum(pair * sp)
    recon = recon_sum / n_pairs

    # --- KL( N(mu, sigma) || N(0, 1) ), summed over dims, mean over REAL nodes
    kl_elem = -logstd + 0.5 * (sigma * sigma + mu * mu) - 0.5    # [Np, Dp]
    node_ids = jax.lax.broadcasted_iota(jnp.int32, kl_elem.shape, 0)
    node_mask = (node_ids < nn_ref[0, 0]).astype(jnp.float32)    # padding-safe
    kl = jnp.sum(node_mask * kl_elem) / nn_ref[0, 0].astype(jnp.float32)

    out_ref[0, 0] = -(recon - kl)   # forward = -elbo


# ----------------------------------------------------------------------------
# Wrapper: zero-pad to lane/sublane-friendly shapes, move scalars to SMEM.
# ----------------------------------------------------------------------------
def _pad2(arr, rows, cols):
    r, c = arr.shape
    return jnp.pad(arr, ((0, rows - r), (0, cols - c)))


def graphvae_forward(x, a, eps, pair_mask, n_true_edges, n_pairs, params,
                     *, num_mp_rounds, f_pad=128, d_pad=128):
    n, _ = x.shape
    n_pad = -(-n // 8) * 8        # sublane-align nodes (demo already uses N=128)

    xp = _pad2(x.astype(jnp.float32), n_pad, f_pad)
    ap = _pad2(a.astype(jnp.float32), n_pad, n_pad).astype(jnp.bfloat16)
    pp = _pad2(pair_mask.astype(jnp.float32), n_pad, n_pad).astype(jnp.bfloat16)
    ep = _pad2(eps.astype(jnp.float32), n_pad, d_pad)

    w_in = _pad2(params["w_in"], f_pad, d_pad)
    b_in = _pad2(params["b_in"], 1, d_pad)
    w_msg = _pad2(params["w_msg"], d_pad, d_pad)
    b_msg = _pad2(params["b_msg"], 1, d_pad)
    w_mu = _pad2(params["w_mu"], d_pad, d_pad)
    b_mu = _pad2(params["b_mu"], 1, d_pad)
    w_ls = _pad2(params["w_ls"], d_pad, d_pad)
    b_ls = _pad2(params["b_ls"], 1, d_pad)
    w_dec = _pad2(params["w_dec"], 1, d_pad)

    # One SMEM f32 scalar pack: [n_pairs, n_true_edges, decoder_bias]
    scal = jnp.array(
        [[float(n_pairs), float(n_true_edges),
          float(np.asarray(params["b_dec"]).reshape(-1)[0])]],
        dtype=jnp.float32,
    )
    nn = jnp.array([[n]], dtype=jnp.int32)

    smem = pl.BlockSpec(memory_space=pltpu.MemorySpace.SMEM)
    vmem = pl.BlockSpec(memory_space=pltpu.MemorySpace.VMEM)

    inputs = (scal, nn,
              xp, ap, ep, pp,
              w_in, b_in, w_msg, b_msg, w_mu, b_mu, w_ls, b_ls, w_dec)
    in_specs = [smem, smem] + [vmem] * (len(inputs) - 2)

    # TODO(synk): for very large batched N (N^2 fp32 logits/softplus approaching
    # v7x's 64 MiB VMEM), block-tile the pairwise-decoder stage over a
    # (row_block, col_block) grid with "parallel" dimension_semantics; at the
    # demo size everything is VMEM-resident in one program.
    out = pl.pallas_call(
        functools.partial(graphvae_kernel, num_mp_rounds=num_mp_rounds),
        out_shape=jax.ShapeDtypeStruct((1, 1), jnp.float32),
        in_specs=in_specs,
        out_specs=smem,
    )(*inputs)
    return out[0, 0]


# ----------------------------------------------------------------------------
# Pure-JAX reference (same math, unpadded) for a correctness check.
# ----------------------------------------------------------------------------
def graphvae_reference(x, a, eps, true_mask, false_mask, count, p, *, num_mp_rounds):
    h = jax.nn.relu(x @ p["w_in"] + p["b_in"])
    for _ in range(num_mp_rounds):
        h = jax.nn.relu((a @ h) @ p["w_msg"] + p["b_msg"])
    mu = h @ p["w_mu"] + p["b_mu"]
    logstd = h @ p["w_ls"] + p["b_ls"]
    sigma = jnp.exp(logstd)
    z = mu + eps * sigma
    logits = (z * p["w_dec"]) @ z.T + p["b_dec"][0, 0]
    sp = jax.nn.softplus(logits)
    recon = jnp.sum(true_mask * (logits - sp) + false_mask * (-sp)) / count
    kl = jnp.mean(jnp.sum(-logstd + 0.5 * (sigma**2 + mu**2) - 0.5, axis=-1))
    return -(recon - kl)


if __name__ == "__main__":
    # f32-precise reference matmuls so the tolerance check is meaningful.
    jax.config.update("jax_default_matmul_precision", "highest")

    # --- small synthetic graph batch (8 graphs packed -> N=128 nodes) --------
    NUM_GRAPHS = 8
    NODES_PER_GRAPH = 16
    N = NUM_GRAPHS * NODES_PER_GRAPH          # 128 nodes total
    F = 8                                      # node_feature_dim
    D = 16                                     # state_dim
    R = 3                                      # num_message_passing_rounds

    # Ring-graph edge_index (both directions, PyG convention).
    edges = []
    for g in range(NUM_GRAPHS):
        base = g * NODES_PER_GRAPH
        for i in range(NODES_PER_GRAPH):
            u, v = base + i, base + (i + 1) % NODES_PER_GRAPH
            edges.append((u, v))
            edges.append((v, u))
    true_edges = np.array(edges, dtype=np.int64)            # == edge_index.T

    # all_possible_edges per graph (combinations, u < v), false = all - true.
    true_set = set(map(tuple, true_edges.tolist()))
    false_edges = []
    for g in range(NUM_GRAPHS):
        base = g * NODES_PER_GRAPH
        nodes = list(range(base, base + NODES_PER_GRAPH))
        for i in range(len(nodes)):
            for j in range(i + 1, len(nodes)):
                if (nodes[i], nodes[j]) not in true_set:
                    false_edges.append((nodes[i], nodes[j]))
    false_edges = np.array(false_edges, dtype=np.int64)

    adj = np.zeros((N, N), dtype=np.float32)           # adjacency == true mask
    adj[true_edges[:, 0], true_edges[:, 1]] = 1.0
    false_mask = np.zeros((N, N), dtype=np.float32)
    false_mask[false_edges[:, 0], false_edges[:, 1]] = 1.0
    pair_mask = adj + false_mask                       # all scored pairs (0/1)
    n_true = len(true_edges)
    n_pairs = len(true_edges) + len(false_edges)

    # --- deterministic inputs / parameters -----------------------------------
    key = jax.random.PRNGKey(0)
    keys = jax.random.split(key, 8)
    x = jax.random.normal(keys[0], (N, F), dtype=jnp.float32)
    eps = jax.random.normal(keys[1], (N, D), dtype=jnp.float32)  # q.rsample() noise

    params = {
        "w_in": 0.3 * jax.random.normal(keys[2], (F, D), dtype=jnp.float32),
        "b_in": jnp.zeros((1, D), dtype=jnp.float32),
        "w_msg": 0.2 * jax.random.normal(keys[3], (D, D), dtype=jnp.float32),
        "b_msg": jnp.zeros((1, D), dtype=jnp.float32),
        "w_mu": 0.3 * jax.random.normal(keys[4], (D, D), dtype=jnp.float32),
        "b_mu": jnp.zeros((1, D), dtype=jnp.float32),
        "w_ls": 0.1 * jax.random.normal(keys[5], (D, D), dtype=jnp.float32),
        "b_ls": jnp.zeros((1, D), dtype=jnp.float32),
        "w_dec": 0.5 * jax.random.normal(keys[6], (1, D), dtype=jnp.float32),
        "b_dec": jnp.zeros((1, 1), dtype=jnp.float32),
    }
    # TODO(synk): the module's unused `self.bias` parameter (zeros(1)) does not
    # participate in forward(), so it is intentionally omitted.

    a = jnp.asarray(adj)
    pmask = jnp.asarray(pair_mask)
    fmask = jnp.asarray(false_mask)

    loss = graphvae_forward(x, a, eps, pmask, n_true, n_pairs, params,
                            num_mp_rounds=R)
    loss = jax.block_until_ready(loss)

    ref = graphvae_reference(x, a, eps, a, fmask, float(n_pairs), params,
                             num_mp_rounds=R)
    np.testing.assert_allclose(np.asarray(loss), np.asarray(ref), rtol=1e-4, atol=1e-4)

    print("KERNEL_OK")
</pallas_src>

<mosaic_0001>
module attributes {stable_mosaic.version = 11 : i64} {
  func.func @graphvae_kernel(%arg0: memref<1x3xf32, #tpu.memory_space<smem>>, %arg1: memref<1x1xi32, #tpu.memory_space<smem>>, %arg2: memref<128x128xf32, #tpu.memory_space<vmem>>, %arg3: memref<128x128xbf16, #tpu.memory_space<vmem>>, %arg4: memref<128x128xf32, #tpu.memory_space<vmem>>, %arg5: memref<128x128xbf16, #tpu.memory_space<vmem>>, %arg6: memref<128x128xf32, #tpu.memory_space<vmem>>, %arg7: memref<1x128xf32, #tpu.memory_space<vmem>>, %arg8: memref<128x128xf32, #tpu.memory_space<vmem>>, %arg9: memref<1x128xf32, #tpu.memory_space<vmem>>, %arg10: memref<128x128xf32, #tpu.memory_space<vmem>>, %arg11: memref<1x128xf32, #tpu.memory_space<vmem>>, %arg12: memref<128x128xf32, #tpu.memory_space<vmem>>, %arg13: memref<1x128xf32, #tpu.memory_space<vmem>>, %arg14: memref<1x128xf32, #tpu.memory_space<vmem>>, %arg15: memref<1x1xf32, #tpu.memory_space<smem>>) attributes {dimension_semantics = [], scalar_prefetch = 0 : i64, scratch_operands = 0 : i64, tpu.core_type = #tpu.core_type<tc>} {
    %c0 = arith.constant 0 : index
    %c0_0 = arith.constant 0 : index
    %0 = vector.load %arg2[%c0, %c0_0] : memref<128x128xf32, #tpu.memory_space<vmem>>, vector<128x128xf32>
    %c0_1 = arith.constant 0 : index
    %c0_2 = arith.constant 0 : index
    %1 = vector.load %arg3[%c0_1, %c0_2] : memref<128x128xbf16, #tpu.memory_space<vmem>>, vector<128x128xbf16>
    %2 = arith.extf %1 : vector<128x128xbf16> to vector<128x128xf32>
    %c0_3 = arith.constant 0 : index
    %c0_4 = arith.constant 0 : index
    %3 = vector.load %arg4[%c0_3, %c0_4] : memref<128x128xf32, #tpu.memory_space<vmem>>, vector<128x128xf32>
    %c0_5 = arith.constant 0 : index
    %c0_6 = arith.constant 0 : index
    %4 = vector.load %arg6[%c0_5, %c0_6] : memref<128x128xf32, #tpu.memory_space<vmem>>, vector<128x128xf32>
    %cst = arith.constant dense<0.000000e+00> : vector<128x128xf32>
    %5 = tpu.matmul %0, %4, %cst {dimension_numbers = #tpu.dot_dimension_numbers<[1], [0], [0], [1], [0, 0, 1, 1], [], []>, precision = #tpu.contract_precision<fp32>} : vector<128x128xf32>, vector<128x128xf32>, vector<128x128xf32> -> vector<128x128xf32>
    %c0_7 = arith.constant 0 : index
    %c0_8 = arith.constant 0 : index
    %6 = vector.load %arg7[%c0_7, %c0_8] : memref<1x128xf32, #tpu.memory_space<vmem>>, vector<1x128xf32>
    %7 = vector.broadcast %6 : vector<1x128xf32> to vector<128x128xf32>
    %8 = arith.addf %5, %7 : vector<128x128xf32>
    %cst_9 = arith.constant 0.000000e+00 : f32
    %9 = vector.broadcast %cst_9 : f32 to vector<128x128xf32>
    %10 = arith.maximumf %8, %9 : vector<128x128xf32>
    %cst_10 = arith.constant dense<0.000000e+00> : vector<128x128xf32>
    %11 = tpu.matmul %2, %10, %cst_10 {dimension_numbers = #tpu.dot_dimension_numbers<[1], [0], [0], [1], [0, 0, 1, 1], [], []>, precision = #tpu.contract_precision<fp32>} : vector<128x128xf32>, vector<128x128xf32>, vector<128x128xf32> -> vector<128x128xf32>
    %c0_11 = arith.constant 0 : index
    %c0_12 = arith.constant 0 : index
    %12 = vector.load %arg8[%c0_11, %c0_12] : memref<128x128xf32, #tpu.memory_space<vmem>>, vector<128x128xf32>
    %cst_13 = arith.constant dense<0.000000e+00> : vector<128x128xf32>
    %13 = tpu.matmul %11, %12, %cst_13 {dimension_numbers = #tpu.dot_dimension_numbers<[1], [0], [0], [1], [0, 0, 1, 1], [], []>, precision = #tpu.contract_precision<fp32>} : vector<128x128xf32>, vector<128x128xf32>, vector<128x128xf32> -> vector<128x128xf32>
    %c0_14 = arith.constant 0 : index
    %c0_15 = arith.constant 0 : index
    %14 = vector.load %arg9[%c0_14, %c0_15] : memref<1x128xf32, #tpu.memory_space<vmem>>, vector<1x128xf32>
    %15 = vector.broadcast %14 : vector<1x128xf32> to vector<128x128xf32>
    %16 = arith.addf %13, %15 : vector<128x128xf32>
    %cst_16 = arith.constant 0.000000e+00 : f32
    %17 = vector.broadcast %cst_16 : f32 to vector<128x128xf32>
    %18 = arith.maximumf %16, %17 : vector<128x128xf32>
    %cst_17 = arith.constant dense<0.000000e+00> : vector<128x128xf32>
    %19 = tpu.matmul %2, %18, %cst_17 {dimension_numbers = #tpu.dot_dimension_numbers<[1], [0], [0], [1], [0, 0, 1, 1], [], []>, precision = #tpu.contract_precision<fp32>} : vector<128x128xf32>, vector<128x128xf32>, vector<128x128xf32> -> vector<128x128xf32>
    %c0_18 = arith.constant 0 : index
    %c0_19 = arith.constant 0 : index
    %20 = vector.load %arg8[%c0_18, %c0_19] : memref<128x128xf32, #tpu.memory_space<vmem>>, vector<128x128xf32>
    %cst_20 = arith.constant dense<0.000000e+00> : vector<128x128xf32>
    %21 = tpu.matmul %19, %20, %cst_20 {dimension_numbers = #tpu.dot_dimension_numbers<[1], [0], [0], [1], [0, 0, 1, 1], [], []>, precision = #tpu.contract_precision<fp32>} : vector<128x128xf32>, vector<128x128xf32>, vector<128x128xf32> -> vector<128x128xf32>
    %c0_21 = arith.constant 0 : index
    %c0_22 = arith.constant 0 : index
    %22 = vector.load %arg9[%c0_21, %c0_22] : memref<1x128xf32, #tpu.memory_space<vmem>>, vector<1x128xf32>
    %23 = vector.broadcast %22 : vector<1x128xf32> to vector<128x128xf32>
    %24 = arith.addf %21, %23 : vector<128x128xf32>
    %cst_23 = arith.constant 0.000000e+00 : f32
    %25 = vector.broadcast %cst_23 : f32 to vector<128x128xf32>
    %26 = arith.maximumf %24, %25 : vector<128x128xf32>
    %cst_24 = arith.constant dense<0.000000e+00> : vector<128x128xf32>
    %27 = tpu.matmul %2, %26, %cst_24 {dimension_numbers = #tpu.dot_dimension_numbers<[1], [0], [0], [1], [0, 0, 1, 1], [], []>, precision = #tpu.contract_precision<fp32>} : vector<128x128xf32>, vector<128x128xf32>, vector<128x128xf32> -> vector<128x128xf32>
    %c0_25 = arith.constant 0 : index
    %c0_26 = arith.constant 0 : index
    %28 = vector.load %arg8[%c0_25, %c0_26] : memref<128x128xf32, #tpu.memory_space<vmem>>, vector<128x128xf32>
    %cst_27 = arith.constant dense<0.000000e+00> : vector<128x128xf32>
    %29 = tpu.matmul %27, %28, %cst_27 {dimension_numbers = #tpu.dot_dimension_numbers<[1], [0], [0], [1], [0, 0, 1, 1], [], []>, precision = #tpu.contract_precision<fp32>} : vector<128x128xf32>, vector<128x128xf32>, vector<128x128xf32> -> vector<128x128xf32>
    %c0_28 = arith.constant 0 : index
    %c0_29 = arith.constant 0 : index
    %30 = vector.load %arg9[%c0_28, %c0_29] : memref<1x128xf32, #tpu.memory_space<vmem>>, vector<1x128xf32>
    %31 = vector.broadcast %30 : vector<1x128xf32> to vector<128x128xf32>
    %32 = arith.addf %29, %31 : vector<128x128xf32>
    %cst_30 = arith.constant 0.000000e+00 : f32
    %33 = vector.broadcast %cst_30 : f32 to vector<128x128xf32>
    %34 = arith.maximumf %32, %33 : vector<128x128xf32>
    %c0_31 = arith.constant 0 : index
    %c0_32 = arith.constant 0 : index
    %35 = vector.load %arg10[%c0_31, %c0_32] : memref<128x128xf32, #tpu.memory_space<vmem>>, vector<128x128xf32>
    %cst_33 = arith.constant dense<0.000000e+00> : vector<128x128xf32>
    %36 = tpu.matmul %34, %35, %cst_33 {dimension_numbers = #tpu.dot_dimension_numbers<[1], [0], [0], [1], [0, 0, 1, 1], [], []>, precision = #tpu.contract_precision<fp32>} : vector<128x128xf32>, vector<128x128xf32>, vector<128x128xf32> -> vector<128x128xf32>
    %c0_34 = arith.constant 0 : index
    %c0_35 = arith.constant 0 : index
    %37 = vector.load %arg11[%c0_34, %c0_35] : memref<1x128xf32, #tpu.memory_space<vmem>>, vector<1x128xf32>
    %38 = vector.broadcast %37 : vector<1x128xf32> to vector<128x128xf32>
    %39 = arith.addf %36, %38 : vector<128x128xf32>
    %c0_36 = arith.constant 0 : index
    %c0_37 = arith.constant 0 : index
    %40 = vector.load %arg12[%c0_36, %c0_37] : memref<128x128xf32, #tpu.memory_space<vmem>>, vector<128x128xf32>
    %cst_38 = arith.constant dense<0.000000e+00> : vector<128x128xf32>
    %41 = tpu.matmul %34, %40, %cst_38 {dimension_numbers = #tpu.dot_dimension_numbers<[1], [0], [0], [1], [0, 0, 1, 1], [], []>, precision = #tpu.contract_precision<fp32>} : vector<128x128xf32>, vector<128x128xf32>, vector<128x128xf32> -> vector<128x128xf32>
    %c0_39 = arith.constant 0 : index
    %c0_40 = arith.constant 0 : index
    %42 = vector.load %arg13[%c0_39, %c0_40] : memref<1x128xf32, #tpu.memory_space<vmem>>, vector<1x128xf32>
    %43 = vector.broadcast %42 : vector<1x128xf32> to vector<128x128xf32>
    %44 = arith.addf %41, %43 : vector<128x128xf32>
    %45 = math.exp %44 : vector<128x128xf32>
    %46 = arith.mulf %3, %45 : vector<128x128xf32>
    %47 = arith.addf %39, %46 : vector<128x128xf32>
    %c0_41 = arith.constant 0 : index
    %c0_42 = arith.constant 0 : index
    %48 = memref.load %arg0[%c0_41, %c0_42] : memref<1x3xf32, #tpu.memory_space<smem>>
    %c0_43 = arith.constant 0 : index
    %c1 = arith.constant 1 : index
    %49 = memref.load %arg0[%c0_43, %c1] : memref<1x3xf32, #tpu.memory_space<smem>>
    %c0_44 = arith.constant 0 : index
    %c2 = arith.constant 2 : index
    %50 = memref.load %arg0[%c0_44, %c2] : memref<1x3xf32, #tpu.memory_space<smem>>
    %c0_45 = arith.constant 0 : index
    %c0_46 = arith.constant 0 : index
    %51 = vector.load %arg14[%c0_45, %c0_46] : memref<1x128xf32, #tpu.memory_space<vmem>>, vector<1x128xf32>
    %52 = vector.broadcast %51 : vector<1x128xf32> to vector<128x128xf32>
    %53 = arith.mulf %47, %52 : vector<128x128xf32>
    %cst_47 = arith.constant dense<0.000000e+00> : vector<128x128xf32>
    %54 = tpu.matmul %53, %47, %cst_47 {dimension_numbers = #tpu.dot_dimension_numbers<[1], [1], [0], [0], [0, 0, 1, 0], [], []>, precision = #tpu.contract_precision<fp32>} : vector<128x128xf32>, vector<128x128xf32>, vector<128x128xf32> -> vector<128x128xf32>
    %55 = vector.broadcast %50 : f32 to vector<128x128xf32>
    %56 = arith.addf %54, %55 : vector<128x128xf32>
    %cst_48 = arith.constant 0.000000e+00 : f32
    %57 = vector.broadcast %cst_48 : f32 to vector<128x128xf32>
    %58 = arith.maximumf %56, %57 : vector<128x128xf32>
    %59 = math.absf %56 : vector<128x128xf32>
    %cst_49 = arith.constant 0.000000e+00 : f32
    %60 = vector.broadcast %cst_49 : f32 to vector<128x128xf32>
    %61 = arith.subf %60, %59 : vector<128x128xf32>
    %62 = math.exp %61 : vector<128x128xf32>
    %63 = math.log1p %62 : vector<128x128xf32>
    %64 = arith.addf %58, %63 : vector<128x128xf32>
    %cst_50 = arith.constant dense<0.000000e+00> : vector<128x128xf32>
    %65 = tpu.matmul %2, %47, %cst_50 {dimension_numbers = #tpu.dot_dimension_numbers<[1], [0], [0], [1], [0, 0, 1, 1], [], []>, precision = #tpu.contract_precision<fp32>} : vector<128x128xf32>, vector<128x128xf32>, vector<128x128xf32> -> vector<128x128xf32>
    %66 = arith.mulf %53, %65 : vector<128x128xf32>
    %67 = vector.shape_cast %66 : vector<128x128xf32> to vector<1x128x128xf32>
    %cst_51 = arith.constant dense<0.000000e+00> : vector<1xf32>
    %68 = vector.multi_reduction <add>, %67, %cst_51 [1, 2] : vector<1x128x128xf32> to vector<1xf32>
    %69 = vector.shape_cast %68 : vector<1xf32> to vector<1x1x1xf32>
    %70 = vector.extract %69[0, 0, 0] : f32 from vector<1x1x1xf32>
    %71 = arith.mulf %50, %49 : f32
    %72 = arith.addf %70, %71 : f32
    %c0_52 = arith.constant 0 : index
    %c0_53 = arith.constant 0 : index
    %73 = vector.load %arg5[%c0_52, %c0_53] : memref<128x128xbf16, #tpu.memory_space<vmem>>, vector<128x128xbf16>
    %74 = arith.extf %73 : vector<128x128xbf16> to vector<128x128xf32>
    %75 = arith.mulf %74, %64 : vector<128x128xf32>
    %76 = vector.shape_cast %75 : vector<128x128xf32> to vector<1x128x128xf32>
    %cst_54 = arith.constant dense<0.000000e+00> : vector<1xf32>
    %77 = vector.multi_reduction <add>, %76, %cst_54 [1, 2] : vector<1x128x128xf32> to vector<1xf32>
    %78 = vector.shape_cast %77 : vector<1xf32> to vector<1x1x1xf32>
    %79 = vector.extract %78[0, 0, 0] : f32 from vector<1x1x1xf32>
    %80 = arith.subf %72, %79 : f32
    %81 = arith.divf %80, %48 : f32
    %cst_55 = arith.constant 0.000000e+00 : f32
    %82 = vector.broadcast %cst_55 : f32 to vector<128x128xf32>
    %83 = arith.subf %82, %44 : vector<128x128xf32>
    %84 = arith.mulf %45, %45 : vector<128x128xf32>
    %85 = arith.mulf %39, %39 : vector<128x128xf32>
    %86 = arith.addf %84, %85 : vector<128x128xf32>
    %cst_56 = arith.constant 5.000000e-01 : f32
    %87 = vector.broadcast %cst_56 : f32 to vector<128x128xf32>
    %88 = arith.mulf %87, %86 : vector<128x128xf32>
    %89 = arith.addf %83, %88 : vector<128x128xf32>
    %cst_57 = arith.constant 5.000000e-01 : f32
    %90 = vector.broadcast %cst_57 : f32 to vector<128x128xf32>
    %91 = arith.subf %89, %90 : vector<128x128xf32>
    %92 = tpu.iota {dimensions = array<i32: 0>} : vector<128x128xi32>
    %c0_58 = arith.constant 0 : index
    %c0_59 = arith.constant 0 : index
    %93 = memref.load %arg1[%c0_58, %c0_59] : memref<1x1xi32, #tpu.memory_space<smem>>
    %94 = vector.broadcast %93 : i32 to vector<128x128xi32>
    %95 = arith.cmpi slt, %92, %94 : vector<128x128xi32>
    %96 = arith.extui %95 : vector<128x128xi1> to vector<128x128xi32>
    %97 = arith.sitofp %96 : vector<128x128xi32> to vector<128x128xf32>
    %98 = arith.mulf %97, %91 : vector<128x128xf32>
    %99 = vector.shape_cast %98 : vector<128x128xf32> to vector<1x128x128xf32>
    %cst_60 = arith.constant dense<0.000000e+00> : vector<1xf32>
    %100 = vector.multi_reduction <add>, %99, %cst_60 [1, 2] : vector<1x128x128xf32> to vector<1xf32>
    %101 = vector.shape_cast %100 : vector<1xf32> to vector<1x1x1xf32>
    %102 = vector.extract %101[0, 0, 0] : f32 from vector<1x1x1xf32>
    %c0_61 = arith.constant 0 : index
    %c0_62 = arith.constant 0 : index
    %103 = memref.load %arg1[%c0_61, %c0_62] : memref<1x1xi32, #tpu.memory_space<smem>>
    %104 = arith.sitofp %103 : i32 to f32
    %105 = arith.divf %102, %104 : f32
    %106 = arith.subf %81, %105 : f32
    %cst_63 = arith.constant 0.000000e+00 : f32
    %107 = arith.subf %cst_63, %106 : f32
    %c0_64 = arith.constant 0 : index
    %c0_65 = arith.constant 0 : index
    %108 = memref.load %arg15[%c0_64, %c0_65] : memref<1x1xf32, #tpu.memory_space<smem>>
    memref.store %107, %arg15[%c0_64, %c0_65] : memref<1x1xf32, #tpu.memory_space<smem>>
    return
  }
}

</mosaic_0001>

<llo_original>
// kernel: tpu_custom_call.1
$region0: #{tpu_custom_call.1}
  #allocation0 [shape = 'u32[]', space=smem, size = 0x4, offset = 0x4, fixed_abs, tag = 'smem constant byte address 0x4 - core index']
  #allocation1 [shape = 'u32[72,128]{1,0:T(1,128)}', space=vmem, size = 0x9000, scoped, tag = 'internal scratch']
  #allocation2 [shape = 's32[1,1]{1,0:T(1,128)S(6)}', space=smem, size = 0x200, scoped, tag = 'scoped memory for tpu_custom_call.1']
  %s0 = inlined_call_operand.vmem [shape: f32[1,3], index: 0, kind: input, shape index: {}]
  %s1 = inlined_call_operand.<no memory space> [shape: s32[1,1], index: 1, kind: input, shape index: {}]
  %s2 = inlined_call_operand.hbm [shape: f32[128,128], index: 2, kind: input, shape index: {}]
  %s3 = inlined_call_operand.hbm [shape: bf16[128,128], index: 3, kind: input, shape index: {}]
  %s4 = inlined_call_operand.hbm [shape: f32[128,128], index: 4, kind: input, shape index: {}]
  %s5 = inlined_call_operand.hbm [shape: bf16[128,128], index: 5, kind: input, shape index: {}]
  %s6 = inlined_call_operand.hbm [shape: f32[128,128], index: 6, kind: input, shape index: {}]
  %s7 = inlined_call_operand.vmem [shape: f32[1,128], index: 7, kind: input, shape index: {}]
  %s8 = inlined_call_operand.hbm [shape: f32[128,128], index: 8, kind: input, shape index: {}]
  %s9 = inlined_call_operand.vmem [shape: f32[1,128], index: 9, kind: input, shape index: {}]
  %s10 = inlined_call_operand.hbm [shape: f32[128,128], index: 10, kind: input, shape index: {}]
  %s11 = inlined_call_operand.vmem [shape: f32[1,128], index: 11, kind: input, shape index: {}]
  %s12 = inlined_call_operand.hbm [shape: f32[128,128], index: 12, kind: input, shape index: {}]
  %s13 = inlined_call_operand.vmem [shape: f32[1,128], index: 13, kind: input, shape index: {}]
  %s14 = inlined_call_operand.vmem [shape: f32[1,128], index: 14, kind: input, shape index: {}]
  %s15 = inlined_call_operand.hbm [shape: f32[1,1], index: 15, kind: output, shape index: {}]
  %s16 = sld [smem:[#allocation0]]
  $region106: #{tpu_custom_call.1} parent=0
    _
  %s18 = ssub.s32 1, %s16
  %s19 = scalar_select 0, %s18, %s16
  %20 = sst [smem:[#allocation2]] %s1
  $region1: #{tpu_custom_call.1} parent=0
    #allocation3 [shape = 'u8[512]{0}', space=smem, size = 0x200, scoped, tag = 'input window, operand 0, single buffered']
    #allocation4 [shape = 's32[1]{0}', space=sflag, size = 0x4, scoped, tag = 'scoped memory for tpu_custom_call.1']
    #allocation5 [shape = 's32[1]{0}', space=sflag, size = 0x4, scoped, tag = 'scoped memory for tpu_custom_call.1']
    #allocation6 [shape = 's32[1]{0}', space=sflag, size = 0x4, scoped, tag = 'scoped memory for tpu_custom_call.1']
    #allocation7 [shape = 'u8[65536]{0}', space=vmem, size = 0x10000, scoped, tag = 'input window, operand 2, single buffered']
    #allocation8 [shape = 'u8[32768]{0}', space=vmem, size = 0x8000, scoped, tag = 'input window, operand 3, single buffered']
    #allocation9 [shape = 's32[1]{0}', space=sflag, size = 0x4, scoped, tag = 'scoped memory for tpu_custom_call.1']
    #allocation10 [shape = 'u8[65536]{0}', space=vmem, size = 0x10000, scoped, tag = 'input window, operand 4, single buffered']
    #allocation11 [shape = 'u8[32768]{0}', space=vmem, size = 0x8000, scoped, tag = 'input window, operand 5, single buffered']
    #allocation12 [shape = 's32[1]{0}', space=sflag, size = 0x4, scoped, tag = 'scoped memory for tpu_custom_call.1']
    #allocation13 [shape = 'u8[65536]{0}', space=vmem, size = 0x10000, scoped, tag = 'input window, operand 6, single buffered']
    #allocation14 [shape = 'u8[65536]{0}', space=vmem, size = 0x10000, scoped, tag = 'input window, operand 8, single buffered']
    #allocation15 [shape = 's32[1]{0}', space=sflag, size = 0x4, scoped, tag = 'scoped memory for tpu_custom_call.1']
    #allocation16 [shape = 'u8[65536]{0}', space=vmem, size = 0x10000, scoped, tag = 'input window, operand 10, single buffered']
    #allocation17 [shape = 'u8[65536]{0}', space=vmem, size = 0x10000, scoped, tag = 'input window, operand 12, single buffered']
    #allocation18 [shape = 's32[1]{0}', space=sflag, size = 0x4, scoped, tag = 'scoped memory for tpu_custom_call.1']
    #allocation19 [shape = 'u8[512]{0}', space=smem, size = 0x200, scoped, tag = 'output window, operand 0, single buffered']
    %21 = vsyncpa [#allocation6], 0
    %22 = vsyncpa [#allocation4], 0
    %23 = vsyncpa [#allocation9], 0
    %24 = vsyncpa [#allocation12], 0
    %25 = vsyncpa [#allocation15], 0
    %26 = vsyncpa [#allocation18], 0
    %27 = vsyncpa [#allocation5], 0
    // Predicated region
    $region2: #{tpu_custom_call.1} parent=1 // pred_check
      _
    $region3: #{tpu_custom_call.1} parent=1 // pred_check_branch
      %29 = sbr.rel (0) target = $region5
    $region4: #{tpu_custom_call.1} parent=1 // pred_region
      %31 = vsyncadd [#allocation6], 0
      %s33 = sshll.u32 %s0, 4
      %s34 = int_to_ptr.vmem [resolvable:$true] %s33
      %36 = dma.vmem_to_smem %s34, 16, [#allocation3], [#allocation6]
    $region5: #{tpu_custom_call.1} parent=1 // pred_fallthru
      _
    // Predicated region
    $region6: #{tpu_custom_call.1} parent=1 // pred_check
      _
    $region7: #{tpu_custom_call.1} parent=1 // pred_check_branch
      %38 = sbr.rel (0) target = $region9
    $region8: #{tpu_custom_call.1} parent=1 // pred_region
      _
    $region9: #{tpu_custom_call.1} parent=1 // pred_fallthru
      _
    // Predicated region
    $region10: #{tpu_custom_call.1} parent=1 // pred_check
      _
    $region11: #{tpu_custom_call.1} parent=1 // pred_check_branch
      %40 = sbr.rel (0) target = $region13
    $region12: #{tpu_custom_call.1} parent=1 // pred_region
      %42 = vsyncadd [#allocation4], 0
      %s43 = sshll.u32 %s2, 4
      %s44 = int_to_ptr.hbm [resolvable:$true] %s43
      %s45 = sshll.u32 [#allocation7], 4
      %s46 = int_to_ptr.vmem [resolvable:$true] %s45
      %51 = dma.hbm_to_vmem [thread:$0]  %s44, 2048, %s46, [#allocation4], 128, 128, 8
    $region13: #{tpu_custom_call.1} parent=1 // pred_fallthru
      _
    // Predicated region
    $region14: #{tpu_custom_call.1} parent=1 // pred_check
      _
    $region15: #{tpu_custom_call.1} parent=1 // pred_check_branch
      %53 = sbr.rel (0) target = $region17
    $region16: #{tpu_custom_call.1} parent=1 // pred_region
      %55 = vsyncadd [#allocation9], 0
      %s56 = sshll.u32 %s3, 4
      %s57 = int_to_ptr.hbm [resolvable:$true] %s56
      %s58 = sshll.u32 [#allocation8], 4
      %s59 = int_to_ptr.vmem [resolvable:$true] %s58
      %64 = dma.hbm_to_vmem [thread:$0]  %s57, 1024, %s59, [#allocation9], 64, 64, 4
    $region17: #{tpu_custom_call.1} parent=1 // pred_fallthru
      _
    // Predicated region
    $region18: #{tpu_custom_call.1} parent=1 // pred_check
      _
    $region19: #{tpu_custom_call.1} parent=1 // pred_check_branch
      %66 = sbr.rel (0) target = $region21
    $region20: #{tpu_custom_call.1} parent=1 // pred_region
      %68 = vsyncadd [#allocation9], 0
      %s69 = sshll.u32 %s4, 4
      %s70 = int_to_ptr.hbm [resolvable:$true] %s69
      %s71 = sshll.u32 [#allocation10], 4
      %s72 = int_to_ptr.vmem [resolvable:$true] %s71
      %77 = dma.hbm_to_vmem [thread:$0]  %s70, 2048, %s72, [#allocation9], 128, 128, 8
    $region21: #{tpu_custom_call.1} parent=1 // pred_fallthru
      _
    // Predicated region
    $region22: #{tpu_custom_call.1} parent=1 // pred_check
      _
    $region23: #{tpu_custom_call.1} parent=1 // pred_check_branch
      %79 = sbr.rel (0) target = $region25
    $region24: #{tpu_custom_call.1} parent=1 // pred_region
      %81 = vsyncadd [#allocation12], 0
      %s82 = sshll.u32 %s5, 4
      %s83 = int_to_ptr.hbm [resolvable:$true] %s82
      %s84 = sshll.u32 [#allocation11], 4
      %s85 = int_to_ptr.vmem [resolvable:$true] %s84
      %90 = dma.hbm_to_vmem [thread:$0]  %s83, 1024, %s85, [#allocation12], 64, 64, 4
    $region25: #{tpu_custom_call.1} parent=1 // pred_fallthru
      _
    // Predicated region
    $region26: #{tpu_custom_call.1} parent=1 // pred_check
      _
    $region27: #{tpu_custom_call.1} parent=1 // pred_check_branch
      %92 = sbr.rel (0) target = $region29
    $region28: #{tpu_custom_call.1} parent=1 // pred_region
      %94 = vsyncadd [#allocation12], 0
      %s95 = sshll.u32 %s6, 4
      %s96 = int_to_ptr.hbm [resolvable:$true] %s95
      %s97 = sshll.u32 [#allocation13], 4
      %s98 = int_to_ptr.vmem [resolvable:$true] %s97
      %103 = dma.hbm_to_vmem [thread:$0]  %s96, 2048, %s98, [#allocation12], 128, 128, 8
    $region29: #{tpu_custom_call.1} parent=1 // pred_fallthru
      _
    // Predicated region
    $region30: #{tpu_custom_call.1} parent=1 // pred_check
      _
    $region31: #{tpu_custom_call.1} parent=1 // pred_check_branch
      %105 = sbr.rel (0) target = $region33
    $region32: #{tpu_custom_call.1} parent=1 // pred_region
      _
    $region33: #{tpu_custom_call.1} parent=1 // pred_fallthru
      _
    // Predicated region
    $region34: #{tpu_custom_call.1} parent=1 // pred_check
      _
    $region35: #{tpu_custom_call.1} parent=1 // pred_check_branch
      %107 = sbr.rel (0) target = $region37
    $region36: #{tpu_custom_call.1} parent=1 // pred_region
      %109 = vsyncadd [#allocation15], 0
      %s110 = sshll.u32 %s8, 4
      %s111 = int_to_ptr.hbm [resolvable:$true] %s110
      %s112 = sshll.u32 [#allocation14], 4
      %s113 = int_to_ptr.vmem [resolvable:$true] %s112
      %118 = dma.hbm_to_vmem [thread:$0]  %s111, 2048, %s113, [#allocation15], 128, 128, 8
    $region37: #{tpu_custom_call.1} parent=1 // pred_fallthru
      _
    // Predicated region
    $region38: #{tpu_custom_call.1} parent=1 // pred_check
      _
    $region39: #{tpu_custom_call.1} parent=1 // pred_check_branch
      %120 = sbr.rel (0) target = $region41
    $region40: #{tpu_custom_call.1} parent=1 // pred_region
      _
    $region41: #{tpu_custom_call.1} parent=1 // pred_fallthru
      _
    // Predicated region
    $region42: #{tpu_custom_call.1} parent=1 // pred_check
      _
    $region43: #{tpu_custom_call.1} parent=1 // pred_check_branch
      %122 = sbr.rel (0) target = $region45
    $region44: #{tpu_custom_call.1} parent=1 // pred_region
      %124 = vsyncadd [#allocation15], 0
      %s125 = sshll.u32 %s10, 4
      %s126 = int_to_ptr.hbm [resolvable:$true] %s125
      %s127 = sshll.u32 [#allocation16], 4
      %s128 = int_to_ptr.vmem [resolvable:$true] %s127
      %133 = dma.hbm_to_vmem [thread:$0]  %s126, 2048, %s128, [#allocation15], 128, 128, 8
    $region45: #{tpu_custom_call.1} parent=1 // pred_fallthru
      _
    // Predicated region
    $region46: #{tpu_custom_call.1} parent=1 // pred_check
      _
    $region47: #{tpu_custom_call.1} parent=1 // pred_check_branch
      %135 = sbr.rel (0) target = $region49
    $region48: #{tpu_custom_call.1} parent=1 // pred_region
      _
    $region49: #{tpu_custom_call.1} parent=1 // pred_fallthru
      _
    // Predicated region
    $region50: #{tpu_custom_call.1} parent=1 // pred_check
      _
    $region51: #{tpu_custom_call.1} parent=1 // pred_check_branch
      %137 = sbr.rel (0) target = $region53
    $region52: #{tpu_custom_call.1} parent=1 // pred_region
      %139 = vsyncadd [#allocation18], 0
      %s140 = sshll.u32 %s12, 4
      %s141 = int_to_ptr.hbm [resolvable:$true] %s140
      %s142 = sshll.u32 [#allocation17], 4
      %s143 = int_to_ptr.vmem [resolvable:$true] %s142
      %148 = dma.hbm_to_vmem [thread:$0]  %s141, 2048, %s143, [#allocation18], 128, 128, 8
    $region53: #{tpu_custom_call.1} parent=1 // pred_fallthru
      _
    // Predicated region
    $region54: #{tpu_custom_call.1} parent=1 // pred_check
      _
    $region55: #{tpu_custom_call.1} parent=1 // pred_check_branch
      %150 = sbr.rel (0) target = $region57
    $region56: #{tpu_custom_call.1} parent=1 // pred_region
      _
    $region57: #{tpu_custom_call.1} parent=1 // pred_fallthru
      _
    // Predicated region
    $region58: #{tpu_custom_call.1} parent=1 // pred_check
      _
    $region59: #{tpu_custom_call.1} parent=1 // pred_check_branch
      %152 = sbr.rel (0) target = $region61
    $region60: #{tpu_custom_call.1} parent=1 // pred_region
      _
    $region61: #{tpu_custom_call.1} parent=1 // pred_fallthru
      _
    // Predicated region
    $region62: #{tpu_custom_call.1} parent=1 // pred_check
      _
    $region63: #{tpu_custom_call.1} parent=1 // pred_check_branch
      %154 = sbr.rel (0) target = $region65
    $region64: #{tpu_custom_call.1} parent=1 // pred_region
      %156 = dma.done [#allocation6], 16
    $region65: #{tpu_custom_call.1} parent=1 // pred_fallthru
      _
    // Predicated region
    $region66: #{tpu_custom_call.1} parent=1 // pred_check
      _
    $region67: #{tpu_custom_call.1} parent=1 // pred_check_branch
      %158 = sbr.rel (0) target = $region69
    $region68: #{tpu_custom_call.1} parent=1 // pred_region
      %160 = dma.done [#allocation4], 2048
    $region69: #{tpu_custom_call.1} parent=1 // pred_fallthru
      _
    // Predicated region
    $region70: #{tpu_custom_call.1} parent=1 // pred_check
      _
    $region71: #{tpu_custom_call.1} parent=1 // pred_check_branch
      %162 = sbr.rel (0) target = $region73
    $region72: #{tpu_custom_call.1} parent=1 // pred_region
      %164 = dma.done [#allocation9], 1024
    $region73: #{tpu_custom_call.1} parent=1 // pred_fallthru
      _
    // Predicated region
    $region74: #{tpu_custom_call.1} parent=1 // pred_check
      _
    $region75: #{tpu_custom_call.1} parent=1 // pred_check_branch
      %166 = sbr.rel (0) target = $region77
    $region76: #{tpu_custom_call.1} parent=1 // pred_region
      %168 = dma.done [#allocation9], 2048
    $region77: #{tpu_custom_call.1} parent=1 // pred_fallthru
      _
    // Predicated region
    $region78: #{tpu_custom_call.1} parent=1 // pred_check
      _
    $region79: #{tpu_custom_call.1} parent=1 // pred_check_branch
      %170 = sbr.rel (0) target = $region81
    $region80: #{tpu_custom_call.1} parent=1 // pred_region
      %172 = dma.done [#allocation12], 1024
    $region81: #{tpu_custom_call.1} parent=1 // pred_fallthru
      _
    // Predicated region
    $region82: #{tpu_custom_call.1} parent=1 // pred_check
      _
    $region83: #{tpu_custom_call.1} parent=1 // pred_check_branch
      %174 = sbr.rel (0) target = $region85
    $region84: #{tpu_custom_call.1} parent=1 // pred_region
      %176 = dma.done [#allocation12], 2048
    $region85: #{tpu_custom_call.1} parent=1 // pred_fallthru
      _
    // Predicated region
    $region86: #{tpu_custom_call.1} parent=1 // pred_check
      _
    $region87: #{tpu_custom_call.1} parent=1 // pred_check_branch
      %178 = sbr.rel (0) target = $region89
    $region88: #{tpu_custom_call.1} parent=1 // pred_region
      %180 = dma.done [#allocation15], 2048
    $region89: #{tpu_custom_call.1} parent=1 // pred_fallthru
      _
    // Predicated region
    $region90: #{tpu_custom_call.1} parent=1 // pred_check
      _
    $region91: #{tpu_custom_call.1} parent=1 // pred_check_branch
      %182 = sbr.rel (0) target = $region93
    $region92: #{tpu_custom_call.1} parent=1 // pred_region
      %184 = dma.done [#allocation15], 2048
    $region93: #{tpu_custom_call.1} parent=1 // pred_fallthru
      _
    // Predicated region
    $region94: #{tpu_custom_call.1} parent=1 // pred_check
      _
    $region95: #{tpu_custom_call.1} parent=1 // pred_check_branch
      %186 = sbr.rel (0) target = $region97
    $region96: #{tpu_custom_call.1} parent=1 // pred_region
      %188 = dma.done [#allocation18], 2048
    $region97: #{tpu_custom_call.1} parent=1 // pred_fallthru
      _
    %189 = sfence
    %v190 = vld [vmem:[#allocation7] sm:$0xff]
    %v191 = vld [vmem:[#allocation7 + $0x8] sm:$0xff]
    %v192 = vld [vmem:[#allocation7 + $0x10] sm:$0xff]
    %v193 = vld [vmem:[#allocation7 + $0x18] sm:$0xff]
    %v194 = vld [vmem:[#allocation7 + $0x20] sm:$0xff]
    %v195 = vld [vmem:[#allocation7 + $0x28] sm:$0xff]
    %v196 = vld [vmem:[#allocation7 + $0x30] sm:$0xff]
    %v197 = vld [vmem:[#allocation7 + $0x38] sm:$0xff]
    %v198 = vld [vmem:[#allocation7 + $0x40] sm:$0xff]
    %v199 = vld [vmem:[#allocation7 + $0x48] sm:$0xff]
    %v200 = vld [vmem:[#allocation7 + $0x50] sm:$0xff]
    %v201 = vld [vmem:[#allocation7 + $0x58] sm:$0xff]
    %v202 = vld [vmem:[#allocation7 + $0x60] sm:$0xff]
    %v203 = vld [vmem:[#allocation7 + $0x68] sm:$0xff]
    %v204 = vld [vmem:[#allocation7 + $0x70] sm:$0xff]
    %v205 = vld [vmem:[#allocation7 + $0x78] sm:$0xff]
    %v206 = vld [vmem:[#allocation8] sm:$0xf]
    %v207 = vld [vmem:[#allocation8 + $0x4] sm:$0xf]
    %v208 = vld [vmem:[#allocation8 + $0x8] sm:$0xf]
    %v209 = vld [vmem:[#allocation8 + $0xc] sm:$0xf]
    %v210 = vld [vmem:[#allocation8 + $0x10] sm:$0xf]
    %v211 = vld [vmem:[#allocation8 + $0x14] sm:$0xf]
    %v212 = vld [vmem:[#allocation8 + $0x18] sm:$0xf]
    %v213 = vld [vmem:[#allocation8 + $0x1c] sm:$0xf]
    %v214 = vld [vmem:[#allocation8 + $0x20] sm:$0xf]
    %v215 = vld [vmem:[#allocation8 + $0x24] sm:$0xf]
    %v216 = vld [vmem:[#allocation8 + $0x28] sm:$0xf]
    %v217 = vld [vmem:[#allocation8 + $0x2c] sm:$0xf]
    %v218 = vld [vmem:[#allocation8 + $0x30] sm:$0xf]
    %v219 = vld [vmem:[#allocation8 + $0x34] sm:$0xf]
    %v220 = vld [vmem:[#allocation8 + $0x38] sm:$0xf]
    %v221 = vld [vmem:[#allocation8 + $0x3c] sm:$0xf]
    %v222 = vunpack.c.l.bf16 %v206
    %v223 = vunpack.c.l.bf16 %v207
    %v224 = vunpack.c.l.bf16 %v208
    %v225 = vunpack.c.l.bf16 %v209
    %v226 = vunpack.c.l.bf16 %v210
    %v227 = vunpack.c.l.bf16 %v211
    %v228 = vunpack.c.l.bf16 %v212
    %v229 = vunpack.c.l.bf16 %v213
    %v230 = vunpack.c.l.bf16 %v214
    %v231 = vunpack.c.l.bf16 %v215
    %v232 = vunpack.c.l.bf16 %v216
    %v233 = vunpack.c.l.bf16 %v217
    %v234 = vunpack.c.l.bf16 %v218
    %v235 = vunpack.c.l.bf16 %v219
    %v236 = vunpack.c.l.bf16 %v220
    %v237 = vunpack.c.l.bf16 %v221
    %v238 = vld [vmem:[#allocation10] sm:$0xff]
    %v239 = vld [vmem:[#allocation10 + $0x8] sm:$0xff]
    %v240 = vld [vmem:[#allocation10 + $0x10] sm:$0xff]
    %v241 = vld [vmem:[#allocation10 + $0x18] sm:$0xff]
    %v242 = vld [vmem:[#allocation10 + $0x20] sm:$0xff]
    %v243 = vld [vmem:[#allocation10 + $0x28] sm:$0xff]
    %v244 = vld [vmem:[#allocation10 + $0x30] sm:$0xff]
    %v245 = vld [vmem:[#allocation10 + $0x38] sm:$0xff]
    %v246 = vld [vmem:[#allocation10 + $0x40] sm:$0xff]
    %v247 = vld [vmem:[#allocation10 + $0x48] sm:$0xff]
    %v248 = vld [vmem:[#allocation10 + $0x50] sm:$0xff]
    %v249 = vld [vmem:[#allocation10 + $0x58] sm:$0xff]
    %v250 = vld [vmem:[#allocation10 + $0x60] sm:$0xff]
    %v251 = vld [vmem:[#allocation10 + $0x68] sm:$0xff]
    %v252 = vld [vmem:[#allocation10 + $0x70] sm:$0xff]
    %v253 = vld [vmem:[#allocation10 + $0x78] sm:$0xff]
    %v254 = vld [vmem:[#allocation13] sm:$0xff]
    %v255 = vld [vmem:[#allocation13 + $0x8] sm:$0xff]
    %v256 = vld [vmem:[#allocation13 + $0x10] sm:$0xff]
    %v257 = vld [vmem:[#allocation13 + $0x18] sm:$0xff]
    %v258 = vld [vmem:[#allocation13 + $0x20] sm:$0xff]
    %v259 = vld [vmem:[#allocation13 + $0x28] sm:$0xff]
    %v260 = vld [vmem:[#allocation13 + $0x30] sm:$0xff]
    %v261 = vld [vmem:[#allocation13 + $0x38] sm:$0xff]
    %v262 = vld [vmem:[#allocation13 + $0x40] sm:$0xff]
    %v263 = vld [vmem:[#allocation13 + $0x48] sm:$0xff]
    %v264 = vld [vmem:[#allocation13 + $0x50] sm:$0xff]
    %v265 = vld [vmem:[#allocation13 + $0x58] sm:$0xff]
    %v266 = vld [vmem:[#allocation13 + $0x60] sm:$0xff]
    %v267 = vld [vmem:[#allocation13 + $0x68] sm:$0xff]
    %v268 = vld [vmem:[#allocation13 + $0x70] sm:$0xff]
    %v269 = vld [vmem:[#allocation13 + $0x78] sm:$0xff]
    %v270 = vld [vmem:[%s7] sm:$0x1]
    %v272 = vperm.slane %v270, 0
    %v274 = vand.u32 %v269, 4294901760
    %275 = vmatpush.msra.mxu0 %v274
    %v276 = vand.u32 %v268, 4294901760
    %277 = vmatpush.msra.mxu0 %v276
    %v278 = vand.u32 %v267, 4294901760
    %279 = vmatpush.msra.mxu0 %v278
    %v280 = vand.u32 %v266, 4294901760
    %281 = vmatpush.msra.mxu0 %v280
    %v282 = vand.u32 %v265, 4294901760
    %283 = vmatpush.msra.mxu0 %v282
    %v284 = vand.u32 %v264, 4294901760
    %285 = vmatpush.msra.mxu0 %v284
    %v286 = vand.u32 %v263, 4294901760
    %287 = vmatpush.msra.mxu0 %v286
    %v288 = vand.u32 %v262, 4294901760
    %289 = vmatpush.msra.mxu0 %v288
    %v290 = vand.u32 %v261, 4294901760
    %291 = vmatpush.msra.mxu0 %v290
    %v292 = vand.u32 %v260, 4294901760
    %293 = vmatpush.msra.mxu0 %v292
    %v294 = vand.u32 %v259, 4294901760
    %295 = vmatpush.msra.mxu0 %v294
    %v296 = vand.u32 %v258, 4294901760
    %297 = vmatpush.msra.mxu0 %v296
    %v298 = vand.u32 %v257, 4294901760
    %299 = vmatpush.msra.mxu0 %v298
    %v300 = vand.u32 %v256, 4294901760
    %301 = vmatpush.msra.mxu0 %v300
    %v302 = vand.u32 %v255, 4294901760
    %303 = vmatpush.msra.mxu0 %v302
    %v304 = vand.u32 %v254, 4294901760
    %305 = vmatpush.msra.mxu0 %v304
    %v306 = vand.u32 %v190, 4294901760
    %v307 = vsub.f32 %v190, %v306
    %v308 = vand.u32 %v307, 4294901760
    %v309 = vsub.f32 %v307, %v308
    %v310 = vand.u32 %v309, 4294901760
    %311 = vmatmul.f32.gmra.mxu0 %v310
    %v312 = vpop.f32.mrf.mxu0
    %v313 = vadd.f32 %v272, %v312
    %v314 = vand.u32 %v191, 4294901760
    %v315 = vsub.f32 %v191, %v314
    %v316 = vand.u32 %v315, 4294901760
    %v317 = vsub.f32 %v315, %v316
    %v318 = vand.u32 %v317, 4294901760
    %319 = vmatmul.f32.gmra.mxu0 %v318
    %v320 = vpop.f32.mrf.mxu0
    %v321 = vadd.f32 %v272, %v320
    %v322 = vand.u32 %v192, 4294901760
    %v323 = vsub.f32 %v192, %v322
    %v324 = vand.u32 %v323, 4294901760
    %v325 = vsub.f32 %v323, %v324
    %v326 = vand.u32 %v325, 4294901760
    %327 = vmatmul.f32.gmra.mxu0 %v326
    %v328 = vpop.f32.mrf.mxu0
    %v329 = vadd.f32 %v272, %v328
    %v330 = vand.u32 %v193, 4294901760
    %v331 = vsub.f32 %v193, %v330
    %v332 = vand.u32 %v331, 4294901760
    %v333 = vsub.f32 %v331, %v332
    %v334 = vand.u32 %v333, 4294901760
    %335 = vmatmul.f32.gmra.mxu0 %v334
    %v336 = vpop.f32.mrf.mxu0
    %v337 = vadd.f32 %v272, %v336
    %v338 = vand.u32 %v194, 4294901760
    %v339 = vsub.f32 %v194, %v338
    %v340 = vand.u32 %v339, 4294901760
    %v341 = vsub.f32 %v339, %v340
    %v342 = vand.u32 %v341, 4294901760
    %343 = vmatmul.f32.gmra.mxu0 %v342
    %v344 = vpop.f32.mrf.mxu0
    %v345 = vadd.f32 %v272, %v344
    %v346 = vand.u32 %v195, 4294901760
    %v347 = vsub.f32 %v195, %v346
    %v348 = vand.u32 %v347, 4294901760
    %v349 = vsub.f32 %v347, %v348
    %v350 = vand.u32 %v349, 4294901760
    %351 = vmatmul.f32.gmra.mxu0 %v350
    %v352 = vpop.f32.mrf.mxu0
    %v353 = vadd.f32 %v272, %v352
    %v354 = vand.u32 %v196, 4294901760
    %v355 = vsub.f32 %v196, %v354
    %v356 = vand.u32 %v355, 4294901760
    %v357 = vsub.f32 %v355, %v356
    %v358 = vand.u32 %v357, 4294901760
    %359 = vmatmul.f32.gmra.mxu0 %v358
    %v360 = vpop.f32.mrf.mxu0
    %v361 = vadd.f32 %v272, %v360
    %v362 = vand.u32 %v197, 4294901760
    %v363 = vsub.f32 %v197, %v362
    %v364 = vand.u32 %v363, 4294901760
    %v365 = vsub.f32 %v363, %v364
    %v366 = vand.u32 %v365, 4294901760
    %367 = vmatmul.f32.gmra.mxu0 %v366
    %v368 = vpop.f32.mrf.mxu0
    %v369 = vadd.f32 %v272, %v368
    %v370 = vand.u32 %v198, 4294901760
    %v371 = vsub.f32 %v198, %v370
    %v372 = vand.u32 %v371, 4294901760
    %v373 = vsub.f32 %v371, %v372
    %v374 = vand.u32 %v373, 4294901760
    %375 = vmatmul.f32.gmra.mxu0 %v374
    %v376 = vpop.f32.mrf.mxu0
    %v377 = vadd.f32 %v272, %v376
    %v378 = vand.u32 %v199, 4294901760
    %v379 = vsub.f32 %v199, %v378
    %v380 = vand.u32 %v379, 4294901760
    %v381 = vsub.f32 %v379, %v380
    %v382 = vand.u32 %v381, 4294901760
    %383 = vmatmul.f32.gmra.mxu0 %v382
    %v384 = vpop.f32.mrf.mxu0
    %v385 = vadd.f32 %v272, %v384
    %v386 = vand.u32 %v200, 4294901760
    %v387 = vsub.f32 %v200, %v386
    %v388 = vand.u32 %v387, 4294901760
    %v389 = vsub.f32 %v387, %v388
    %v390 = vand.u32 %v389, 4294901760
    %391 = vmatmul.f32.gmra.mxu0 %v390
    %v392 = vpop.f32.mrf.mxu0
    %v393 = vadd.f32 %v272, %v392
    %v394 = vand.u32 %v201, 4294901760
    %v395 = vsub.f32 %v201, %v394
    %v396 = vand.u32 %v395, 4294901760
    %v397 = vsub.f32 %v395, %v396
    %v398 = vand.u32 %v397, 4294901760
    %399 = vmatmul.f32.gmra.mxu0 %v398
    %v400 = vpop.f32.mrf.mxu0
    %v401 = vadd.f32 %v272, %v400
    %v402 = vand.u32 %v202, 4294901760
    %v403 = vsub.f32 %v202, %v402
    %v404 = vand.u32 %v403, 4294901760
    %v405 = vsub.f32 %v403, %v404
    %v406 = vand.u32 %v405, 4294901760
    %407 = vmatmul.f32.gmra.mxu0 %v406
    %v408 = vpop.f32.mrf.mxu0
    %v409 = vadd.f32 %v272, %v408
    %v410 = vand.u32 %v203, 4294901760
    %v411 = vsub.f32 %v203, %v410
    %v412 = vand.u32 %v411, 4294901760
    %v413 = vsub.f32 %v411, %v412
    %v414 = vand.u32 %v413, 4294901760
    %415 = vmatmul.f32.gmra.mxu0 %v414
    %v416 = vpop.f32.mrf.mxu0
    %v417 = vadd.f32 %v272, %v416
    %v418 = vand.u32 %v204, 4294901760
    %v419 = vsub.f32 %v204, %v418
    %v420 = vand.u32 %v419, 4294901760
    %v421 = vsub.f32 %v419, %v420
    %v422 = vand.u32 %v421, 4294901760
    %423 = vmatmul.f32.gmra.mxu0 %v422
    %v424 = vpop.f32.mrf.mxu0
    %v425 = vadd.f32 %v272, %v424
    %v426 = vand.u32 %v205, 4294901760
    %v427 = vsub.f32 %v205, %v426
    %v428 = vand.u32 %v427, 4294901760
    %v429 = vsub.f32 %v427, %v428
    %v430 = vand.u32 %v429, 4294901760
    %431 = vmatmul.f32.gmra.mxu0 %v430
    %v432 = vpop.f32.mrf.mxu0
    %v433 = vadd.f32 %v272, %v432
    %434 = vdwg.mxu0
    %v435 = vand.u32 %v269, 4294901760
    %v436 = vsub.f32 %v269, %v435
    %v437 = vand.u32 %v436, 4294901760
    %v438 = vsub.f32 %v436, %v437
    %v439 = vand.u32 %v438, 4294901760
    %440 = vmatpush.msra.mxu0 %v439
    %v441 = vand.u32 %v268, 4294901760
    %v442 = vsub.f32 %v268, %v441
    %v443 = vand.u32 %v442, 4294901760
    %v444 = vsub.f32 %v442, %v443
    %v445 = vand.u32 %v444, 4294901760
    %446 = vmatpush.msra.mxu0 %v445
    %v447 = vand.u32 %v267, 4294901760
    %v448 = vsub.f32 %v267, %v447
    %v449 = vand.u32 %v448, 4294901760
    %v450 = vsub.f32 %v448, %v449
    %v451 = vand.u32 %v450, 4294901760
    %452 = vmatpush.msra.mxu0 %v451
    %v453 = vand.u32 %v266, 4294901760
    %v454 = vsub.f32 %v266, %v453
    %v455 = vand.u32 %v454, 4294901760
    %v456 = vsub.f32 %v454, %v455
    %v457 = vand.u32 %v456, 4294901760
    %458 = vmatpush.msra.mxu0 %v457
    %v459 = vand.u32 %v265, 4294901760
    %v460 = vsub.f32 %v265, %v459
    %v461 = vand.u32 %v460, 4294901760
    %v462 = vsub.f32 %v460, %v461
    %v463 = vand.u32 %v462, 4294901760
    %464 = vmatpush.msra.mxu0 %v463
    %v465 = vand.u32 %v264, 4294901760
    %v466 = vsub.f32 %v264, %v465
    %v467 = vand.u32 %v466, 4294901760
    %v468 = vsub.f32 %v466, %v467
    %v469 = vand.u32 %v468, 4294901760
    %470 = vmatpush.msra.mxu0 %v469
    %v471 = vand.u32 %v263, 4294901760
    %v472 = vsub.f32 %v263, %v471
    %v473 = vand.u32 %v472, 4294901760
    %v474 = vsub.f32 %v472, %v473
    %v475 = vand.u32 %v474, 4294901760
    %476 = vmatpush.msra.mxu0 %v475
    %v477 = vand.u32 %v262, 4294901760
    %v478 = vsub.f32 %v262, %v477
    %v479 = vand.u32 %v478, 4294901760
    %v480 = vsub.f32 %v478, %v479
    %v481 = vand.u32 %v480, 4294901760
    %482 = vmatpush.msra.mxu0 %v481
    %v483 = vand.u32 %v261, 4294901760
    %v484 = vsub.f32 %v261, %v483
    %v485 = vand.u32 %v484, 4294901760
    %v486 = vsub.f32 %v484, %v485
    %v487 = vand.u32 %v486, 4294901760
    %488 = vmatpush.msra.mxu0 %v487
    %v489 = vand.u32 %v260, 4294901760
    %v490 = vsub.f32 %v260, %v489
    %v491 = vand.u32 %v490, 4294901760
    %v492 = vsub.f32 %v490, %v491
    %v493 = vand.u32 %v492, 4294901760
    %494 = vmatpush.msra.mxu0 %v493
    %v495 = vand.u32 %v259, 4294901760
    %v496 = vsub.f32 %v259, %v495
    %v497 = vand.u32 %v496, 4294901760
    %v498 = vsub.f32 %v496, %v497
    %v499 = vand.u32 %v498, 4294901760
    %500 = vmatpush.msra.mxu0 %v499
    %v501 = vand.u32 %v258, 4294901760
    %v502 = vsub.f32 %v258, %v501
    %v503 = vand.u32 %v502, 4294901760
    %v504 = vsub.f32 %v502, %v503
    %v505 = vand.u32 %v504, 4294901760
    %506 = vmatpush.msra.mxu0 %v505
    %v507 = vand.u32 %v257, 4294901760
    %v508 = vsub.f32 %v257, %v507
    %v509 = vand.u32 %v508, 4294901760
    %v510 = vsub.f32 %v508, %v509
    %v511 = vand.u32 %v510, 4294901760
    %512 = vmatpush.msra.mxu0 %v511
    %v513 = vand.u32 %v256, 4294901760
    %v514 = vsub.f32 %v256, %v513
    %v515 = vand.u32 %v514, 4294901760
    %v516 = vsub.f32 %v514, %v515
    %v517 = vand.u32 %v516, 4294901760
    %518 = vmatpush.msra.mxu0 %v517
    %v519 = vand.u32 %v255, 4294901760
    %v520 = vsub.f32 %v255, %v519
    %v521 = vand.u32 %v520, 4294901760
    %v522 = vsub.f32 %v520, %v521
    %v523 = vand.u32 %v522, 4294901760
    %524 = vmatpush.msra.mxu0 %v523
    %v525 = vand.u32 %v254, 4294901760
    %v526 = vsub.f32 %v254, %v525
    %v527 = vand.u32 %v526, 4294901760
    %v528 = vsub.f32 %v526, %v527
    %v529 = vand.u32 %v528, 4294901760
    %530 = vmatpush.msra.mxu0 %v529
    %v531 = vand.u32 %v190, 4294901760
    %532 = vmatmul.f32.gmra.mxu0 %v531
    %v533 = vpop.f32.mrf.mxu0
    %v534 = vadd.f32 %v313, %v533
    %v535 = vand.u32 %v191, 4294901760
    %536 = vmatmul.f32.gmra.mxu0 %v535
    %v537 = vpop.f32.mrf.mxu0
    %v538 = vadd.f32 %v321, %v537
    %v539 = vand.u32 %v192, 4294901760
    %540 = vmatmul.f32.gmra.mxu0 %v539
    %v541 = vpop.f32.mrf.mxu0
    %v542 = vadd.f32 %v329, %v541
    %v543 = vand.u32 %v193, 4294901760
    %544 = vmatmul.f32.gmra.mxu0 %v543
    %v545 = vpop.f32.mrf.mxu0
    %v546 = vadd.f32 %v337, %v545
    %v547 = vand.u32 %v194, 4294901760
    %548 = vmatmul.f32.gmra.mxu0 %v547
    %v549 = vpop.f32.mrf.mxu0
    %v550 = vadd.f32 %v345, %v549
    %v551 = vand.u32 %v195, 4294901760
    %552 = vmatmul.f32.gmra.mxu0 %v551
    %v553 = vpop.f32.mrf.mxu0
    %v554 = vadd.f32 %v353, %v553
    %v555 = vand.u32 %v196, 4294901760
    %556 = vmatmul.f32.gmra.mxu0 %v555
    %v557 = vpop.f32.mrf.mxu0
    %v558 = vadd.f32 %v361, %v557
    %v559 = vand.u32 %v197, 4294901760
    %560 = vmatmul.f32.gmra.mxu0 %v559
    %v561 = vpop.f32.mrf.mxu0
    %v562 = vadd.f32 %v369, %v561
    %v563 = vand.u32 %v198, 4294901760
    %564 = vmatmul.f32.gmra.mxu0 %v563
    %v565 = vpop.f32.mrf.mxu0
    %v566 = vadd.f32 %v377, %v565
    %v567 = vand.u32 %v199, 4294901760
    %568 = vmatmul.f32.gmra.mxu0 %v567
    %v569 = vpop.f32.mrf.mxu0
    %v570 = vadd.f32 %v385, %v569
    %v571 = vand.u32 %v200, 4294901760
    %572 = vmatmul.f32.gmra.mxu0 %v571
    %v573 = vpop.f32.mrf.mxu0
    %v574 = vadd.f32 %v393, %v573
    %v575 = vand.u32 %v201, 4294901760
    %576 = vmatmul.f32.gmra.mxu0 %v575
    %v577 = vpop.f32.mrf.mxu0
    %v578 = vadd.f32 %v401, %v577
    %v579 = vand.u32 %v202, 4294901760
    %580 = vmatmul.f32.gmra.mxu0 %v579
    %v581 = vpop.f32.mrf.mxu0
    %v582 = vadd.f32 %v409, %v581
    %v583 = vand.u32 %v203, 4294901760
    %584 = vmatmul.f32.gmra.mxu0 %v583
    %v585 = vpop.f32.mrf.mxu0
    %v586 = vadd.f32 %v417, %v585
    %v587 = vand.u32 %v204, 4294901760
    %588 = vmatmul.f32.gmra.mxu0 %v587
    %v589 = vpop.f32.mrf.mxu0
    %v590 = vadd.f32 %v425, %v589
    %v591 = vand.u32 %v205, 4294901760
    %592 = vmatmul.f32.gmra.mxu0 %v591
    %v593 = vpop.f32.mrf.mxu0
    %v594 = vadd.f32 %v433, %v593
    %595 = vdwg.mxu0
    %v596 = vand.u32 %v269, 4294901760
    %v597 = vsub.f32 %v269, %v596
    %598 = vmatpush.msra.mxu0 %v597
    %v599 = vand.u32 %v268, 4294901760
    %v600 = vsub.f32 %v268, %v599
    %601 = vmatpush.msra.mxu0 %v600
    %v602 = vand.u32 %v267, 4294901760
    %v603 = vsub.f32 %v267, %v602
    %604 = vmatpush.msra.mxu0 %v603
    %v605 = vand.u32 %v266, 4294901760
    %v606 = vsub.f32 %v266, %v605
    %607 = vmatpush.msra.mxu0 %v606
    %v608 = vand.u32 %v265, 4294901760
    %v609 = vsub.f32 %v265, %v608
    %610 = vmatpush.msra.mxu0 %v609
    %v611 = vand.u32 %v264, 4294901760
    %v612 = vsub.f32 %v264, %v611
    %613 = vmatpush.msra.mxu0 %v612
    %v614 = vand.u32 %v263, 4294901760
    %v615 = vsub.f32 %v263, %v614
    %616 = vmatpush.msra.mxu0 %v615
    %v617 = vand.u32 %v262, 4294901760
    %v618 = vsub.f32 %v262, %v617
    %619 = vmatpush.msra.mxu0 %v618
    %v620 = vand.u32 %v261, 4294901760
    %v621 = vsub.f32 %v261, %v620
    %622 = vmatpush.msra.mxu0 %v621
    %v623 = vand.u32 %v260, 4294901760
    %v624 = vsub.f32 %v260, %v623
    %625 = vmatpush.msra.mxu0 %v624
    %v626 = vand.u32 %v259, 4294901760
    %v627 = vsub.f32 %v259, %v626
    %628 = vmatpush.msra.mxu0 %v627
    %v629 = vand.u32 %v258, 4294901760
    %v630 = vsub.f32 %v258, %v629
    %631 = vmatpush.msra.mxu0 %v630
    %v632 = vand.u32 %v257, 4294901760
    %v633 = vsub.f32 %v257, %v632
    %634 = vmatpush.msra.mxu0 %v633
    %v635 = vand.u32 %v256, 4294901760
    %v636 = vsub.f32 %v256, %v635
    %637 = vmatpush.msra.mxu0 %v636
    %v638 = vand.u32 %v255, 4294901760
    %v639 = vsub.f32 %v255, %v638
    %640 = vmatpush.msra.mxu0 %v639
    %v641 = vand.u32 %v254, 4294901760
    %v642 = vsub.f32 %v254, %v641
    %643 = vmatpush.msra.mxu0 %v642
    %v644 = vand.u32 %v190, 4294901760
    %v645 = vsub.f32 %v190, %v644
    %646 = vmatmul.f32.gmra.mxu0 %v645
    %v647 = vpop.f32.mrf.mxu0
    %v648 = vadd.f32 %v534, %v647
    %v649 = vand.u32 %v191, 4294901760
    %v650 = vsub.f32 %v191, %v649
    %651 = vmatmul.f32.gmra.mxu0 %v650
    %v652 = vpop.f32.mrf.mxu0
    %v653 = vadd.f32 %v538, %v652
    %v654 = vand.u32 %v192, 4294901760
    %v655 = vsub.f32 %v192, %v654
    %656 = vmatmul.f32.gmra.mxu0 %v655
    %v657 = vpop.f32.mrf.mxu0
    %v658 = vadd.f32 %v542, %v657
    %v659 = vand.u32 %v193, 4294901760
    %v660 = vsub.f32 %v193, %v659
    %661 = vmatmul.f32.gmra.mxu0 %v660
    %v662 = vpop.f32.mrf.mxu0
    %v663 = vadd.f32 %v546, %v662
    %v664 = vand.u32 %v194, 4294901760
    %v665 = vsub.f32 %v194, %v664
    %666 = vmatmul.f32.gmra.mxu0 %v665
    %v667 = vpop.f32.mrf.mxu0
    %v668 = vadd.f32 %v550, %v667
    %v669 = vand.u32 %v195, 4294901760
    %v670 = vsub.f32 %v195, %v669
    %671 = vmatmul.f32.gmra.mxu0 %v670
    %v672 = vpop.f32.mrf.mxu0
    %v673 = vadd.f32 %v554, %v672
    %v674 = vand.u32 %v196, 4294901760
    %v675 = vsub.f32 %v196, %v674
    %676 = vmatmul.f32.gmra.mxu0 %v675
    %v677 = vpop.f32.mrf.mxu0
    %v678 = vadd.f32 %v558, %v677
    %v679 = vand.u32 %v197, 4294901760
    %v680 = vsub.f32 %v197, %v679
    %681 = vmatmul.f32.gmra.mxu0 %v680
    %v682 = vpop.f32.mrf.mxu0
    %v683 = vadd.f32 %v562, %v682
    %v684 = vand.u32 %v198, 4294901760
    %v685 = vsub.f32 %v198, %v684
    %686 = vmatmul.f32.gmra.mxu0 %v685
    %v687 = vpop.f32.mrf.mxu0
    %v688 = vadd.f32 %v566, %v687
    %v689 = vand.u32 %v199, 4294901760
    %v690 = vsub.f32 %v199, %v689
    %691 = vmatmul.f32.gmra.mxu0 %v690
    %v692 = vpop.f32.mrf.mxu0
    %v693 = vadd.f32 %v570, %v692
    %v694 = vand.u32 %v200, 4294901760
    %v695 = vsub.f32 %v200, %v694
    %696 = vmatmul.f32.gmra.mxu0 %v695
    %v697 = vpop.f32.mrf.mxu0
    %v698 = vadd.f32 %v574, %v697
    %v699 = vand.u32 %v201, 4294901760
    %v700 = vsub.f32 %v201, %v699
    %701 = vmatmul.f32.gmra.mxu0 %v700
    %v702 = vpop.f32.mrf.mxu0
    %v703 = vadd.f32 %v578, %v702
    %v704 = vand.u32 %v202, 4294901760
    %v705 = vsub.f32 %v202, %v704
    %706 = vmatmul.f32.gmra.mxu0 %v705
    %v707 = vpop.f32.mrf.mxu0
    %v708 = vadd.f32 %v582, %v707
    %v709 = vand.u32 %v203, 4294901760
    %v710 = vsub.f32 %v203, %v709
    %711 = vmatmul.f32.gmra.mxu0 %v710
    %v712 = vpop.f32.mrf.mxu0
    %v713 = vadd.f32 %v586, %v712
    %v714 = vand.u32 %v204, 4294901760
    %v715 = vsub.f32 %v204, %v714
    %716 = vmatmul.f32.gmra.mxu0 %v715
    %v717 = vpop.f32.mrf.mxu0
    %v718 = vadd.f32 %v590, %v717
    %v719 = vand.u32 %v205, 4294901760
    %v720 = vsub.f32 %v205, %v719
    %721 = vmatmul.f32.gmra.mxu0 %v720
    %v722 = vpop.f32.mrf.mxu0
    %v723 = vadd.f32 %v594, %v722
    %724 = vdwg.mxu0
    %v725 = vand.u32 %v269, 4294901760
    %726 = vmatpush.msra.mxu0 %v725
    %v727 = vand.u32 %v268, 4294901760
    %728 = vmatpush.msra.mxu0 %v727
    %v729 = vand.u32 %v267, 4294901760
    %730 = vmatpush.msra.mxu0 %v729
    %v731 = vand.u32 %v266, 4294901760
    %732 = vmatpush.msra.mxu0 %v731
    %v733 = vand.u32 %v265, 4294901760
    %734 = vmatpush.msra.mxu0 %v733
    %v735 = vand.u32 %v264, 4294901760
    %736 = vmatpush.msra.mxu0 %v735
    %v737 = vand.u32 %v263, 4294901760
    %738 = vmatpush.msra.mxu0 %v737
    %v739 = vand.u32 %v262, 4294901760
    %740 = vmatpush.msra.mxu0 %v739
    %v741 = vand.u32 %v261, 4294901760
    %742 = vmatpush.msra.mxu0 %v741
    %v743 = vand.u32 %v260, 4294901760
    %744 = vmatpush.msra.mxu0 %v743
    %v745 = vand.u32 %v259, 4294901760
    %746 = vmatpush.msra.mxu0 %v745
    %v747 = vand.u32 %v258, 4294901760
    %748 = vmatpush.msra.mxu0 %v747
    %v749 = vand.u32 %v257, 4294901760
    %750 = vmatpush.msra.mxu0 %v749
    %v751 = vand.u32 %v256, 4294901760
    %752 = vmatpush.msra.mxu0 %v751
    %v753 = vand.u32 %v255, 4294901760
    %754 = vmatpush.msra.mxu0 %v753
    %v755 = vand.u32 %v254, 4294901760
    %756 = vmatpush.msra.mxu0 %v755
    %v757 = vand.u32 %v190, 4294901760
    %v758 = vsub.f32 %v190, %v757
    %v759 = vand.u32 %v758, 4294901760
    %760 = vmatmul.f32.gmra.mxu0 %v759
    %v761 = vpop.f32.mrf.mxu0
    %v762 = vadd.f32 %v648, %v761
    %v763 = vand.u32 %v191, 4294901760
    %v764 = vsub.f32 %v191, %v763
    %v765 = vand.u32 %v764, 4294901760
    %766 = vmatmul.f32.gmra.mxu0 %v765
    %v767 = vpop.f32.mrf.mxu0
    %v768 = vadd.f32 %v653, %v767
    %v769 = vand.u32 %v192, 4294901760
    %v770 = vsub.f32 %v192, %v769
    %v771 = vand.u32 %v770, 4294901760
    %772 = vmatmul.f32.gmra.mxu0 %v771
    %v773 = vpop.f32.mrf.mxu0
    %v774 = vadd.f32 %v658, %v773
    %v775 = vand.u32 %v193, 4294901760
    %v776 = vsub.f32 %v193, %v775
    %v777 = vand.u32 %v776, 4294901760
    %778 = vmatmul.f32.gmra.mxu0 %v777
    %v779 = vpop.f32.mrf.mxu0
    %v780 = vadd.f32 %v663, %v779
    %v781 = vand.u32 %v194, 4294901760
    %v782 = vsub.f32 %v194, %v781
    %v783 = vand.u32 %v782, 4294901760
    %784 = vmatmul.f32.gmra.mxu0 %v783
    %v785 = vpop.f32.mrf.mxu0
    %v786 = vadd.f32 %v668, %v785
    %v787 = vand.u32 %v195, 4294901760
    %v788 = vsub.f32 %v195, %v787
    %v789 = vand.u32 %v788, 4294901760
    %790 = vmatmul.f32.gmra.mxu0 %v789
    %v791 = vpop.f32.mrf.mxu0
    %v792 = vadd.f32 %v673, %v791
    %v793 = vand.u32 %v196, 4294901760
    %v794 = vsub.f32 %v196, %v793
    %v795 = vand.u32 %v794, 4294901760
    %796 = vmatmul.f32.gmra.mxu0 %v795
    %v797 = vpop.f32.mrf.mxu0
    %v798 = vadd.f32 %v678, %v797
    %v799 = vand.u32 %v197, 4294901760
    %v800 = vsub.f32 %v197, %v799
    %v801 = vand.u32 %v800, 4294901760
    %802 = vmatmul.f32.gmra.mxu0 %v801
    %v803 = vpop.f32.mrf.mxu0
    %v804 = vadd.f32 %v683, %v803
    %v805 = vand.u32 %v198, 4294901760
    %v806 = vsub.f32 %v198, %v805
    %v807 = vand.u32 %v806, 4294901760
    %808 = vmatmul.f32.gmra.mxu0 %v807
    %v809 = vpop.f32.mrf.mxu0
    %v810 = vadd.f32 %v688, %v809
    %v811 = vand.u32 %v199, 4294901760
    %v812 = vsub.f32 %v199, %v811
    %v813 = vand.u32 %v812, 4294901760
    %814 = vmatmul.f32.gmra.mxu0 %v813
    %v815 = vpop.f32.mrf.mxu0
    %v816 = vadd.f32 %v693, %v815
    %v817 = vand.u32 %v200, 4294901760
    %v818 = vsub.f32 %v200, %v817
    %v819 = vand.u32 %v818, 4294901760
    %820 = vmatmul.f32.gmra.mxu0 %v819
    %v821 = vpop.f32.mrf.mxu0
    %v822 = vadd.f32 %v698, %v821
    %v823 = vand.u32 %v201, 4294901760
    %v824 = vsub.f32 %v201, %v823
    %v825 = vand.u32 %v824, 4294901760
    %826 = vmatmul.f32.gmra.mxu0 %v825
    %v827 = vpop.f32.mrf.mxu0
    %v828 = vadd.f32 %v703, %v827
    %v829 = vand.u32 %v202, 4294901760
    %v830 = vsub.f32 %v202, %v829
    %v831 = vand.u32 %v830, 4294901760
    %832 = vmatmul.f32.gmra.mxu0 %v831
    %v833 = vpop.f32.mrf.mxu0
    %v834 = vadd.f32 %v708, %v833
    %v835 = vand.u32 %v203, 4294901760
    %v836 = vsub.f32 %v203, %v835
    %v837 = vand.u32 %v836, 4294901760
    %838 = vmatmul.f32.gmra.mxu0 %v837
    %v839 = vpop.f32.mrf.mxu0
    %v840 = vadd.f32 %v713, %v839
    %v841 = vand.u32 %v204, 4294901760
    %v842 = vsub.f32 %v204, %v841
    %v843 = vand.u32 %v842, 4294901760
    %844 = vmatmul.f32.gmra.mxu0 %v843
    %v845 = vpop.f32.mrf.mxu0
    %v846 = vadd.f32 %v718, %v845
    %v847 = vand.u32 %v205, 4294901760
    %v848 = vsub.f32 %v205, %v847
    %v849 = vand.u32 %v848, 4294901760
    %850 = vmatmul.f32.gmra.mxu0 %v849
    %v851 = vpop.f32.mrf.mxu0
    %v852 = vadd.f32 %v723, %v851
    %853 = vdwg.mxu0
    %v854 = vand.u32 %v269, 4294901760
    %v855 = vsub.f32 %v269, %v854
    %v856 = vand.u32 %v855, 4294901760
    %857 = vmatpush.msra.mxu0 %v856
    %v858 = vand.u32 %v268, 4294901760
    %v859 = vsub.f32 %v268, %v858
    %v860 = vand.u32 %v859, 4294901760
    %861 = vmatpush.msra.mxu0 %v860
    %v862 = vand.u32 %v267, 4294901760
    %v863 = vsub.f32 %v267, %v862
    %v864 = vand.u32 %v863, 4294901760
    %865 = vmatpush.msra.mxu0 %v864
    %v866 = vand.u32 %v266, 4294901760
    %v867 = vsub.f32 %v266, %v866
    %v868 = vand.u32 %v867, 4294901760
    %869 = vmatpush.msra.mxu0 %v868
    %v870 = vand.u32 %v265, 4294901760
    %v871 = vsub.f32 %v265, %v870
    %v872 = vand.u32 %v871, 4294901760
    %873 = vmatpush.msra.mxu0 %v872
    %v874 = vand.u32 %v264, 4294901760
    %v875 = vsub.f32 %v264, %v874
    %v876 = vand.u32 %v875, 4294901760
    %877 = vmatpush.msra.mxu0 %v876
    %v878 = vand.u32 %v263, 4294901760
    %v879 = vsub.f32 %v263, %v878
    %v880 = vand.u32 %v879, 4294901760
    %881 = vmatpush.msra.mxu0 %v880
    %v882 = vand.u32 %v262, 4294901760
    %v883 = vsub.f32 %v262, %v882
    %v884 = vand.u32 %v883, 4294901760
    %885 = vmatpush.msra.mxu0 %v884
    %v886 = vand.u32 %v261, 4294901760
    %v887 = vsub.f32 %v261, %v886
    %v888 = vand.u32 %v887, 4294901760
    %889 = vmatpush.msra.mxu0 %v888
    %v890 = vand.u32 %v260, 4294901760
    %v891 = vsub.f32 %v260, %v890
    %v892 = vand.u32 %v891, 4294901760
    %893 = vmatpush.msra.mxu0 %v892
    %v894 = vand.u32 %v259, 4294901760
    %v895 = vsub.f32 %v259, %v894
    %v896 = vand.u32 %v895, 4294901760
    %897 = vmatpush.msra.mxu0 %v896
    %v898 = vand.u32 %v258, 4294901760
    %v899 = vsub.f32 %v258, %v898
    %v900 = vand.u32 %v899, 4294901760
    %901 = vmatpush.msra.mxu0 %v900
    %v902 = vand.u32 %v257, 4294901760
    %v903 = vsub.f32 %v257, %v902
    %v904 = vand.u32 %v903, 4294901760
    %905 = vmatpush.msra.mxu0 %v904
    %v906 = vand.u32 %v256, 4294901760
    %v907 = vsub.f32 %v256, %v906
    %v908 = vand.u32 %v907, 4294901760
    %909 = vmatpush.msra.mxu0 %v908
    %v910 = vand.u32 %v255, 4294901760
    %v911 = vsub.f32 %v255, %v910
    %v912 = vand.u32 %v911, 4294901760
    %913 = vmatpush.msra.mxu0 %v912
    %v914 = vand.u32 %v254, 4294901760
    %v915 = vsub.f32 %v254, %v914
    %v916 = vand.u32 %v915, 4294901760
    %917 = vmatpush.msra.mxu0 %v916
    %v918 = vand.u32 %v190, 4294901760
    %919 = vmatmul.f32.gmra.mxu0 %v918
    %v920 = vpop.f32.mrf.mxu0
    %v921 = vadd.f32 %v762, %v920
    %v922 = vand.u32 %v191, 4294901760
    %923 = vmatmul.f32.gmra.mxu0 %v922
    %v924 = vpop.f32.mrf.mxu0
    %v925 = vadd.f32 %v768, %v924
    %v926 = vand.u32 %v192, 4294901760
    %927 = vmatmul.f32.gmra.mxu0 %v926
    %v928 = vpop.f32.mrf.mxu0
    %v929 = vadd.f32 %v774, %v928
    %v930 = vand.u32 %v193, 4294901760
    %931 = vmatmul.f32.gmra.mxu0 %v930
    %v932 = vpop.f32.mrf.mxu0
    %v933 = vadd.f32 %v780, %v932
    %v934 = vand.u32 %v194, 4294901760
    %935 = vmatmul.f32.gmra.mxu0 %v934
    %v936 = vpop.f32.mrf.mxu0
    %v937 = vadd.f32 %v786, %v936
    %v938 = vand.u32 %v195, 4294901760
    %939 = vmatmul.f32.gmra.mxu0 %v938
    %v940 = vpop.f32.mrf.mxu0
    %v941 = vadd.f32 %v792, %v940
    %v942 = vand.u32 %v196, 4294901760
    %943 = vmatmul.f32.gmra.mxu0 %v942
    %v944 = vpop.f32.mrf.mxu0
    %v945 = vadd.f32 %v798, %v944
    %v946 = vand.u32 %v197, 4294901760
    %947 = vmatmul.f32.gmra.mxu0 %v946
    %v948 = vpop.f32.mrf.mxu0
    %v949 = vadd.f32 %v804, %v948
    %v950 = vand.u32 %v198, 4294901760
    %951 = vmatmul.f32.gmra.mxu0 %v950
    %v952 = vpop.f32.mrf.mxu0
    %v953 = vadd.f32 %v810, %v952
    %v954 = vand.u32 %v199, 4294901760
    %955 = vmatmul.f32.gmra.mxu0 %v954
    %v956 = vpop.f32.mrf.mxu0
    %v957 = vadd.f32 %v816, %v956
    %v958 = vand.u32 %v200, 4294901760
    %959 = vmatmul.f32.gmra.mxu0 %v958
    %v960 = vpop.f32.mrf.mxu0
    %v961 = vadd.f32 %v822, %v960
    %v962 = vand.u32 %v201, 4294901760
    %963 = vmatmul.f32.gmra.mxu0 %v962
    %v964 = vpop.f32.mrf.mxu0
    %v965 = vadd.f32 %v828, %v964
    %v966 = vand.u32 %v202, 4294901760
    %967 = vmatmul.f32.gmra.mxu0 %v966
    %v968 = vpop.f32.mrf.mxu0
    %v969 = vadd.f32 %v834, %v968
    %v970 = vand.u32 %v203, 4294901760
    %971 = vmatmul.f32.gmra.mxu0 %v970
    %v972 = vpop.f32.mrf.mxu0
    %v973 = vadd.f32 %v840, %v972
    %v974 = vand.u32 %v204, 4294901760
    %975 = vmatmul.f32.gmra.mxu0 %v974
    %v976 = vpop.f32.mrf.mxu0
    %v977 = vadd.f32 %v846, %v976
    %v978 = vand.u32 %v205, 4294901760
    %979 = vmatmul.f32.gmra.mxu0 %v978
    %v980 = vpop.f32.mrf.mxu0
    %v981 = vadd.f32 %v852, %v980
    %982 = vdwg.mxu0
    %v983 = vand.u32 %v269, 4294901760
    %984 = vmatpush.msra.mxu0 %v983
    %v985 = vand.u32 %v268, 4294901760
    %986 = vmatpush.msra.mxu0 %v985
    %v987 = vand.u32 %v267, 4294901760
    %988 = vmatpush.msra.mxu0 %v987
    %v989 = vand.u32 %v266, 4294901760
    %990 = vmatpush.msra.mxu0 %v989
    %v991 = vand.u32 %v265, 4294901760
    %992 = vmatpush.msra.mxu0 %v991
    %v993 = vand.u32 %v264, 4294901760
    %994 = vmatpush.msra.mxu0 %v993
    %v995 = vand.u32 %v263, 4294901760
    %996 = vmatpush.msra.mxu0 %v995
    %v997 = vand.u32 %v262, 4294901760
    %998 = vmatpush.msra.mxu0 %v997
    %v999 = vand.u32 %v261, 4294901760
    %1000 = vmatpush.msra.mxu0 %v999
    %v1001 = vand.u32 %v260, 4294901760
    %1002 = vmatpush.msra.mxu0 %v1001
    %v1003 = vand.u32 %v259, 4294901760
    %1004 = vmatpush.msra.mxu0 %v1003
    %v1005 = vand.u32 %v258, 4294901760
    %1006 = vmatpush.msra.mxu0 %v1005
    %v1007 = vand.u32 %v257, 4294901760
    %1008 = vmatpush.msra.mxu0 %v1007
    %v1009 = vand.u32 %v256, 4294901760
    %1010 = vmatpush.msra.mxu0 %v1009
    %v1011 = vand.u32 %v255, 4294901760
    %1012 = vmatpush.msra.mxu0 %v1011
    %v1013 = vand.u32 %v254, 4294901760
    %1014 = vmatpush.msra.mxu0 %v1013
    %v1015 = vand.u32 %v190, 4294901760
    %1016 = vmatmul.f32.gmra.mxu0 %v1015
    %v1017 = vpop.f32.mrf.mxu0
    %v1018 = vadd.f32 %v921, %v1017
    %v1019 = vand.u32 %v191, 4294901760
    %1020 = vmatmul.f32.gmra.mxu0 %v1019
    %v1021 = vpop.f32.mrf.mxu0
    %v1022 = vadd.f32 %v925, %v1021
    %v1023 = vand.u32 %v192, 4294901760
    %1024 = vmatmul.f32.gmra.mxu0 %v1023
    %v1025 = vpop.f32.mrf.mxu0
    %v1026 = vadd.f32 %v929, %v1025
    %v1027 = vand.u32 %v193, 4294901760
    %1028 = vmatmul.f32.gmra.mxu0 %v1027
    %v1029 = vpop.f32.mrf.mxu0
    %v1030 = vadd.f32 %v933, %v1029
    %v1031 = vand.u32 %v194, 4294901760
    %1032 = vmatmul.f32.gmra.mxu0 %v1031
    %v1033 = vpop.f32.mrf.mxu0
    %v1034 = vadd.f32 %v937, %v1033
    %v1035 = vand.u32 %v195, 4294901760
    %1036 = vmatmul.f32.gmra.mxu0 %v1035
    %v1037 = vpop.f32.mrf.mxu0
    %v1038 = vadd.f32 %v941, %v1037
    %v1039 = vand.u32 %v196, 4294901760
    %1040 = vmatmul.f32.gmra.mxu0 %v1039
    %v1041 = vpop.f32.mrf.mxu0
    %v1042 = vadd.f32 %v945, %v1041
    %v1043 = vand.u32 %v197, 4294901760
    %1044 = vmatmul.f32.gmra.mxu0 %v1043
    %v1045 = vpop.f32.mrf.mxu0
    %v1046 = vadd.f32 %v949, %v1045
    %v1047 = vand.u32 %v198, 4294901760
    %1048 = vmatmul.f32.gmra.mxu0 %v1047
    %v1049 = vpop.f32.mrf.mxu0
    %v1050 = vadd.f32 %v953, %v1049
    %v1051 = vand.u32 %v199, 4294901760
    %1052 = vmatmul.f32.gmra.mxu0 %v1051
    %v1053 = vpop.f32.mrf.mxu0
    %v1054 = vadd.f32 %v957, %v1053
    %v1055 = vand.u32 %v200, 4294901760
    %1056 = vmatmul.f32.gmra.mxu0 %v1055
    %v1057 = vpop.f32.mrf.mxu0
    %v1058 = vadd.f32 %v961, %v1057
    %v1059 = vand.u32 %v201, 4294901760
    %1060 = vmatmul.f32.gmra.mxu0 %v1059
    %v1061 = vpop.f32.mrf.mxu0
    %v1062 = vadd.f32 %v965, %v1061
    %v1063 = vand.u32 %v202, 4294901760
    %1064 = vmatmul.f32.gmra.mxu0 %v1063
    %v1065 = vpop.f32.mrf.mxu0
    %v1066 = vadd.f32 %v969, %v1065
    %v1067 = vand.u32 %v203, 4294901760
    %1068 = vmatmul.f32.gmra.mxu0 %v1067
    %v1069 = vpop.f32.mrf.mxu0
    %v1070 = vadd.f32 %v973, %v1069
    %v1071 = vand.u32 %v204, 4294901760
    %1072 = vmatmul.f32.gmra.mxu0 %v1071
    %v1073 = vpop.f32.mrf.mxu0
    %v1074 = vadd.f32 %v977, %v1073
    %v1075 = vand.u32 %v205, 4294901760
    %1076 = vmatmul.f32.gmra.mxu0 %v1075
    %v1077 = vpop.f32.mrf.mxu0
    %v1078 = vadd.f32 %v981, %v1077
    %1079 = vdwg.mxu0
    %v1080 = vmax.f32 %v1018, 0.0
    %v1081 = vmax.f32 %v1022, 0.0
    %v1082 = vmax.f32 %v1026, 0.0
    %v1083 = vmax.f32 %v1030, 0.0
    %v1084 = vmax.f32 %v1034, 0.0
    %v1085 = vmax.f32 %v1038, 0.0
    %v1086 = vmax.f32 %v1042, 0.0
    %v1087 = vmax.f32 %v1046, 0.0
    %v1088 = vmax.f32 %v1050, 0.0
    %v1089 = vmax.f32 %v1054, 0.0
    %v1090 = vmax.f32 %v1058, 0.0
    %v1091 = vmax.f32 %v1062, 0.0
    %v1092 = vmax.f32 %v1066, 0.0
    %v1093 = vmax.f32 %v1070, 0.0
    %v1094 = vmax.f32 %v1074, 0.0
    %v1095 = vmax.f32 %v1078, 0.0
    %v1096 = vand.u32 %v1095, 4294901760
    %1097 = vmatpush.msra.mxu0 %v1096
    %v1098 = vand.u32 %v1094, 4294901760
    %1099 = vmatpush.msra.mxu0 %v1098
    %v1100 = vand.u32 %v1093, 4294901760
    %1101 = vmatpush.msra.mxu0 %v1100
    %v1102 = vand.u32 %v1092, 4294901760
    %1103 = vmatpush.msra.mxu0 %v1102
    %v1104 = vand.u32 %v1091, 4294901760
    %1105 = vmatpush.msra.mxu0 %v1104
    %v1106 = vand.u32 %v1090, 4294901760
    %1107 = vmatpush.msra.mxu0 %v1106
    %v1108 = vand.u32 %v1089, 4294901760
    %1109 = vmatpush.msra.mxu0 %v1108
    %v1110 = vand.u32 %v1088, 4294901760
    %1111 = vmatpush.msra.mxu0 %v1110
    %v1112 = vand.u32 %v1087, 4294901760
    %1113 = vmatpush.msra.mxu0 %v1112
    %v1114 = vand.u32 %v1086, 4294901760
    %1115 = vmatpush.msra.mxu0 %v1114
    %v1116 = vand.u32 %v1085, 4294901760
    %1117 = vmatpush.msra.mxu0 %v1116
    %v1118 = vand.u32 %v1084, 4294901760
    %1119 = vmatpush.msra.mxu0 %v1118
    %v1120 = vand.u32 %v1083, 4294901760
    %1121 = vmatpush.msra.mxu0 %v1120
    %v1122 = vand.u32 %v1082, 4294901760
    %1123 = vmatpush.msra.mxu0 %v1122
    %v1124 = vand.u32 %v1081, 4294901760
    %1125 = vmatpush.msra.mxu0 %v1124
    %v1126 = vand.u32 %v1080, 4294901760
    %1127 = vmatpush.msra.mxu0 %v1126
    %v1128 = vsub.f32 %v222, %v222
    %v1129 = vand.u32 %v1128, 4294901760
    %v1130 = vsub.f32 %v1128, %v1129
    %v1131 = vand.u32 %v1130, 4294901760
    %1132 = vmatmul.f32.gmra.mxu0 %v1131
    %v1133 = vpop.f32.mrf.mxu0
    %v1134 = vadd.f32 0.0, %v1133
    %v1135 = vsub.f32 %v223, %v223
    %v1136 = vand.u32 %v1135, 4294901760
    %v1137 = vsub.f32 %v1135, %v1136
    %v1138 = vand.u32 %v1137, 4294901760
    %1139 = vmatmul.f32.gmra.mxu0 %v1138
    %v1140 = vpop.f32.mrf.mxu0
    %v1141 = vadd.f32 0.0, %v1140
    %v1142 = vsub.f32 %v224, %v224
    %v1143 = vand.u32 %v1142, 4294901760
    %v1144 = vsub.f32 %v1142, %v1143
    %v1145 = vand.u32 %v1144, 4294901760
    %1146 = vmatmul.f32.gmra.mxu0 %v1145
    %v1147 = vpop.f32.mrf.mxu0
    %v1148 = vadd.f32 0.0, %v1147
    %v1149 = vsub.f32 %v225, %v225
    %v1150 = vand.u32 %v1149, 4294901760
    %v1151 = vsub.f32 %v1149, %v1150
    %v1152 = vand.u32 %v1151, 4294901760
    %1153 = vmatmul.f32.gmra.mxu0 %v1152
    %v1154 = vpop.f32.mrf.mxu0
    %v1155 = vadd.f32 0.0, %v1154
    %v1156 = vsub.f32 %v226, %v226
    %v1157 = vand.u32 %v1156, 4294901760
    %v1158 = vsub.f32 %v1156, %v1157
    %v1159 = vand.u32 %v1158, 4294901760
    %1160 = vmatmul.f32.gmra.mxu0 %v1159
    %v1161 = vpop.f32.mrf.mxu0
    %v1162 = vadd.f32 0.0, %v1161
    %v1163 = vsub.f32 %v227, %v227
    %v1164 = vand.u32 %v1163, 4294901760
    %v1165 = vsub.f32 %v1163, %v1164
    %v1166 = vand.u32 %v1165, 4294901760
    %1167 = vmatmul.f32.gmra.mxu0 %v1166
    %v1168 = vpop.f32.mrf.mxu0
    %v1169 = vadd.f32 0.0, %v1168
    %v1170 = vsub.f32 %v228, %v228
    %v1171 = vand.u32 %v1170, 4294901760
    %v1172 = vsub.f32 %v1170, %v1171
    %v1173 = vand.u32 %v1172, 4294901760
    %1174 = vmatmul.f32.gmra.mxu0 %v1173
    %v1175 = vpop.f32.mrf.mxu0
    %v1176 = vadd.f32 0.0, %v1175
    %v1177 = vsub.f32 %v229, %v229
    %v1178 = vand.u32 %v1177, 4294901760
    %v1179 = vsub.f32 %v1177, %v1178
    %v1180 = vand.u32 %v1179, 4294901760
    %1181 = vmatmul.f32.gmra.mxu0 %v1180
    %v1182 = vpop.f32.mrf.mxu0
    %v1183 = vadd.f32 0.0, %v1182
    %v1184 = vsub.f32 %v230, %v230
    %v1185 = vand.u32 %v1184, 4294901760
    %v1186 = vsub.f32 %v1184, %v1185
    %v1187 = vand.u32 %v1186, 4294901760
    %1188 = vmatmul.f32.gmra.mxu0 %v1187
    %v1189 = vpop.f32.mrf.mxu0
    %v1190 = vadd.f32 0.0, %v1189
    %v1191 = vsub.f32 %v231, %v231
    %v1192 = vand.u32 %v1191, 4294901760
    %v1193 = vsub.f32 %v1191, %v1192
    %v1194 = vand.u32 %v1193, 4294901760
    %1195 = vmatmul.f32.gmra.mxu0 %v1194
    %v1196 = vpop.f32.mrf.mxu0
    %v1197 = vadd.f32 0.0, %v1196
    %v1198 = vsub.f32 %v232, %v232
    %v1199 = vand.u32 %v1198, 4294901760
    %v1200 = vsub.f32 %v1198, %v1199
    %v1201 = vand.u32 %v1200, 4294901760
    %1202 = vmatmul.f32.gmra.mxu0 %v1201
    %v1203 = vpop.f32.mrf.mxu0
    %v1204 = vadd.f32 0.0, %v1203
    %v1205 = vsub.f32 %v233, %v233
    %v1206 = vand.u32 %v1205, 4294901760
    %v1207 = vsub.f32 %v1205, %v1206
    %v1208 = vand.u32 %v1207, 4294901760
    %1209 = vmatmul.f32.gmra.mxu0 %v1208
    %v1210 = vpop.f32.mrf.mxu0
    %v1211 = vadd.f32 0.0, %v1210
    %v1212 = vsub.f32 %v234, %v234
    %v1213 = vand.u32 %v1212, 4294901760
    %v1214 = vsub.f32 %v1212, %v1213
    %v1215 = vand.u32 %v1214, 4294901760
    %1216 = vmatmul.f32.gmra.mxu0 %v1215
    %v1217 = vpop.f32.mrf.mxu0
    %v1218 = vadd.f32 0.0, %v1217
    %v1219 = vsub.f32 %v235, %v235
    %v1220 = vand.u32 %v1219, 4294901760
    %v1221 = vsub.f32 %v1219, %v1220
    %v1222 = vand.u32 %v1221, 4294901760
    %1223 = vmatmul.f32.gmra.mxu0 %v1222
    %v1224 = vpop.f32.mrf.mxu0
    %v1225 = vadd.f32 0.0, %v1224
    %v1226 = vsub.f32 %v236, %v236
    %v1227 = vand.u32 %v1226, 4294901760
    %v1228 = vsub.f32 %v1226, %v1227
    %v1229 = vand.u32 %v1228, 4294901760
    %1230 = vmatmul.f32.gmra.mxu0 %v1229
    %v1231 = vpop.f32.mrf.mxu0
    %v1232 = vadd.f32 0.0, %v1231
    %v1233 = vsub.f32 %v237, %v237
    %v1234 = vand.u32 %v1233, 4294901760
    %v1235 = vsub.f32 %v1233, %v1234
    %v1236 = vand.u32 %v1235, 4294901760
    %1237 = vmatmul.f32.gmra.mxu0 %v1236
    %v1238 = vpop.f32.mrf.mxu0
    %v1239 = vadd.f32 0.0, %v1238
    %1240 = vdwg.mxu0
    %v1241 = vand.u32 %v1095, 4294901760
    %v1242 = vsub.f32 %v1095, %v1241
    %v1243 = vand.u32 %v1242, 4294901760
    %v1244 = vsub.f32 %v1242, %v1243
    %v1245 = vand.u32 %v1244, 4294901760
    %1246 = vmatpush.msra.mxu0 %v1245
    %v1247 = vand.u32 %v1094, 4294901760
    %v1248 = vsub.f32 %v1094, %v1247
    %v1249 = vand.u32 %v1248, 4294901760
    %v1250 = vsub.f32 %v1248, %v1249
    %v1251 = vand.u32 %v1250, 4294901760
    %1252 = vmatpush.msra.mxu0 %v1251
    %v1253 = vand.u32 %v1093, 4294901760
    %v1254 = vsub.f32 %v1093, %v1253
    %v1255 = vand.u32 %v1254, 4294901760
    %v1256 = vsub.f32 %v1254, %v1255
    %v1257 = vand.u32 %v1256, 4294901760
    %1258 = vmatpush.msra.mxu0 %v1257
    %v1259 = vand.u32 %v1092, 4294901760
    %v1260 = vsub.f32 %v1092, %v1259
    %v1261 = vand.u32 %v1260, 4294901760
    %v1262 = vsub.f32 %v1260, %v1261
    %v1263 = vand.u32 %v1262, 4294901760
    %1264 = vmatpush.msra.mxu0 %v1263
    %v1265 = vand.u32 %v1091, 4294901760
    %v1266 = vsub.f32 %v1091, %v1265
    %v1267 = vand.u32 %v1266, 4294901760
    %v1268 = vsub.f32 %v1266, %v1267
    %v1269 = vand.u32 %v1268, 4294901760
    %1270 = vmatpush.msra.mxu0 %v1269
    %v1271 = vand.u32 %v1090, 4294901760
    %v1272 = vsub.f32 %v1090, %v1271
    %v1273 = vand.u32 %v1272, 4294901760
    %v1274 = vsub.f32 %v1272, %v1273
    %v1275 = vand.u32 %v1274, 4294901760
    %1276 = vmatpush.msra.mxu0 %v1275
    %v1277 = vand.u32 %v1089, 4294901760
    %v1278 = vsub.f32 %v1089, %v1277
    %v1279 = vand.u32 %v1278, 4294901760
    %v1280 = vsub.f32 %v1278, %v1279
    %v1281 = vand.u32 %v1280, 4294901760
    %1282 = vmatpush.msra.mxu0 %v1281
    %v1283 = vand.u32 %v1088, 4294901760
    %v1284 = vsub.f32 %v1088, %v1283
    %v1285 = vand.u32 %v1284, 4294901760
    %v1286 = vsub.f32 %v1284, %v1285
    %v1287 = vand.u32 %v1286, 4294901760
    %1288 = vmatpush.msra.mxu0 %v1287
    %v1289 = vand.u32 %v1087, 4294901760
    %v1290 = vsub.f32 %v1087, %v1289
    %v1291 = vand.u32 %v1290, 4294901760
    %v1292 = vsub.f32 %v1290, %v1291
    %v1293 = vand.u32 %v1292, 4294901760
    %1294 = vmatpush.msra.mxu0 %v1293
    %v1295 = vand.u32 %v1086, 4294901760
    %v1296 = vsub.f32 %v1086, %v1295
    %v1297 = vand.u32 %v1296, 4294901760
    %v1298 = vsub.f32 %v1296, %v1297
    %v1299 = vand.u32 %v1298, 4294901760
    %1300 = vmatpush.msra.mxu0 %v1299
    %v1301 = vand.u32 %v1085, 4294901760
    %v1302 = vsub.f32 %v1085, %v1301
    %v1303 = vand.u32 %v1302, 4294901760
    %v1304 = vsub.f32 %v1302, %v1303
    %v1305 = vand.u32 %v1304, 4294901760
    %1306 = vmatpush.msra.mxu0 %v1305
    %v1307 = vand.u32 %v1084, 4294901760
    %v1308 = vsub.f32 %v1084, %v1307
    %v1309 = vand.u32 %v1308, 4294901760
    %v1310 = vsub.f32 %v1308, %v1309
    %v1311 = vand.u32 %v1310, 4294901760
    %1312 = vmatpush.msra.mxu0 %v1311
    %v1313 = vand.u32 %v1083, 4294901760
    %v1314 = vsub.f32 %v1083, %v1313
    %v1315 = vand.u32 %v1314, 4294901760
    %v1316 = vsub.f32 %v1314, %v1315
    %v1317 = vand.u32 %v1316, 4294901760
    %1318 = vmatpush.msra.mxu0 %v1317
    %v1319 = vand.u32 %v1082, 4294901760
    %v1320 = vsub.f32 %v1082, %v1319
    %v1321 = vand.u32 %v1320, 4294901760
    %v1322 = vsub.f32 %v1320, %v1321
    %v1323 = vand.u32 %v1322, 4294901760
    %1324 = vmatpush.msra.mxu0 %v1323
    %v1325 = vand.u32 %v1081, 4294901760
    %v1326 = vsub.f32 %v1081, %v1325
    %v1327 = vand.u32 %v1326, 4294901760
    %v1328 = vsub.f32 %v1326, %v1327
    %v1329 = vand.u32 %v1328, 4294901760
    %1330 = vmatpush.msra.mxu0 %v1329
    %v1331 = vand.u32 %v1080, 4294901760
    %v1332 = vsub.f32 %v1080, %v1331
    %v1333 = vand.u32 %v1332, 4294901760
    %v1334 = vsub.f32 %v1332, %v1333
    %v1335 = vand.u32 %v1334, 4294901760
    %1336 = vmatpush.msra.mxu0 %v1335
    %1337 = vmatmul.f32.gmra.mxu0 %v222
    %v1338 = vpop.f32.mrf.mxu0
    %v1339 = vadd.f32 %v1134, %v1338
    %1340 = vmatmul.f32.gmra.mxu0 %v223
    %v1341 = vpop.f32.mrf.mxu0
    %v1342 = vadd.f32 %v1141, %v1341
    %1343 = vmatmul.f32.gmra.mxu0 %v224
    %v1344 = vpop.f32.mrf.mxu0
    %v1345 = vadd.f32 %v1148, %v1344
    %1346 = vmatmul.f32.gmra.mxu0 %v225
    %v1347 = vpop.f32.mrf.mxu0
    %v1348 = vadd.f32 %v1155, %v1347
    %1349 = vmatmul.f32.gmra.mxu0 %v226
    %v1350 = vpop.f32.mrf.mxu0
    %v1351 = vadd.f32 %v1162, %v1350
    %1352 = vmatmul.f32.gmra.mxu0 %v227
    %v1353 = vpop.f32.mrf.mxu0
    %v1354 = vadd.f32 %v1169, %v1353
    %1355 = vmatmul.f32.gmra.mxu0 %v228
    %v1356 = vpop.f32.mrf.mxu0
    %v1357 = vadd.f32 %v1176, %v1356
    %1358 = vmatmul.f32.gmra.mxu0 %v229
    %v1359 = vpop.f32.mrf.mxu0
    %v1360 = vadd.f32 %v1183, %v1359
    %1361 = vmatmul.f32.gmra.mxu0 %v230
    %v1362 = vpop.f32.mrf.mxu0
    %v1363 = vadd.f32 %v1190, %v1362
    %1364 = vmatmul.f32.gmra.mxu0 %v231
    %v1365 = vpop.f32.mrf.mxu0
    %v1366 = vadd.f32 %v1197, %v1365
    %1367 = vmatmul.f32.gmra.mxu0 %v232
    %v1368 = vpop.f32.mrf.mxu0
    %v1369 = vadd.f32 %v1204, %v1368
    %1370 = vmatmul.f32.gmra.mxu0 %v233
    %v1371 = vpop.f32.mrf.mxu0
    %v1372 = vadd.f32 %v1211, %v1371
    %1373 = vmatmul.f32.gmra.mxu0 %v234
    %v1374 = vpop.f32.mrf.mxu0
    %v1375 = vadd.f32 %v1218, %v1374
    %1376 = vmatmul.f32.gmra.mxu0 %v235
    %v1377 = vpop.f32.mrf.mxu0
    %v1378 = vadd.f32 %v1225, %v1377
    %1379 = vmatmul.f32.gmra.mxu0 %v236
    %v1380 = vpop.f32.mrf.mxu0
    %v1381 = vadd.f32 %v1232, %v1380
    %1382 = vmatmul.f32.gmra.mxu0 %v237
    %v1383 = vpop.f32.mrf.mxu0
    %v1384 = vadd.f32 %v1239, %v1383
    %1385 = vdwg.mxu0
    %v1386 = vand.u32 %v1095, 4294901760
    %v1387 = vsub.f32 %v1095, %v1386
    %1388 = vmatpush.msra.mxu0 %v1387
    %v1389 = vand.u32 %v1094, 4294901760
    %v1390 = vsub.f32 %v1094, %v1389
    %1391 = vmatpush.msra.mxu0 %v1390
    %v1392 = vand.u32 %v1093, 4294901760
    %v1393 = vsub.f32 %v1093, %v1392
    %1394 = vmatpush.msra.mxu0 %v1393
    %v1395 = vand.u32 %v1092, 4294901760
    %v1396 = vsub.f32 %v1092, %v1395
    %1397 = vmatpush.msra.mxu0 %v1396
    %v1398 = vand.u32 %v1091, 4294901760
    %v1399 = vsub.f32 %v1091, %v1398
    %1400 = vmatpush.msra.mxu0 %v1399
    %v1401 = vand.u32 %v1090, 4294901760
    %v1402 = vsub.f32 %v1090, %v1401
    %1403 = vmatpush.msra.mxu0 %v1402
    %v1404 = vand.u32 %v1089, 4294901760
    %v1405 = vsub.f32 %v1089, %v1404
    %1406 = vmatpush.msra.mxu0 %v1405
    %v1407 = vand.u32 %v1088, 4294901760
    %v1408 = vsub.f32 %v1088, %v1407
    %1409 = vmatpush.msra.mxu0 %v1408
    %v1410 = vand.u32 %v1087, 4294901760
    %v1411 = vsub.f32 %v1087, %v1410
    %1412 = vmatpush.msra.mxu0 %v1411
    %v1413 = vand.u32 %v1086, 4294901760
    %v1414 = vsub.f32 %v1086, %v1413
    %1415 = vmatpush.msra.mxu0 %v1414
    %v1416 = vand.u32 %v1085, 4294901760
    %v1417 = vsub.f32 %v1085, %v1416
    %1418 = vmatpush.msra.mxu0 %v1417
    %v1419 = vand.u32 %v1084, 4294901760
    %v1420 = vsub.f32 %v1084, %v1419
    %1421 = vmatpush.msra.mxu0 %v1420
    %v1422 = vand.u32 %v1083, 4294901760
    %v1423 = vsub.f32 %v1083, %v1422
    %1424 = vmatpush.msra.mxu0 %v1423
    %v1425 = vand.u32 %v1082, 4294901760
    %v1426 = vsub.f32 %v1082, %v1425
    %1427 = vmatpush.msra.mxu0 %v1426
    %v1428 = vand.u32 %v1081, 4294901760
    %v1429 = vsub.f32 %v1081, %v1428
    %1430 = vmatpush.msra.mxu0 %v1429
    %v1431 = vand.u32 %v1080, 4294901760
    %v1432 = vsub.f32 %v1080, %v1431
    %1433 = vmatpush.msra.mxu0 %v1432
    %v1434 = vsub.f32 %v222, %v222
    %1435 = vmatmul.f32.gmra.mxu0 %v1434
    %v1436 = vpop.f32.mrf.mxu0
    %v1437 = vadd.f32 %v1339, %v1436
    %v1438 = vsub.f32 %v223, %v223
    %1439 = vmatmul.f32.gmra.mxu0 %v1438
    %v1440 = vpop.f32.mrf.mxu0
    %v1441 = vadd.f32 %v1342, %v1440
    %v1442 = vsub.f32 %v224, %v224
    %1443 = vmatmul.f32.gmra.mxu0 %v1442
    %v1444 = vpop.f32.mrf.mxu0
    %v1445 = vadd.f32 %v1345, %v1444
    %v1446 = vsub.f32 %v225, %v225
    %1447 = vmatmul.f32.gmra.mxu0 %v1446
    %v1448 = vpop.f32.mrf.mxu0
    %v1449 = vadd.f32 %v1348, %v1448
    %v1450 = vsub.f32 %v226, %v226
    %1451 = vmatmul.f32.gmra.mxu0 %v1450
    %v1452 = vpop.f32.mrf.mxu0
    %v1453 = vadd.f32 %v1351, %v1452
    %v1454 = vsub.f32 %v227, %v227
    %1455 = vmatmul.f32.gmra.mxu0 %v1454
    %v1456 = vpop.f32.mrf.mxu0
    %v1457 = vadd.f32 %v1354, %v1456
    %v1458 = vsub.f32 %v228, %v228
    %1459 = vmatmul.f32.gmra.mxu0 %v1458
    %v1460 = vpop.f32.mrf.mxu0
    %v1461 = vadd.f32 %v1357, %v1460
    %v1462 = vsub.f32 %v229, %v229
    %1463 = vmatmul.f32.gmra.mxu0 %v1462
    %v1464 = vpop.f32.mrf.mxu0
    %v1465 = vadd.f32 %v1360, %v1464
    %v1466 = vsub.f32 %v230, %v230
    %1467 = vmatmul.f32.gmra.mxu0 %v1466
    %v1468 = vpop.f32.mrf.mxu0
    %v1469 = vadd.f32 %v1363, %v1468
    %v1470 = vsub.f32 %v231, %v231
    %1471 = vmatmul.f32.gmra.mxu0 %v1470
    %v1472 = vpop.f32.mrf.mxu0
    %v1473 = vadd.f32 %v1366, %v1472
    %v1474 = vsub.f32 %v232, %v232
    %1475 = vmatmul.f32.gmra.mxu0 %v1474
    %v1476 = vpop.f32.mrf.mxu0
    %v1477 = vadd.f32 %v1369, %v1476
    %v1478 = vsub.f32 %v233, %v233
    %1479 = vmatmul.f32.gmra.mxu0 %v1478
    %v1480 = vpop.f32.mrf.mxu0
    %v1481 = vadd.f32 %v1372, %v1480
    %v1482 = vsub.f32 %v234, %v234
    %1483 = vmatmul.f32.gmra.mxu0 %v1482
    %v1484 = vpop.f32.mrf.mxu0
    %v1485 = vadd.f32 %v1375, %v1484
    %v1486 = vsub.f32 %v235, %v235
    %1487 = vmatmul.f32.gmra.mxu0 %v1486
    %v1488 = vpop.f32.mrf.mxu0
    %v1489 = vadd.f32 %v1378, %v1488
    %v1490 = vsub.f32 %v236, %v236
    %1491 = vmatmul.f32.gmra.mxu0 %v1490
    %v1492 = vpop.f32.mrf.mxu0
    %v1493 = vadd.f32 %v1381, %v1492
    %v1494 = vsub.f32 %v237, %v237
    %1495 = vmatmul.f32.gmra.mxu0 %v1494
    %v1496 = vpop.f32.mrf.mxu0
    %v1497 = vadd.f32 %v1384, %v1496
    %1498 = vdwg.mxu0
    %v1499 = vand.u32 %v1095, 4294901760
    %1500 = vmatpush.msra.mxu0 %v1499
    %v1501 = vand.u32 %v1094, 4294901760
    %1502 = vmatpush.msra.mxu0 %v1501
    %v1503 = vand.u32 %v1093, 4294901760
    %1504 = vmatpush.msra.mxu0 %v1503
    %v1505 = vand.u32 %v1092, 4294901760
    %1506 = vmatpush.msra.mxu0 %v1505
    %v1507 = vand.u32 %v1091, 4294901760
    %1508 = vmatpush.msra.mxu0 %v1507
    %v1509 = vand.u32 %v1090, 4294901760
    %1510 = vmatpush.msra.mxu0 %v1509
    %v1511 = vand.u32 %v1089, 4294901760
    %1512 = vmatpush.msra.mxu0 %v1511
    %v1513 = vand.u32 %v1088, 4294901760
    %1514 = vmatpush.msra.mxu0 %v1513
    %v1515 = vand.u32 %v1087, 4294901760
    %1516 = vmatpush.msra.mxu0 %v1515
    %v1517 = vand.u32 %v1086, 4294901760
    %1518 = vmatpush.msra.mxu0 %v1517
    %v1519 = vand.u32 %v1085, 4294901760
    %1520 = vmatpush.msra.mxu0 %v1519
    %v1521 = vand.u32 %v1084, 4294901760
    %1522 = vmatpush.msra.mxu0 %v1521
    %v1523 = vand.u32 %v1083, 4294901760
    %1524 = vmatpush.msra.mxu0 %v1523
    %v1525 = vand.u32 %v1082, 4294901760
    %1526 = vmatpush.msra.mxu0 %v1525
    %v1527 = vand.u32 %v1081, 4294901760
    %1528 = vmatpush.msra.mxu0 %v1527
    %v1529 = vand.u32 %v1080, 4294901760
    %1530 = vmatpush.msra.mxu0 %v1529
    %v1531 = vsub.f32 %v222, %v222
    %v1532 = vand.u32 %v1531, 4294901760
    %1533 = vmatmul.f32.gmra.mxu0 %v1532
    %v1534 = vpop.f32.mrf.mxu0
    %v1535 = vadd.f32 %v1437, %v1534
    %v1536 = vsub.f32 %v223, %v223
    %v1537 = vand.u32 %v1536, 4294901760
    %1538 = vmatmul.f32.gmra.mxu0 %v1537
    %v1539 = vpop.f32.mrf.mxu0
    %v1540 = vadd.f32 %v1441, %v1539
    %v1541 = vsub.f32 %v224, %v224
    %v1542 = vand.u32 %v1541, 4294901760
    %1543 = vmatmul.f32.gmra.mxu0 %v1542
    %v1544 = vpop.f32.mrf.mxu0
    %v1545 = vadd.f32 %v1445, %v1544
    %v1546 = vsub.f32 %v225, %v225
    %v1547 = vand.u32 %v1546, 4294901760
    %1548 = vmatmul.f32.gmra.mxu0 %v1547
    %v1549 = vpop.f32.mrf.mxu0
    %v1550 = vadd.f32 %v1449, %v1549
    %v1551 = vsub.f32 %v226, %v226
    %v1552 = vand.u32 %v1551, 4294901760
    %1553 = vmatmul.f32.gmra.mxu0 %v1552
    %v1554 = vpop.f32.mrf.mxu0
    %v1555 = vadd.f32 %v1453, %v1554
    %v1556 = vsub.f32 %v227, %v227
    %v1557 = vand.u32 %v1556, 4294901760
    %1558 = vmatmul.f32.gmra.mxu0 %v1557
    %v1559 = vpop.f32.mrf.mxu0
    %v1560 = vadd.f32 %v1457, %v1559
    %v1561 = vsub.f32 %v228, %v228
    %v1562 = vand.u32 %v1561, 4294901760
    %1563 = vmatmul.f32.gmra.mxu0 %v1562
    %v1564 = vpop.f32.mrf.mxu0
    %v1565 = vadd.f32 %v1461, %v1564
    %v1566 = vsub.f32 %v229, %v229
    %v1567 = vand.u32 %v1566, 4294901760
    %1568 = vmatmul.f32.gmra.mxu0 %v1567
    %v1569 = vpop.f32.mrf.mxu0
    %v1570 = vadd.f32 %v1465, %v1569
    %v1571 = vsub.f32 %v230, %v230
    %v1572 = vand.u32 %v1571, 4294901760
    %1573 = vmatmul.f32.gmra.mxu0 %v1572
    %v1574 = vpop.f32.mrf.mxu0
    %v1575 = vadd.f32 %v1469, %v1574
    %v1576 = vsub.f32 %v231, %v231
    %v1577 = vand.u32 %v1576, 4294901760
    %1578 = vmatmul.f32.gmra.mxu0 %v1577
    %v1579 = vpop.f32.mrf.mxu0
    %v1580 = vadd.f32 %v1473, %v1579
    %v1581 = vsub.f32 %v232, %v232
    %v1582 = vand.u32 %v1581, 4294901760
    %1583 = vmatmul.f32.gmra.mxu0 %v1582
    %v1584 = vpop.f32.mrf.mxu0
    %v1585 = vadd.f32 %v1477, %v1584
    %v1586 = vsub.f32 %v233, %v233
    %v1587 = vand.u32 %v1586, 4294901760
    %1588 = vmatmul.f32.gmra.mxu0 %v1587
    %v1589 = vpop.f32.mrf.mxu0
    %v1590 = vadd.f32 %v1481, %v1589
    %v1591 = vsub.f32 %v234, %v234
    %v1592 = vand.u32 %v1591, 4294901760
    %1593 = vmatmul.f32.gmra.mxu0 %v1592
    %v1594 = vpop.f32.mrf.mxu0
    %v1595 = vadd.f32 %v1485, %v1594
    %v1596 = vsub.f32 %v235, %v235
    %v1597 = vand.u32 %v1596, 4294901760
    %1598 = vmatmul.f32.gmra.mxu0 %v1597
    %v1599 = vpop.f32.mrf.mxu0
    %v1600 = vadd.f32 %v1489, %v1599
    %v1601 = vsub.f32 %v236, %v236
    %v1602 = vand.u32 %v1601, 4294901760
    %1603 = vmatmul.f32.gmra.mxu0 %v1602
    %v1604 = vpop.f32.mrf.mxu0
    %v1605 = vadd.f32 %v1493, %v1604
    %v1606 = vsub.f32 %v237, %v237
    %v1607 = vand.u32 %v1606, 4294901760
    %1608 = vmatmul.f32.gmra.mxu0 %v1607
    %v1609 = vpop.f32.mrf.mxu0
    %v1610 = vadd.f32 %v1497, %v1609
    %1611 = vdwg.mxu0
    %v1612 = vand.u32 %v1095, 4294901760
    %v1613 = vsub.f32 %v1095, %v1612
    %v1614 = vand.u32 %v1613, 4294901760
    %1615 = vmatpush.msra.mxu0 %v1614
    %v1616 = vand.u32 %v1094, 4294901760
    %v1617 = vsub.f32 %v1094, %v1616
    %v1618 = vand.u32 %v1617, 4294901760
    %1619 = vmatpush.msra.mxu0 %v1618
    %v1620 = vand.u32 %v1093, 4294901760
    %v1621 = vsub.f32 %v1093, %v1620
    %v1622 = vand.u32 %v1621, 4294901760
    %1623 = vmatpush.msra.mxu0 %v1622
    %v1624 = vand.u32 %v1092, 4294901760
    %v1625 = vsub.f32 %v1092, %v1624
    %v1626 = vand.u32 %v1625, 4294901760
    %1627 = vmatpush.msra.mxu0 %v1626
    %v1628 = vand.u32 %v1091, 4294901760
    %v1629 = vsub.f32 %v1091, %v1628
    %v1630 = vand.u32 %v1629, 4294901760
    %1631 = vmatpush.msra.mxu0 %v1630
    %v1632 = vand.u32 %v1090, 4294901760
    %v1633 = vsub.f32 %v1090, %v1632
    %v1634 = vand.u32 %v1633, 4294901760
    %1635 = vmatpush.msra.mxu0 %v1634
    %v1636 = vand.u32 %v1089, 4294901760
    %v1637 = vsub.f32 %v1089, %v1636
    %v1638 = vand.u32 %v1637, 4294901760
    %1639 = vmatpush.msra.mxu0 %v1638
    %v1640 = vand.u32 %v1088, 4294901760
    %v1641 = vsub.f32 %v1088, %v1640
    %v1642 = vand.u32 %v1641, 4294901760
    %1643 = vmatpush.msra.mxu0 %v1642
    %v1644 = vand.u32 %v1087, 4294901760
    %v1645 = vsub.f32 %v1087, %v1644
    %v1646 = vand.u32 %v1645, 4294901760
    %1647 = vmatpush.msra.mxu0 %v1646
    %v1648 = vand.u32 %v1086, 4294901760
    %v1649 = vsub.f32 %v1086, %v1648
    %v1650 = vand.u32 %v1649, 4294901760
    %1651 = vmatpush.msra.mxu0 %v1650
    %v1652 = vand.u32 %v1085, 4294901760
    %v1653 = vsub.f32 %v1085, %v1652
    %v1654 = vand.u32 %v1653, 4294901760
    %1655 = vmatpush.msra.mxu0 %v1654
    %v1656 = vand.u32 %v1084, 4294901760
    %v1657 = vsub.f32 %v1084, %v1656
    %v1658 = vand.u32 %v1657, 4294901760
    %1659 = vmatpush.msra.mxu0 %v1658
    %v1660 = vand.u32 %v1083, 4294901760
    %v1661 = vsub.f32 %v1083, %v1660
    %v1662 = vand.u32 %v1661, 4294901760
    %1663 = vmatpush.msra.mxu0 %v1662
    %v1664 = vand.u32 %v1082, 4294901760
    %v1665 = vsub.f32 %v1082, %v1664
    %v1666 = vand.u32 %v1665, 4294901760
    %1667 = vmatpush.msra.mxu0 %v1666
    %v1668 = vand.u32 %v1081, 4294901760
    %v1669 = vsub.f32 %v1081, %v1668
    %v1670 = vand.u32 %v1669, 4294901760
    %1671 = vmatpush.msra.mxu0 %v1670
    %v1672 = vand.u32 %v1080, 4294901760
    %v1673 = vsub.f32 %v1080, %v1672
    %v1674 = vand.u32 %v1673, 4294901760
    %1675 = vmatpush.msra.mxu0 %v1674
    %1676 = vmatmul.f32.gmra.mxu0 %v222
    %v1677 = vpop.f32.mrf.mxu0
    %v1678 = vadd.f32 %v1535, %v1677
    %1679 = vmatmul.f32.gmra.mxu0 %v223
    %v1680 = vpop.f32.mrf.mxu0
    %v1681 = vadd.f32 %v1540, %v1680
    %1682 = vmatmul.f32.gmra.mxu0 %v224
    %v1683 = vpop.f32.mrf.mxu0
    %v1684 = vadd.f32 %v1545, %v1683
    %1685 = vmatmul.f32.gmra.mxu0 %v225
    %v1686 = vpop.f32.mrf.mxu0
    %v1687 = vadd.f32 %v1550, %v1686
    %1688 = vmatmul.f32.gmra.mxu0 %v226
    %v1689 = vpop.f32.mrf.mxu0
    %v1690 = vadd.f32 %v1555, %v1689
    %1691 = vmatmul.f32.gmra.mxu0 %v227
    %v1692 = vpop.f32.mrf.mxu0
    %v1693 = vadd.f32 %v1560, %v1692
    %1694 = vmatmul.f32.gmra.mxu0 %v228
    %v1695 = vpop.f32.mrf.mxu0
    %v1696 = vadd.f32 %v1565, %v1695
    %1697 = vmatmul.f32.gmra.mxu0 %v229
    %v1698 = vpop.f32.mrf.mxu0
    %v1699 = vadd.f32 %v1570, %v1698
    %1700 = vmatmul.f32.gmra.mxu0 %v230
    %v1701 = vpop.f32.mrf.mxu0
    %v1702 = vadd.f32 %v1575, %v1701
    %1703 = vmatmul.f32.gmra.mxu0 %v231
    %v1704 = vpop.f32.mrf.mxu0
    %v1705 = vadd.f32 %v1580, %v1704
    %1706 = vmatmul.f32.gmra.mxu0 %v232
    %v1707 = vpop.f32.mrf.mxu0
    %v1708 = vadd.f32 %v1585, %v1707
    %1709 = vmatmul.f32.gmra.mxu0 %v233
    %v1710 = vpop.f32.mrf.mxu0
    %v1711 = vadd.f32 %v1590, %v1710
    %1712 = vmatmul.f32.gmra.mxu0 %v234
    %v1713 = vpop.f32.mrf.mxu0
    %v1714 = vadd.f32 %v1595, %v1713
    %1715 = vmatmul.f32.gmra.mxu0 %v235
    %v1716 = vpop.f32.mrf.mxu0
    %v1717 = vadd.f32 %v1600, %v1716
    %1718 = vmatmul.f32.gmra.mxu0 %v236
    %v1719 = vpop.f32.mrf.mxu0
    %v1720 = vadd.f32 %v1605, %v1719
    %1721 = vmatmul.f32.gmra.mxu0 %v237
    %v1722 = vpop.f32.mrf.mxu0
    %v1723 = vadd.f32 %v1610, %v1722
    %1724 = vdwg.mxu0
    %v1725 = vand.u32 %v1095, 4294901760
    %1726 = vmatpush.msra.mxu0 %v1725
    %v1727 = vand.u32 %v1094, 4294901760
    %1728 = vmatpush.msra.mxu0 %v1727
    %v1729 = vand.u32 %v1093, 4294901760
    %1730 = vmatpush.msra.mxu0 %v1729
    %v1731 = vand.u32 %v1092, 4294901760
    %1732 = vmatpush.msra.mxu0 %v1731
    %v1733 = vand.u32 %v1091, 4294901760
    %1734 = vmatpush.msra.mxu0 %v1733
    %v1735 = vand.u32 %v1090, 4294901760
    %1736 = vmatpush.msra.mxu0 %v1735
    %v1737 = vand.u32 %v1089, 4294901760
    %1738 = vmatpush.msra.mxu0 %v1737
    %v1739 = vand.u32 %v1088, 4294901760
    %1740 = vmatpush.msra.mxu0 %v1739
    %v1741 = vand.u32 %v1087, 4294901760
    %1742 = vmatpush.msra.mxu0 %v1741
    %v1743 = vand.u32 %v1086, 4294901760
    %1744 = vmatpush.msra.mxu0 %v1743
    %v1745 = vand.u32 %v1085, 4294901760
    %1746 = vmatpush.msra.mxu0 %v1745
    %v1747 = vand.u32 %v1084, 4294901760
    %1748 = vmatpush.msra.mxu0 %v1747
    %v1749 = vand.u32 %v1083, 4294901760
    %1750 = vmatpush.msra.mxu0 %v1749
    %v1751 = vand.u32 %v1082, 4294901760
    %1752 = vmatpush.msra.mxu0 %v1751
    %v1753 = vand.u32 %v1081, 4294901760
    %1754 = vmatpush.msra.mxu0 %v1753
    %v1755 = vand.u32 %v1080, 4294901760
    %1756 = vmatpush.msra.mxu0 %v1755
    %1757 = vmatmul.f32.gmra.mxu0 %v222
    %v1758 = vpop.f32.mrf.mxu0
    %v1759 = vadd.f32 %v1678, %v1758
    %1760 = vmatmul.f32.gmra.mxu0 %v223
    %v1761 = vpop.f32.mrf.mxu0
    %v1762 = vadd.f32 %v1681, %v1761
    %1763 = vmatmul.f32.gmra.mxu0 %v224
    %v1764 = vpop.f32.mrf.mxu0
    %v1765 = vadd.f32 %v1684, %v1764
    %1766 = vmatmul.f32.gmra.mxu0 %v225
    %v1767 = vpop.f32.mrf.mxu0
    %v1768 = vadd.f32 %v1687, %v1767
    %1769 = vmatmul.f32.gmra.mxu0 %v226
    %v1770 = vpop.f32.mrf.mxu0
    %v1771 = vadd.f32 %v1690, %v1770
    %1772 = vmatmul.f32.gmra.mxu0 %v227
    %v1773 = vpop.f32.mrf.mxu0
    %v1774 = vadd.f32 %v1693, %v1773
    %1775 = vmatmul.f32.gmra.mxu0 %v228
    %v1776 = vpop.f32.mrf.mxu0
    %v1777 = vadd.f32 %v1696, %v1776
    %1778 = vmatmul.f32.gmra.mxu0 %v229
    %v1779 = vpop.f32.mrf.mxu0
    %v1780 = vadd.f32 %v1699, %v1779
    %1781 = vmatmul.f32.gmra.mxu0 %v230
    %v1782 = vpop.f32.mrf.mxu0
    %v1783 = vadd.f32 %v1702, %v1782
    %1784 = vmatmul.f32.gmra.mxu0 %v231
    %v1785 = vpop.f32.mrf.mxu0
    %v1786 = vadd.f32 %v1705, %v1785
    %1787 = vmatmul.f32.gmra.mxu0 %v232
    %v1788 = vpop.f32.mrf.mxu0
    %v1789 = vadd.f32 %v1708, %v1788
    %1790 = vmatmul.f32.gmra.mxu0 %v233
    %v1791 = vpop.f32.mrf.mxu0
    %v1792 = vadd.f32 %v1711, %v1791
    %1793 = vmatmul.f32.gmra.mxu0 %v234
    %v1794 = vpop.f32.mrf.mxu0
    %v1795 = vadd.f32 %v1714, %v1794
    %1796 = vmatmul.f32.gmra.mxu0 %v235
    %v1797 = vpop.f32.mrf.mxu0
    %v1798 = vadd.f32 %v1717, %v1797
    %1799 = vmatmul.f32.gmra.mxu0 %v236
    %v1800 = vpop.f32.mrf.mxu0
    %v1801 = vadd.f32 %v1720, %v1800
    %1802 = vmatmul.f32.gmra.mxu0 %v237
    %v1803 = vpop.f32.mrf.mxu0
    %v1804 = vadd.f32 %v1723, %v1803
    %1805 = vdwg.mxu0
    %v1806 = vld [vmem:[#allocation14] sm:$0xff]
    %v1807 = vld [vmem:[#allocation14 + $0x8] sm:$0xff]
    %v1808 = vld [vmem:[#allocation14 + $0x10] sm:$0xff]
    %v1809 = vld [vmem:[#allocation14 + $0x18] sm:$0xff]
    %v1810 = vld [vmem:[#allocation14 + $0x20] sm:$0xff]
    %v1811 = vld [vmem:[#allocation14 + $0x28] sm:$0xff]
    %v1812 = vld [vmem:[#allocation14 + $0x30] sm:$0xff]
    %v1813 = vld [vmem:[#allocation14 + $0x38] sm:$0xff]
    %v1814 = vld [vmem:[#allocation14 + $0x40] sm:$0xff]
    %v1815 = vld [vmem:[#allocation14 + $0x48] sm:$0xff]
    %v1816 = vld [vmem:[#allocation14 + $0x50] sm:$0xff]
    %v1817 = vld [vmem:[#allocation14 + $0x58] sm:$0xff]
    %v1818 = vld [vmem:[#allocation14 + $0x60] sm:$0xff]
    %v1819 = vld [vmem:[#allocation14 + $0x68] sm:$0xff]
    %v1820 = vld [vmem:[#allocation14 + $0x70] sm:$0xff]
    %v1821 = vld [vmem:[#allocation14 + $0x78] sm:$0xff]
    %v1822 = vld [vmem:[%s9] sm:$0x1]
    %v1824 = vperm.slane %v1822, 0
    %v1826 = vand.u32 %v1821, 4294901760
    %1827 = vmatpush.msra.mxu0 %v1826
    %v1828 = vand.u32 %v1820, 4294901760
    %1829 = vmatpush.msra.mxu0 %v1828
    %v1830 = vand.u32 %v1819, 4294901760
    %1831 = vmatpush.msra.mxu0 %v1830
    %v1832 = vand.u32 %v1818, 4294901760
    %1833 = vmatpush.msra.mxu0 %v1832
    %v1834 = vand.u32 %v1817, 4294901760
    %1835 = vmatpush.msra.mxu0 %v1834
    %v1836 = vand.u32 %v1816, 4294901760
    %1837 = vmatpush.msra.mxu0 %v1836
    %v1838 = vand.u32 %v1815, 4294901760
    %1839 = vmatpush.msra.mxu0 %v1838
    %v1840 = vand.u32 %v1814, 4294901760
    %1841 = vmatpush.msra.mxu0 %v1840
    %v1842 = vand.u32 %v1813, 4294901760
    %1843 = vmatpush.msra.mxu0 %v1842
    %v1844 = vand.u32 %v1812, 4294901760
    %1845 = vmatpush.msra.mxu0 %v1844
    %v1846 = vand.u32 %v1811, 4294901760
    %1847 = vmatpush.msra.mxu0 %v1846
    %v1848 = vand.u32 %v1810, 4294901760
    %1849 = vmatpush.msra.mxu0 %v1848
    %v1850 = vand.u32 %v1809, 4294901760
    %1851 = vmatpush.msra.mxu0 %v1850
    %v1852 = vand.u32 %v1808, 4294901760
    %1853 = vmatpush.msra.mxu0 %v1852
    %v1854 = vand.u32 %v1807, 4294901760
    %1855 = vmatpush.msra.mxu0 %v1854
    %v1856 = vand.u32 %v1806, 4294901760
    %1857 = vmatpush.msra.mxu0 %v1856
    %v1858 = vand.u32 %v1759, 4294901760
    %v1859 = vsub.f32 %v1759, %v1858
    %v1860 = vand.u32 %v1859, 4294901760
    %v1861 = vsub.f32 %v1859, %v1860
    %v1862 = vand.u32 %v1861, 4294901760
    %1863 = vmatmul.f32.gmra.mxu0 %v1862
    %v1864 = vpop.f32.mrf.mxu0
    %v1865 = vadd.f32 %v1824, %v1864
    %v1866 = vand.u32 %v1762, 4294901760
    %v1867 = vsub.f32 %v1762, %v1866
    %v1868 = vand.u32 %v1867, 4294901760
    %v1869 = vsub.f32 %v1867, %v1868
    %v1870 = vand.u32 %v1869, 4294901760
    %1871 = vmatmul.f32.gmra.mxu0 %v1870
    %v1872 = vpop.f32.mrf.mxu0
    %v1873 = vadd.f32 %v1824, %v1872
    %v1874 = vand.u32 %v1765, 4294901760
    %v1875 = vsub.f32 %v1765, %v1874
    %v1876 = vand.u32 %v1875, 4294901760
    %v1877 = vsub.f32 %v1875, %v1876
    %v1878 = vand.u32 %v1877, 4294901760
    %1879 = vmatmul.f32.gmra.mxu0 %v1878
    %v1880 = vpop.f32.mrf.mxu0
    %v1881 = vadd.f32 %v1824, %v1880
    %v1882 = vand.u32 %v1768, 4294901760
    %v1883 = vsub.f32 %v1768, %v1882
    %v1884 = vand.u32 %v1883, 4294901760
    %v1885 = vsub.f32 %v1883, %v1884
    %v1886 = vand.u32 %v1885, 4294901760
    %1887 = vmatmul.f32.gmra.mxu0 %v1886
    %v1888 = vpop.f32.mrf.mxu0
    %v1889 = vadd.f32 %v1824, %v1888
    %v1890 = vand.u32 %v1771, 4294901760
    %v1891 = vsub.f32 %v1771, %v1890
    %v1892 = vand.u32 %v1891, 4294901760
    %v1893 = vsub.f32 %v1891, %v1892
    %v1894 = vand.u32 %v1893, 4294901760
    %1895 = vmatmul.f32.gmra.mxu0 %v1894
    %v1896 = vpop.f32.mrf.mxu0
    %v1897 = vadd.f32 %v1824, %v1896
    %v1898 = vand.u32 %v1774, 4294901760
    %v1899 = vsub.f32 %v1774, %v1898
    %v1900 = vand.u32 %v1899, 4294901760
    %v1901 = vsub.f32 %v1899, %v1900
    %v1902 = vand.u32 %v1901, 4294901760
    %1903 = vmatmul.f32.gmra.mxu0 %v1902
    %v1904 = vpop.f32.mrf.mxu0
    %v1905 = vadd.f32 %v1824, %v1904
    %v1906 = vand.u32 %v1777, 4294901760
    %v1907 = vsub.f32 %v1777, %v1906
    %v1908 = vand.u32 %v1907, 4294901760
    %v1909 = vsub.f32 %v1907, %v1908
    %v1910 = vand.u32 %v1909, 4294901760
    %1911 = vmatmul.f32.gmra.mxu0 %v1910
    %v1912 = vpop.f32.mrf.mxu0
    %v1913 = vadd.f32 %v1824, %v1912
    %v1914 = vand.u32 %v1780, 4294901760
    %v1915 = vsub.f32 %v1780, %v1914
    %v1916 = vand.u32 %v1915, 4294901760
    %v1917 = vsub.f32 %v1915, %v1916
    %v1918 = vand.u32 %v1917, 4294901760
    %1919 = vmatmul.f32.gmra.mxu0 %v1918
    %v1920 = vpop.f32.mrf.mxu0
    %v1921 = vadd.f32 %v1824, %v1920
    %v1922 = vand.u32 %v1783, 4294901760
    %v1923 = vsub.f32 %v1783, %v1922
    %v1924 = vand.u32 %v1923, 4294901760
    %v1925 = vsub.f32 %v1923, %v1924
    %v1926 = vand.u32 %v1925, 4294901760
    %1927 = vmatmul.f32.gmra.mxu0 %v1926
    %v1928 = vpop.f32.mrf.mxu0
    %v1929 = vadd.f32 %v1824, %v1928
    %v1930 = vand.u32 %v1786, 4294901760
    %v1931 = vsub.f32 %v1786, %v1930
    %v1932 = vand.u32 %v1931, 4294901760
    %v1933 = vsub.f32 %v1931, %v1932
    %v1934 = vand.u32 %v1933, 4294901760
    %1935 = vmatmul.f32.gmra.mxu0 %v1934
    %v1936 = vpop.f32.mrf.mxu0
    %v1937 = vadd.f32 %v1824, %v1936
    %v1938 = vand.u32 %v1789, 4294901760
    %v1939 = vsub.f32 %v1789, %v1938
    %v1940 = vand.u32 %v1939, 4294901760
    %v1941 = vsub.f32 %v1939, %v1940
    %v1942 = vand.u32 %v1941, 4294901760
    %1943 = vmatmul.f32.gmra.mxu0 %v1942
    %v1944 = vpop.f32.mrf.mxu0
    %v1945 = vadd.f32 %v1824, %v1944
    %v1946 = vand.u32 %v1792, 4294901760
    %v1947 = vsub.f32 %v1792, %v1946
    %v1948 = vand.u32 %v1947, 4294901760
    %v1949 = vsub.f32 %v1947, %v1948
    %v1950 = vand.u32 %v1949, 4294901760
    %1951 = vmatmul.f32.gmra.mxu0 %v1950
    %v1952 = vpop.f32.mrf.mxu0
    %v1953 = vadd.f32 %v1824, %v1952
    %v1954 = vand.u32 %v1795, 4294901760
    %v1955 = vsub.f32 %v1795, %v1954
    %v1956 = vand.u32 %v1955, 4294901760
    %v1957 = vsub.f32 %v1955, %v1956
    %v1958 = vand.u32 %v1957, 4294901760
    %1959 = vmatmul.f32.gmra.mxu0 %v1958
    %v1960 = vpop.f32.mrf.mxu0
    %v1961 = vadd.f32 %v1824, %v1960
    %v1962 = vand.u32 %v1798, 4294901760
    %v1963 = vsub.f32 %v1798, %v1962
    %v1964 = vand.u32 %v1963, 4294901760
    %v1965 = vsub.f32 %v1963, %v1964
    %v1966 = vand.u32 %v1965, 4294901760
    %1967 = vmatmul.f32.gmra.mxu0 %v1966
    %v1968 = vpop.f32.mrf.mxu0
    %v1969 = vadd.f32 %v1824, %v1968
    %v1970 = vand.u32 %v1801, 4294901760
    %v1971 = vsub.f32 %v1801, %v1970
    %v1972 = vand.u32 %v1971, 4294901760
    %v1973 = vsub.f32 %v1971, %v1972
    %v1974 = vand.u32 %v1973, 4294901760
    %1975 = vmatmul.f32.gmra.mxu0 %v1974
    %v1976 = vpop.f32.mrf.mxu0
    %v1977 = vadd.f32 %v1824, %v1976
    %v1978 = vand.u32 %v1804, 4294901760
    %v1979 = vsub.f32 %v1804, %v1978
    %v1980 = vand.u32 %v1979, 4294901760
    %v1981 = vsub.f32 %v1979, %v1980
    %v1982 = vand.u32 %v1981, 4294901760
    %1983 = vmatmul.f32.gmra.mxu0 %v1982
    %v1984 = vpop.f32.mrf.mxu0
    %v1985 = vadd.f32 %v1824, %v1984
    %1986 = vdwg.mxu0
    %v1987 = vand.u32 %v1821, 4294901760
    %v1988 = vsub.f32 %v1821, %v1987
    %v1989 = vand.u32 %v1988, 4294901760
    %v1990 = vsub.f32 %v1988, %v1989
    %v1991 = vand.u32 %v1990, 4294901760
    %1992 = vmatpush.msra.mxu0 %v1991
    %v1993 = vand.u32 %v1820, 4294901760
    %v1994 = vsub.f32 %v1820, %v1993
    %v1995 = vand.u32 %v1994, 4294901760
    %v1996 = vsub.f32 %v1994, %v1995
    %v1997 = vand.u32 %v1996, 4294901760
    %1998 = vmatpush.msra.mxu0 %v1997
    %v1999 = vand.u32 %v1819, 4294901760
    %v2000 = vsub.f32 %v1819, %v1999
    %v2001 = vand.u32 %v2000, 4294901760
    %v2002 = vsub.f32 %v2000, %v2001
    %v2003 = vand.u32 %v2002, 4294901760
    %2004 = vmatpush.msra.mxu0 %v2003
    %v2005 = vand.u32 %v1818, 4294901760
    %v2006 = vsub.f32 %v1818, %v2005
    %v2007 = vand.u32 %v2006, 4294901760
    %v2008 = vsub.f32 %v2006, %v2007
    %v2009 = vand.u32 %v2008, 4294901760
    %2010 = vmatpush.msra.mxu0 %v2009
    %v2011 = vand.u32 %v1817, 4294901760
    %v2012 = vsub.f32 %v1817, %v2011
    %v2013 = vand.u32 %v2012, 4294901760
    %v2014 = vsub.f32 %v2012, %v2013
    %v2015 = vand.u32 %v2014, 4294901760
    %2016 = vmatpush.msra.mxu0 %v2015
    %v2017 = vand.u32 %v1816, 4294901760
    %v2018 = vsub.f32 %v1816, %v2017
    %v2019 = vand.u32 %v2018, 4294901760
    %v2020 = vsub.f32 %v2018, %v2019
    %v2021 = vand.u32 %v2020, 4294901760
    %2022 = vmatpush.msra.mxu0 %v2021
    %v2023 = vand.u32 %v1815, 4294901760
    %v2024 = vsub.f32 %v1815, %v2023
    %v2025 = vand.u32 %v2024, 4294901760
    %v2026 = vsub.f32 %v2024, %v2025
    %v2027 = vand.u32 %v2026, 4294901760
    %2028 = vmatpush.msra.mxu0 %v2027
    %v2029 = vand.u32 %v1814, 4294901760
    %v2030 = vsub.f32 %v1814, %v2029
    %v2031 = vand.u32 %v2030, 4294901760
    %v2032 = vsub.f32 %v2030, %v2031
    %v2033 = vand.u32 %v2032, 4294901760
    %2034 = vmatpush.msra.mxu0 %v2033
    %v2035 = vand.u32 %v1813, 4294901760
    %v2036 = vsub.f32 %v1813, %v2035
    %v2037 = vand.u32 %v2036, 4294901760
    %v2038 = vsub.f32 %v2036, %v2037
    %v2039 = vand.u32 %v2038, 4294901760
    %2040 = vmatpush.msra.mxu0 %v2039
    %v2041 = vand.u32 %v1812, 4294901760
    %v2042 = vsub.f32 %v1812, %v2041
    %v2043 = vand.u32 %v2042, 4294901760
    %v2044 = vsub.f32 %v2042, %v2043
    %v2045 = vand.u32 %v2044, 4294901760
    %2046 = vmatpush.msra.mxu0 %v2045
    %v2047 = vand.u32 %v1811, 4294901760
    %v2048 = vsub.f32 %v1811, %v2047
    %v2049 = vand.u32 %v2048, 4294901760
    %v2050 = vsub.f32 %v2048, %v2049
    %v2051 = vand.u32 %v2050, 4294901760
    %2052 = vmatpush.msra.mxu0 %v2051
    %v2053 = vand.u32 %v1810, 4294901760
    %v2054 = vsub.f32 %v1810, %v2053
    %v2055 = vand.u32 %v2054, 4294901760
    %v2056 = vsub.f32 %v2054, %v2055
    %v2057 = vand.u32 %v2056, 4294901760
    %2058 = vmatpush.msra.mxu0 %v2057
    %v2059 = vand.u32 %v1809, 4294901760
    %v2060 = vsub.f32 %v1809, %v2059
    %v2061 = vand.u32 %v2060, 4294901760
    %v2062 = vsub.f32 %v2060, %v2061
    %v2063 = vand.u32 %v2062, 4294901760
    %2064 = vmatpush.msra.mxu0 %v2063
    %v2065 = vand.u32 %v1808, 4294901760
    %v2066 = vsub.f32 %v1808, %v2065
    %v2067 = vand.u32 %v2066, 4294901760
    %v2068 = vsub.f32 %v2066, %v2067
    %v2069 = vand.u32 %v2068, 4294901760
    %2070 = vmatpush.msra.mxu0 %v2069
    %v2071 = vand.u32 %v1807, 4294901760
    %v2072 = vsub.f32 %v1807, %v2071
    %v2073 = vand.u32 %v2072, 4294901760
    %v2074 = vsub.f32 %v2072, %v2073
    %v2075 = vand.u32 %v2074, 4294901760
    %2076 = vmatpush.msra.mxu0 %v2075
    %v2077 = vand.u32 %v1806, 4294901760
    %v2078 = vsub.f32 %v1806, %v2077
    %v2079 = vand.u32 %v2078, 4294901760
    %v2080 = vsub.f32 %v2078, %v2079
    %v2081 = vand.u32 %v2080, 4294901760
    %2082 = vmatpush.msra.mxu0 %v2081
    %v2083 = vand.u32 %v1759, 4294901760
    %2084 = vmatmul.f32.gmra.mxu0 %v2083
    %v2085 = vpop.f32.mrf.mxu0
    %v2086 = vadd.f32 %v1865, %v2085
    %v2087 = vand.u32 %v1762, 4294901760
    %2088 = vmatmul.f32.gmra.mxu0 %v2087
    %v2089 = vpop.f32.mrf.mxu0
    %v2090 = vadd.f32 %v1873, %v2089
    %v2091 = vand.u32 %v1765, 4294901760
    %2092 = vmatmul.f32.gmra.mxu0 %v2091
    %v2093 = vpop.f32.mrf.mxu0
    %v2094 = vadd.f32 %v1881, %v2093
    %v2095 = vand.u32 %v1768, 4294901760
    %2096 = vmatmul.f32.gmra.mxu0 %v2095
    %v2097 = vpop.f32.mrf.mxu0
    %v2098 = vadd.f32 %v1889, %v2097
    %v2099 = vand.u32 %v1771, 4294901760
    %2100 = vmatmul.f32.gmra.mxu0 %v2099
    %v2101 = vpop.f32.mrf.mxu0
    %v2102 = vadd.f32 %v1897, %v2101
    %v2103 = vand.u32 %v1774, 4294901760
    %2104 = vmatmul.f32.gmra.mxu0 %v2103
    %v2105 = vpop.f32.mrf.mxu0
    %v2106 = vadd.f32 %v1905, %v2105
    %v2107 = vand.u32 %v1777, 4294901760
    %2108 = vmatmul.f32.gmra.mxu0 %v2107
    %v2109 = vpop.f32.mrf.mxu0
    %v2110 = vadd.f32 %v1913, %v2109
    %v2111 = vand.u32 %v1780, 4294901760
    %2112 = vmatmul.f32.gmra.mxu0 %v2111
    %v2113 = vpop.f32.mrf.mxu0
    %v2114 = vadd.f32 %v1921, %v2113
    %v2115 = vand.u32 %v1783, 4294901760
    %2116 = vmatmul.f32.gmra.mxu0 %v2115
    %v2117 = vpop.f32.mrf.mxu0
    %v2118 = vadd.f32 %v1929, %v2117
    %v2119 = vand.u32 %v1786, 4294901760
    %2120 = vmatmul.f32.gmra.mxu0 %v2119
    %v2121 = vpop.f32.mrf.mxu0
    %v2122 = vadd.f32 %v1937, %v2121
    %v2123 = vand.u32 %v1789, 4294901760
    %2124 = vmatmul.f32.gmra.mxu0 %v2123
    %v2125 = vpop.f32.mrf.mxu0
    %v2126 = vadd.f32 %v1945, %v2125
    %v2127 = vand.u32 %v1792, 4294901760
    %2128 = vmatmul.f32.gmra.mxu0 %v2127
    %v2129 = vpop.f32.mrf.mxu0
    %v2130 = vadd.f32 %v1953, %v2129
    %v2131 = vand.u32 %v1795, 4294901760
    %2132 = vmatmul.f32.gmra.mxu0 %v2131
    %v2133 = vpop.f32.mrf.mxu0
    %v2134 = vadd.f32 %v1961, %v2133
    %v2135 = vand.u32 %v1798, 4294901760
    %2136 = vmatmul.f32.gmra.mxu0 %v2135
    %v2137 = vpop.f32.mrf.mxu0
    %v2138 = vadd.f32 %v1969, %v2137
    %v2139 = vand.u32 %v1801, 4294901760
    %2140 = vmatmul.f32.gmra.mxu0 %v2139
    %v2141 = vpop.f32.mrf.mxu0
    %v2142 = vadd.f32 %v1977, %v2141
    %v2143 = vand.u32 %v1804, 4294901760
    %2144 = vmatmul.f32.gmra.mxu0 %v2143
    %v2145 = vpop.f32.mrf.mxu0
    %v2146 = vadd.f32 %v1985, %v2145
    %2147 = vdwg.mxu0
    %v2148 = vand.u32 %v1821, 4294901760
    %v2149 = vsub.f32 %v1821, %v2148
    %2150 = vmatpush.msra.mxu0 %v2149
    %v2151 = vand.u32 %v1820, 4294901760
    %v2152 = vsub.f32 %v1820, %v2151
    %2153 = vmatpush.msra.mxu0 %v2152
    %v2154 = vand.u32 %v1819, 4294901760
    %v2155 = vsub.f32 %v1819, %v2154
    %2156 = vmatpush.msra.mxu0 %v2155
    %v2157 = vand.u32 %v1818, 4294901760
    %v2158 = vsub.f32 %v1818, %v2157
    %2159 = vmatpush.msra.mxu0 %v2158
    %v2160 = vand.u32 %v1817, 4294901760
    %v2161 = vsub.f32 %v1817, %v2160
    %2162 = vmatpush.msra.mxu0 %v2161
    %v2163 = vand.u32 %v1816, 4294901760
    %v2164 = vsub.f32 %v1816, %v2163
    %2165 = vmatpush.msra.mxu0 %v2164
    %v2166 = vand.u32 %v1815, 4294901760
    %v2167 = vsub.f32 %v1815, %v2166
    %2168 = vmatpush.msra.mxu0 %v2167
    %v2169 = vand.u32 %v1814, 4294901760
    %v2170 = vsub.f32 %v1814, %v2169
    %2171 = vmatpush.msra.mxu0 %v2170
    %v2172 = vand.u32 %v1813, 4294901760
    %v2173 = vsub.f32 %v1813, %v2172
    %2174 = vmatpush.msra.mxu0 %v2173
    %v2175 = vand.u32 %v1812, 4294901760
    %v2176 = vsub.f32 %v1812, %v2175
    %2177 = vmatpush.msra.mxu0 %v2176
    %v2178 = vand.u32 %v1811, 4294901760
    %v2179 = vsub.f32 %v1811, %v2178
    %2180 = vmatpush.msra.mxu0 %v2179
    %v2181 = vand.u32 %v1810, 4294901760
    %v2182 = vsub.f32 %v1810, %v2181
    %2183 = vmatpush.msra.mxu0 %v2182
    %v2184 = vand.u32 %v1809, 4294901760
    %v2185 = vsub.f32 %v1809, %v2184
    %2186 = vmatpush.msra.mxu0 %v2185
    %v2187 = vand.u32 %v1808, 4294901760
    %v2188 = vsub.f32 %v1808, %v2187
    %2189 = vmatpush.msra.mxu0 %v2188
    %v2190 = vand.u32 %v1807, 4294901760
    %v2191 = vsub.f32 %v1807, %v2190
    %2192 = vmatpush.msra.mxu0 %v2191
    %v2193 = vand.u32 %v1806, 4294901760
    %v2194 = vsub.f32 %v1806, %v2193
    %2195 = vmatpush.msra.mxu0 %v2194
    %v2196 = vand.u32 %v1759, 4294901760
    %v2197 = vsub.f32 %v1759, %v2196
    %2198 = vmatmul.f32.gmra.mxu0 %v2197
    %v2199 = vpop.f32.mrf.mxu0
    %v2200 = vadd.f32 %v2086, %v2199
    %v2201 = vand.u32 %v1762, 4294901760
    %v2202 = vsub.f32 %v1762, %v2201
    %2203 = vmatmul.f32.gmra.mxu0 %v2202
    %v2204 = vpop.f32.mrf.mxu0
    %v2205 = vadd.f32 %v2090, %v2204
    %v2206 = vand.u32 %v1765, 4294901760
    %v2207 = vsub.f32 %v1765, %v2206
    %2208 = vmatmul.f32.gmra.mxu0 %v2207
    %v2209 = vpop.f32.mrf.mxu0
    %v2210 = vadd.f32 %v2094, %v2209
    %v2211 = vand.u32 %v1768, 4294901760
    %v2212 = vsub.f32 %v1768, %v2211
    %2213 = vmatmul.f32.gmra.mxu0 %v2212
    %v2214 = vpop.f32.mrf.mxu0
    %v2215 = vadd.f32 %v2098, %v2214
    %v2216 = vand.u32 %v1771, 4294901760
    %v2217 = vsub.f32 %v1771, %v2216
    %2218 = vmatmul.f32.gmra.mxu0 %v2217
    %v2219 = vpop.f32.mrf.mxu0
    %v2220 = vadd.f32 %v2102, %v2219
    %v2221 = vand.u32 %v1774, 4294901760
    %v2222 = vsub.f32 %v1774, %v2221
    %2223 = vmatmul.f32.gmra.mxu0 %v2222
    %v2224 = vpop.f32.mrf.mxu0
    %v2225 = vadd.f32 %v2106, %v2224
    %v2226 = vand.u32 %v1777, 4294901760
    %v2227 = vsub.f32 %v1777, %v2226
    %2228 = vmatmul.f32.gmra.mxu0 %v2227
    %v2229 = vpop.f32.mrf.mxu0
    %v2230 = vadd.f32 %v2110, %v2229
    %v2231 = vand.u32 %v1780, 4294901760
    %v2232 = vsub.f32 %v1780, %v2231
    %2233 = vmatmul.f32.gmra.mxu0 %v2232
    %v2234 = vpop.f32.mrf.mxu0
    %v2235 = vadd.f32 %v2114, %v2234
    %v2236 = vand.u32 %v1783, 4294901760
    %v2237 = vsub.f32 %v1783, %v2236
    %2238 = vmatmul.f32.gmra.mxu0 %v2237
    %v2239 = vpop.f32.mrf.mxu0
    %v2240 = vadd.f32 %v2118, %v2239
    %v2241 = vand.u32 %v1786, 4294901760
    %v2242 = vsub.f32 %v1786, %v2241
    %2243 = vmatmul.f32.gmra.mxu0 %v2242
    %v2244 = vpop.f32.mrf.mxu0
    %v2245 = vadd.f32 %v2122, %v2244
    %v2246 = vand.u32 %v1789, 4294901760
    %v2247 = vsub.f32 %v1789, %v2246
    %2248 = vmatmul.f32.gmra.mxu0 %v2247
    %v2249 = vpop.f32.mrf.mxu0
    %v2250 = vadd.f32 %v2126, %v2249
    %v2251 = vand.u32 %v1792, 4294901760
    %v2252 = vsub.f32 %v1792, %v2251
    %2253 = vmatmul.f32.gmra.mxu0 %v2252
    %v2254 = vpop.f32.mrf.mxu0
    %v2255 = vadd.f32 %v2130, %v2254
    %v2256 = vand.u32 %v1795, 4294901760
    %v2257 = vsub.f32 %v1795, %v2256
    %2258 = vmatmul.f32.gmra.mxu0 %v2257
    %v2259 = vpop.f32.mrf.mxu0
    %v2260 = vadd.f32 %v2134, %v2259
    %v2261 = vand.u32 %v1798, 4294901760
    %v2262 = vsub.f32 %v1798, %v2261
    %2263 = vmatmul.f32.gmra.mxu0 %v2262
    %v2264 = vpop.f32.mrf.mxu0
    %v2265 = vadd.f32 %v2138, %v2264
    %v2266 = vand.u32 %v1801, 4294901760
    %v2267 = vsub.f32 %v1801, %v2266
    %2268 = vmatmul.f32.gmra.mxu0 %v2267
    %v2269 = vpop.f32.mrf.mxu0
    %v2270 = vadd.f32 %v2142, %v2269
    %v2271 = vand.u32 %v1804, 4294901760
    %v2272 = vsub.f32 %v1804, %v2271
    %2273 = vmatmul.f32.gmra.mxu0 %v2272
    %v2274 = vpop.f32.mrf.mxu0
    %v2275 = vadd.f32 %v2146, %v2274
    %2276 = vdwg.mxu0
    %v2277 = vand.u32 %v1821, 4294901760
    %2278 = vmatpush.msra.mxu0 %v2277
    %v2279 = vand.u32 %v1820, 4294901760
    %2280 = vmatpush.msra.mxu0 %v2279
    %v2281 = vand.u32 %v1819, 4294901760
    %2282 = vmatpush.msra.mxu0 %v2281
    %v2283 = vand.u32 %v1818, 4294901760
    %2284 = vmatpush.msra.mxu0 %v2283
    %v2285 = vand.u32 %v1817, 4294901760
    %2286 = vmatpush.msra.mxu0 %v2285
    %v2287 = vand.u32 %v1816, 4294901760
    %2288 = vmatpush.msra.mxu0 %v2287
    %v2289 = vand.u32 %v1815, 4294901760
    %2290 = vmatpush.msra.mxu0 %v2289
    %v2291 = vand.u32 %v1814, 4294901760
    %2292 = vmatpush.msra.mxu0 %v2291
    %v2293 = vand.u32 %v1813, 4294901760
    %2294 = vmatpush.msra.mxu0 %v2293
    %v2295 = vand.u32 %v1812, 4294901760
    %2296 = vmatpush.msra.mxu0 %v2295
    %v2297 = vand.u32 %v1811, 4294901760
    %2298 = vmatpush.msra.mxu0 %v2297
    %v2299 = vand.u32 %v1810, 4294901760
    %2300 = vmatpush.msra.mxu0 %v2299
    %v2301 = vand.u32 %v1809, 4294901760
    %2302 = vmatpush.msra.mxu0 %v2301
    %v2303 = vand.u32 %v1808, 4294901760
    %2304 = vmatpush.msra.mxu0 %v2303
    %v2305 = vand.u32 %v1807, 4294901760
    %2306 = vmatpush.msra.mxu0 %v2305
    %v2307 = vand.u32 %v1806, 4294901760
    %2308 = vmatpush.msra.mxu0 %v2307
    %v2309 = vand.u32 %v1759, 4294901760
    %v2310 = vsub.f32 %v1759, %v2309
    %v2311 = vand.u32 %v2310, 4294901760
    %2312 = vmatmul.f32.gmra.mxu0 %v2311
    %v2313 = vpop.f32.mrf.mxu0
    %v2314 = vadd.f32 %v2200, %v2313
    %v2315 = vand.u32 %v1762, 4294901760
    %v2316 = vsub.f32 %v1762, %v2315
    %v2317 = vand.u32 %v2316, 4294901760
    %2318 = vmatmul.f32.gmra.mxu0 %v2317
    %v2319 = vpop.f32.mrf.mxu0
    %v2320 = vadd.f32 %v2205, %v2319
    %v2321 = vand.u32 %v1765, 4294901760
    %v2322 = vsub.f32 %v1765, %v2321
    %v2323 = vand.u32 %v2322, 4294901760
    %2324 = vmatmul.f32.gmra.mxu0 %v2323
    %v2325 = vpop.f32.mrf.mxu0
    %v2326 = vadd.f32 %v2210, %v2325
    %v2327 = vand.u32 %v1768, 4294901760
    %v2328 = vsub.f32 %v1768, %v2327
    %v2329 = vand.u32 %v2328, 4294901760
    %2330 = vmatmul.f32.gmra.mxu0 %v2329
    %v2331 = vpop.f32.mrf.mxu0
    %v2332 = vadd.f32 %v2215, %v2331
    %v2333 = vand.u32 %v1771, 4294901760
    %v2334 = vsub.f32 %v1771, %v2333
    %v2335 = vand.u32 %v2334, 4294901760
    %2336 = vmatmul.f32.gmra.mxu0 %v2335
    %v2337 = vpop.f32.mrf.mxu0
    %v2338 = vadd.f32 %v2220, %v2337
    %v2339 = vand.u32 %v1774, 4294901760
    %v2340 = vsub.f32 %v1774, %v2339
    %v2341 = vand.u32 %v2340, 4294901760
    %2342 = vmatmul.f32.gmra.mxu0 %v2341
    %v2343 = vpop.f32.mrf.mxu0
    %v2344 = vadd.f32 %v2225, %v2343
    %v2345 = vand.u32 %v1777, 4294901760
    %v2346 = vsub.f32 %v1777, %v2345
    %v2347 = vand.u32 %v2346, 4294901760
    %2348 = vmatmul.f32.gmra.mxu0 %v2347
    %v2349 = vpop.f32.mrf.mxu0
    %v2350 = vadd.f32 %v2230, %v2349
    %v2351 = vand.u32 %v1780, 4294901760
    %v2352 = vsub.f32 %v1780, %v2351
    %v2353 = vand.u32 %v2352, 4294901760
    %2354 = vmatmul.f32.gmra.mxu0 %v2353
    %v2355 = vpop.f32.mrf.mxu0
    %v2356 = vadd.f32 %v2235, %v2355
    %v2357 = vand.u32 %v1783, 4294901760
    %v2358 = vsub.f32 %v1783, %v2357
    %v2359 = vand.u32 %v2358, 4294901760
    %2360 = vmatmul.f32.gmra.mxu0 %v2359
    %v2361 = vpop.f32.mrf.mxu0
    %v2362 = vadd.f32 %v2240, %v2361
    %v2363 = vand.u32 %v1786, 4294901760
    %v2364 = vsub.f32 %v1786, %v2363
    %v2365 = vand.u32 %v2364, 4294901760
    %2366 = vmatmul.f32.gmra.mxu0 %v2365
    %v2367 = vpop.f32.mrf.mxu0
    %v2368 = vadd.f32 %v2245, %v2367
    %v2369 = vand.u32 %v1789, 4294901760
    %v2370 = vsub.f32 %v1789, %v2369
    %v2371 = vand.u32 %v2370, 4294901760
    %2372 = vmatmul.f32.gmra.mxu0 %v2371
    %v2373 = vpop.f32.mrf.mxu0
    %v2374 = vadd.f32 %v2250, %v2373
    %v2375 = vand.u32 %v1792, 4294901760
    %v2376 = vsub.f32 %v1792, %v2375
    %v2377 = vand.u32 %v2376, 4294901760
    %2378 = vmatmul.f32.gmra.mxu0 %v2377
    %v2379 = vpop.f32.mrf.mxu0
    %v2380 = vadd.f32 %v2255, %v2379
    %v2381 = vand.u32 %v1795, 4294901760
    %v2382 = vsub.f32 %v1795, %v2381
    %v2383 = vand.u32 %v2382, 4294901760
    %2384 = vmatmul.f32.gmra.mxu0 %v2383
    %v2385 = vpop.f32.mrf.mxu0
    %v2386 = vadd.f32 %v2260, %v2385
    %v2387 = vand.u32 %v1798, 4294901760
    %v2388 = vsub.f32 %v1798, %v2387
    %v2389 = vand.u32 %v2388, 4294901760
    %2390 = vmatmul.f32.gmra.mxu0 %v2389
    %v2391 = vpop.f32.mrf.mxu0
    %v2392 = vadd.f32 %v2265, %v2391
    %v2393 = vand.u32 %v1801, 4294901760
    %v2394 = vsub.f32 %v1801, %v2393
    %v2395 = vand.u32 %v2394, 4294901760
    %2396 = vmatmul.f32.gmra.mxu0 %v2395
    %v2397 = vpop.f32.mrf.mxu0
    %v2398 = vadd.f32 %v2270, %v2397
    %v2399 = vand.u32 %v1804, 4294901760
    %v2400 = vsub.f32 %v1804, %v2399
    %v2401 = vand.u32 %v2400, 4294901760
    %2402 = vmatmul.f32.gmra.mxu0 %v2401
    %v2403 = vpop.f32.mrf.mxu0
    %v2404 = vadd.f32 %v2275, %v2403
    %2405 = vdwg.mxu0
    %v2406 = vand.u32 %v1821, 4294901760
    %v2407 = vsub.f32 %v1821, %v2406
    %v2408 = vand.u32 %v2407, 4294901760
    %2409 = vmatpush.msra.mxu0 %v2408
    %v2410 = vand.u32 %v1820, 4294901760
    %v2411 = vsub.f32 %v1820, %v2410
    %v2412 = vand.u32 %v2411, 4294901760
    %2413 = vmatpush.msra.mxu0 %v2412
    %v2414 = vand.u32 %v1819, 4294901760
    %v2415 = vsub.f32 %v1819, %v2414
    %v2416 = vand.u32 %v2415, 4294901760
    %2417 = vmatpush.msra.mxu0 %v2416
    %v2418 = vand.u32 %v1818, 4294901760
    %v2419 = vsub.f32 %v1818, %v2418
    %v2420 = vand.u32 %v2419, 4294901760
    %2421 = vmatpush.msra.mxu0 %v2420
    %v2422 = vand.u32 %v1817, 4294901760
    %v2423 = vsub.f32 %v1817, %v2422
    %v2424 = vand.u32 %v2423, 4294901760
    %2425 = vmatpush.msra.mxu0 %v2424
    %v2426 = vand.u32 %v1816, 4294901760
    %v2427 = vsub.f32 %v1816, %v2426
    %v2428 = vand.u32 %v2427, 4294901760
    %2429 = vmatpush.msra.mxu0 %v2428
    %v2430 = vand.u32 %v1815, 4294901760
    %v2431 = vsub.f32 %v1815, %v2430
    %v2432 = vand.u32 %v2431, 4294901760
    %2433 = vmatpush.msra.mxu0 %v2432
    %v2434 = vand.u32 %v1814, 4294901760
    %v2435 = vsub.f32 %v1814, %v2434
    %v2436 = vand.u32 %v2435, 4294901760
    %2437 = vmatpush.msra.mxu0 %v2436
    %v2438 = vand.u32 %v1813, 4294901760
    %v2439 = vsub.f32 %v1813, %v2438
    %v2440 = vand.u32 %v2439, 4294901760
    %2441 = vmatpush.msra.mxu0 %v2440
    %v2442 = vand.u32 %v1812, 4294901760
    %v2443 = vsub.f32 %v1812, %v2442
    %v2444 = vand.u32 %v2443, 4294901760
    %2445 = vmatpush.msra.mxu0 %v2444
    %v2446 = vand.u32 %v1811, 4294901760
    %v2447 = vsub.f32 %v1811, %v2446
    %v2448 = vand.u32 %v2447, 4294901760
    %2449 = vmatpush.msra.mxu0 %v2448
    %v2450 = vand.u32 %v1810, 4294901760
    %v2451 = vsub.f32 %v1810, %v2450
    %v2452 = vand.u32 %v2451, 4294901760
    %2453 = vmatpush.msra.mxu0 %v2452
    %v2454 = vand.u32 %v1809, 4294901760
    %v2455 = vsub.f32 %v1809, %v2454
    %v2456 = vand.u32 %v2455, 4294901760
    %2457 = vmatpush.msra.mxu0 %v2456
    %v2458 = vand.u32 %v1808, 4294901760
    %v2459 = vsub.f32 %v1808, %v2458
    %v2460 = vand.u32 %v2459, 4294901760
    %2461 = vmatpush.msra.mxu0 %v2460
    %v2462 = vand.u32 %v1807, 4294901760
    %v2463 = vsub.f32 %v1807, %v2462
    %v2464 = vand.u32 %v2463, 4294901760
    %2465 = vmatpush.msra.mxu0 %v2464
    %v2466 = vand.u32 %v1806, 4294901760
    %v2467 = vsub.f32 %v1806, %v2466
    %v2468 = vand.u32 %v2467, 4294901760
    %2469 = vmatpush.msra.mxu0 %v2468
    %v2470 = vand.u32 %v1759, 4294901760
    %2471 = vmatmul.f32.gmra.mxu0 %v2470
    %v2472 = vpop.f32.mrf.mxu0
    %v2473 = vadd.f32 %v2314, %v2472
    %v2474 = vand.u32 %v1762, 4294901760
    %2475 = vmatmul.f32.gmra.mxu0 %v2474
    %v2476 = vpop.f32.mrf.mxu0
    %v2477 = vadd.f32 %v2320, %v2476
    %v2478 = vand.u32 %v1765, 4294901760
    %2479 = vmatmul.f32.gmra.mxu0 %v2478
    %v2480 = vpop.f32.mrf.mxu0
    %v2481 = vadd.f32 %v2326, %v2480
    %v2482 = vand.u32 %v1768, 4294901760
    %2483 = vmatmul.f32.gmra.mxu0 %v2482
    %v2484 = vpop.f32.mrf.mxu0
    %v2485 = vadd.f32 %v2332, %v2484
    %v2486 = vand.u32 %v1771, 4294901760
    %2487 = vmatmul.f32.gmra.mxu0 %v2486
    %v2488 = vpop.f32.mrf.mxu0
    %v2489 = vadd.f32 %v2338, %v2488
    %v2490 = vand.u32 %v1774, 4294901760
    %2491 = vmatmul.f32.gmra.mxu0 %v2490
    %v2492 = vpop.f32.mrf.mxu0
    %v2493 = vadd.f32 %v2344, %v2492
    %v2494 = vand.u32 %v1777, 4294901760
    %2495 = vmatmul.f32.gmra.mxu0 %v2494
    %v2496 = vpop.f32.mrf.mxu0
    %v2497 = vadd.f32 %v2350, %v2496
    %v2498 = vand.u32 %v1780, 4294901760
    %2499 = vmatmul.f32.gmra.mxu0 %v2498
    %v2500 = vpop.f32.mrf.mxu0
    %v2501 = vadd.f32 %v2356, %v2500
    %v2502 = vand.u32 %v1783, 4294901760
    %2503 = vmatmul.f32.gmra.mxu0 %v2502
    %v2504 = vpop.f32.mrf.mxu0
    %v2505 = vadd.f32 %v2362, %v2504
    %v2506 = vand.u32 %v1786, 4294901760
    %2507 = vmatmul.f32.gmra.mxu0 %v2506
    %v2508 = vpop.f32.mrf.mxu0
    %v2509 = vadd.f32 %v2368, %v2508
    %v2510 = vand.u32 %v1789, 4294901760
    %2511 = vmatmul.f32.gmra.mxu0 %v2510
    %v2512 = vpop.f32.mrf.mxu0
    %v2513 = vadd.f32 %v2374, %v2512
    %v2514 = vand.u32 %v1792, 4294901760
    %2515 = vmatmul.f32.gmra.mxu0 %v2514
    %v2516 = vpop.f32.mrf.mxu0
    %v2517 = vadd.f32 %v2380, %v2516
    %v2518 = vand.u32 %v1795, 4294901760
    %2519 = vmatmul.f32.gmra.mxu0 %v2518
    %v2520 = vpop.f32.mrf.mxu0
    %v2521 = vadd.f32 %v2386, %v2520
    %v2522 = vand.u32 %v1798, 4294901760
    %2523 = vmatmul.f32.gmra.mxu0 %v2522
    %v2524 = vpop.f32.mrf.mxu0
    %v2525 = vadd.f32 %v2392, %v2524
    %v2526 = vand.u32 %v1801, 4294901760
    %2527 = vmatmul.f32.gmra.mxu0 %v2526
    %v2528 = vpop.f32.mrf.mxu0
    %v2529 = vadd.f32 %v2398, %v2528
    %v2530 = vand.u32 %v1804, 4294901760
    %2531 = vmatmul.f32.gmra.mxu0 %v2530
    %v2532 = vpop.f32.mrf.mxu0
    %v2533 = vadd.f32 %v2404, %v2532
    %2534 = vdwg.mxu0
    %v2535 = vand.u32 %v1821, 4294901760
    %2536 = vmatpush.msra.mxu0 %v2535
    %v2537 = vand.u32 %v1820, 4294901760
    %2538 = vmatpush.msra.mxu0 %v2537
    %v2539 = vand.u32 %v1819, 4294901760
    %2540 = vmatpush.msra.mxu0 %v2539
    %v2541 = vand.u32 %v1818, 4294901760
    %2542 = vmatpush.msra.mxu0 %v2541
    %v2543 = vand.u32 %v1817, 4294901760
    %2544 = vmatpush.msra.mxu0 %v2543
    %v2545 = vand.u32 %v1816, 4294901760
    %2546 = vmatpush.msra.mxu0 %v2545
    %v2547 = vand.u32 %v1815, 4294901760
    %2548 = vmatpush.msra.mxu0 %v2547
    %v2549 = vand.u32 %v1814, 4294901760
    %2550 = vmatpush.msra.mxu0 %v2549
    %v2551 = vand.u32 %v1813, 4294901760
    %2552 = vmatpush.msra.mxu0 %v2551
    %v2553 = vand.u32 %v1812, 4294901760
    %2554 = vmatpush.msra.mxu0 %v2553
    %v2555 = vand.u32 %v1811, 4294901760
    %2556 = vmatpush.msra.mxu0 %v2555
    %v2557 = vand.u32 %v1810, 4294901760
    %2558 = vmatpush.msra.mxu0 %v2557
    %v2559 = vand.u32 %v1809, 4294901760
    %2560 = vmatpush.msra.mxu0 %v2559
    %v2561 = vand.u32 %v1808, 4294901760
    %2562 = vmatpush.msra.mxu0 %v2561
    %v2563 = vand.u32 %v1807, 4294901760
    %2564 = vmatpush.msra.mxu0 %v2563
    %v2565 = vand.u32 %v1806, 4294901760
    %2566 = vmatpush.msra.mxu0 %v2565
    %v2567 = vand.u32 %v1759, 4294901760
    %2568 = vmatmul.f32.gmra.mxu0 %v2567
    %v2569 = vpop.f32.mrf.mxu0
    %v2570 = vadd.f32 %v2473, %v2569
    %v2571 = vand.u32 %v1762, 4294901760
    %2572 = vmatmul.f32.gmra.mxu0 %v2571
    %v2573 = vpop.f32.mrf.mxu0
    %v2574 = vadd.f32 %v2477, %v2573
    %v2575 = vand.u32 %v1765, 4294901760
    %2576 = vmatmul.f32.gmra.mxu0 %v2575
    %v2577 = vpop.f32.mrf.mxu0
    %v2578 = vadd.f32 %v2481, %v2577
    %v2579 = vand.u32 %v1768, 4294901760
    %2580 = vmatmul.f32.gmra.mxu0 %v2579
    %v2581 = vpop.f32.mrf.mxu0
    %v2582 = vadd.f32 %v2485, %v2581
    %v2583 = vand.u32 %v1771, 4294901760
    %2584 = vmatmul.f32.gmra.mxu0 %v2583
    %v2585 = vpop.f32.mrf.mxu0
    %v2586 = vadd.f32 %v2489, %v2585
    %v2587 = vand.u32 %v1774, 4294901760
    %2588 = vmatmul.f32.gmra.mxu0 %v2587
    %v2589 = vpop.f32.mrf.mxu0
    %v2590 = vadd.f32 %v2493, %v2589
    %v2591 = vand.u32 %v1777, 4294901760
    %2592 = vmatmul.f32.gmra.mxu0 %v2591
    %v2593 = vpop.f32.mrf.mxu0
    %v2594 = vadd.f32 %v2497, %v2593
    %v2595 = vand.u32 %v1780, 4294901760
    %2596 = vmatmul.f32.gmra.mxu0 %v2595
    %v2597 = vpop.f32.mrf.mxu0
    %v2598 = vadd.f32 %v2501, %v2597
    %v2599 = vand.u32 %v1783, 4294901760
    %2600 = vmatmul.f32.gmra.mxu0 %v2599
    %v2601 = vpop.f32.mrf.mxu0
    %v2602 = vadd.f32 %v2505, %v2601
    %v2603 = vand.u32 %v1786, 4294901760
    %2604 = vmatmul.f32.gmra.mxu0 %v2603
    %v2605 = vpop.f32.mrf.mxu0
    %v2606 = vadd.f32 %v2509, %v2605
    %v2607 = vand.u32 %v1789, 4294901760
    %2608 = vmatmul.f32.gmra.mxu0 %v2607
    %v2609 = vpop.f32.mrf.mxu0
    %v2610 = vadd.f32 %v2513, %v2609
    %v2611 = vand.u32 %v1792, 4294901760
    %2612 = vmatmul.f32.gmra.mxu0 %v2611
    %v2613 = vpop.f32.mrf.mxu0
    %v2614 = vadd.f32 %v2517, %v2613
    %v2615 = vand.u32 %v1795, 4294901760
    %2616 = vmatmul.f32.gmra.mxu0 %v2615
    %v2617 = vpop.f32.mrf.mxu0
    %v2618 = vadd.f32 %v2521, %v2617
    %v2619 = vand.u32 %v1798, 4294901760
    %2620 = vmatmul.f32.gmra.mxu0 %v2619
    %v2621 = vpop.f32.mrf.mxu0
    %v2622 = vadd.f32 %v2525, %v2621
    %v2623 = vand.u32 %v1801, 4294901760
    %2624 = vmatmul.f32.gmra.mxu0 %v2623
    %v2625 = vpop.f32.mrf.mxu0
    %v2626 = vadd.f32 %v2529, %v2625
    %v2627 = vand.u32 %v1804, 4294901760
    %2628 = vmatmul.f32.gmra.mxu0 %v2627
    %v2629 = vpop.f32.mrf.mxu0
    %v2630 = vadd.f32 %v2533, %v2629
    %2631 = vdwg.mxu0
    %v2632 = vmax.f32 %v2570, 0.0
    %v2633 = vmax.f32 %v2574, 0.0
    %v2634 = vmax.f32 %v2578, 0.0
    %v2635 = vmax.f32 %v2582, 0.0
    %v2636 = vmax.f32 %v2586, 0.0
    %v2637 = vmax.f32 %v2590, 0.0
    %v2638 = vmax.f32 %v2594, 0.0
    %v2639 = vmax.f32 %v2598, 0.0
    %v2640 = vmax.f32 %v2602, 0.0
    %v2641 = vmax.f32 %v2606, 0.0
    %v2642 = vmax.f32 %v2610, 0.0
    %v2643 = vmax.f32 %v2614, 0.0
    %v2644 = vmax.f32 %v2618, 0.0
    %v2645 = vmax.f32 %v2622, 0.0
    %v2646 = vmax.f32 %v2626, 0.0
    %v2647 = vmax.f32 %v2630, 0.0
    %v2648 = vand.u32 %v2647, 4294901760
    %2649 = vmatpush.msra.mxu0 %v2648
    %v2650 = vand.u32 %v2646, 4294901760
    %2651 = vmatpush.msra.mxu0 %v2650
    %v2652 = vand.u32 %v2645, 4294901760
    %2653 = vmatpush.msra.mxu0 %v2652
    %v2654 = vand.u32 %v2644, 4294901760
    %2655 = vmatpush.msra.mxu0 %v2654
    %v2656 = vand.u32 %v2643, 4294901760
    %2657 = vmatpush.msra.mxu0 %v2656
    %v2658 = vand.u32 %v2642, 4294901760
    %2659 = vmatpush.msra.mxu0 %v2658
    %v2660 = vand.u32 %v2641, 4294901760
    %2661 = vmatpush.msra.mxu0 %v2660
    %v2662 = vand.u32 %v2640, 4294901760
    %2663 = vmatpush.msra.mxu0 %v2662
    %v2664 = vand.u32 %v2639, 4294901760
    %2665 = vmatpush.msra.mxu0 %v2664
    %v2666 = vand.u32 %v2638, 4294901760
    %2667 = vmatpush.msra.mxu0 %v2666
    %v2668 = vand.u32 %v2637, 4294901760
    %2669 = vmatpush.msra.mxu0 %v2668
    %v2670 = vand.u32 %v2636, 4294901760
    %2671 = vmatpush.msra.mxu0 %v2670
    %v2672 = vand.u32 %v2635, 4294901760
    %2673 = vmatpush.msra.mxu0 %v2672
    %v2674 = vand.u32 %v2634, 4294901760
    %2675 = vmatpush.msra.mxu0 %v2674
    %v2676 = vand.u32 %v2633, 4294901760
    %2677 = vmatpush.msra.mxu0 %v2676
    %v2678 = vand.u32 %v2632, 4294901760
    %2679 = vmatpush.msra.mxu0 %v2678
    %v2680 = vsub.f32 %v222, %v222
    %v2681 = vand.u32 %v2680, 4294901760
    %v2682 = vsub.f32 %v2680, %v2681
    %v2683 = vand.u32 %v2682, 4294901760
    %2684 = vmatmul.f32.gmra.mxu0 %v2683
    %v2685 = vpop.f32.mrf.mxu0
    %v2686 = vadd.f32 0.0, %v2685
    %v2687 = vsub.f32 %v223, %v223
    %v2688 = vand.u32 %v2687, 4294901760
    %v2689 = vsub.f32 %v2687, %v2688
    %v2690 = vand.u32 %v2689, 4294901760
    %2691 = vmatmul.f32.gmra.mxu0 %v2690
    %v2692 = vpop.f32.mrf.mxu0
    %v2693 = vadd.f32 0.0, %v2692
    %v2694 = vsub.f32 %v224, %v224
    %v2695 = vand.u32 %v2694, 4294901760
    %v2696 = vsub.f32 %v2694, %v2695
    %v2697 = vand.u32 %v2696, 4294901760
    %2698 = vmatmul.f32.gmra.mxu0 %v2697
    %v2699 = vpop.f32.mrf.mxu0
    %v2700 = vadd.f32 0.0, %v2699
    %v2701 = vsub.f32 %v225, %v225
    %v2702 = vand.u32 %v2701, 4294901760
    %v2703 = vsub.f32 %v2701, %v2702
    %v2704 = vand.u32 %v2703, 4294901760
    %2705 = vmatmul.f32.gmra.mxu0 %v2704
    %v2706 = vpop.f32.mrf.mxu0
    %v2707 = vadd.f32 0.0, %v2706
    %v2708 = vsub.f32 %v226, %v226
    %v2709 = vand.u32 %v2708, 4294901760
    %v2710 = vsub.f32 %v2708, %v2709
    %v2711 = vand.u32 %v2710, 4294901760
    %2712 = vmatmul.f32.gmra.mxu0 %v2711
    %v2713 = vpop.f32.mrf.mxu0
    %v2714 = vadd.f32 0.0, %v2713
    %v2715 = vsub.f32 %v227, %v227
    %v2716 = vand.u32 %v2715, 4294901760
    %v2717 = vsub.f32 %v2715, %v2716
    %v2718 = vand.u32 %v2717, 4294901760
    %2719 = vmatmul.f32.gmra.mxu0 %v2718
    %v2720 = vpop.f32.mrf.mxu0
    %v2721 = vadd.f32 0.0, %v2720
    %v2722 = vsub.f32 %v228, %v228
    %v2723 = vand.u32 %v2722, 4294901760
    %v2724 = vsub.f32 %v2722, %v2723
    %v2725 = vand.u32 %v2724, 4294901760
    %2726 = vmatmul.f32.gmra.mxu0 %v2725
    %v2727 = vpop.f32.mrf.mxu0
    %v2728 = vadd.f32 0.0, %v2727
    %v2729 = vsub.f32 %v229, %v229
    %v2730 = vand.u32 %v2729, 4294901760
    %v2731 = vsub.f32 %v2729, %v2730
    %v2732 = vand.u32 %v2731, 4294901760
    %2733 = vmatmul.f32.gmra.mxu0 %v2732
    %v2734 = vpop.f32.mrf.mxu0
    %v2735 = vadd.f32 0.0, %v2734
    %v2736 = vsub.f32 %v230, %v230
    %v2737 = vand.u32 %v2736, 4294901760
    %v2738 = vsub.f32 %v2736, %v2737
    %v2739 = vand.u32 %v2738, 4294901760
    %2740 = vmatmul.f32.gmra.mxu0 %v2739
    %v2741 = vpop.f32.mrf.mxu0
    %v2742 = vadd.f32 0.0, %v2741
    %v2743 = vsub.f32 %v231, %v231
    %v2744 = vand.u32 %v2743, 4294901760
    %v2745 = vsub.f32 %v2743, %v2744
    %v2746 = vand.u32 %v2745, 4294901760
    %2747 = vmatmul.f32.gmra.mxu0 %v2746
    %v2748 = vpop.f32.mrf.mxu0
    %v2749 = vadd.f32 0.0, %v2748
    %v2750 = vsub.f32 %v232, %v232
    %v2751 = vand.u32 %v2750, 4294901760
    %v2752 = vsub.f32 %v2750, %v2751
    %v2753 = vand.u32 %v2752, 4294901760
    %2754 = vmatmul.f32.gmra.mxu0 %v2753
    %v2755 = vpop.f32.mrf.mxu0
    %v2756 = vadd.f32 0.0, %v2755
    %v2757 = vsub.f32 %v233, %v233
    %v2758 = vand.u32 %v2757, 4294901760
    %v2759 = vsub.f32 %v2757, %v2758
    %v2760 = vand.u32 %v2759, 4294901760
    %2761 = vmatmul.f32.gmra.mxu0 %v2760
    %v2762 = vpop.f32.mrf.mxu0
    %v2763 = vadd.f32 0.0, %v2762
    %v2764 = vsub.f32 %v234, %v234
    %v2765 = vand.u32 %v2764, 4294901760
    %v2766 = vsub.f32 %v2764, %v2765
    %v2767 = vand.u32 %v2766, 4294901760
    %2768 = vmatmul.f32.gmra.mxu0 %v2767
    %v2769 = vpop.f32.mrf.mxu0
    %v2770 = vadd.f32 0.0, %v2769
    %v2771 = vsub.f32 %v235, %v235
    %v2772 = vand.u32 %v2771, 4294901760
    %v2773 = vsub.f32 %v2771, %v2772
    %v2774 = vand.u32 %v2773, 4294901760
    %2775 = vmatmul.f32.gmra.mxu0 %v2774
    %v2776 = vpop.f32.mrf.mxu0
    %v2777 = vadd.f32 0.0, %v2776
    %v2778 = vsub.f32 %v236, %v236
    %v2779 = vand.u32 %v2778, 4294901760
    %v2780 = vsub.f32 %v2778, %v2779
    %v2781 = vand.u32 %v2780, 4294901760
    %2782 = vmatmul.f32.gmra.mxu0 %v2781
    %v2783 = vpop.f32.mrf.mxu0
    %v2784 = vadd.f32 0.0, %v2783
    %v2785 = vsub.f32 %v237, %v237
    %v2786 = vand.u32 %v2785, 4294901760
    %v2787 = vsub.f32 %v2785, %v2786
    %v2788 = vand.u32 %v2787, 4294901760
    %2789 = vmatmul.f32.gmra.mxu0 %v2788
    %v2790 = vpop.f32.mrf.mxu0
    %v2791 = vadd.f32 0.0, %v2790
    %2792 = vdwg.mxu0
    %v2793 = vand.u32 %v2647, 4294901760
    %v2794 = vsub.f32 %v2647, %v2793
    %v2795 = vand.u32 %v2794, 4294901760
    %v2796 = vsub.f32 %v2794, %v2795
    %v2797 = vand.u32 %v2796, 4294901760
    %2798 = vmatpush.msra.mxu0 %v2797
    %v2799 = vand.u32 %v2646, 4294901760
    %v2800 = vsub.f32 %v2646, %v2799
    %v2801 = vand.u32 %v2800, 4294901760
    %v2802 = vsub.f32 %v2800, %v2801
    %v2803 = vand.u32 %v2802, 4294901760
    %2804 = vmatpush.msra.mxu0 %v2803
    %v2805 = vand.u32 %v2645, 4294901760
    %v2806 = vsub.f32 %v2645, %v2805
    %v2807 = vand.u32 %v2806, 4294901760
    %v2808 = vsub.f32 %v2806, %v2807
    %v2809 = vand.u32 %v2808, 4294901760
    %2810 = vmatpush.msra.mxu0 %v2809
    %v2811 = vand.u32 %v2644, 4294901760
    %v2812 = vsub.f32 %v2644, %v2811
    %v2813 = vand.u32 %v2812, 4294901760
    %v2814 = vsub.f32 %v2812, %v2813
    %v2815 = vand.u32 %v2814, 4294901760
    %2816 = vmatpush.msra.mxu0 %v2815
    %v2817 = vand.u32 %v2643, 4294901760
    %v2818 = vsub.f32 %v2643, %v2817
    %v2819 = vand.u32 %v2818, 4294901760
    %v2820 = vsub.f32 %v2818, %v2819
    %v2821 = vand.u32 %v2820, 4294901760
    %2822 = vmatpush.msra.mxu0 %v2821
    %v2823 = vand.u32 %v2642, 4294901760
    %v2824 = vsub.f32 %v2642, %v2823
    %v2825 = vand.u32 %v2824, 4294901760
    %v2826 = vsub.f32 %v2824, %v2825
    %v2827 = vand.u32 %v2826, 4294901760
    %2828 = vmatpush.msra.mxu0 %v2827
    %v2829 = vand.u32 %v2641, 4294901760
    %v2830 = vsub.f32 %v2641, %v2829
    %v2831 = vand.u32 %v2830, 4294901760
    %v2832 = vsub.f32 %v2830, %v2831
    %v2833 = vand.u32 %v2832, 4294901760
    %2834 = vmatpush.msra.mxu0 %v2833
    %v2835 = vand.u32 %v2640, 4294901760
    %v2836 = vsub.f32 %v2640, %v2835
    %v2837 = vand.u32 %v2836, 4294901760
    %v2838 = vsub.f32 %v2836, %v2837
    %v2839 = vand.u32 %v2838, 4294901760
    %2840 = vmatpush.msra.mxu0 %v2839
    %v2841 = vand.u32 %v2639, 4294901760
    %v2842 = vsub.f32 %v2639, %v2841
    %v2843 = vand.u32 %v2842, 4294901760
    %v2844 = vsub.f32 %v2842, %v2843
    %v2845 = vand.u32 %v2844, 4294901760
    %2846 = vmatpush.msra.mxu0 %v2845
    %v2847 = vand.u32 %v2638, 4294901760
    %v2848 = vsub.f32 %v2638, %v2847
    %v2849 = vand.u32 %v2848, 4294901760
    %v2850 = vsub.f32 %v2848, %v2849
    %v2851 = vand.u32 %v2850, 4294901760
    %2852 = vmatpush.msra.mxu0 %v2851
    %v2853 = vand.u32 %v2637, 4294901760
    %v2854 = vsub.f32 %v2637, %v2853
    %v2855 = vand.u32 %v2854, 4294901760
    %v2856 = vsub.f32 %v2854, %v2855
    %v2857 = vand.u32 %v2856, 4294901760
    %2858 = vmatpush.msra.mxu0 %v2857
    %v2859 = vand.u32 %v2636, 4294901760
    %v2860 = vsub.f32 %v2636, %v2859
    %v2861 = vand.u32 %v2860, 4294901760
    %v2862 = vsub.f32 %v2860, %v2861
    %v2863 = vand.u32 %v2862, 4294901760
    %2864 = vmatpush.msra.mxu0 %v2863
    %v2865 = vand.u32 %v2635, 4294901760
    %v2866 = vsub.f32 %v2635, %v2865
    %v2867 = vand.u32 %v2866, 4294901760
    %v2868 = vsub.f32 %v2866, %v2867
    %v2869 = vand.u32 %v2868, 4294901760
    %2870 = vmatpush.msra.mxu0 %v2869
    %v2871 = vand.u32 %v2634, 4294901760
    %v2872 = vsub.f32 %v2634, %v2871
    %v2873 = vand.u32 %v2872, 4294901760
    %v2874 = vsub.f32 %v2872, %v2873
    %v2875 = vand.u32 %v2874, 4294901760
    %2876 = vmatpush.msra.mxu0 %v2875
    %v2877 = vand.u32 %v2633, 4294901760
    %v2878 = vsub.f32 %v2633, %v2877
    %v2879 = vand.u32 %v2878, 4294901760
    %v2880 = vsub.f32 %v2878, %v2879
    %v2881 = vand.u32 %v2880, 4294901760
    %2882 = vmatpush.msra.mxu0 %v2881
    %v2883 = vand.u32 %v2632, 4294901760
    %v2884 = vsub.f32 %v2632, %v2883
    %v2885 = vand.u32 %v2884, 4294901760
    %v2886 = vsub.f32 %v2884, %v2885
    %v2887 = vand.u32 %v2886, 4294901760
    %2888 = vmatpush.msra.mxu0 %v2887
    %2889 = vmatmul.f32.gmra.mxu0 %v222
    %v2890 = vpop.f32.mrf.mxu0
    %v2891 = vadd.f32 %v2686, %v2890
    %2892 = vmatmul.f32.gmra.mxu0 %v223
    %v2893 = vpop.f32.mrf.mxu0
    %v2894 = vadd.f32 %v2693, %v2893
    %2895 = vmatmul.f32.gmra.mxu0 %v224
    %v2896 = vpop.f32.mrf.mxu0
    %v2897 = vadd.f32 %v2700, %v2896
    %2898 = vmatmul.f32.gmra.mxu0 %v225
    %v2899 = vpop.f32.mrf.mxu0
    %v2900 = vadd.f32 %v2707, %v2899
    %2901 = vmatmul.f32.gmra.mxu0 %v226
    %v2902 = vpop.f32.mrf.mxu0
    %v2903 = vadd.f32 %v2714, %v2902
    %2904 = vmatmul.f32.gmra.mxu0 %v227
    %v2905 = vpop.f32.mrf.mxu0
    %v2906 = vadd.f32 %v2721, %v2905
    %2907 = vmatmul.f32.gmra.mxu0 %v228
    %v2908 = vpop.f32.mrf.mxu0
    %v2909 = vadd.f32 %v2728, %v2908
    %2910 = vmatmul.f32.gmra.mxu0 %v229
    %v2911 = vpop.f32.mrf.mxu0
    %v2912 = vadd.f32 %v2735, %v2911
    %2913 = vmatmul.f32.gmra.mxu0 %v230
    %v2914 = vpop.f32.mrf.mxu0
    %v2915 = vadd.f32 %v2742, %v2914
    %2916 = vmatmul.f32.gmra.mxu0 %v231
    %v2917 = vpop.f32.mrf.mxu0
    %v2918 = vadd.f32 %v2749, %v2917
    %2919 = vmatmul.f32.gmra.mxu0 %v232
    %v2920 = vpop.f32.mrf.mxu0
    %v2921 = vadd.f32 %v2756, %v2920
    %2922 = vmatmul.f32.gmra.mxu0 %v233
    %v2923 = vpop.f32.mrf.mxu0
    %v2924 = vadd.f32 %v2763, %v2923
    %2925 = vmatmul.f32.gmra.mxu0 %v234
    %v2926 = vpop.f32.mrf.mxu0
    %v2927 = vadd.f32 %v2770, %v2926
    %2928 = vmatmul.f32.gmra.mxu0 %v235
    %v2929 = vpop.f32.mrf.mxu0
    %v2930 = vadd.f32 %v2777, %v2929
    %2931 = vmatmul.f32.gmra.mxu0 %v236
    %v2932 = vpop.f32.mrf.mxu0
    %v2933 = vadd.f32 %v2784, %v2932
    %2934 = vmatmul.f32.gmra.mxu0 %v237
    %v2935 = vpop.f32.mrf.mxu0
    %v2936 = vadd.f32 %v2791, %v2935
    %2937 = vdwg.mxu0
    %v2938 = vand.u32 %v2647, 4294901760
    %v2939 = vsub.f32 %v2647, %v2938
    %2940 = vmatpush.msra.mxu0 %v2939
    %v2941 = vand.u32 %v2646, 4294901760
    %v2942 = vsub.f32 %v2646, %v2941
    %2943 = vmatpush.msra.mxu0 %v2942
    %v2944 = vand.u32 %v2645, 4294901760
    %v2945 = vsub.f32 %v2645, %v2944
    %2946 = vmatpush.msra.mxu0 %v2945
    %v2947 = vand.u32 %v2644, 4294901760
    %v2948 = vsub.f32 %v2644, %v2947
    %2949 = vmatpush.msra.mxu0 %v2948
    %v2950 = vand.u32 %v2643, 4294901760
    %v2951 = vsub.f32 %v2643, %v2950
    %2952 = vmatpush.msra.mxu0 %v2951
    %v2953 = vand.u32 %v2642, 4294901760
    %v2954 = vsub.f32 %v2642, %v2953
    %2955 = vmatpush.msra.mxu0 %v2954
    %v2956 = vand.u32 %v2641, 4294901760
    %v2957 = vsub.f32 %v2641, %v2956
    %2958 = vmatpush.msra.mxu0 %v2957
    %v2959 = vand.u32 %v2640, 4294901760
    %v2960 = vsub.f32 %v2640, %v2959
    %2961 = vmatpush.msra.mxu0 %v2960
    %v2962 = vand.u32 %v2639, 4294901760
    %v2963 = vsub.f32 %v2639, %v2962
    %2964 = vmatpush.msra.mxu0 %v2963
    %v2965 = vand.u32 %v2638, 4294901760
    %v2966 = vsub.f32 %v2638, %v2965
    %2967 = vmatpush.msra.mxu0 %v2966
    %v2968 = vand.u32 %v2637, 4294901760
    %v2969 = vsub.f32 %v2637, %v2968
    %2970 = vmatpush.msra.mxu0 %v2969
    %v2971 = vand.u32 %v2636, 4294901760
    %v2972 = vsub.f32 %v2636, %v2971
    %2973 = vmatpush.msra.mxu0 %v2972
    %v2974 = vand.u32 %v2635, 4294901760
    %v2975 = vsub.f32 %v2635, %v2974
    %2976 = vmatpush.msra.mxu0 %v2975
    %v2977 = vand.u32 %v2634, 4294901760
    %v2978 = vsub.f32 %v2634, %v2977
    %2979 = vmatpush.msra.mxu0 %v2978
    %v2980 = vand.u32 %v2633, 4294901760
    %v2981 = vsub.f32 %v2633, %v2980
    %2982 = vmatpush.msra.mxu0 %v2981
    %v2983 = vand.u32 %v2632, 4294901760
    %v2984 = vsub.f32 %v2632, %v2983
    %2985 = vmatpush.msra.mxu0 %v2984
    %v2986 = vsub.f32 %v222, %v222
    %2987 = vmatmul.f32.gmra.mxu0 %v2986
    %v2988 = vpop.f32.mrf.mxu0
    %v2989 = vadd.f32 %v2891, %v2988
    %v2990 = vsub.f32 %v223, %v223
    %2991 = vmatmul.f32.gmra.mxu0 %v2990
    %v2992 = vpop.f32.mrf.mxu0
    %v2993 = vadd.f32 %v2894, %v2992
    %v2994 = vsub.f32 %v224, %v224
    %2995 = vmatmul.f32.gmra.mxu0 %v2994
    %v2996 = vpop.f32.mrf.mxu0
    %v2997 = vadd.f32 %v2897, %v2996
    %v2998 = vsub.f32 %v225, %v225
    %2999 = vmatmul.f32.gmra.mxu0 %v2998
    %v3000 = vpop.f32.mrf.mxu0
    %v3001 = vadd.f32 %v2900, %v3000
    %v3002 = vsub.f32 %v226, %v226
    %3003 = vmatmul.f32.gmra.mxu0 %v3002
    %v3004 = vpop.f32.mrf.mxu0
    %v3005 = vadd.f32 %v2903, %v3004
    %v3006 = vsub.f32 %v227, %v227
    %3007 = vmatmul.f32.gmra.mxu0 %v3006
    %v3008 = vpop.f32.mrf.mxu0
    %v3009 = vadd.f32 %v2906, %v3008
    %v3010 = vsub.f32 %v228, %v228
    %3011 = vmatmul.f32.gmra.mxu0 %v3010
    %v3012 = vpop.f32.mrf.mxu0
    %v3013 = vadd.f32 %v2909, %v3012
    %v3014 = vsub.f32 %v229, %v229
    %3015 = vmatmul.f32.gmra.mxu0 %v3014
    %v3016 = vpop.f32.mrf.mxu0
    %v3017 = vadd.f32 %v2912, %v3016
    %v3018 = vsub.f32 %v230, %v230
    %3019 = vmatmul.f32.gmra.mxu0 %v3018
    %v3020 = vpop.f32.mrf.mxu0
    %v3021 = vadd.f32 %v2915, %v3020
    %v3022 = vsub.f32 %v231, %v231
    %3023 = vmatmul.f32.gmra.mxu0 %v3022
    %v3024 = vpop.f32.mrf.mxu0
    %v3025 = vadd.f32 %v2918, %v3024
    %v3026 = vsub.f32 %v232, %v232
    %3027 = vmatmul.f32.gmra.mxu0 %v3026
    %v3028 = vpop.f32.mrf.mxu0
    %v3029 = vadd.f32 %v2921, %v3028
    %v3030 = vsub.f32 %v233, %v233
    %3031 = vmatmul.f32.gmra.mxu0 %v3030
    %v3032 = vpop.f32.mrf.mxu0
    %v3033 = vadd.f32 %v2924, %v3032
    %v3034 = vsub.f32 %v234, %v234
    %3035 = vmatmul.f32.gmra.mxu0 %v3034
    %v3036 = vpop.f32.mrf.mxu0
    %v3037 = vadd.f32 %v2927, %v3036
    %v3038 = vsub.f32 %v235, %v235
    %3039 = vmatmul.f32.gmra.mxu0 %v3038
    %v3040 = vpop.f32.mrf.mxu0
    %v3041 = vadd.f32 %v2930, %v3040
    %v3042 = vsub.f32 %v236, %v236
    %3043 = vmatmul.f32.gmra.mxu0 %v3042
    %v3044 = vpop.f32.mrf.mxu0
    %v3045 = vadd.f32 %v2933, %v3044
    %v3046 = vsub.f32 %v237, %v237
    %3047 = vmatmul.f32.gmra.mxu0 %v3046
    %v3048 = vpop.f32.mrf.mxu0
    %v3049 = vadd.f32 %v2936, %v3048
    %3050 = vdwg.mxu0
    %v3051 = vand.u32 %v2647, 4294901760
    %3052 = vmatpush.msra.mxu0 %v3051
    %v3053 = vand.u32 %v2646, 4294901760
    %3054 = vmatpush.msra.mxu0 %v3053
    %v3055 = vand.u32 %v2645, 4294901760
    %3056 = vmatpush.msra.mxu0 %v3055
    %v3057 = vand.u32 %v2644, 4294901760
    %3058 = vmatpush.msra.mxu0 %v3057
    %v3059 = vand.u32 %v2643, 4294901760
    %3060 = vmatpush.msra.mxu0 %v3059
    %v3061 = vand.u32 %v2642, 4294901760
    %3062 = vmatpush.msra.mxu0 %v3061
    %v3063 = vand.u32 %v2641, 4294901760
    %3064 = vmatpush.msra.mxu0 %v3063
    %v3065 = vand.u32 %v2640, 4294901760
    %3066 = vmatpush.msra.mxu0 %v3065
    %v3067 = vand.u32 %v2639, 4294901760
    %3068 = vmatpush.msra.mxu0 %v3067
    %v3069 = vand.u32 %v2638, 4294901760
    %3070 = vmatpush.msra.mxu0 %v3069
    %v3071 = vand.u32 %v2637, 4294901760
    %3072 = vmatpush.msra.mxu0 %v3071
    %v3073 = vand.u32 %v2636, 4294901760
    %3074 = vmatpush.msra.mxu0 %v3073
    %v3075 = vand.u32 %v2635, 4294901760
    %3076 = vmatpush.msra.mxu0 %v3075
    %v3077 = vand.u32 %v2634, 4294901760
    %3078 = vmatpush.msra.mxu0 %v3077
    %v3079 = vand.u32 %v2633, 4294901760
    %3080 = vmatpush.msra.mxu0 %v3079
    %v3081 = vand.u32 %v2632, 4294901760
    %3082 = vmatpush.msra.mxu0 %v3081
    %v3083 = vsub.f32 %v222, %v222
    %v3084 = vand.u32 %v3083, 4294901760
    %3085 = vmatmul.f32.gmra.mxu0 %v3084
    %v3086 = vpop.f32.mrf.mxu0
    %v3087 = vadd.f32 %v2989, %v3086
    %v3088 = vsub.f32 %v223, %v223
    %v3089 = vand.u32 %v3088, 4294901760
    %3090 = vmatmul.f32.gmra.mxu0 %v3089
    %v3091 = vpop.f32.mrf.mxu0
    %v3092 = vadd.f32 %v2993, %v3091
    %v3093 = vsub.f32 %v224, %v224
    %v3094 = vand.u32 %v3093, 4294901760
    %3095 = vmatmul.f32.gmra.mxu0 %v3094
    %v3096 = vpop.f32.mrf.mxu0
    %v3097 = vadd.f32 %v2997, %v3096
    %v3098 = vsub.f32 %v225, %v225
    %v3099 = vand.u32 %v3098, 4294901760
    %3100 = vmatmul.f32.gmra.mxu0 %v3099
    %v3101 = vpop.f32.mrf.mxu0
    %v3102 = vadd.f32 %v3001, %v3101
    %v3103 = vsub.f32 %v226, %v226
    %v3104 = vand.u32 %v3103, 4294901760
    %3105 = vmatmul.f32.gmra.mxu0 %v3104
    %v3106 = vpop.f32.mrf.mxu0
    %v3107 = vadd.f32 %v3005, %v3106
    %v3108 = vsub.f32 %v227, %v227
    %v3109 = vand.u32 %v3108, 4294901760
    %3110 = vmatmul.f32.gmra.mxu0 %v3109
    %v3111 = vpop.f32.mrf.mxu0
    %v3112 = vadd.f32 %v3009, %v3111
    %v3113 = vsub.f32 %v228, %v228
    %v3114 = vand.u32 %v3113, 4294901760
    %3115 = vmatmul.f32.gmra.mxu0 %v3114
    %v3116 = vpop.f32.mrf.mxu0
    %v3117 = vadd.f32 %v3013, %v3116
    %v3118 = vsub.f32 %v229, %v229
    %v3119 = vand.u32 %v3118, 4294901760
    %3120 = vmatmul.f32.gmra.mxu0 %v3119
    %v3121 = vpop.f32.mrf.mxu0
    %v3122 = vadd.f32 %v3017, %v3121
    %v3123 = vsub.f32 %v230, %v230
    %v3124 = vand.u32 %v3123, 4294901760
    %3125 = vmatmul.f32.gmra.mxu0 %v3124
    %v3126 = vpop.f32.mrf.mxu0
    %v3127 = vadd.f32 %v3021, %v3126
    %v3128 = vsub.f32 %v231, %v231
    %v3129 = vand.u32 %v3128, 4294901760
    %3130 = vmatmul.f32.gmra.mxu0 %v3129
    %v3131 = vpop.f32.mrf.mxu0
    %v3132 = vadd.f32 %v3025, %v3131
    %v3133 = vsub.f32 %v232, %v232
    %v3134 = vand.u32 %v3133, 4294901760
    %3135 = vmatmul.f32.gmra.mxu0 %v3134
    %v3136 = vpop.f32.mrf.mxu0
    %v3137 = vadd.f32 %v3029, %v3136
    %v3138 = vsub.f32 %v233, %v233
    %v3139 = vand.u32 %v3138, 4294901760
    %3140 = vmatmul.f32.gmra.mxu0 %v3139
    %v3141 = vpop.f32.mrf.mxu0
    %v3142 = vadd.f32 %v3033, %v3141
    %v3143 = vsub.f32 %v234, %v234
    %v3144 = vand.u32 %v3143, 4294901760
    %3145 = vmatmul.f32.gmra.mxu0 %v3144
    %v3146 = vpop.f32.mrf.mxu0
    %v3147 = vadd.f32 %v3037, %v3146
    %v3148 = vsub.f32 %v235, %v235
    %v3149 = vand.u32 %v3148, 4294901760
    %3150 = vmatmul.f32.gmra.mxu0 %v3149
    %v3151 = vpop.f32.mrf.mxu0
    %v3152 = vadd.f32 %v3041, %v3151
    %v3153 = vsub.f32 %v236, %v236
    %v3154 = vand.u32 %v3153, 4294901760
    %3155 = vmatmul.f32.gmra.mxu0 %v3154
    %v3156 = vpop.f32.mrf.mxu0
    %v3157 = vadd.f32 %v3045, %v3156
    %v3158 = vsub.f32 %v237, %v237
    %v3159 = vand.u32 %v3158, 4294901760
    %3160 = vmatmul.f32.gmra.mxu0 %v3159
    %v3161 = vpop.f32.mrf.mxu0
    %v3162 = vadd.f32 %v3049, %v3161
    %3163 = vdwg.mxu0
    %v3164 = vand.u32 %v2647, 4294901760
    %v3165 = vsub.f32 %v2647, %v3164
    %v3166 = vand.u32 %v3165, 4294901760
    %3167 = vmatpush.msra.mxu0 %v3166
    %v3168 = vand.u32 %v2646, 4294901760
    %v3169 = vsub.f32 %v2646, %v3168
    %v3170 = vand.u32 %v3169, 4294901760
    %3171 = vmatpush.msra.mxu0 %v3170
    %v3172 = vand.u32 %v2645, 4294901760
    %v3173 = vsub.f32 %v2645, %v3172
    %v3174 = vand.u32 %v3173, 4294901760
    %3175 = vmatpush.msra.mxu0 %v3174
    %v3176 = vand.u32 %v2644, 4294901760
    %v3177 = vsub.f32 %v2644, %v3176
    %v3178 = vand.u32 %v3177, 4294901760
    %3179 = vmatpush.msra.mxu0 %v3178
    %v3180 = vand.u32 %v2643, 4294901760
    %v3181 = vsub.f32 %v2643, %v3180
    %v3182 = vand.u32 %v3181, 4294901760
    %3183 = vmatpush.msra.mxu0 %v3182
    %v3184 = vand.u32 %v2642, 4294901760
    %v3185 = vsub.f32 %v2642, %v3184
    %v3186 = vand.u32 %v3185, 4294901760
    %3187 = vmatpush.msra.mxu0 %v3186
    %v3188 = vand.u32 %v2641, 4294901760
    %v3189 = vsub.f32 %v2641, %v3188
    %v3190 = vand.u32 %v3189, 4294901760
    %3191 = vmatpush.msra.mxu0 %v3190
    %v3192 = vand.u32 %v2640, 4294901760
    %v3193 = vsub.f32 %v2640, %v3192
    %v3194 = vand.u32 %v3193, 4294901760
    %3195 = vmatpush.msra.mxu0 %v3194
    %v3196 = vand.u32 %v2639, 4294901760
    %v3197 = vsub.f32 %v2639, %v3196
    %v3198 = vand.u32 %v3197, 4294901760
    %3199 = vmatpush.msra.mxu0 %v3198
    %v3200 = vand.u32 %v2638, 4294901760
    %v3201 = vsub.f32 %v2638, %v3200
    %v3202 = vand.u32 %v3201, 4294901760
    %3203 = vmatpush.msra.mxu0 %v3202
    %v3204 = vand.u32 %v2637, 4294901760
    %v3205 = vsub.f32 %v2637, %v3204
    %v3206 = vand.u32 %v3205, 4294901760
    %3207 = vmatpush.msra.mxu0 %v3206
    %v3208 = vand.u32 %v2636, 4294901760
    %v3209 = vsub.f32 %v2636, %v3208
    %v3210 = vand.u32 %v3209, 4294901760
    %3211 = vmatpush.msra.mxu0 %v3210
    %v3212 = vand.u32 %v2635, 4294901760
    %v3213 = vsub.f32 %v2635, %v3212
    %v3214 = vand.u32 %v3213, 4294901760
    %3215 = vmatpush.msra.mxu0 %v3214
    %v3216 = vand.u32 %v2634, 4294901760
    %v3217 = vsub.f32 %v2634, %v3216
    %v3218 = vand.u32 %v3217, 4294901760
    %3219 = vmatpush.msra.mxu0 %v3218
    %v3220 = vand.u32 %v2633, 4294901760
    %v3221 = vsub.f32 %v2633, %v3220
    %v3222 = vand.u32 %v3221, 4294901760
    %3223 = vmatpush.msra.mxu0 %v3222
    %v3224 = vand.u32 %v2632, 4294901760
    %v3225 = vsub.f32 %v2632, %v3224
    %v3226 = vand.u32 %v3225, 4294901760
    %3227 = vmatpush.msra.mxu0 %v3226
    %3228 = vmatmul.f32.gmra.mxu0 %v222
    %v3229 = vpop.f32.mrf.mxu0
    %v3230 = vadd.f32 %v3087, %v3229
    %3231 = vmatmul.f32.gmra.mxu0 %v223
    %v3232 = vpop.f32.mrf.mxu0
    %v3233 = vadd.f32 %v3092, %v3232
    %3234 = vmatmul.f32.gmra.mxu0 %v224
    %v3235 = vpop.f32.mrf.mxu0
    %v3236 = vadd.f32 %v3097, %v3235
    %3237 = vmatmul.f32.gmra.mxu0 %v225
    %v3238 = vpop.f32.mrf.mxu0
    %v3239 = vadd.f32 %v3102, %v3238
    %3240 = vmatmul.f32.gmra.mxu0 %v226
    %v3241 = vpop.f32.mrf.mxu0
    %v3242 = vadd.f32 %v3107, %v3241
    %3243 = vmatmul.f32.gmra.mxu0 %v227
    %v3244 = vpop.f32.mrf.mxu0
    %v3245 = vadd.f32 %v3112, %v3244
    %3246 = vmatmul.f32.gmra.mxu0 %v228
    %v3247 = vpop.f32.mrf.mxu0
    %v3248 = vadd.f32 %v3117, %v3247
    %3249 = vmatmul.f32.gmra.mxu0 %v229
    %v3250 = vpop.f32.mrf.mxu0
    %v3251 = vadd.f32 %v3122, %v3250
    %3252 = vmatmul.f32.gmra.mxu0 %v230
    %v3253 = vpop.f32.mrf.mxu0
    %v3254 = vadd.f32 %v3127, %v3253
    %3255 = vmatmul.f32.gmra.mxu0 %v231
    %v3256 = vpop.f32.mrf.mxu0
    %v3257 = vadd.f32 %v3132, %v3256
    %3258 = vmatmul.f32.gmra.mxu0 %v232
    %v3259 = vpop.f32.mrf.mxu0
    %v3260 = vadd.f32 %v3137, %v3259
    %3261 = vmatmul.f32.gmra.mxu0 %v233
    %v3262 = vpop.f32.mrf.mxu0
    %v3263 = vadd.f32 %v3142, %v3262
    %3264 = vmatmul.f32.gmra.mxu0 %v234
    %v3265 = vpop.f32.mrf.mxu0
    %v3266 = vadd.f32 %v3147, %v3265
    %3267 = vmatmul.f32.gmra.mxu0 %v235
    %v3268 = vpop.f32.mrf.mxu0
    %v3269 = vadd.f32 %v3152, %v3268
    %3270 = vmatmul.f32.gmra.mxu0 %v236
    %v3271 = vpop.f32.mrf.mxu0
    %v3272 = vadd.f32 %v3157, %v3271
    %3273 = vmatmul.f32.gmra.mxu0 %v237
    %v3274 = vpop.f32.mrf.mxu0
    %v3275 = vadd.f32 %v3162, %v3274
    %3276 = vdwg.mxu0
    %v3277 = vand.u32 %v2647, 4294901760
    %3278 = vmatpush.msra.mxu0 %v3277
    %v3279 = vand.u32 %v2646, 4294901760
    %3280 = vmatpush.msra.mxu0 %v3279
    %v3281 = vand.u32 %v2645, 4294901760
    %3282 = vmatpush.msra.mxu0 %v3281
    %v3283 = vand.u32 %v2644, 4294901760
    %3284 = vmatpush.msra.mxu0 %v3283
    %v3285 = vand.u32 %v2643, 4294901760
    %3286 = vmatpush.msra.mxu0 %v3285
    %v3287 = vand.u32 %v2642, 4294901760
    %3288 = vmatpush.msra.mxu0 %v3287
    %v3289 = vand.u32 %v2641, 4294901760
    %3290 = vmatpush.msra.mxu0 %v3289
    %v3291 = vand.u32 %v2640, 4294901760
    %3292 = vmatpush.msra.mxu0 %v3291
    %v3293 = vand.u32 %v2639, 4294901760
    %3294 = vmatpush.msra.mxu0 %v3293
    %v3295 = vand.u32 %v2638, 4294901760
    %3296 = vmatpush.msra.mxu0 %v3295
    %v3297 = vand.u32 %v2637, 4294901760
    %3298 = vmatpush.msra.mxu0 %v3297
    %v3299 = vand.u32 %v2636, 4294901760
    %3300 = vmatpush.msra.mxu0 %v3299
    %v3301 = vand.u32 %v2635, 4294901760
    %3302 = vmatpush.msra.mxu0 %v3301
    %v3303 = vand.u32 %v2634, 4294901760
    %3304 = vmatpush.msra.mxu0 %v3303
    %v3305 = vand.u32 %v2633, 4294901760
    %3306 = vmatpush.msra.mxu0 %v3305
    %v3307 = vand.u32 %v2632, 4294901760
    %3308 = vmatpush.msra.mxu0 %v3307
    %3309 = vmatmul.f32.gmra.mxu0 %v222
    %v3310 = vpop.f32.mrf.mxu0
    %v3311 = vadd.f32 %v3230, %v3310
    %3312 = vmatmul.f32.gmra.mxu0 %v223
    %v3313 = vpop.f32.mrf.mxu0
    %v3314 = vadd.f32 %v3233, %v3313
    %3315 = vmatmul.f32.gmra.mxu0 %v224
    %v3316 = vpop.f32.mrf.mxu0
    %v3317 = vadd.f32 %v3236, %v3316
    %3318 = vmatmul.f32.gmra.mxu0 %v225
    %v3319 = vpop.f32.mrf.mxu0
    %v3320 = vadd.f32 %v3239, %v3319
    %3321 = vmatmul.f32.gmra.mxu0 %v226
    %v3322 = vpop.f32.mrf.mxu0
    %v3323 = vadd.f32 %v3242, %v3322
    %3324 = vmatmul.f32.gmra.mxu0 %v227
    %v3325 = vpop.f32.mrf.mxu0
    %v3326 = vadd.f32 %v3245, %v3325
    %3327 = vmatmul.f32.gmra.mxu0 %v228
    %v3328 = vpop.f32.mrf.mxu0
    %v3329 = vadd.f32 %v3248, %v3328
    %3330 = vmatmul.f32.gmra.mxu0 %v229
    %v3331 = vpop.f32.mrf.mxu0
    %v3332 = vadd.f32 %v3251, %v3331
    %3333 = vmatmul.f32.gmra.mxu0 %v230
    %v3334 = vpop.f32.mrf.mxu0
    %v3335 = vadd.f32 %v3254, %v3334
    %3336 = vmatmul.f32.gmra.mxu0 %v231
    %v3337 = vpop.f32.mrf.mxu0
    %v3338 = vadd.f32 %v3257, %v3337
    %3339 = vmatmul.f32.gmra.mxu0 %v232
    %v3340 = vpop.f32.mrf.mxu0
    %v3341 = vadd.f32 %v3260, %v3340
    %3342 = vmatmul.f32.gmra.mxu0 %v233
    %v3343 = vpop.f32.mrf.mxu0
    %v3344 = vadd.f32 %v3263, %v3343
    %3345 = vmatmul.f32.gmra.mxu0 %v234
    %v3346 = vpop.f32.mrf.mxu0
    %v3347 = vadd.f32 %v3266, %v3346
    %3348 = vmatmul.f32.gmra.mxu0 %v235
    %v3349 = vpop.f32.mrf.mxu0
    %v3350 = vadd.f32 %v3269, %v3349
    %3351 = vmatmul.f32.gmra.mxu0 %v236
    %v3352 = vpop.f32.mrf.mxu0
    %v3353 = vadd.f32 %v3272, %v3352
    %3354 = vmatmul.f32.gmra.mxu0 %v237
    %v3355 = vpop.f32.mrf.mxu0
    %v3356 = vadd.f32 %v3275, %v3355
    %3357 = vdwg.mxu0
    %v3358 = vand.u32 %v1821, 4294901760
    %3359 = vmatpush.msra.mxu0 %v3358
    %v3360 = vand.u32 %v1820, 4294901760
    %3361 = vmatpush.msra.mxu0 %v3360
    %v3362 = vand.u32 %v1819, 4294901760
    %3363 = vmatpush.msra.mxu0 %v3362
    %v3364 = vand.u32 %v1818, 4294901760
    %3365 = vmatpush.msra.mxu0 %v3364
    %v3366 = vand.u32 %v1817, 4294901760
    %3367 = vmatpush.msra.mxu0 %v3366
    %v3368 = vand.u32 %v1816, 4294901760
    %3369 = vmatpush.msra.mxu0 %v3368
    %v3370 = vand.u32 %v1815, 4294901760
    %3371 = vmatpush.msra.mxu0 %v3370
    %v3372 = vand.u32 %v1814, 4294901760
    %3373 = vmatpush.msra.mxu0 %v3372
    %v3374 = vand.u32 %v1813, 4294901760
    %3375 = vmatpush.msra.mxu0 %v3374
    %v3376 = vand.u32 %v1812, 4294901760
    %3377 = vmatpush.msra.mxu0 %v3376
    %v3378 = vand.u32 %v1811, 4294901760
    %3379 = vmatpush.msra.mxu0 %v3378
    %v3380 = vand.u32 %v1810, 4294901760
    %3381 = vmatpush.msra.mxu0 %v3380
    %v3382 = vand.u32 %v1809, 4294901760
    %3383 = vmatpush.msra.mxu0 %v3382
    %v3384 = vand.u32 %v1808, 4294901760
    %3385 = vmatpush.msra.mxu0 %v3384
    %v3386 = vand.u32 %v1807, 4294901760
    %3387 = vmatpush.msra.mxu0 %v3386
    %v3388 = vand.u32 %v1806, 4294901760
    %3389 = vmatpush.msra.mxu0 %v3388
    %v3390 = vand.u32 %v3311, 4294901760
    %v3391 = vsub.f32 %v3311, %v3390
    %v3392 = vand.u32 %v3391, 4294901760
    %v3393 = vsub.f32 %v3391, %v3392
    %v3394 = vand.u32 %v3393, 4294901760
    %3395 = vmatmul.f32.gmra.mxu0 %v3394
    %v3396 = vpop.f32.mrf.mxu0
    %v3397 = vadd.f32 %v1824, %v3396
    %v3398 = vand.u32 %v3314, 4294901760
    %v3399 = vsub.f32 %v3314, %v3398
    %v3400 = vand.u32 %v3399, 4294901760
    %v3401 = vsub.f32 %v3399, %v3400
    %v3402 = vand.u32 %v3401, 4294901760
    %3403 = vmatmul.f32.gmra.mxu0 %v3402
    %v3404 = vpop.f32.mrf.mxu0
    %v3405 = vadd.f32 %v1824, %v3404
    %v3406 = vand.u32 %v3317, 4294901760
    %v3407 = vsub.f32 %v3317, %v3406
    %v3408 = vand.u32 %v3407, 4294901760
    %v3409 = vsub.f32 %v3407, %v3408
    %v3410 = vand.u32 %v3409, 4294901760
    %3411 = vmatmul.f32.gmra.mxu0 %v3410
    %v3412 = vpop.f32.mrf.mxu0
    %v3413 = vadd.f32 %v1824, %v3412
    %v3414 = vand.u32 %v3320, 4294901760
    %v3415 = vsub.f32 %v3320, %v3414
    %v3416 = vand.u32 %v3415, 4294901760
    %v3417 = vsub.f32 %v3415, %v3416
    %v3418 = vand.u32 %v3417, 4294901760
    %3419 = vmatmul.f32.gmra.mxu0 %v3418
    %v3420 = vpop.f32.mrf.mxu0
    %v3421 = vadd.f32 %v1824, %v3420
    %v3422 = vand.u32 %v3323, 4294901760
    %v3423 = vsub.f32 %v3323, %v3422
    %v3424 = vand.u32 %v3423, 4294901760
    %v3425 = vsub.f32 %v3423, %v3424
    %v3426 = vand.u32 %v3425, 4294901760
    %3427 = vmatmul.f32.gmra.mxu0 %v3426
    %v3428 = vpop.f32.mrf.mxu0
    %v3429 = vadd.f32 %v1824, %v3428
    %v3430 = vand.u32 %v3326, 4294901760
    %v3431 = vsub.f32 %v3326, %v3430
    %v3432 = vand.u32 %v3431, 4294901760
    %v3433 = vsub.f32 %v3431, %v3432
    %v3434 = vand.u32 %v3433, 4294901760
    %3435 = vmatmul.f32.gmra.mxu0 %v3434
    %v3436 = vpop.f32.mrf.mxu0
    %v3437 = vadd.f32 %v1824, %v3436
    %v3438 = vand.u32 %v3329, 4294901760
    %v3439 = vsub.f32 %v3329, %v3438
    %v3440 = vand.u32 %v3439, 4294901760
    %v3441 = vsub.f32 %v3439, %v3440
    %v3442 = vand.u32 %v3441, 4294901760
    %3443 = vmatmul.f32.gmra.mxu0 %v3442
    %v3444 = vpop.f32.mrf.mxu0
    %v3445 = vadd.f32 %v1824, %v3444
    %v3446 = vand.u32 %v3332, 4294901760
    %v3447 = vsub.f32 %v3332, %v3446
    %v3448 = vand.u32 %v3447, 4294901760
    %v3449 = vsub.f32 %v3447, %v3448
    %v3450 = vand.u32 %v3449, 4294901760
    %3451 = vmatmul.f32.gmra.mxu0 %v3450
    %v3452 = vpop.f32.mrf.mxu0
    %v3453 = vadd.f32 %v1824, %v3452
    %v3454 = vand.u32 %v3335, 4294901760
    %v3455 = vsub.f32 %v3335, %v3454
    %v3456 = vand.u32 %v3455, 4294901760
    %v3457 = vsub.f32 %v3455, %v3456
    %v3458 = vand.u32 %v3457, 4294901760
    %3459 = vmatmul.f32.gmra.mxu0 %v3458
    %v3460 = vpop.f32.mrf.mxu0
    %v3461 = vadd.f32 %v1824, %v3460
    %v3462 = vand.u32 %v3338, 4294901760
    %v3463 = vsub.f32 %v3338, %v3462
    %v3464 = vand.u32 %v3463, 4294901760
    %v3465 = vsub.f32 %v3463, %v3464
    %v3466 = vand.u32 %v3465, 4294901760
    %3467 = vmatmul.f32.gmra.mxu0 %v3466
    %v3468 = vpop.f32.mrf.mxu0
    %v3469 = vadd.f32 %v1824, %v3468
    %v3470 = vand.u32 %v3341, 4294901760
    %v3471 = vsub.f32 %v3341, %v3470
    %v3472 = vand.u32 %v3471, 4294901760
    %v3473 = vsub.f32 %v3471, %v3472
    %v3474 = vand.u32 %v3473, 4294901760
    %3475 = vmatmul.f32.gmra.mxu0 %v3474
    %v3476 = vpop.f32.mrf.mxu0
    %v3477 = vadd.f32 %v1824, %v3476
    %v3478 = vand.u32 %v3344, 4294901760
    %v3479 = vsub.f32 %v3344, %v3478
    %v3480 = vand.u32 %v3479, 4294901760
    %v3481 = vsub.f32 %v3479, %v3480
    %v3482 = vand.u32 %v3481, 4294901760
    %3483 = vmatmul.f32.gmra.mxu0 %v3482
    %v3484 = vpop.f32.mrf.mxu0
    %v3485 = vadd.f32 %v1824, %v3484
    %v3486 = vand.u32 %v3347, 4294901760
    %v3487 = vsub.f32 %v3347, %v3486
    %v3488 = vand.u32 %v3487, 4294901760
    %v3489 = vsub.f32 %v3487, %v3488
    %v3490 = vand.u32 %v3489, 4294901760
    %3491 = vmatmul.f32.gmra.mxu0 %v3490
    %v3492 = vpop.f32.mrf.mxu0
    %v3493 = vadd.f32 %v1824, %v3492
    %v3494 = vand.u32 %v3350, 4294901760
    %v3495 = vsub.f32 %v3350, %v3494
    %v3496 = vand.u32 %v3495, 4294901760
    %v3497 = vsub.f32 %v3495, %v3496
    %v3498 = vand.u32 %v3497, 4294901760
    %3499 = vmatmul.f32.gmra.mxu0 %v3498
    %v3500 = vpop.f32.mrf.mxu0
    %v3501 = vadd.f32 %v1824, %v3500
    %v3502 = vand.u32 %v3353, 4294901760
    %v3503 = vsub.f32 %v3353, %v3502
    %v3504 = vand.u32 %v3503, 4294901760
    %v3505 = vsub.f32 %v3503, %v3504
    %v3506 = vand.u32 %v3505, 4294901760
    %3507 = vmatmul.f32.gmra.mxu0 %v3506
    %v3508 = vpop.f32.mrf.mxu0
    %v3509 = vadd.f32 %v1824, %v3508
    %v3510 = vand.u32 %v3356, 4294901760
    %v3511 = vsub.f32 %v3356, %v3510
    %v3512 = vand.u32 %v3511, 4294901760
    %v3513 = vsub.f32 %v3511, %v3512
    %v3514 = vand.u32 %v3513, 4294901760
    %3515 = vmatmul.f32.gmra.mxu0 %v3514
    %v3516 = vpop.f32.mrf.mxu0
    %v3517 = vadd.f32 %v1824, %v3516
    %3518 = vdwg.mxu0
    %v3519 = vand.u32 %v1821, 4294901760
    %v3520 = vsub.f32 %v1821, %v3519
    %v3521 = vand.u32 %v3520, 4294901760
    %v3522 = vsub.f32 %v3520, %v3521
    %v3523 = vand.u32 %v3522, 4294901760
    %3524 = vmatpush.msra.mxu0 %v3523
    %v3525 = vand.u32 %v1820, 4294901760
    %v3526 = vsub.f32 %v1820, %v3525
    %v3527 = vand.u32 %v3526, 4294901760
    %v3528 = vsub.f32 %v3526, %v3527
    %v3529 = vand.u32 %v3528, 4294901760
    %3530 = vmatpush.msra.mxu0 %v3529
    %v3531 = vand.u32 %v1819, 4294901760
    %v3532 = vsub.f32 %v1819, %v3531
    %v3533 = vand.u32 %v3532, 4294901760
    %v3534 = vsub.f32 %v3532, %v3533
    %v3535 = vand.u32 %v3534, 4294901760
    %3536 = vmatpush.msra.mxu0 %v3535
    %v3537 = vand.u32 %v1818, 4294901760
    %v3538 = vsub.f32 %v1818, %v3537
    %v3539 = vand.u32 %v3538, 4294901760
    %v3540 = vsub.f32 %v3538, %v3539
    %v3541 = vand.u32 %v3540, 4294901760
    %3542 = vmatpush.msra.mxu0 %v3541
    %v3543 = vand.u32 %v1817, 4294901760
    %v3544 = vsub.f32 %v1817, %v3543
    %v3545 = vand.u32 %v3544, 4294901760
    %v3546 = vsub.f32 %v3544, %v3545
    %v3547 = vand.u32 %v3546, 4294901760
    %3548 = vmatpush.msra.mxu0 %v3547
    %v3549 = vand.u32 %v1816, 4294901760
    %v3550 = vsub.f32 %v1816, %v3549
    %v3551 = vand.u32 %v3550, 4294901760
    %v3552 = vsub.f32 %v3550, %v3551
    %v3553 = vand.u32 %v3552, 4294901760
    %3554 = vmatpush.msra.mxu0 %v3553
    %v3555 = vand.u32 %v1815, 4294901760
    %v3556 = vsub.f32 %v1815, %v3555
    %v3557 = vand.u32 %v3556, 4294901760
    %v3558 = vsub.f32 %v3556, %v3557
    %v3559 = vand.u32 %v3558, 4294901760
    %3560 = vmatpush.msra.mxu0 %v3559
    %v3561 = vand.u32 %v1814, 4294901760
    %v3562 = vsub.f32 %v1814, %v3561
    %v3563 = vand.u32 %v3562, 4294901760
    %v3564 = vsub.f32 %v3562, %v3563
    %v3565 = vand.u32 %v3564, 4294901760
    %3566 = vmatpush.msra.mxu0 %v3565
    %v3567 = vand.u32 %v1813, 4294901760
    %v3568 = vsub.f32 %v1813, %v3567
    %v3569 = vand.u32 %v3568, 4294901760
    %v3570 = vsub.f32 %v3568, %v3569
    %v3571 = vand.u32 %v3570, 4294901760
    %3572 = vmatpush.msra.mxu0 %v3571
    %v3573 = vand.u32 %v1812, 4294901760
    %v3574 = vsub.f32 %v1812, %v3573
    %v3575 = vand.u32 %v3574, 4294901760
    %v3576 = vsub.f32 %v3574, %v3575
    %v3577 = vand.u32 %v3576, 4294901760
    %3578 = vmatpush.msra.mxu0 %v3577
    %v3579 = vand.u32 %v1811, 4294901760
    %v3580 = vsub.f32 %v1811, %v3579
    %v3581 = vand.u32 %v3580, 4294901760
    %v3582 = vsub.f32 %v3580, %v3581
    %v3583 = vand.u32 %v3582, 4294901760
    %3584 = vmatpush.msra.mxu0 %v3583
    %v3585 = vand.u32 %v1810, 4294901760
    %v3586 = vsub.f32 %v1810, %v3585
    %v3587 = vand.u32 %v3586, 4294901760
    %v3588 = vsub.f32 %v3586, %v3587
    %v3589 = vand.u32 %v3588, 4294901760
    %3590 = vmatpush.msra.mxu0 %v3589
    %v3591 = vand.u32 %v1809, 4294901760
    %v3592 = vsub.f32 %v1809, %v3591
    %v3593 = vand.u32 %v3592, 4294901760
    %v3594 = vsub.f32 %v3592, %v3593
    %v3595 = vand.u32 %v3594, 4294901760
    %3596 = vmatpush.msra.mxu0 %v3595
    %v3597 = vand.u32 %v1808, 4294901760
    %v3598 = vsub.f32 %v1808, %v3597
    %v3599 = vand.u32 %v3598, 4294901760
    %v3600 = vsub.f32 %v3598, %v3599
    %v3601 = vand.u32 %v3600, 4294901760
    %3602 = vmatpush.msra.mxu0 %v3601
    %v3603 = vand.u32 %v1807, 4294901760
    %v3604 = vsub.f32 %v1807, %v3603
    %v3605 = vand.u32 %v3604, 4294901760
    %v3606 = vsub.f32 %v3604, %v3605
    %v3607 = vand.u32 %v3606, 4294901760
    %3608 = vmatpush.msra.mxu0 %v3607
    %v3609 = vand.u32 %v1806, 4294901760
    %v3610 = vsub.f32 %v1806, %v3609
    %v3611 = vand.u32 %v3610, 4294901760
    %v3612 = vsub.f32 %v3610, %v3611
    %v3613 = vand.u32 %v3612, 4294901760
    %3614 = vmatpush.msra.mxu0 %v3613
    %v3615 = vand.u32 %v3311, 4294901760
    %3616 = vmatmul.f32.gmra.mxu0 %v3615
    %v3617 = vpop.f32.mrf.mxu0
    %v3618 = vadd.f32 %v3397, %v3617
    %v3619 = vand.u32 %v3314, 4294901760
    %3620 = vmatmul.f32.gmra.mxu0 %v3619
    %v3621 = vpop.f32.mrf.mxu0
    %v3622 = vadd.f32 %v3405, %v3621
    %v3623 = vand.u32 %v3317, 4294901760
    %3624 = vmatmul.f32.gmra.mxu0 %v3623
    %v3625 = vpop.f32.mrf.mxu0
    %v3626 = vadd.f32 %v3413, %v3625
    %v3627 = vand.u32 %v3320, 4294901760
    %3628 = vmatmul.f32.gmra.mxu0 %v3627
    %v3629 = vpop.f32.mrf.mxu0
    %v3630 = vadd.f32 %v3421, %v3629
    %v3631 = vand.u32 %v3323, 4294901760
    %3632 = vmatmul.f32.gmra.mxu0 %v3631
    %v3633 = vpop.f32.mrf.mxu0
    %v3634 = vadd.f32 %v3429, %v3633
    %v3635 = vand.u32 %v3326, 4294901760
    %3636 = vmatmul.f32.gmra.mxu0 %v3635
    %v3637 = vpop.f32.mrf.mxu0
    %v3638 = vadd.f32 %v3437, %v3637
    %v3639 = vand.u32 %v3329, 4294901760
    %3640 = vmatmul.f32.gmra.mxu0 %v3639
    %v3641 = vpop.f32.mrf.mxu0
    %v3642 = vadd.f32 %v3445, %v3641
    %v3643 = vand.u32 %v3332, 4294901760
    %3644 = vmatmul.f32.gmra.mxu0 %v3643
    %v3645 = vpop.f32.mrf.mxu0
    %v3646 = vadd.f32 %v3453, %v3645
    %v3647 = vand.u32 %v3335, 4294901760
    %3648 = vmatmul.f32.gmra.mxu0 %v3647
    %v3649 = vpop.f32.mrf.mxu0
    %v3650 = vadd.f32 %v3461, %v3649
    %v3651 = vand.u32 %v3338, 4294901760
    %3652 = vmatmul.f32.gmra.mxu0 %v3651
    %v3653 = vpop.f32.mrf.mxu0
    %v3654 = vadd.f32 %v3469, %v3653
    %v3655 = vand.u32 %v3341, 4294901760
    %3656 = vmatmul.f32.gmra.mxu0 %v3655
    %v3657 = vpop.f32.mrf.mxu0
    %v3658 = vadd.f32 %v3477, %v3657
    %v3659 = vand.u32 %v3344, 4294901760
    %3660 = vmatmul.f32.gmra.mxu0 %v3659
    %v3661 = vpop.f32.mrf.mxu0
    %v3662 = vadd.f32 %v3485, %v3661
    %v3663 = vand.u32 %v3347, 4294901760
    %3664 = vmatmul.f32.gmra.mxu0 %v3663
    %v3665 = vpop.f32.mrf.mxu0
    %v3666 = vadd.f32 %v3493, %v3665
    %v3667 = vand.u32 %v3350, 4294901760
    %3668 = vmatmul.f32.gmra.mxu0 %v3667
    %v3669 = vpop.f32.mrf.mxu0
    %v3670 = vadd.f32 %v3501, %v3669
    %v3671 = vand.u32 %v3353, 4294901760
    %3672 = vmatmul.f32.gmra.mxu0 %v3671
    %v3673 = vpop.f32.mrf.mxu0
    %v3674 = vadd.f32 %v3509, %v3673
    %v3675 = vand.u32 %v3356, 4294901760
    %3676 = vmatmul.f32.gmra.mxu0 %v3675
    %v3677 = vpop.f32.mrf.mxu0
    %v3678 = vadd.f32 %v3517, %v3677
    %3679 = vdwg.mxu0
    %v3680 = vand.u32 %v1821, 4294901760
    %v3681 = vsub.f32 %v1821, %v3680
    %3682 = vmatpush.msra.mxu0 %v3681
    %v3683 = vand.u32 %v1820, 4294901760
    %v3684 = vsub.f32 %v1820, %v3683
    %3685 = vmatpush.msra.mxu0 %v3684
    %v3686 = vand.u32 %v1819, 4294901760
    %v3687 = vsub.f32 %v1819, %v3686
    %3688 = vmatpush.msra.mxu0 %v3687
    %v3689 = vand.u32 %v1818, 4294901760
    %v3690 = vsub.f32 %v1818, %v3689
    %3691 = vmatpush.msra.mxu0 %v3690
    %v3692 = vand.u32 %v1817, 4294901760
    %v3693 = vsub.f32 %v1817, %v3692
    %3694 = vmatpush.msra.mxu0 %v3693
    %v3695 = vand.u32 %v1816, 4294901760
    %v3696 = vsub.f32 %v1816, %v3695
    %3697 = vmatpush.msra.mxu0 %v3696
    %v3698 = vand.u32 %v1815, 4294901760
    %v3699 = vsub.f32 %v1815, %v3698
    %3700 = vmatpush.msra.mxu0 %v3699
    %v3701 = vand.u32 %v1814, 4294901760
    %v3702 = vsub.f32 %v1814, %v3701
    %3703 = vmatpush.msra.mxu0 %v3702
    %v3704 = vand.u32 %v1813, 4294901760
    %v3705 = vsub.f32 %v1813, %v3704
    %3706 = vmatpush.msra.mxu0 %v3705
    %v3707 = vand.u32 %v1812, 4294901760
    %v3708 = vsub.f32 %v1812, %v3707
    %3709 = vmatpush.msra.mxu0 %v3708
    %v3710 = vand.u32 %v1811, 4294901760
    %v3711 = vsub.f32 %v1811, %v3710
    %3712 = vmatpush.msra.mxu0 %v3711
    %v3713 = vand.u32 %v1810, 4294901760
    %v3714 = vsub.f32 %v1810, %v3713
    %3715 = vmatpush.msra.mxu0 %v3714
    %v3716 = vand.u32 %v1809, 4294901760
    %v3717 = vsub.f32 %v1809, %v3716
    %3718 = vmatpush.msra.mxu0 %v3717
    %v3719 = vand.u32 %v1808, 4294901760
    %v3720 = vsub.f32 %v1808, %v3719
    %3721 = vmatpush.msra.mxu0 %v3720
    %v3722 = vand.u32 %v1807, 4294901760
    %v3723 = vsub.f32 %v1807, %v3722
    %3724 = vmatpush.msra.mxu0 %v3723
    %v3725 = vand.u32 %v1806, 4294901760
    %v3726 = vsub.f32 %v1806, %v3725
    %3727 = vmatpush.msra.mxu0 %v3726
    %v3728 = vand.u32 %v3311, 4294901760
    %v3729 = vsub.f32 %v3311, %v3728
    %3730 = vmatmul.f32.gmra.mxu0 %v3729
    %v3731 = vpop.f32.mrf.mxu0
    %v3732 = vadd.f32 %v3618, %v3731
    %v3733 = vand.u32 %v3314, 4294901760
    %v3734 = vsub.f32 %v3314, %v3733
    %3735 = vmatmul.f32.gmra.mxu0 %v3734
    %v3736 = vpop.f32.mrf.mxu0
    %v3737 = vadd.f32 %v3622, %v3736
    %v3738 = vand.u32 %v3317, 4294901760
    %v3739 = vsub.f32 %v3317, %v3738
    %3740 = vmatmul.f32.gmra.mxu0 %v3739
    %v3741 = vpop.f32.mrf.mxu0
    %v3742 = vadd.f32 %v3626, %v3741
    %v3743 = vand.u32 %v3320, 4294901760
    %v3744 = vsub.f32 %v3320, %v3743
    %3745 = vmatmul.f32.gmra.mxu0 %v3744
    %v3746 = vpop.f32.mrf.mxu0
    %v3747 = vadd.f32 %v3630, %v3746
    %v3748 = vand.u32 %v3323, 4294901760
    %v3749 = vsub.f32 %v3323, %v3748
    %3750 = vmatmul.f32.gmra.mxu0 %v3749
    %v3751 = vpop.f32.mrf.mxu0
    %v3752 = vadd.f32 %v3634, %v3751
    %v3753 = vand.u32 %v3326, 4294901760
    %v3754 = vsub.f32 %v3326, %v3753
    %3755 = vmatmul.f32.gmra.mxu0 %v3754
    %v3756 = vpop.f32.mrf.mxu0
    %v3757 = vadd.f32 %v3638, %v3756
    %v3758 = vand.u32 %v3329, 4294901760
    %v3759 = vsub.f32 %v3329, %v3758
    %3760 = vmatmul.f32.gmra.mxu0 %v3759
    %v3761 = vpop.f32.mrf.mxu0
    %v3762 = vadd.f32 %v3642, %v3761
    %v3763 = vand.u32 %v3332, 4294901760
    %v3764 = vsub.f32 %v3332, %v3763
    %3765 = vmatmul.f32.gmra.mxu0 %v3764
    %v3766 = vpop.f32.mrf.mxu0
    %v3767 = vadd.f32 %v3646, %v3766
    %v3768 = vand.u32 %v3335, 4294901760
    %v3769 = vsub.f32 %v3335, %v3768
    %3770 = vmatmul.f32.gmra.mxu0 %v3769
    %v3771 = vpop.f32.mrf.mxu0
    %v3772 = vadd.f32 %v3650, %v3771
    %v3773 = vand.u32 %v3338, 4294901760
    %v3774 = vsub.f32 %v3338, %v3773
    %3775 = vmatmul.f32.gmra.mxu0 %v3774
    %v3776 = vpop.f32.mrf.mxu0
    %v3777 = vadd.f32 %v3654, %v3776
    %v3778 = vand.u32 %v3341, 4294901760
    %v3779 = vsub.f32 %v3341, %v3778
    %3780 = vmatmul.f32.gmra.mxu0 %v3779
    %v3781 = vpop.f32.mrf.mxu0
    %v3782 = vadd.f32 %v3658, %v3781
    %v3783 = vand.u32 %v3344, 4294901760
    %v3784 = vsub.f32 %v3344, %v3783
    %3785 = vmatmul.f32.gmra.mxu0 %v3784
    %v3786 = vpop.f32.mrf.mxu0
    %v3787 = vadd.f32 %v3662, %v3786
    %v3788 = vand.u32 %v3347, 4294901760
    %v3789 = vsub.f32 %v3347, %v3788
    %3790 = vmatmul.f32.gmra.mxu0 %v3789
    %v3791 = vpop.f32.mrf.mxu0
    %v3792 = vadd.f32 %v3666, %v3791
    %v3793 = vand.u32 %v3350, 4294901760
    %v3794 = vsub.f32 %v3350, %v3793
    %3795 = vmatmul.f32.gmra.mxu0 %v3794
    %v3796 = vpop.f32.mrf.mxu0
    %v3797 = vadd.f32 %v3670, %v3796
    %v3798 = vand.u32 %v3353, 4294901760
    %v3799 = vsub.f32 %v3353, %v3798
    %3800 = vmatmul.f32.gmra.mxu0 %v3799
    %v3801 = vpop.f32.mrf.mxu0
    %v3802 = vadd.f32 %v3674, %v3801
    %v3803 = vand.u32 %v3356, 4294901760
    %v3804 = vsub.f32 %v3356, %v3803
    %3805 = vmatmul.f32.gmra.mxu0 %v3804
    %v3806 = vpop.f32.mrf.mxu0
    %v3807 = vadd.f32 %v3678, %v3806
    %3808 = vdwg.mxu0
    %v3809 = vand.u32 %v1821, 4294901760
    %3810 = vmatpush.msra.mxu0 %v3809
    %v3811 = vand.u32 %v1820, 4294901760
    %3812 = vmatpush.msra.mxu0 %v3811
    %v3813 = vand.u32 %v1819, 4294901760
    %3814 = vmatpush.msra.mxu0 %v3813
    %v3815 = vand.u32 %v1818, 4294901760
    %3816 = vmatpush.msra.mxu0 %v3815
    %v3817 = vand.u32 %v1817, 4294901760
    %3818 = vmatpush.msra.mxu0 %v3817
    %v3819 = vand.u32 %v1816, 4294901760
    %3820 = vmatpush.msra.mxu0 %v3819
    %v3821 = vand.u32 %v1815, 4294901760
    %3822 = vmatpush.msra.mxu0 %v3821
    %v3823 = vand.u32 %v1814, 4294901760
    %3824 = vmatpush.msra.mxu0 %v3823
    %v3825 = vand.u32 %v1813, 4294901760
    %3826 = vmatpush.msra.mxu0 %v3825
    %v3827 = vand.u32 %v1812, 4294901760
    %3828 = vmatpush.msra.mxu0 %v3827
    %v3829 = vand.u32 %v1811, 4294901760
    %3830 = vmatpush.msra.mxu0 %v3829
    %v3831 = vand.u32 %v1810, 4294901760
    %3832 = vmatpush.msra.mxu0 %v3831
    %v3833 = vand.u32 %v1809, 4294901760
    %3834 = vmatpush.msra.mxu0 %v3833
    %v3835 = vand.u32 %v1808, 4294901760
    %3836 = vmatpush.msra.mxu0 %v3835
    %v3837 = vand.u32 %v1807, 4294901760
    %3838 = vmatpush.msra.mxu0 %v3837
    %v3839 = vand.u32 %v1806, 4294901760
    %3840 = vmatpush.msra.mxu0 %v3839
    %v3841 = vand.u32 %v3311, 4294901760
    %v3842 = vsub.f32 %v3311, %v3841
    %v3843 = vand.u32 %v3842, 4294901760
    %3844 = vmatmul.f32.gmra.mxu0 %v3843
    %v3845 = vpop.f32.mrf.mxu0
    %v3846 = vadd.f32 %v3732, %v3845
    %v3847 = vand.u32 %v3314, 4294901760
    %v3848 = vsub.f32 %v3314, %v3847
    %v3849 = vand.u32 %v3848, 4294901760
    %3850 = vmatmul.f32.gmra.mxu0 %v3849
    %v3851 = vpop.f32.mrf.mxu0
    %v3852 = vadd.f32 %v3737, %v3851
    %v3853 = vand.u32 %v3317, 4294901760
    %v3854 = vsub.f32 %v3317, %v3853
    %v3855 = vand.u32 %v3854, 4294901760
    %3856 = vmatmul.f32.gmra.mxu0 %v3855
    %v3857 = vpop.f32.mrf.mxu0
    %v3858 = vadd.f32 %v3742, %v3857
    %v3859 = vand.u32 %v3320, 4294901760
    %v3860 = vsub.f32 %v3320, %v3859
    %v3861 = vand.u32 %v3860, 4294901760
    %3862 = vmatmul.f32.gmra.mxu0 %v3861
    %v3863 = vpop.f32.mrf.mxu0
    %v3864 = vadd.f32 %v3747, %v3863
    %v3865 = vand.u32 %v3323, 4294901760
    %v3866 = vsub.f32 %v3323, %v3865
    %v3867 = vand.u32 %v3866, 4294901760
    %3868 = vmatmul.f32.gmra.mxu0 %v3867
    %v3869 = vpop.f32.mrf.mxu0
    %v3870 = vadd.f32 %v3752, %v3869
    %v3871 = vand.u32 %v3326, 4294901760
    %v3872 = vsub.f32 %v3326, %v3871
    %v3873 = vand.u32 %v3872, 4294901760
    %3874 = vmatmul.f32.gmra.mxu0 %v3873
    %v3875 = vpop.f32.mrf.mxu0
    %v3876 = vadd.f32 %v3757, %v3875
    %v3877 = vand.u32 %v3329, 4294901760
    %v3878 = vsub.f32 %v3329, %v3877
    %v3879 = vand.u32 %v3878, 4294901760
    %3880 = vmatmul.f32.gmra.mxu0 %v3879
    %v3881 = vpop.f32.mrf.mxu0
    %v3882 = vadd.f32 %v3762, %v3881
    %v3883 = vand.u32 %v3332, 4294901760
    %v3884 = vsub.f32 %v3332, %v3883
    %v3885 = vand.u32 %v3884, 4294901760
    %3886 = vmatmul.f32.gmra.mxu0 %v3885
    %v3887 = vpop.f32.mrf.mxu0
    %v3888 = vadd.f32 %v3767, %v3887
    %v3889 = vand.u32 %v3335, 4294901760
    %v3890 = vsub.f32 %v3335, %v3889
    %v3891 = vand.u32 %v3890, 4294901760
    %3892 = vmatmul.f32.gmra.mxu0 %v3891
    %v3893 = vpop.f32.mrf.mxu0
    %v3894 = vadd.f32 %v3772, %v3893
    %v3895 = vand.u32 %v3338, 4294901760
    %v3896 = vsub.f32 %v3338, %v3895
    %v3897 = vand.u32 %v3896, 4294901760
    %3898 = vmatmul.f32.gmra.mxu0 %v3897
    %v3899 = vpop.f32.mrf.mxu0
    %v3900 = vadd.f32 %v3777, %v3899
    %v3901 = vand.u32 %v3341, 4294901760
    %v3902 = vsub.f32 %v3341, %v3901
    %v3903 = vand.u32 %v3902, 4294901760
    %3904 = vmatmul.f32.gmra.mxu0 %v3903
    %v3905 = vpop.f32.mrf.mxu0
    %v3906 = vadd.f32 %v3782, %v3905
    %v3907 = vand.u32 %v3344, 4294901760
    %v3908 = vsub.f32 %v3344, %v3907
    %v3909 = vand.u32 %v3908, 4294901760
    %3910 = vmatmul.f32.gmra.mxu0 %v3909
    %v3911 = vpop.f32.mrf.mxu0
    %v3912 = vadd.f32 %v3787, %v3911
    %v3913 = vand.u32 %v3347, 4294901760
    %v3914 = vsub.f32 %v3347, %v3913
    %v3915 = vand.u32 %v3914, 4294901760
    %3916 = vmatmul.f32.gmra.mxu0 %v3915
    %v3917 = vpop.f32.mrf.mxu0
    %v3918 = vadd.f32 %v3792, %v3917
    %v3919 = vand.u32 %v3350, 4294901760
    %v3920 = vsub.f32 %v3350, %v3919
    %v3921 = vand.u32 %v3920, 4294901760
    %3922 = vmatmul.f32.gmra.mxu0 %v3921
    %v3923 = vpop.f32.mrf.mxu0
    %v3924 = vadd.f32 %v3797, %v3923
    %v3925 = vand.u32 %v3353, 4294901760
    %v3926 = vsub.f32 %v3353, %v3925
    %v3927 = vand.u32 %v3926, 4294901760
    %3928 = vmatmul.f32.gmra.mxu0 %v3927
    %v3929 = vpop.f32.mrf.mxu0
    %v3930 = vadd.f32 %v3802, %v3929
    %v3931 = vand.u32 %v3356, 4294901760
    %v3932 = vsub.f32 %v3356, %v3931
    %v3933 = vand.u32 %v3932, 4294901760
    %3934 = vmatmul.f32.gmra.mxu0 %v3933
    %v3935 = vpop.f32.mrf.mxu0
    %v3936 = vadd.f32 %v3807, %v3935
    %3937 = vdwg.mxu0
    %v3938 = vand.u32 %v1821, 4294901760
    %v3939 = vsub.f32 %v1821, %v3938
    %v3940 = vand.u32 %v3939, 4294901760
    %3941 = vmatpush.msra.mxu0 %v3940
    %v3942 = vand.u32 %v1820, 4294901760
    %v3943 = vsub.f32 %v1820, %v3942
    %v3944 = vand.u32 %v3943, 4294901760
    %3945 = vmatpush.msra.mxu0 %v3944
    %v3946 = vand.u32 %v1819, 4294901760
    %v3947 = vsub.f32 %v1819, %v3946
    %v3948 = vand.u32 %v3947, 4294901760
    %3949 = vmatpush.msra.mxu0 %v3948
    %v3950 = vand.u32 %v1818, 4294901760
    %v3951 = vsub.f32 %v1818, %v3950
    %v3952 = vand.u32 %v3951, 4294901760
    %3953 = vmatpush.msra.mxu0 %v3952
    %v3954 = vand.u32 %v1817, 4294901760
    %v3955 = vsub.f32 %v1817, %v3954
    %v3956 = vand.u32 %v3955, 4294901760
    %3957 = vmatpush.msra.mxu0 %v3956
    %v3958 = vand.u32 %v1816, 4294901760
    %v3959 = vsub.f32 %v1816, %v3958
    %v3960 = vand.u32 %v3959, 4294901760
    %3961 = vmatpush.msra.mxu0 %v3960
    %v3962 = vand.u32 %v1815, 4294901760
    %v3963 = vsub.f32 %v1815, %v3962
    %v3964 = vand.u32 %v3963, 4294901760
    %3965 = vmatpush.msra.mxu0 %v3964
    %v3966 = vand.u32 %v1814, 4294901760
    %v3967 = vsub.f32 %v1814, %v3966
    %v3968 = vand.u32 %v3967, 4294901760
    %3969 = vmatpush.msra.mxu0 %v3968
    %v3970 = vand.u32 %v1813, 4294901760
    %v3971 = vsub.f32 %v1813, %v3970
    %v3972 = vand.u32 %v3971, 4294901760
    %3973 = vmatpush.msra.mxu0 %v3972
    %v3974 = vand.u32 %v1812, 4294901760
    %v3975 = vsub.f32 %v1812, %v3974
    %v3976 = vand.u32 %v3975, 4294901760
    %3977 = vmatpush.msra.mxu0 %v3976
    %v3978 = vand.u32 %v1811, 4294901760
    %v3979 = vsub.f32 %v1811, %v3978
    %v3980 = vand.u32 %v3979, 4294901760
    %3981 = vmatpush.msra.mxu0 %v3980
    %v3982 = vand.u32 %v1810, 4294901760
    %v3983 = vsub.f32 %v1810, %v3982
    %v3984 = vand.u32 %v3983, 4294901760
    %3985 = vmatpush.msra.mxu0 %v3984
    %v3986 = vand.u32 %v1809, 4294901760
    %v3987 = vsub.f32 %v1809, %v3986
    %v3988 = vand.u32 %v3987, 4294901760
    %3989 = vmatpush.msra.mxu0 %v3988
    %v3990 = vand.u32 %v1808, 4294901760
    %v3991 = vsub.f32 %v1808, %v3990
    %v3992 = vand.u32 %v3991, 4294901760
    %3993 = vmatpush.msra.mxu0 %v3992
    %v3994 = vand.u32 %v1807, 4294901760
    %v3995 = vsub.f32 %v1807, %v3994
    %v3996 = vand.u32 %v3995, 4294901760
    %3997 = vmatpush.msra.mxu0 %v3996
    %v3998 = vand.u32 %v1806, 4294901760
    %v3999 = vsub.f32 %v1806, %v3998
    %v4000 = vand.u32 %v3999, 4294901760
    %4001 = vmatpush.msra.mxu0 %v4000
    %v4002 = vand.u32 %v3311, 4294901760
    %4003 = vmatmul.f32.gmra.mxu0 %v4002
    %v4004 = vpop.f32.mrf.mxu0
    %v4005 = vadd.f32 %v3846, %v4004
    %v4006 = vand.u32 %v3314, 4294901760
    %4007 = vmatmul.f32.gmra.mxu0 %v4006
    %v4008 = vpop.f32.mrf.mxu0
    %v4009 = vadd.f32 %v3852, %v4008
    %v4010 = vand.u32 %v3317, 4294901760
    %4011 = vmatmul.f32.gmra.mxu0 %v4010
    %v4012 = vpop.f32.mrf.mxu0
    %v4013 = vadd.f32 %v3858, %v4012
    %v4014 = vand.u32 %v3320, 4294901760
    %4015 = vmatmul.f32.gmra.mxu0 %v4014
    %v4016 = vpop.f32.mrf.mxu0
    %v4017 = vadd.f32 %v3864, %v4016
    %v4018 = vand.u32 %v3323, 4294901760
    %4019 = vmatmul.f32.gmra.mxu0 %v4018
    %v4020 = vpop.f32.mrf.mxu0
    %v4021 = vadd.f32 %v3870, %v4020
    %v4022 = vand.u32 %v3326, 4294901760
    %4023 = vmatmul.f32.gmra.mxu0 %v4022
    %v4024 = vpop.f32.mrf.mxu0
    %v4025 = vadd.f32 %v3876, %v4024
    %v4026 = vand.u32 %v3329, 4294901760
    %4027 = vmatmul.f32.gmra.mxu0 %v4026
    %v4028 = vpop.f32.mrf.mxu0
    %v4029 = vadd.f32 %v3882, %v4028
    %v4030 = vand.u32 %v3332, 4294901760
    %4031 = vmatmul.f32.gmra.mxu0 %v4030
    %v4032 = vpop.f32.mrf.mxu0
    %v4033 = vadd.f32 %v3888, %v4032
    %v4034 = vand.u32 %v3335, 4294901760
    %4035 = vmatmul.f32.gmra.mxu0 %v4034
    %v4036 = vpop.f32.mrf.mxu0
    %v4037 = vadd.f32 %v3894, %v4036
    %v4038 = vand.u32 %v3338, 4294901760
    %4039 = vmatmul.f32.gmra.mxu0 %v4038
    %v4040 = vpop.f32.mrf.mxu0
    %v4041 = vadd.f32 %v3900, %v4040
    %v4042 = vand.u32 %v3341, 4294901760
    %4043 = vmatmul.f32.gmra.mxu0 %v4042
    %v4044 = vpop.f32.mrf.mxu0
    %v4045 = vadd.f32 %v3906, %v4044
    %v4046 = vand.u32 %v3344, 4294901760
    %4047 = vmatmul.f32.gmra.mxu0 %v4046
    %v4048 = vpop.f32.mrf.mxu0
    %v4049 = vadd.f32 %v3912, %v4048
    %v4050 = vand.u32 %v3347, 4294901760
    %4051 = vmatmul.f32.gmra.mxu0 %v4050
    %v4052 = vpop.f32.mrf.mxu0
    %v4053 = vadd.f32 %v3918, %v4052
    %v4054 = vand.u32 %v3350, 4294901760
    %4055 = vmatmul.f32.gmra.mxu0 %v4054
    %v4056 = vpop.f32.mrf.mxu0
    %v4057 = vadd.f32 %v3924, %v4056
    %v4058 = vand.u32 %v3353, 4294901760
    %4059 = vmatmul.f32.gmra.mxu0 %v4058
    %v4060 = vpop.f32.mrf.mxu0
    %v4061 = vadd.f32 %v3930, %v4060
    %v4062 = vand.u32 %v3356, 4294901760
    %4063 = vmatmul.f32.gmra.mxu0 %v4062
    %v4064 = vpop.f32.mrf.mxu0
    %v4065 = vadd.f32 %v3936, %v4064
    %4066 = vdwg.mxu0
    %v4067 = vand.u32 %v1821, 4294901760
    %4068 = vmatpush.msra.mxu0 %v4067
    %v4069 = vand.u32 %v1820, 4294901760
    %4070 = vmatpush.msra.mxu0 %v4069
    %v4071 = vand.u32 %v1819, 4294901760
    %4072 = vmatpush.msra.mxu0 %v4071
    %v4073 = vand.u32 %v1818, 4294901760
    %4074 = vmatpush.msra.mxu0 %v4073
    %v4075 = vand.u32 %v1817, 4294901760
    %4076 = vmatpush.msra.mxu0 %v4075
    %v4077 = vand.u32 %v1816, 4294901760
    %4078 = vmatpush.msra.mxu0 %v4077
    %v4079 = vand.u32 %v1815, 4294901760
    %4080 = vmatpush.msra.mxu0 %v4079
    %v4081 = vand.u32 %v1814, 4294901760
    %4082 = vmatpush.msra.mxu0 %v4081
    %v4083 = vand.u32 %v1813, 4294901760
    %4084 = vmatpush.msra.mxu0 %v4083
    %v4085 = vand.u32 %v1812, 4294901760
    %4086 = vmatpush.msra.mxu0 %v4085
    %v4087 = vand.u32 %v1811, 4294901760
    %4088 = vmatpush.msra.mxu0 %v4087
    %v4089 = vand.u32 %v1810, 4294901760
    %4090 = vmatpush.msra.mxu0 %v4089
    %v4091 = vand.u32 %v1809, 4294901760
    %4092 = vmatpush.msra.mxu0 %v4091
    %v4093 = vand.u32 %v1808, 4294901760
    %4094 = vmatpush.msra.mxu0 %v4093
    %v4095 = vand.u32 %v1807, 4294901760
    %4096 = vmatpush.msra.mxu0 %v4095
    %v4097 = vand.u32 %v1806, 4294901760
    %4098 = vmatpush.msra.mxu0 %v4097
    %v4099 = vand.u32 %v3311, 4294901760
    %4100 = vmatmul.f32.gmra.mxu0 %v4099
    %v4101 = vpop.f32.mrf.mxu0
    %v4102 = vadd.f32 %v4005, %v4101
    %v4103 = vand.u32 %v3314, 4294901760
    %4104 = vmatmul.f32.gmra.mxu0 %v4103
    %v4105 = vpop.f32.mrf.mxu0
    %v4106 = vadd.f32 %v4009, %v4105
    %v4107 = vand.u32 %v3317, 4294901760
    %4108 = vmatmul.f32.gmra.mxu0 %v4107
    %v4109 = vpop.f32.mrf.mxu0
    %v4110 = vadd.f32 %v4013, %v4109
    %v4111 = vand.u32 %v3320, 4294901760
    %4112 = vmatmul.f32.gmra.mxu0 %v4111
    %v4113 = vpop.f32.mrf.mxu0
    %v4114 = vadd.f32 %v4017, %v4113
    %v4115 = vand.u32 %v3323, 4294901760
    %4116 = vmatmul.f32.gmra.mxu0 %v4115
    %v4117 = vpop.f32.mrf.mxu0
    %v4118 = vadd.f32 %v4021, %v4117
    %v4119 = vand.u32 %v3326, 4294901760
    %4120 = vmatmul.f32.gmra.mxu0 %v4119
    %v4121 = vpop.f32.mrf.mxu0
    %v4122 = vadd.f32 %v4025, %v4121
    %v4123 = vand.u32 %v3329, 4294901760
    %4124 = vmatmul.f32.gmra.mxu0 %v4123
    %v4125 = vpop.f32.mrf.mxu0
    %v4126 = vadd.f32 %v4029, %v4125
    %v4127 = vand.u32 %v3332, 4294901760
    %4128 = vmatmul.f32.gmra.mxu0 %v4127
    %v4129 = vpop.f32.mrf.mxu0
    %v4130 = vadd.f32 %v4033, %v4129
    %v4131 = vand.u32 %v3335, 4294901760
    %4132 = vmatmul.f32.gmra.mxu0 %v4131
    %v4133 = vpop.f32.mrf.mxu0
    %v4134 = vadd.f32 %v4037, %v4133
    %v4135 = vand.u32 %v3338, 4294901760
    %4136 = vmatmul.f32.gmra.mxu0 %v4135
    %v4137 = vpop.f32.mrf.mxu0
    %v4138 = vadd.f32 %v4041, %v4137
    %v4139 = vand.u32 %v3341, 4294901760
    %4140 = vmatmul.f32.gmra.mxu0 %v4139
    %v4141 = vpop.f32.mrf.mxu0
    %v4142 = vadd.f32 %v4045, %v4141
    %v4143 = vand.u32 %v3344, 4294901760
    %4144 = vmatmul.f32.gmra.mxu0 %v4143
    %v4145 = vpop.f32.mrf.mxu0
    %v4146 = vadd.f32 %v4049, %v4145
    %v4147 = vand.u32 %v3347, 4294901760
    %4148 = vmatmul.f32.gmra.mxu0 %v4147
    %v4149 = vpop.f32.mrf.mxu0
    %v4150 = vadd.f32 %v4053, %v4149
    %v4151 = vand.u32 %v3350, 4294901760
    %4152 = vmatmul.f32.gmra.mxu0 %v4151
    %v4153 = vpop.f32.mrf.mxu0
    %v4154 = vadd.f32 %v4057, %v4153
    %v4155 = vand.u32 %v3353, 4294901760
    %4156 = vmatmul.f32.gmra.mxu0 %v4155
    %v4157 = vpop.f32.mrf.mxu0
    %v4158 = vadd.f32 %v4061, %v4157
    %v4159 = vand.u32 %v3356, 4294901760
    %4160 = vmatmul.f32.gmra.mxu0 %v4159
    %v4161 = vpop.f32.mrf.mxu0
    %v4162 = vadd.f32 %v4065, %v4161
    %4163 = vdwg.mxu0
    %v4164 = vmax.f32 %v4102, 0.0
    %v4165 = vmax.f32 %v4106, 0.0
    %v4166 = vmax.f32 %v4110, 0.0
    %v4167 = vmax.f32 %v4114, 0.0
    %v4168 = vmax.f32 %v4118, 0.0
    %v4169 = vmax.f32 %v4122, 0.0
    %v4170 = vmax.f32 %v4126, 0.0
    %v4171 = vmax.f32 %v4130, 0.0
    %v4172 = vmax.f32 %v4134, 0.0
    %v4173 = vmax.f32 %v4138, 0.0
    %v4174 = vmax.f32 %v4142, 0.0
    %v4175 = vmax.f32 %v4146, 0.0
    %v4176 = vmax.f32 %v4150, 0.0
    %v4177 = vmax.f32 %v4154, 0.0
    %v4178 = vmax.f32 %v4158, 0.0
    %v4179 = vmax.f32 %v4162, 0.0
    %v4180 = vand.u32 %v4179, 4294901760
    %4181 = vmatpush.msra.mxu0 %v4180
    %v4182 = vand.u32 %v4178, 4294901760
    %4183 = vmatpush.msra.mxu0 %v4182
    %v4184 = vand.u32 %v4177, 4294901760
    %4185 = vmatpush.msra.mxu0 %v4184
    %v4186 = vand.u32 %v4176, 4294901760
    %4187 = vmatpush.msra.mxu0 %v4186
    %v4188 = vand.u32 %v4175, 4294901760
    %4189 = vmatpush.msra.mxu0 %v4188
    %v4190 = vand.u32 %v4174, 4294901760
    %4191 = vmatpush.msra.mxu0 %v4190
    %v4192 = vand.u32 %v4173, 4294901760
    %4193 = vmatpush.msra.mxu0 %v4192
    %v4194 = vand.u32 %v4172, 4294901760
    %4195 = vmatpush.msra.mxu0 %v4194
    %v4196 = vand.u32 %v4171, 4294901760
    %4197 = vmatpush.msra.mxu0 %v4196
    %v4198 = vand.u32 %v4170, 4294901760
    %4199 = vmatpush.msra.mxu0 %v4198
    %v4200 = vand.u32 %v4169, 4294901760
    %4201 = vmatpush.msra.mxu0 %v4200
    %v4202 = vand.u32 %v4168, 4294901760
    %4203 = vmatpush.msra.mxu0 %v4202
    %v4204 = vand.u32 %v4167, 4294901760
    %4205 = vmatpush.msra.mxu0 %v4204
    %v4206 = vand.u32 %v4166, 4294901760
    %4207 = vmatpush.msra.mxu0 %v4206
    %v4208 = vand.u32 %v4165, 4294901760
    %4209 = vmatpush.msra.mxu0 %v4208
    %v4210 = vand.u32 %v4164, 4294901760
    %4211 = vmatpush.msra.mxu0 %v4210
    %v4212 = vsub.f32 %v222, %v222
    %v4213 = vand.u32 %v4212, 4294901760
    %v4214 = vsub.f32 %v4212, %v4213
    %v4215 = vand.u32 %v4214, 4294901760
    %4216 = vmatmul.f32.gmra.mxu0 %v4215
    %v4217 = vpop.f32.mrf.mxu0
    %v4218 = vadd.f32 0.0, %v4217
    %v4219 = vsub.f32 %v223, %v223
    %v4220 = vand.u32 %v4219, 4294901760
    %v4221 = vsub.f32 %v4219, %v4220
    %v4222 = vand.u32 %v4221, 4294901760
    %4223 = vmatmul.f32.gmra.mxu0 %v4222
    %v4224 = vpop.f32.mrf.mxu0
    %v4225 = vadd.f32 0.0, %v4224
    %v4226 = vsub.f32 %v224, %v224
    %v4227 = vand.u32 %v4226, 4294901760
    %v4228 = vsub.f32 %v4226, %v4227
    %v4229 = vand.u32 %v4228, 4294901760
    %4230 = vmatmul.f32.gmra.mxu0 %v4229
    %v4231 = vpop.f32.mrf.mxu0
    %v4232 = vadd.f32 0.0, %v4231
    %v4233 = vsub.f32 %v225, %v225
    %v4234 = vand.u32 %v4233, 4294901760
    %v4235 = vsub.f32 %v4233, %v4234
    %v4236 = vand.u32 %v4235, 4294901760
    %4237 = vmatmul.f32.gmra.mxu0 %v4236
    %v4238 = vpop.f32.mrf.mxu0
    %v4239 = vadd.f32 0.0, %v4238
    %v4240 = vsub.f32 %v226, %v226
    %v4241 = vand.u32 %v4240, 4294901760
    %v4242 = vsub.f32 %v4240, %v4241
    %v4243 = vand.u32 %v4242, 4294901760
    %4244 = vmatmul.f32.gmra.mxu0 %v4243
    %v4245 = vpop.f32.mrf.mxu0
    %v4246 = vadd.f32 0.0, %v4245
    %v4247 = vsub.f32 %v227, %v227
    %v4248 = vand.u32 %v4247, 4294901760
    %v4249 = vsub.f32 %v4247, %v4248
    %v4250 = vand.u32 %v4249, 4294901760
    %4251 = vmatmul.f32.gmra.mxu0 %v4250
    %v4252 = vpop.f32.mrf.mxu0
    %v4253 = vadd.f32 0.0, %v4252
    %v4254 = vsub.f32 %v228, %v228
    %v4255 = vand.u32 %v4254, 4294901760
    %v4256 = vsub.f32 %v4254, %v4255
    %v4257 = vand.u32 %v4256, 4294901760
    %4258 = vmatmul.f32.gmra.mxu0 %v4257
    %v4259 = vpop.f32.mrf.mxu0
    %v4260 = vadd.f32 0.0, %v4259
    %v4261 = vsub.f32 %v229, %v229
    %v4262 = vand.u32 %v4261, 4294901760
    %v4263 = vsub.f32 %v4261, %v4262
    %v4264 = vand.u32 %v4263, 4294901760
    %4265 = vmatmul.f32.gmra.mxu0 %v4264
    %v4266 = vpop.f32.mrf.mxu0
    %v4267 = vadd.f32 0.0, %v4266
    %v4268 = vsub.f32 %v230, %v230
    %v4269 = vand.u32 %v4268, 4294901760
    %v4270 = vsub.f32 %v4268, %v4269
    %v4271 = vand.u32 %v4270, 4294901760
    %4272 = vmatmul.f32.gmra.mxu0 %v4271
    %v4273 = vpop.f32.mrf.mxu0
    %v4274 = vadd.f32 0.0, %v4273
    %v4275 = vsub.f32 %v231, %v231
    %v4276 = vand.u32 %v4275, 4294901760
    %v4277 = vsub.f32 %v4275, %v4276
    %v4278 = vand.u32 %v4277, 4294901760
    %4279 = vmatmul.f32.gmra.mxu0 %v4278
    %v4280 = vpop.f32.mrf.mxu0
    %v4281 = vadd.f32 0.0, %v4280
    %v4282 = vsub.f32 %v232, %v232
    %v4283 = vand.u32 %v4282, 4294901760
    %v4284 = vsub.f32 %v4282, %v4283
    %v4285 = vand.u32 %v4284, 4294901760
    %4286 = vmatmul.f32.gmra.mxu0 %v4285
    %v4287 = vpop.f32.mrf.mxu0
    %v4288 = vadd.f32 0.0, %v4287
    %v4289 = vsub.f32 %v233, %v233
    %v4290 = vand.u32 %v4289, 4294901760
    %v4291 = vsub.f32 %v4289, %v4290
    %v4292 = vand.u32 %v4291, 4294901760
    %4293 = vmatmul.f32.gmra.mxu0 %v4292
    %v4294 = vpop.f32.mrf.mxu0
    %v4295 = vadd.f32 0.0, %v4294
    %v4296 = vsub.f32 %v234, %v234
    %v4297 = vand.u32 %v4296, 4294901760
    %v4298 = vsub.f32 %v4296, %v4297
    %v4299 = vand.u32 %v4298, 4294901760
    %4300 = vmatmul.f32.gmra.mxu0 %v4299
    %v4301 = vpop.f32.mrf.mxu0
    %v4302 = vadd.f32 0.0, %v4301
    %v4303 = vsub.f32 %v235, %v235
    %v4304 = vand.u32 %v4303, 4294901760
    %v4305 = vsub.f32 %v4303, %v4304
    %v4306 = vand.u32 %v4305, 4294901760
    %4307 = vmatmul.f32.gmra.mxu0 %v4306
    %v4308 = vpop.f32.mrf.mxu0
    %v4309 = vadd.f32 0.0, %v4308
    %v4310 = vsub.f32 %v236, %v236
    %v4311 = vand.u32 %v4310, 4294901760
    %v4312 = vsub.f32 %v4310, %v4311
    %v4313 = vand.u32 %v4312, 4294901760
    %4314 = vmatmul.f32.gmra.mxu0 %v4313
    %v4315 = vpop.f32.mrf.mxu0
    %v4316 = vadd.f32 0.0, %v4315
    %v4317 = vsub.f32 %v237, %v237
    %v4318 = vand.u32 %v4317, 4294901760
    %v4319 = vsub.f32 %v4317, %v4318
    %v4320 = vand.u32 %v4319, 4294901760
    %4321 = vmatmul.f32.gmra.mxu0 %v4320
    %v4322 = vpop.f32.mrf.mxu0
    %v4323 = vadd.f32 0.0, %v4322
    %4324 = vdwg.mxu0
    %v4325 = vand.u32 %v4179, 4294901760
    %v4326 = vsub.f32 %v4179, %v4325
    %v4327 = vand.u32 %v4326, 4294901760
    %v4328 = vsub.f32 %v4326, %v4327
    %v4329 = vand.u32 %v4328, 4294901760
    %4330 = vmatpush.msra.mxu0 %v4329
    %v4331 = vand.u32 %v4178, 4294901760
    %v4332 = vsub.f32 %v4178, %v4331
    %v4333 = vand.u32 %v4332, 4294901760
    %v4334 = vsub.f32 %v4332, %v4333
    %v4335 = vand.u32 %v4334, 4294901760
    %4336 = vmatpush.msra.mxu0 %v4335
    %v4337 = vand.u32 %v4177, 4294901760
    %v4338 = vsub.f32 %v4177, %v4337
    %v4339 = vand.u32 %v4338, 4294901760
    %v4340 = vsub.f32 %v4338, %v4339
    %v4341 = vand.u32 %v4340, 4294901760
    %4342 = vmatpush.msra.mxu0 %v4341
    %v4343 = vand.u32 %v4176, 4294901760
    %v4344 = vsub.f32 %v4176, %v4343
    %v4345 = vand.u32 %v4344, 4294901760
    %v4346 = vsub.f32 %v4344, %v4345
    %v4347 = vand.u32 %v4346, 4294901760
    %4348 = vmatpush.msra.mxu0 %v4347
    %v4349 = vand.u32 %v4175, 4294901760
    %v4350 = vsub.f32 %v4175, %v4349
    %v4351 = vand.u32 %v4350, 4294901760
    %v4352 = vsub.f32 %v4350, %v4351
    %v4353 = vand.u32 %v4352, 4294901760
    %4354 = vmatpush.msra.mxu0 %v4353
    %v4355 = vand.u32 %v4174, 4294901760
    %v4356 = vsub.f32 %v4174, %v4355
    %v4357 = vand.u32 %v4356, 4294901760
    %v4358 = vsub.f32 %v4356, %v4357
    %v4359 = vand.u32 %v4358, 4294901760
    %4360 = vmatpush.msra.mxu0 %v4359
    %v4361 = vand.u32 %v4173, 4294901760
    %v4362 = vsub.f32 %v4173, %v4361
    %v4363 = vand.u32 %v4362, 4294901760
    %v4364 = vsub.f32 %v4362, %v4363
    %v4365 = vand.u32 %v4364, 4294901760
    %4366 = vmatpush.msra.mxu0 %v4365
    %v4367 = vand.u32 %v4172, 4294901760
    %v4368 = vsub.f32 %v4172, %v4367
    %v4369 = vand.u32 %v4368, 4294901760
    %v4370 = vsub.f32 %v4368, %v4369
    %v4371 = vand.u32 %v4370, 4294901760
    %4372 = vmatpush.msra.mxu0 %v4371
    %v4373 = vand.u32 %v4171, 4294901760
    %v4374 = vsub.f32 %v4171, %v4373
    %v4375 = vand.u32 %v4374, 4294901760
    %v4376 = vsub.f32 %v4374, %v4375
    %v4377 = vand.u32 %v4376, 4294901760
    %4378 = vmatpush.msra.mxu0 %v4377
    %v4379 = vand.u32 %v4170, 4294901760
    %v4380 = vsub.f32 %v4170, %v4379
    %v4381 = vand.u32 %v4380, 4294901760
    %v4382 = vsub.f32 %v4380, %v4381
    %v4383 = vand.u32 %v4382, 4294901760
    %4384 = vmatpush.msra.mxu0 %v4383
    %v4385 = vand.u32 %v4169, 4294901760
    %v4386 = vsub.f32 %v4169, %v4385
    %v4387 = vand.u32 %v4386, 4294901760
    %v4388 = vsub.f32 %v4386, %v4387
    %v4389 = vand.u32 %v4388, 4294901760
    %4390 = vmatpush.msra.mxu0 %v4389
    %v4391 = vand.u32 %v4168, 4294901760
    %v4392 = vsub.f32 %v4168, %v4391
    %v4393 = vand.u32 %v4392, 4294901760
    %v4394 = vsub.f32 %v4392, %v4393
    %v4395 = vand.u32 %v4394, 4294901760
    %4396 = vmatpush.msra.mxu0 %v4395
    %v4397 = vand.u32 %v4167, 4294901760
    %v4398 = vsub.f32 %v4167, %v4397
    %v4399 = vand.u32 %v4398, 4294901760
    %v4400 = vsub.f32 %v4398, %v4399
    %v4401 = vand.u32 %v4400, 4294901760
    %4402 = vmatpush.msra.mxu0 %v4401
    %v4403 = vand.u32 %v4166, 4294901760
    %v4404 = vsub.f32 %v4166, %v4403
    %v4405 = vand.u32 %v4404, 4294901760
    %v4406 = vsub.f32 %v4404, %v4405
    %v4407 = vand.u32 %v4406, 4294901760
    %4408 = vmatpush.msra.mxu0 %v4407
    %v4409 = vand.u32 %v4165, 4294901760
    %v4410 = vsub.f32 %v4165, %v4409
    %v4411 = vand.u32 %v4410, 4294901760
    %v4412 = vsub.f32 %v4410, %v4411
    %v4413 = vand.u32 %v4412, 4294901760
    %4414 = vmatpush.msra.mxu0 %v4413
    %v4415 = vand.u32 %v4164, 4294901760
    %v4416 = vsub.f32 %v4164, %v4415
    %v4417 = vand.u32 %v4416, 4294901760
    %v4418 = vsub.f32 %v4416, %v4417
    %v4419 = vand.u32 %v4418, 4294901760
    %4420 = vmatpush.msra.mxu0 %v4419
    %4421 = vmatmul.f32.gmra.mxu0 %v222
    %v4422 = vpop.f32.mrf.mxu0
    %v4423 = vadd.f32 %v4218, %v4422
    %4424 = vmatmul.f32.gmra.mxu0 %v223
    %v4425 = vpop.f32.mrf.mxu0
    %v4426 = vadd.f32 %v4225, %v4425
    %4427 = vmatmul.f32.gmra.mxu0 %v224
    %v4428 = vpop.f32.mrf.mxu0
    %v4429 = vadd.f32 %v4232, %v4428
    %4430 = vmatmul.f32.gmra.mxu0 %v225
    %v4431 = vpop.f32.mrf.mxu0
    %v4432 = vadd.f32 %v4239, %v4431
    %4433 = vmatmul.f32.gmra.mxu0 %v226
    %v4434 = vpop.f32.mrf.mxu0
    %v4435 = vadd.f32 %v4246, %v4434
    %4436 = vmatmul.f32.gmra.mxu0 %v227
    %v4437 = vpop.f32.mrf.mxu0
    %v4438 = vadd.f32 %v4253, %v4437
    %4439 = vmatmul.f32.gmra.mxu0 %v228
    %v4440 = vpop.f32.mrf.mxu0
    %v4441 = vadd.f32 %v4260, %v4440
    %4442 = vmatmul.f32.gmra.mxu0 %v229
    %v4443 = vpop.f32.mrf.mxu0
    %v4444 = vadd.f32 %v4267, %v4443
    %4445 = vmatmul.f32.gmra.mxu0 %v230
    %v4446 = vpop.f32.mrf.mxu0
    %v4447 = vadd.f32 %v4274, %v4446
    %4448 = vmatmul.f32.gmra.mxu0 %v231
    %v4449 = vpop.f32.mrf.mxu0
    %v4450 = vadd.f32 %v4281, %v4449
    %4451 = vmatmul.f32.gmra.mxu0 %v232
    %v4452 = vpop.f32.mrf.mxu0
    %v4453 = vadd.f32 %v4288, %v4452
    %4454 = vmatmul.f32.gmra.mxu0 %v233
    %v4455 = vpop.f32.mrf.mxu0
    %v4456 = vadd.f32 %v4295, %v4455
    %4457 = vmatmul.f32.gmra.mxu0 %v234
    %v4458 = vpop.f32.mrf.mxu0
    %v4459 = vadd.f32 %v4302, %v4458
    %4460 = vmatmul.f32.gmra.mxu0 %v235
    %v4461 = vpop.f32.mrf.mxu0
    %v4462 = vadd.f32 %v4309, %v4461
    %4463 = vmatmul.f32.gmra.mxu0 %v236
    %v4464 = vpop.f32.mrf.mxu0
    %v4465 = vadd.f32 %v4316, %v4464
    %4466 = vmatmul.f32.gmra.mxu0 %v237
    %v4467 = vpop.f32.mrf.mxu0
    %v4468 = vadd.f32 %v4323, %v4467
    %4469 = vdwg.mxu0
    %v4470 = vand.u32 %v4179, 4294901760
    %v4471 = vsub.f32 %v4179, %v4470
    %4472 = vmatpush.msra.mxu0 %v4471
    %v4473 = vand.u32 %v4178, 4294901760
    %v4474 = vsub.f32 %v4178, %v4473
    %4475 = vmatpush.msra.mxu0 %v4474
    %v4476 = vand.u32 %v4177, 4294901760
    %v4477 = vsub.f32 %v4177, %v4476
    %4478 = vmatpush.msra.mxu0 %v4477
    %v4479 = vand.u32 %v4176, 4294901760
    %v4480 = vsub.f32 %v4176, %v4479
    %4481 = vmatpush.msra.mxu0 %v4480
    %v4482 = vand.u32 %v4175, 4294901760
    %v4483 = vsub.f32 %v4175, %v4482
    %4484 = vmatpush.msra.mxu0 %v4483
    %v4485 = vand.u32 %v4174, 4294901760
    %v4486 = vsub.f32 %v4174, %v4485
    %4487 = vmatpush.msra.mxu0 %v4486
    %v4488 = vand.u32 %v4173, 4294901760
    %v4489 = vsub.f32 %v4173, %v4488
    %4490 = vmatpush.msra.mxu0 %v4489
    %v4491 = vand.u32 %v4172, 4294901760
    %v4492 = vsub.f32 %v4172, %v4491
    %4493 = vmatpush.msra.mxu0 %v4492
    %v4494 = vand.u32 %v4171, 4294901760
    %v4495 = vsub.f32 %v4171, %v4494
    %4496 = vmatpush.msra.mxu0 %v4495
    %v4497 = vand.u32 %v4170, 4294901760
    %v4498 = vsub.f32 %v4170, %v4497
    %4499 = vmatpush.msra.mxu0 %v4498
    %v4500 = vand.u32 %v4169, 4294901760
    %v4501 = vsub.f32 %v4169, %v4500
    %4502 = vmatpush.msra.mxu0 %v4501
    %v4503 = vand.u32 %v4168, 4294901760
    %v4504 = vsub.f32 %v4168, %v4503
    %4505 = vmatpush.msra.mxu0 %v4504
    %v4506 = vand.u32 %v4167, 4294901760
    %v4507 = vsub.f32 %v4167, %v4506
    %4508 = vmatpush.msra.mxu0 %v4507
    %v4509 = vand.u32 %v4166, 4294901760
    %v4510 = vsub.f32 %v4166, %v4509
    %4511 = vmatpush.msra.mxu0 %v4510
    %v4512 = vand.u32 %v4165, 4294901760
    %v4513 = vsub.f32 %v4165, %v4512
    %4514 = vmatpush.msra.mxu0 %v4513
    %v4515 = vand.u32 %v4164, 4294901760
    %v4516 = vsub.f32 %v4164, %v4515
    %4517 = vmatpush.msra.mxu0 %v4516
    %v4518 = vsub.f32 %v222, %v222
    %4519 = vmatmul.f32.gmra.mxu0 %v4518
    %v4520 = vpop.f32.mrf.mxu0
    %v4521 = vadd.f32 %v4423, %v4520
    %v4522 = vsub.f32 %v223, %v223
    %4523 = vmatmul.f32.gmra.mxu0 %v4522
    %v4524 = vpop.f32.mrf.mxu0
    %v4525 = vadd.f32 %v4426, %v4524
    %v4526 = vsub.f32 %v224, %v224
    %4527 = vmatmul.f32.gmra.mxu0 %v4526
    %v4528 = vpop.f32.mrf.mxu0
    %v4529 = vadd.f32 %v4429, %v4528
    %v4530 = vsub.f32 %v225, %v225
    %4531 = vmatmul.f32.gmra.mxu0 %v4530
    %v4532 = vpop.f32.mrf.mxu0
    %v4533 = vadd.f32 %v4432, %v4532
    %v4534 = vsub.f32 %v226, %v226
    %4535 = vmatmul.f32.gmra.mxu0 %v4534
    %v4536 = vpop.f32.mrf.mxu0
    %v4537 = vadd.f32 %v4435, %v4536
    %v4538 = vsub.f32 %v227, %v227
    %4539 = vmatmul.f32.gmra.mxu0 %v4538
    %v4540 = vpop.f32.mrf.mxu0
    %v4541 = vadd.f32 %v4438, %v4540
    %v4542 = vsub.f32 %v228, %v228
    %4543 = vmatmul.f32.gmra.mxu0 %v4542
    %v4544 = vpop.f32.mrf.mxu0
    %v4545 = vadd.f32 %v4441, %v4544
    %v4546 = vsub.f32 %v229, %v229
    %4547 = vmatmul.f32.gmra.mxu0 %v4546
    %v4548 = vpop.f32.mrf.mxu0
    %v4549 = vadd.f32 %v4444, %v4548
    %v4550 = vsub.f32 %v230, %v230
    %4551 = vmatmul.f32.gmra.mxu0 %v4550
    %v4552 = vpop.f32.mrf.mxu0
    %v4553 = vadd.f32 %v4447, %v4552
    %v4554 = vsub.f32 %v231, %v231
    %4555 = vmatmul.f32.gmra.mxu0 %v4554
    %v4556 = vpop.f32.mrf.mxu0
    %v4557 = vadd.f32 %v4450, %v4556
    %v4558 = vsub.f32 %v232, %v232
    %4559 = vmatmul.f32.gmra.mxu0 %v4558
    %v4560 = vpop.f32.mrf.mxu0
    %v4561 = vadd.f32 %v4453, %v4560
    %v4562 = vsub.f32 %v233, %v233
    %4563 = vmatmul.f32.gmra.mxu0 %v4562
    %v4564 = vpop.f32.mrf.mxu0
    %v4565 = vadd.f32 %v4456, %v4564
    %v4566 = vsub.f32 %v234, %v234
    %4567 = vmatmul.f32.gmra.mxu0 %v4566
    %v4568 = vpop.f32.mrf.mxu0
    %v4569 = vadd.f32 %v4459, %v4568
    %v4570 = vsub.f32 %v235, %v235
    %4571 = vmatmul.f32.gmra.mxu0 %v4570
    %v4572 = vpop.f32.mrf.mxu0
    %v4573 = vadd.f32 %v4462, %v4572
    %v4574 = vsub.f32 %v236, %v236
    %4575 = vmatmul.f32.gmra.mxu0 %v4574
    %v4576 = vpop.f32.mrf.mxu0
    %v4577 = vadd.f32 %v4465, %v4576
    %v4578 = vsub.f32 %v237, %v237
    %4579 = vmatmul.f32.gmra.mxu0 %v4578
    %v4580 = vpop.f32.mrf.mxu0
    %v4581 = vadd.f32 %v4468, %v4580
    %4582 = vdwg.mxu0
    %v4583 = vand.u32 %v4179, 4294901760
    %4584 = vmatpush.msra.mxu0 %v4583
    %v4585 = vand.u32 %v4178, 4294901760
    %4586 = vmatpush.msra.mxu0 %v4585
    %v4587 = vand.u32 %v4177, 4294901760
    %4588 = vmatpush.msra.mxu0 %v4587
    %v4589 = vand.u32 %v4176, 4294901760
    %4590 = vmatpush.msra.mxu0 %v4589
    %v4591 = vand.u32 %v4175, 4294901760
    %4592 = vmatpush.msra.mxu0 %v4591
    %v4593 = vand.u32 %v4174, 4294901760
    %4594 = vmatpush.msra.mxu0 %v4593
    %v4595 = vand.u32 %v4173, 4294901760
    %4596 = vmatpush.msra.mxu0 %v4595
    %v4597 = vand.u32 %v4172, 4294901760
    %4598 = vmatpush.msra.mxu0 %v4597
    %v4599 = vand.u32 %v4171, 4294901760
    %4600 = vmatpush.msra.mxu0 %v4599
    %v4601 = vand.u32 %v4170, 4294901760
    %4602 = vmatpush.msra.mxu0 %v4601
    %v4603 = vand.u32 %v4169, 4294901760
    %4604 = vmatpush.msra.mxu0 %v4603
    %v4605 = vand.u32 %v4168, 4294901760
    %4606 = vmatpush.msra.mxu0 %v4605
    %v4607 = vand.u32 %v4167, 4294901760
    %4608 = vmatpush.msra.mxu0 %v4607
    %v4609 = vand.u32 %v4166, 4294901760
    %4610 = vmatpush.msra.mxu0 %v4609
    %v4611 = vand.u32 %v4165, 4294901760
    %4612 = vmatpush.msra.mxu0 %v4611
    %v4613 = vand.u32 %v4164, 4294901760
    %4614 = vmatpush.msra.mxu0 %v4613
    %v4615 = vsub.f32 %v222, %v222
    %v4616 = vand.u32 %v4615, 4294901760
    %4617 = vmatmul.f32.gmra.mxu0 %v4616
    %v4618 = vpop.f32.mrf.mxu0
    %v4619 = vadd.f32 %v4521, %v4618
    %v4620 = vsub.f32 %v223, %v223
    %v4621 = vand.u32 %v4620, 4294901760
    %4622 = vmatmul.f32.gmra.mxu0 %v4621
    %v4623 = vpop.f32.mrf.mxu0
    %v4624 = vadd.f32 %v4525, %v4623
    %v4625 = vsub.f32 %v224, %v224
    %v4626 = vand.u32 %v4625, 4294901760
    %4627 = vmatmul.f32.gmra.mxu0 %v4626
    %v4628 = vpop.f32.mrf.mxu0
    %v4629 = vadd.f32 %v4529, %v4628
    %v4630 = vsub.f32 %v225, %v225
    %v4631 = vand.u32 %v4630, 4294901760
    %4632 = vmatmul.f32.gmra.mxu0 %v4631
    %v4633 = vpop.f32.mrf.mxu0
    %v4634 = vadd.f32 %v4533, %v4633
    %v4635 = vsub.f32 %v226, %v226
    %v4636 = vand.u32 %v4635, 4294901760
    %4637 = vmatmul.f32.gmra.mxu0 %v4636
    %v4638 = vpop.f32.mrf.mxu0
    %v4639 = vadd.f32 %v4537, %v4638
    %v4640 = vsub.f32 %v227, %v227
    %v4641 = vand.u32 %v4640, 4294901760
    %4642 = vmatmul.f32.gmra.mxu0 %v4641
    %v4643 = vpop.f32.mrf.mxu0
    %v4644 = vadd.f32 %v4541, %v4643
    %v4645 = vsub.f32 %v228, %v228
    %v4646 = vand.u32 %v4645, 4294901760
    %4647 = vmatmul.f32.gmra.mxu0 %v4646
    %v4648 = vpop.f32.mrf.mxu0
    %v4649 = vadd.f32 %v4545, %v4648
    %v4650 = vsub.f32 %v229, %v229
    %v4651 = vand.u32 %v4650, 4294901760
    %4652 = vmatmul.f32.gmra.mxu0 %v4651
    %v4653 = vpop.f32.mrf.mxu0
    %v4654 = vadd.f32 %v4549, %v4653
    %v4655 = vsub.f32 %v230, %v230
    %v4656 = vand.u32 %v4655, 4294901760
    %4657 = vmatmul.f32.gmra.mxu0 %v4656
    %v4658 = vpop.f32.mrf.mxu0
    %v4659 = vadd.f32 %v4553, %v4658
    %v4660 = vsub.f32 %v231, %v231
    %v4661 = vand.u32 %v4660, 4294901760
    %4662 = vmatmul.f32.gmra.mxu0 %v4661
    %v4663 = vpop.f32.mrf.mxu0
    %v4664 = vadd.f32 %v4557, %v4663
    %v4665 = vsub.f32 %v232, %v232
    %v4666 = vand.u32 %v4665, 4294901760
    %4667 = vmatmul.f32.gmra.mxu0 %v4666
    %v4668 = vpop.f32.mrf.mxu0
    %v4669 = vadd.f32 %v4561, %v4668
    %v4670 = vsub.f32 %v233, %v233
    %v4671 = vand.u32 %v4670, 4294901760
    %4672 = vmatmul.f32.gmra.mxu0 %v4671
    %v4673 = vpop.f32.mrf.mxu0
    %v4674 = vadd.f32 %v4565, %v4673
    %v4675 = vsub.f32 %v234, %v234
    %v4676 = vand.u32 %v4675, 4294901760
    %4677 = vmatmul.f32.gmra.mxu0 %v4676
    %v4678 = vpop.f32.mrf.mxu0
    %v4679 = vadd.f32 %v4569, %v4678
    %v4680 = vsub.f32 %v235, %v235
    %v4681 = vand.u32 %v4680, 4294901760
    %4682 = vmatmul.f32.gmra.mxu0 %v4681
    %v4683 = vpop.f32.mrf.mxu0
    %v4684 = vadd.f32 %v4573, %v4683
    %v4685 = vsub.f32 %v236, %v236
    %v4686 = vand.u32 %v4685, 4294901760
    %4687 = vmatmul.f32.gmra.mxu0 %v4686
    %v4688 = vpop.f32.mrf.mxu0
    %v4689 = vadd.f32 %v4577, %v4688
    %v4690 = vsub.f32 %v237, %v237
    %v4691 = vand.u32 %v4690, 4294901760
    %4692 = vmatmul.f32.gmra.mxu0 %v4691
    %v4693 = vpop.f32.mrf.mxu0
    %v4694 = vadd.f32 %v4581, %v4693
    %4695 = vdwg.mxu0
    %v4696 = vand.u32 %v4179, 4294901760
    %v4697 = vsub.f32 %v4179, %v4696
    %v4698 = vand.u32 %v4697, 4294901760
    %4699 = vmatpush.msra.mxu0 %v4698
    %v4700 = vand.u32 %v4178, 4294901760
    %v4701 = vsub.f32 %v4178, %v4700
    %v4702 = vand.u32 %v4701, 4294901760
    %4703 = vmatpush.msra.mxu0 %v4702
    %v4704 = vand.u32 %v4177, 4294901760
    %v4705 = vsub.f32 %v4177, %v4704
    %v4706 = vand.u32 %v4705, 4294901760
    %4707 = vmatpush.msra.mxu0 %v4706
    %v4708 = vand.u32 %v4176, 4294901760
    %v4709 = vsub.f32 %v4176, %v4708
    %v4710 = vand.u32 %v4709, 4294901760
    %4711 = vmatpush.msra.mxu0 %v4710
    %v4712 = vand.u32 %v4175, 4294901760
    %v4713 = vsub.f32 %v4175, %v4712
    %v4714 = vand.u32 %v4713, 4294901760
    %4715 = vmatpush.msra.mxu0 %v4714
    %v4716 = vand.u32 %v4174, 4294901760
    %v4717 = vsub.f32 %v4174, %v4716
    %v4718 = vand.u32 %v4717, 4294901760
    %4719 = vmatpush.msra.mxu0 %v4718
    %v4720 = vand.u32 %v4173, 4294901760
    %v4721 = vsub.f32 %v4173, %v4720
    %v4722 = vand.u32 %v4721, 4294901760
    %4723 = vmatpush.msra.mxu0 %v4722
    %v4724 = vand.u32 %v4172, 4294901760
    %v4725 = vsub.f32 %v4172, %v4724
    %v4726 = vand.u32 %v4725, 4294901760
    %4727 = vmatpush.msra.mxu0 %v4726
    %v4728 = vand.u32 %v4171, 4294901760
    %v4729 = vsub.f32 %v4171, %v4728
    %v4730 = vand.u32 %v4729, 4294901760
    %4731 = vmatpush.msra.mxu0 %v4730
    %v4732 = vand.u32 %v4170, 4294901760
    %v4733 = vsub.f32 %v4170, %v4732
    %v4734 = vand.u32 %v4733, 4294901760
    %4735 = vmatpush.msra.mxu0 %v4734
    %v4736 = vand.u32 %v4169, 4294901760
    %v4737 = vsub.f32 %v4169, %v4736
    %v4738 = vand.u32 %v4737, 4294901760
    %4739 = vmatpush.msra.mxu0 %v4738
    %v4740 = vand.u32 %v4168, 4294901760
    %v4741 = vsub.f32 %v4168, %v4740
    %v4742 = vand.u32 %v4741, 4294901760
    %4743 = vmatpush.msra.mxu0 %v4742
    %v4744 = vand.u32 %v4167, 4294901760
    %v4745 = vsub.f32 %v4167, %v4744
    %v4746 = vand.u32 %v4745, 4294901760
    %4747 = vmatpush.msra.mxu0 %v4746
    %v4748 = vand.u32 %v4166, 4294901760
    %v4749 = vsub.f32 %v4166, %v4748
    %v4750 = vand.u32 %v4749, 4294901760
    %4751 = vmatpush.msra.mxu0 %v4750
    %v4752 = vand.u32 %v4165, 4294901760
    %v4753 = vsub.f32 %v4165, %v4752
    %v4754 = vand.u32 %v4753, 4294901760
    %4755 = vmatpush.msra.mxu0 %v4754
    %v4756 = vand.u32 %v4164, 4294901760
    %v4757 = vsub.f32 %v4164, %v4756
    %v4758 = vand.u32 %v4757, 4294901760
    %4759 = vmatpush.msra.mxu0 %v4758
    %4760 = vmatmul.f32.gmra.mxu0 %v222
    %v4761 = vpop.f32.mrf.mxu0
    %v4762 = vadd.f32 %v4619, %v4761
    %4763 = vmatmul.f32.gmra.mxu0 %v223
    %v4764 = vpop.f32.mrf.mxu0
    %v4765 = vadd.f32 %v4624, %v4764
    %4766 = vmatmul.f32.gmra.mxu0 %v224
    %v4767 = vpop.f32.mrf.mxu0
    %v4768 = vadd.f32 %v4629, %v4767
    %4769 = vmatmul.f32.gmra.mxu0 %v225
    %v4770 = vpop.f32.mrf.mxu0
    %v4771 = vadd.f32 %v4634, %v4770
    %4772 = vmatmul.f32.gmra.mxu0 %v226
    %v4773 = vpop.f32.mrf.mxu0
    %v4774 = vadd.f32 %v4639, %v4773
    %4775 = vmatmul.f32.gmra.mxu0 %v227
    %v4776 = vpop.f32.mrf.mxu0
    %v4777 = vadd.f32 %v4644, %v4776
    %4778 = vmatmul.f32.gmra.mxu0 %v228
    %v4779 = vpop.f32.mrf.mxu0
    %v4780 = vadd.f32 %v4649, %v4779
    %4781 = vmatmul.f32.gmra.mxu0 %v229
    %v4782 = vpop.f32.mrf.mxu0
    %v4783 = vadd.f32 %v4654, %v4782
    %4784 = vmatmul.f32.gmra.mxu0 %v230
    %v4785 = vpop.f32.mrf.mxu0
    %v4786 = vadd.f32 %v4659, %v4785
    %4787 = vmatmul.f32.gmra.mxu0 %v231
    %v4788 = vpop.f32.mrf.mxu0
    %v4789 = vadd.f32 %v4664, %v4788
    %4790 = vmatmul.f32.gmra.mxu0 %v232
    %v4791 = vpop.f32.mrf.mxu0
    %v4792 = vadd.f32 %v4669, %v4791
    %4793 = vmatmul.f32.gmra.mxu0 %v233
    %v4794 = vpop.f32.mrf.mxu0
    %v4795 = vadd.f32 %v4674, %v4794
    %4796 = vmatmul.f32.gmra.mxu0 %v234
    %v4797 = vpop.f32.mrf.mxu0
    %v4798 = vadd.f32 %v4679, %v4797
    %4799 = vmatmul.f32.gmra.mxu0 %v235
    %v4800 = vpop.f32.mrf.mxu0
    %v4801 = vadd.f32 %v4684, %v4800
    %4802 = vmatmul.f32.gmra.mxu0 %v236
    %v4803 = vpop.f32.mrf.mxu0
    %v4804 = vadd.f32 %v4689, %v4803
    %4805 = vmatmul.f32.gmra.mxu0 %v237
    %v4806 = vpop.f32.mrf.mxu0
    %v4807 = vadd.f32 %v4694, %v4806
    %4808 = vdwg.mxu0
    %v4809 = vand.u32 %v4179, 4294901760
    %4810 = vmatpush.msra.mxu0 %v4809
    %v4811 = vand.u32 %v4178, 4294901760
    %4812 = vmatpush.msra.mxu0 %v4811
    %v4813 = vand.u32 %v4177, 4294901760
    %4814 = vmatpush.msra.mxu0 %v4813
    %v4815 = vand.u32 %v4176, 4294901760
    %4816 = vmatpush.msra.mxu0 %v4815
    %v4817 = vand.u32 %v4175, 4294901760
    %4818 = vmatpush.msra.mxu0 %v4817
    %v4819 = vand.u32 %v4174, 4294901760
    %4820 = vmatpush.msra.mxu0 %v4819
    %v4821 = vand.u32 %v4173, 4294901760
    %4822 = vmatpush.msra.mxu0 %v4821
    %v4823 = vand.u32 %v4172, 4294901760
    %4824 = vmatpush.msra.mxu0 %v4823
    %v4825 = vand.u32 %v4171, 4294901760
    %4826 = vmatpush.msra.mxu0 %v4825
    %v4827 = vand.u32 %v4170, 4294901760
    %4828 = vmatpush.msra.mxu0 %v4827
    %v4829 = vand.u32 %v4169, 4294901760
    %4830 = vmatpush.msra.mxu0 %v4829
    %v4831 = vand.u32 %v4168, 4294901760
    %4832 = vmatpush.msra.mxu0 %v4831
    %v4833 = vand.u32 %v4167, 4294901760
    %4834 = vmatpush.msra.mxu0 %v4833
    %v4835 = vand.u32 %v4166, 4294901760
    %4836 = vmatpush.msra.mxu0 %v4835
    %v4837 = vand.u32 %v4165, 4294901760
    %4838 = vmatpush.msra.mxu0 %v4837
    %v4839 = vand.u32 %v4164, 4294901760
    %4840 = vmatpush.msra.mxu0 %v4839
    %4841 = vmatmul.f32.gmra.mxu0 %v222
    %v4842 = vpop.f32.mrf.mxu0
    %v4843 = vadd.f32 %v4762, %v4842
    %4844 = vmatmul.f32.gmra.mxu0 %v223
    %v4845 = vpop.f32.mrf.mxu0
    %v4846 = vadd.f32 %v4765, %v4845
    %4847 = vmatmul.f32.gmra.mxu0 %v224
    %v4848 = vpop.f32.mrf.mxu0
    %v4849 = vadd.f32 %v4768, %v4848
    %4850 = vmatmul.f32.gmra.mxu0 %v225
    %v4851 = vpop.f32.mrf.mxu0
    %v4852 = vadd.f32 %v4771, %v4851
    %4853 = vmatmul.f32.gmra.mxu0 %v226
    %v4854 = vpop.f32.mrf.mxu0
    %v4855 = vadd.f32 %v4774, %v4854
    %4856 = vmatmul.f32.gmra.mxu0 %v227
    %v4857 = vpop.f32.mrf.mxu0
    %v4858 = vadd.f32 %v4777, %v4857
    %4859 = vmatmul.f32.gmra.mxu0 %v228
    %v4860 = vpop.f32.mrf.mxu0
    %v4861 = vadd.f32 %v4780, %v4860
    %4862 = vmatmul.f32.gmra.mxu0 %v229
    %v4863 = vpop.f32.mrf.mxu0
    %v4864 = vadd.f32 %v4783, %v4863
    %4865 = vmatmul.f32.gmra.mxu0 %v230
    %v4866 = vpop.f32.mrf.mxu0
    %v4867 = vadd.f32 %v4786, %v4866
    %4868 = vmatmul.f32.gmra.mxu0 %v231
    %v4869 = vpop.f32.mrf.mxu0
    %v4870 = vadd.f32 %v4789, %v4869
    %4871 = vmatmul.f32.gmra.mxu0 %v232
    %v4872 = vpop.f32.mrf.mxu0
    %v4873 = vadd.f32 %v4792, %v4872
    %4874 = vmatmul.f32.gmra.mxu0 %v233
    %v4875 = vpop.f32.mrf.mxu0
    %v4876 = vadd.f32 %v4795, %v4875
    %4877 = vmatmul.f32.gmra.mxu0 %v234
    %v4878 = vpop.f32.mrf.mxu0
    %v4879 = vadd.f32 %v4798, %v4878
    %4880 = vmatmul.f32.gmra.mxu0 %v235
    %v4881 = vpop.f32.mrf.mxu0
    %v4882 = vadd.f32 %v4801, %v4881
    %4883 = vmatmul.f32.gmra.mxu0 %v236
    %v4884 = vpop.f32.mrf.mxu0
    %v4885 = vadd.f32 %v4804, %v4884
    %4886 = vmatmul.f32.gmra.mxu0 %v237
    %v4887 = vpop.f32.mrf.mxu0
    %v4888 = vadd.f32 %v4807, %v4887
    %4889 = vdwg.mxu0
    %v4890 = vand.u32 %v1821, 4294901760
    %4891 = vmatpush.msra.mxu0 %v4890
    %v4892 = vand.u32 %v1820, 4294901760
    %4893 = vmatpush.msra.mxu0 %v4892
    %v4894 = vand.u32 %v1819, 4294901760
    %4895 = vmatpush.msra.mxu0 %v4894
    %v4896 = vand.u32 %v1818, 4294901760
    %4897 = vmatpush.msra.mxu0 %v4896
    %v4898 = vand.u32 %v1817, 4294901760
    %4899 = vmatpush.msra.mxu0 %v4898
    %v4900 = vand.u32 %v1816, 4294901760
    %4901 = vmatpush.msra.mxu0 %v4900
    %v4902 = vand.u32 %v1815, 4294901760
    %4903 = vmatpush.msra.mxu0 %v4902
    %v4904 = vand.u32 %v1814, 4294901760
    %4905 = vmatpush.msra.mxu0 %v4904
    %v4906 = vand.u32 %v1813, 4294901760
    %4907 = vmatpush.msra.mxu0 %v4906
    %v4908 = vand.u32 %v1812, 4294901760
    %4909 = vmatpush.msra.mxu0 %v4908
    %v4910 = vand.u32 %v1811, 4294901760
    %4911 = vmatpush.msra.mxu0 %v4910
    %v4912 = vand.u32 %v1810, 4294901760
    %4913 = vmatpush.msra.mxu0 %v4912
    %v4914 = vand.u32 %v1809, 4294901760
    %4915 = vmatpush.msra.mxu0 %v4914
    %v4916 = vand.u32 %v1808, 4294901760
    %4917 = vmatpush.msra.mxu0 %v4916
    %v4918 = vand.u32 %v1807, 4294901760
    %4919 = vmatpush.msra.mxu0 %v4918
    %v4920 = vand.u32 %v1806, 4294901760
    %4921 = vmatpush.msra.mxu0 %v4920
    %v4922 = vand.u32 %v4843, 4294901760
    %v4923 = vsub.f32 %v4843, %v4922
    %v4924 = vand.u32 %v4923, 4294901760
    %v4925 = vsub.f32 %v4923, %v4924
    %v4926 = vand.u32 %v4925, 4294901760
    %4927 = vmatmul.f32.gmra.mxu0 %v4926
    %v4928 = vpop.f32.mrf.mxu0
    %v4929 = vadd.f32 %v1824, %v4928
    %v4930 = vand.u32 %v4846, 4294901760
    %v4931 = vsub.f32 %v4846, %v4930
    %v4932 = vand.u32 %v4931, 4294901760
    %v4933 = vsub.f32 %v4931, %v4932
    %v4934 = vand.u32 %v4933, 4294901760
    %4935 = vmatmul.f32.gmra.mxu0 %v4934
    %v4936 = vpop.f32.mrf.mxu0
    %v4937 = vadd.f32 %v1824, %v4936
    %v4938 = vand.u32 %v4849, 4294901760
    %v4939 = vsub.f32 %v4849, %v4938
    %v4940 = vand.u32 %v4939, 4294901760
    %v4941 = vsub.f32 %v4939, %v4940
    %v4942 = vand.u32 %v4941, 4294901760
    %4943 = vmatmul.f32.gmra.mxu0 %v4942
    %v4944 = vpop.f32.mrf.mxu0
    %v4945 = vadd.f32 %v1824, %v4944
    %v4946 = vand.u32 %v4852, 4294901760
    %v4947 = vsub.f32 %v4852, %v4946
    %v4948 = vand.u32 %v4947, 4294901760
    %v4949 = vsub.f32 %v4947, %v4948
    %v4950 = vand.u32 %v4949, 4294901760
    %4951 = vmatmul.f32.gmra.mxu0 %v4950
    %v4952 = vpop.f32.mrf.mxu0
    %v4953 = vadd.f32 %v1824, %v4952
    %v4954 = vand.u32 %v4855, 4294901760
    %v4955 = vsub.f32 %v4855, %v4954
    %v4956 = vand.u32 %v4955, 4294901760
    %v4957 = vsub.f32 %v4955, %v4956
    %v4958 = vand.u32 %v4957, 4294901760
    %4959 = vmatmul.f32.gmra.mxu0 %v4958
    %v4960 = vpop.f32.mrf.mxu0
    %v4961 = vadd.f32 %v1824, %v4960
    %v4962 = vand.u32 %v4858, 4294901760
    %v4963 = vsub.f32 %v4858, %v4962
    %v4964 = vand.u32 %v4963, 4294901760
    %v4965 = vsub.f32 %v4963, %v4964
    %v4966 = vand.u32 %v4965, 4294901760
    %4967 = vmatmul.f32.gmra.mxu0 %v4966
    %v4968 = vpop.f32.mrf.mxu0
    %v4969 = vadd.f32 %v1824, %v4968
    %v4970 = vand.u32 %v4861, 4294901760
    %v4971 = vsub.f32 %v4861, %v4970
    %v4972 = vand.u32 %v4971, 4294901760
    %v4973 = vsub.f32 %v4971, %v4972
    %v4974 = vand.u32 %v4973, 4294901760
    %4975 = vmatmul.f32.gmra.mxu0 %v4974
    %v4976 = vpop.f32.mrf.mxu0
    %v4977 = vadd.f32 %v1824, %v4976
    %v4978 = vand.u32 %v4864, 4294901760
    %v4979 = vsub.f32 %v4864, %v4978
    %v4980 = vand.u32 %v4979, 4294901760
    %v4981 = vsub.f32 %v4979, %v4980
    %v4982 = vand.u32 %v4981, 4294901760
    %4983 = vmatmul.f32.gmra.mxu0 %v4982
    %v4984 = vpop.f32.mrf.mxu0
    %v4985 = vadd.f32 %v1824, %v4984
    %v4986 = vand.u32 %v4867, 4294901760
    %v4987 = vsub.f32 %v4867, %v4986
    %v4988 = vand.u32 %v4987, 4294901760
    %v4989 = vsub.f32 %v4987, %v4988
    %v4990 = vand.u32 %v4989, 4294901760
    %4991 = vmatmul.f32.gmra.mxu0 %v4990
    %v4992 = vpop.f32.mrf.mxu0
    %v4993 = vadd.f32 %v1824, %v4992
    %v4994 = vand.u32 %v4870, 4294901760
    %v4995 = vsub.f32 %v4870, %v4994
    %v4996 = vand.u32 %v4995, 4294901760
    %v4997 = vsub.f32 %v4995, %v4996
    %v4998 = vand.u32 %v4997, 4294901760
    %4999 = vmatmul.f32.gmra.mxu0 %v4998
    %v5000 = vpop.f32.mrf.mxu0
    %v5001 = vadd.f32 %v1824, %v5000
    %v5002 = vand.u32 %v4873, 4294901760
    %v5003 = vsub.f32 %v4873, %v5002
    %v5004 = vand.u32 %v5003, 4294901760
    %v5005 = vsub.f32 %v5003, %v5004
    %v5006 = vand.u32 %v5005, 4294901760
    %5007 = vmatmul.f32.gmra.mxu0 %v5006
    %v5008 = vpop.f32.mrf.mxu0
    %v5009 = vadd.f32 %v1824, %v5008
    %v5010 = vand.u32 %v4876, 4294901760
    %v5011 = vsub.f32 %v4876, %v5010
    %v5012 = vand.u32 %v5011, 4294901760
    %v5013 = vsub.f32 %v5011, %v5012
    %v5014 = vand.u32 %v5013, 4294901760
    %5015 = vmatmul.f32.gmra.mxu0 %v5014
    %v5016 = vpop.f32.mrf.mxu0
    %v5017 = vadd.f32 %v1824, %v5016
    %v5018 = vand.u32 %v4879, 4294901760
    %v5019 = vsub.f32 %v4879, %v5018
    %v5020 = vand.u32 %v5019, 4294901760
    %v5021 = vsub.f32 %v5019, %v5020
    %v5022 = vand.u32 %v5021, 4294901760
    %5023 = vmatmul.f32.gmra.mxu0 %v5022
    %v5024 = vpop.f32.mrf.mxu0
    %v5025 = vadd.f32 %v1824, %v5024
    %v5026 = vand.u32 %v4882, 4294901760
    %v5027 = vsub.f32 %v4882, %v5026
    %v5028 = vand.u32 %v5027, 4294901760
    %v5029 = vsub.f32 %v5027, %v5028
    %v5030 = vand.u32 %v5029, 4294901760
    %5031 = vmatmul.f32.gmra.mxu0 %v5030
    %v5032 = vpop.f32.mrf.mxu0
    %v5033 = vadd.f32 %v1824, %v5032
    %v5034 = vand.u32 %v4885, 4294901760
    %v5035 = vsub.f32 %v4885, %v5034
    %v5036 = vand.u32 %v5035, 4294901760
    %v5037 = vsub.f32 %v5035, %v5036
    %v5038 = vand.u32 %v5037, 4294901760
    %5039 = vmatmul.f32.gmra.mxu0 %v5038
    %v5040 = vpop.f32.mrf.mxu0
    %v5041 = vadd.f32 %v1824, %v5040
    %v5042 = vand.u32 %v4888, 4294901760
    %v5043 = vsub.f32 %v4888, %v5042
    %v5044 = vand.u32 %v5043, 4294901760
    %v5045 = vsub.f32 %v5043, %v5044
    %v5046 = vand.u32 %v5045, 4294901760
    %5047 = vmatmul.f32.gmra.mxu0 %v5046
    %v5048 = vpop.f32.mrf.mxu0
    %v5049 = vadd.f32 %v1824, %v5048
    %5050 = vdwg.mxu0
    %v5051 = vand.u32 %v1821, 4294901760
    %v5052 = vsub.f32 %v1821, %v5051
    %v5053 = vand.u32 %v5052, 4294901760
    %v5054 = vsub.f32 %v5052, %v5053
    %v5055 = vand.u32 %v5054, 4294901760
    %5056 = vmatpush.msra.mxu0 %v5055
    %v5057 = vand.u32 %v1820, 4294901760
    %v5058 = vsub.f32 %v1820, %v5057
    %v5059 = vand.u32 %v5058, 4294901760
    %v5060 = vsub.f32 %v5058, %v5059
    %v5061 = vand.u32 %v5060, 4294901760
    %5062 = vmatpush.msra.mxu0 %v5061
    %v5063 = vand.u32 %v1819, 4294901760
    %v5064 = vsub.f32 %v1819, %v5063
    %v5065 = vand.u32 %v5064, 4294901760
    %v5066 = vsub.f32 %v5064, %v5065
    %v5067 = vand.u32 %v5066, 4294901760
    %5068 = vmatpush.msra.mxu0 %v5067
    %v5069 = vand.u32 %v1818, 4294901760
    %v5070 = vsub.f32 %v1818, %v5069
    %v5071 = vand.u32 %v5070, 4294901760
    %v5072 = vsub.f32 %v5070, %v5071
    %v5073 = vand.u32 %v5072, 4294901760
    %5074 = vmatpush.msra.mxu0 %v5073
    %v5075 = vand.u32 %v1817, 4294901760
    %v5076 = vsub.f32 %v1817, %v5075
    %v5077 = vand.u32 %v5076, 4294901760
    %v5078 = vsub.f32 %v5076, %v5077
    %v5079 = vand.u32 %v5078, 4294901760
    %5080 = vmatpush.msra.mxu0 %v5079
    %v5081 = vand.u32 %v1816, 4294901760
    %v5082 = vsub.f32 %v1816, %v5081
    %v5083 = vand.u32 %v5082, 4294901760
    %v5084 = vsub.f32 %v5082, %v5083
    %v5085 = vand.u32 %v5084, 4294901760
    %5086 = vmatpush.msra.mxu0 %v5085
    %v5087 = vand.u32 %v1815, 4294901760
    %v5088 = vsub.f32 %v1815, %v5087
    %v5089 = vand.u32 %v5088, 4294901760
    %v5090 = vsub.f32 %v5088, %v5089
    %v5091 = vand.u32 %v5090, 4294901760
    %5092 = vmatpush.msra.mxu0 %v5091
    %v5093 = vand.u32 %v1814, 4294901760
    %v5094 = vsub.f32 %v1814, %v5093
    %v5095 = vand.u32 %v5094, 4294901760
    %v5096 = vsub.f32 %v5094, %v5095
    %v5097 = vand.u32 %v5096, 4294901760
    %5098 = vmatpush.msra.mxu0 %v5097
    %v5099 = vand.u32 %v1813, 4294901760
    %v5100 = vsub.f32 %v1813, %v5099
    %v5101 = vand.u32 %v5100, 4294901760
    %v5102 = vsub.f32 %v5100, %v5101
    %v5103 = vand.u32 %v5102, 4294901760
    %5104 = vmatpush.msra.mxu0 %v5103
    %v5105 = vand.u32 %v1812, 4294901760
    %v5106 = vsub.f32 %v1812, %v5105
    %v5107 = vand.u32 %v5106, 4294901760
    %v5108 = vsub.f32 %v5106, %v5107
    %v5109 = vand.u32 %v5108, 4294901760
    %5110 = vmatpush.msra.mxu0 %v5109
    %v5111 = vand.u32 %v1811, 4294901760
    %v5112 = vsub.f32 %v1811, %v5111
    %v5113 = vand.u32 %v5112, 4294901760
    %v5114 = vsub.f32 %v5112, %v5113
    %v5115 = vand.u32 %v5114, 4294901760
    %5116 = vmatpush.msra.mxu0 %v5115
    %v5117 = vand.u32 %v1810, 4294901760
    %v5118 = vsub.f32 %v1810, %v5117
    %v5119 = vand.u32 %v5118, 4294901760
    %v5120 = vsub.f32 %v5118, %v5119
    %v5121 = vand.u32 %v5120, 4294901760
    %5122 = vmatpush.msra.mxu0 %v5121
    %v5123 = vand.u32 %v1809, 4294901760
    %v5124 = vsub.f32 %v1809, %v5123
    %v5125 = vand.u32 %v5124, 4294901760
    %v5126 = vsub.f32 %v5124, %v5125
    %v5127 = vand.u32 %v5126, 4294901760
    %5128 = vmatpush.msra.mxu0 %v5127
    %v5129 = vand.u32 %v1808, 4294901760
    %v5130 = vsub.f32 %v1808, %v5129
    %v5131 = vand.u32 %v5130, 4294901760
    %v5132 = vsub.f32 %v5130, %v5131
    %v5133 = vand.u32 %v5132, 4294901760
    %5134 = vmatpush.msra.mxu0 %v5133
    %v5135 = vand.u32 %v1807, 4294901760
    %v5136 = vsub.f32 %v1807, %v5135
    %v5137 = vand.u32 %v5136, 4294901760
    %v5138 = vsub.f32 %v5136, %v5137
    %v5139 = vand.u32 %v5138, 4294901760
    %5140 = vmatpush.msra.mxu0 %v5139
    %v5141 = vand.u32 %v1806, 4294901760
    %v5142 = vsub.f32 %v1806, %v5141
    %v5143 = vand.u32 %v5142, 4294901760
    %v5144 = vsub.f32 %v5142, %v5143
    %v5145 = vand.u32 %v5144, 4294901760
    %5146 = vmatpush.msra.mxu0 %v5145
    %v5147 = vand.u32 %v4843, 4294901760
    %5148 = vmatmul.f32.gmra.mxu0 %v5147
    %v5149 = vpop.f32.mrf.mxu0
    %v5150 = vadd.f32 %v4929, %v5149
    %v5151 = vand.u32 %v4846, 4294901760
    %5152 = vmatmul.f32.gmra.mxu0 %v5151
    %v5153 = vpop.f32.mrf.mxu0
    %v5154 = vadd.f32 %v4937, %v5153
    %v5155 = vand.u32 %v4849, 4294901760
    %5156 = vmatmul.f32.gmra.mxu0 %v5155
    %v5157 = vpop.f32.mrf.mxu0
    %v5158 = vadd.f32 %v4945, %v5157
    %v5159 = vand.u32 %v4852, 4294901760
    %5160 = vmatmul.f32.gmra.mxu0 %v5159
    %v5161 = vpop.f32.mrf.mxu0
    %v5162 = vadd.f32 %v4953, %v5161
    %v5163 = vand.u32 %v4855, 4294901760
    %5164 = vmatmul.f32.gmra.mxu0 %v5163
    %v5165 = vpop.f32.mrf.mxu0
    %v5166 = vadd.f32 %v4961, %v5165
    %v5167 = vand.u32 %v4858, 4294901760
    %5168 = vmatmul.f32.gmra.mxu0 %v5167
    %v5169 = vpop.f32.mrf.mxu0
    %v5170 = vadd.f32 %v4969, %v5169
    %v5171 = vand.u32 %v4861, 4294901760
    %5172 = vmatmul.f32.gmra.mxu0 %v5171
    %v5173 = vpop.f32.mrf.mxu0
    %v5174 = vadd.f32 %v4977, %v5173
    %v5175 = vand.u32 %v4864, 4294901760
    %5176 = vmatmul.f32.gmra.mxu0 %v5175
    %v5177 = vpop.f32.mrf.mxu0
    %v5178 = vadd.f32 %v4985, %v5177
    %v5179 = vand.u32 %v4867, 4294901760
    %5180 = vmatmul.f32.gmra.mxu0 %v5179
    %v5181 = vpop.f32.mrf.mxu0
    %v5182 = vadd.f32 %v4993, %v5181
    %v5183 = vand.u32 %v4870, 4294901760
    %5184 = vmatmul.f32.gmra.mxu0 %v5183
    %v5185 = vpop.f32.mrf.mxu0
    %v5186 = vadd.f32 %v5001, %v5185
    %v5187 = vand.u32 %v4873, 4294901760
    %5188 = vmatmul.f32.gmra.mxu0 %v5187
    %v5189 = vpop.f32.mrf.mxu0
    %v5190 = vadd.f32 %v5009, %v5189
    %v5191 = vand.u32 %v4876, 4294901760
    %5192 = vmatmul.f32.gmra.mxu0 %v5191
    %v5193 = vpop.f32.mrf.mxu0
    %v5194 = vadd.f32 %v5017, %v5193
    %v5195 = vand.u32 %v4879, 4294901760
    %5196 = vmatmul.f32.gmra.mxu0 %v5195
    %v5197 = vpop.f32.mrf.mxu0
    %v5198 = vadd.f32 %v5025, %v5197
    %v5199 = vand.u32 %v4882, 4294901760
    %5200 = vmatmul.f32.gmra.mxu0 %v5199
    %v5201 = vpop.f32.mrf.mxu0
    %v5202 = vadd.f32 %v5033, %v5201
    %v5203 = vand.u32 %v4885, 4294901760
    %5204 = vmatmul.f32.gmra.mxu0 %v5203
    %v5205 = vpop.f32.mrf.mxu0
    %v5206 = vadd.f32 %v5041, %v5205
    %v5207 = vand.u32 %v4888, 4294901760
    %5208 = vmatmul.f32.gmra.mxu0 %v5207
    %v5209 = vpop.f32.mrf.mxu0
    %v5210 = vadd.f32 %v5049, %v5209
    %5211 = vdwg.mxu0
    %v5212 = vand.u32 %v1821, 4294901760
    %v5213 = vsub.f32 %v1821, %v5212
    %5214 = vmatpush.msra.mxu0 %v5213
    %v5215 = vand.u32 %v1820, 4294901760
    %v5216 = vsub.f32 %v1820, %v5215
    %5217 = vmatpush.msra.mxu0 %v5216
    %v5218 = vand.u32 %v1819, 4294901760
    %v5219 = vsub.f32 %v1819, %v5218
    %5220 = vmatpush.msra.mxu0 %v5219
    %v5221 = vand.u32 %v1818, 4294901760
    %v5222 = vsub.f32 %v1818, %v5221
    %5223 = vmatpush.msra.mxu0 %v5222
    %v5224 = vand.u32 %v1817, 4294901760
    %v5225 = vsub.f32 %v1817, %v5224
    %5226 = vmatpush.msra.mxu0 %v5225
    %v5227 = vand.u32 %v1816, 4294901760
    %v5228 = vsub.f32 %v1816, %v5227
    %5229 = vmatpush.msra.mxu0 %v5228
    %v5230 = vand.u32 %v1815, 4294901760
    %v5231 = vsub.f32 %v1815, %v5230
    %5232 = vmatpush.msra.mxu0 %v5231
    %v5233 = vand.u32 %v1814, 4294901760
    %v5234 = vsub.f32 %v1814, %v5233
    %5235 = vmatpush.msra.mxu0 %v5234
    %v5236 = vand.u32 %v1813, 4294901760
    %v5237 = vsub.f32 %v1813, %v5236
    %5238 = vmatpush.msra.mxu0 %v5237
    %v5239 = vand.u32 %v1812, 4294901760
    %v5240 = vsub.f32 %v1812, %v5239
    %5241 = vmatpush.msra.mxu0 %v5240
    %v5242 = vand.u32 %v1811, 4294901760
    %v5243 = vsub.f32 %v1811, %v5242
    %5244 = vmatpush.msra.mxu0 %v5243
    %v5245 = vand.u32 %v1810, 4294901760
    %v5246 = vsub.f32 %v1810, %v5245
    %5247 = vmatpush.msra.mxu0 %v5246
    %v5248 = vand.u32 %v1809, 4294901760
    %v5249 = vsub.f32 %v1809, %v5248
    %5250 = vmatpush.msra.mxu0 %v5249
    %v5251 = vand.u32 %v1808, 4294901760
    %v5252 = vsub.f32 %v1808, %v5251
    %5253 = vmatpush.msra.mxu0 %v5252
    %v5254 = vand.u32 %v1807, 4294901760
    %v5255 = vsub.f32 %v1807, %v5254
    %5256 = vmatpush.msra.mxu0 %v5255
    %v5257 = vand.u32 %v1806, 4294901760
    %v5258 = vsub.f32 %v1806, %v5257
    %5259 = vmatpush.msra.mxu0 %v5258
    %v5260 = vand.u32 %v4843, 4294901760
    %v5261 = vsub.f32 %v4843, %v5260
    %5262 = vmatmul.f32.gmra.mxu0 %v5261
    %v5263 = vpop.f32.mrf.mxu0
    %v5264 = vadd.f32 %v5150, %v5263
    %v5265 = vand.u32 %v4846, 4294901760
    %v5266 = vsub.f32 %v4846, %v5265
    %5267 = vmatmul.f32.gmra.mxu0 %v5266
    %v5268 = vpop.f32.mrf.mxu0
    %v5269 = vadd.f32 %v5154, %v5268
    %v5270 = vand.u32 %v4849, 4294901760
    %v5271 = vsub.f32 %v4849, %v5270
    %5272 = vmatmul.f32.gmra.mxu0 %v5271
    %v5273 = vpop.f32.mrf.mxu0
    %v5274 = vadd.f32 %v5158, %v5273
    %v5275 = vand.u32 %v4852, 4294901760
    %v5276 = vsub.f32 %v4852, %v5275
    %5277 = vmatmul.f32.gmra.mxu0 %v5276
    %v5278 = vpop.f32.mrf.mxu0
    %v5279 = vadd.f32 %v5162, %v5278
    %v5280 = vand.u32 %v4855, 4294901760
    %v5281 = vsub.f32 %v4855, %v5280
    %5282 = vmatmul.f32.gmra.mxu0 %v5281
    %v5283 = vpop.f32.mrf.mxu0
    %v5284 = vadd.f32 %v5166, %v5283
    %v5285 = vand.u32 %v4858, 4294901760
    %v5286 = vsub.f32 %v4858, %v5285
    %5287 = vmatmul.f32.gmra.mxu0 %v5286
    %v5288 = vpop.f32.mrf.mxu0
    %v5289 = vadd.f32 %v5170, %v5288
    %v5290 = vand.u32 %v4861, 4294901760
    %v5291 = vsub.f32 %v4861, %v5290
    %5292 = vmatmul.f32.gmra.mxu0 %v5291
    %v5293 = vpop.f32.mrf.mxu0
    %v5294 = vadd.f32 %v5174, %v5293
    %v5295 = vand.u32 %v4864, 4294901760
    %v5296 = vsub.f32 %v4864, %v5295
    %5297 = vmatmul.f32.gmra.mxu0 %v5296
    %v5298 = vpop.f32.mrf.mxu0
    %v5299 = vadd.f32 %v5178, %v5298
    %v5300 = vand.u32 %v4867, 4294901760
    %v5301 = vsub.f32 %v4867, %v5300
    %5302 = vmatmul.f32.gmra.mxu0 %v5301
    %v5303 = vpop.f32.mrf.mxu0
    %v5304 = vadd.f32 %v5182, %v5303
    %v5305 = vand.u32 %v4870, 4294901760
    %v5306 = vsub.f32 %v4870, %v5305
    %5307 = vmatmul.f32.gmra.mxu0 %v5306
    %v5308 = vpop.f32.mrf.mxu0
    %v5309 = vadd.f32 %v5186, %v5308
    %v5310 = vand.u32 %v4873, 4294901760
    %v5311 = vsub.f32 %v4873, %v5310
    %5312 = vmatmul.f32.gmra.mxu0 %v5311
    %v5313 = vpop.f32.mrf.mxu0
    %v5314 = vadd.f32 %v5190, %v5313
    %v5315 = vand.u32 %v4876, 4294901760
    %v5316 = vsub.f32 %v4876, %v5315
    %5317 = vmatmul.f32.gmra.mxu0 %v5316
    %v5318 = vpop.f32.mrf.mxu0
    %v5319 = vadd.f32 %v5194, %v5318
    %v5320 = vand.u32 %v4879, 4294901760
    %v5321 = vsub.f32 %v4879, %v5320
    %5322 = vmatmul.f32.gmra.mxu0 %v5321
    %v5323 = vpop.f32.mrf.mxu0
    %v5324 = vadd.f32 %v5198, %v5323
    %v5325 = vand.u32 %v4882, 4294901760
    %v5326 = vsub.f32 %v4882, %v5325
    %5327 = vmatmul.f32.gmra.mxu0 %v5326
    %v5328 = vpop.f32.mrf.mxu0
    %v5329 = vadd.f32 %v5202, %v5328
    %v5330 = vand.u32 %v4885, 4294901760
    %v5331 = vsub.f32 %v4885, %v5330
    %5332 = vmatmul.f32.gmra.mxu0 %v5331
    %v5333 = vpop.f32.mrf.mxu0
    %v5334 = vadd.f32 %v5206, %v5333
    %v5335 = vand.u32 %v4888, 4294901760
    %v5336 = vsub.f32 %v4888, %v5335
    %5337 = vmatmul.f32.gmra.mxu0 %v5336
    %v5338 = vpop.f32.mrf.mxu0
    %v5339 = vadd.f32 %v5210, %v5338
    %5340 = vdwg.mxu0
    %v5341 = vand.u32 %v1821, 4294901760
    %5342 = vmatpush.msra.mxu0 %v5341
    %v5343 = vand.u32 %v1820, 4294901760
    %5344 = vmatpush.msra.mxu0 %v5343
    %v5345 = vand.u32 %v1819, 4294901760
    %5346 = vmatpush.msra.mxu0 %v5345
    %v5347 = vand.u32 %v1818, 4294901760
    %5348 = vmatpush.msra.mxu0 %v5347
    %v5349 = vand.u32 %v1817, 4294901760
    %5350 = vmatpush.msra.mxu0 %v5349
    %v5351 = vand.u32 %v1816, 4294901760
    %5352 = vmatpush.msra.mxu0 %v5351
    %v5353 = vand.u32 %v1815, 4294901760
    %5354 = vmatpush.msra.mxu0 %v5353
    %v5355 = vand.u32 %v1814, 4294901760
    %5356 = vmatpush.msra.mxu0 %v5355
    %v5357 = vand.u32 %v1813, 4294901760
    %5358 = vmatpush.msra.mxu0 %v5357
    %v5359 = vand.u32 %v1812, 4294901760
    %5360 = vmatpush.msra.mxu0 %v5359
    %v5361 = vand.u32 %v1811, 4294901760
    %5362 = vmatpush.msra.mxu0 %v5361
    %v5363 = vand.u32 %v1810, 4294901760
    %5364 = vmatpush.msra.mxu0 %v5363
    %v5365 = vand.u32 %v1809, 4294901760
    %5366 = vmatpush.msra.mxu0 %v5365
    %v5367 = vand.u32 %v1808, 4294901760
    %5368 = vmatpush.msra.mxu0 %v5367
    %v5369 = vand.u32 %v1807, 4294901760
    %5370 = vmatpush.msra.mxu0 %v5369
    %v5371 = vand.u32 %v1806, 4294901760
    %5372 = vmatpush.msra.mxu0 %v5371
    %v5373 = vand.u32 %v4843, 4294901760
    %v5374 = vsub.f32 %v4843, %v5373
    %v5375 = vand.u32 %v5374, 4294901760
    %5376 = vmatmul.f32.gmra.mxu0 %v5375
    %v5377 = vpop.f32.mrf.mxu0
    %v5378 = vadd.f32 %v5264, %v5377
    %v5379 = vand.u32 %v4846, 4294901760
    %v5380 = vsub.f32 %v4846, %v5379
    %v5381 = vand.u32 %v5380, 4294901760
    %5382 = vmatmul.f32.gmra.mxu0 %v5381
    %v5383 = vpop.f32.mrf.mxu0
    %v5384 = vadd.f32 %v5269, %v5383
    %v5385 = vand.u32 %v4849, 4294901760
    %v5386 = vsub.f32 %v4849, %v5385
    %v5387 = vand.u32 %v5386, 4294901760
    %5388 = vmatmul.f32.gmra.mxu0 %v5387
    %v5389 = vpop.f32.mrf.mxu0
    %v5390 = vadd.f32 %v5274, %v5389
    %v5391 = vand.u32 %v4852, 4294901760
    %v5392 = vsub.f32 %v4852, %v5391
    %v5393 = vand.u32 %v5392, 4294901760
    %5394 = vmatmul.f32.gmra.mxu0 %v5393
    %v5395 = vpop.f32.mrf.mxu0
    %v5396 = vadd.f32 %v5279, %v5395
    %v5397 = vand.u32 %v4855, 4294901760
    %v5398 = vsub.f32 %v4855, %v5397
    %v5399 = vand.u32 %v5398, 4294901760
    %5400 = vmatmul.f32.gmra.mxu0 %v5399
    %v5401 = vpop.f32.mrf.mxu0
    %v5402 = vadd.f32 %v5284, %v5401
    %v5403 = vand.u32 %v4858, 4294901760
    %v5404 = vsub.f32 %v4858, %v5403
    %v5405 = vand.u32 %v5404, 4294901760
    %5406 = vmatmul.f32.gmra.mxu0 %v5405
    %v5407 = vpop.f32.mrf.mxu0
    %v5408 = vadd.f32 %v5289, %v5407
    %v5409 = vand.u32 %v4861, 4294901760
    %v5410 = vsub.f32 %v4861, %v5409
    %v5411 = vand.u32 %v5410, 4294901760
    %5412 = vmatmul.f32.gmra.mxu0 %v5411
    %v5413 = vpop.f32.mrf.mxu0
    %v5414 = vadd.f32 %v5294, %v5413
    %v5415 = vand.u32 %v4864, 4294901760
    %v5416 = vsub.f32 %v4864, %v5415
    %v5417 = vand.u32 %v5416, 4294901760
    %5418 = vmatmul.f32.gmra.mxu0 %v5417
    %v5419 = vpop.f32.mrf.mxu0
    %v5420 = vadd.f32 %v5299, %v5419
    %v5421 = vand.u32 %v4867, 4294901760
    %v5422 = vsub.f32 %v4867, %v5421
    %v5423 = vand.u32 %v5422, 4294901760
    %5424 = vmatmul.f32.gmra.mxu0 %v5423
    %v5425 = vpop.f32.mrf.mxu0
    %v5426 = vadd.f32 %v5304, %v5425
    %v5427 = vand.u32 %v4870, 4294901760
    %v5428 = vsub.f32 %v4870, %v5427
    %v5429 = vand.u32 %v5428, 4294901760
    %5430 = vmatmul.f32.gmra.mxu0 %v5429
    %v5431 = vpop.f32.mrf.mxu0
    %v5432 = vadd.f32 %v5309, %v5431
    %v5433 = vand.u32 %v4873, 4294901760
    %v5434 = vsub.f32 %v4873, %v5433
    %v5435 = vand.u32 %v5434, 4294901760
    %5436 = vmatmul.f32.gmra.mxu0 %v5435
    %v5437 = vpop.f32.mrf.mxu0
    %v5438 = vadd.f32 %v5314, %v5437
    %v5439 = vand.u32 %v4876, 4294901760
    %v5440 = vsub.f32 %v4876, %v5439
    %v5441 = vand.u32 %v5440, 4294901760
    %5442 = vmatmul.f32.gmra.mxu0 %v5441
    %v5443 = vpop.f32.mrf.mxu0
    %v5444 = vadd.f32 %v5319, %v5443
    %v5445 = vand.u32 %v4879, 4294901760
    %v5446 = vsub.f32 %v4879, %v5445
    %v5447 = vand.u32 %v5446, 4294901760
    %5448 = vmatmul.f32.gmra.mxu0 %v5447
    %v5449 = vpop.f32.mrf.mxu0
    %v5450 = vadd.f32 %v5324, %v5449
    %v5451 = vand.u32 %v4882, 4294901760
    %v5452 = vsub.f32 %v4882, %v5451
    %v5453 = vand.u32 %v5452, 4294901760
    %5454 = vmatmul.f32.gmra.mxu0 %v5453
    %v5455 = vpop.f32.mrf.mxu0
    %v5456 = vadd.f32 %v5329, %v5455
    %v5457 = vand.u32 %v4885, 4294901760
    %v5458 = vsub.f32 %v4885, %v5457
    %v5459 = vand.u32 %v5458, 4294901760
    %5460 = vmatmul.f32.gmra.mxu0 %v5459
    %v5461 = vpop.f32.mrf.mxu0
    %v5462 = vadd.f32 %v5334, %v5461
    %v5463 = vand.u32 %v4888, 4294901760
    %v5464 = vsub.f32 %v4888, %v5463
    %v5465 = vand.u32 %v5464, 4294901760
    %5466 = vmatmul.f32.gmra.mxu0 %v5465
    %v5467 = vpop.f32.mrf.mxu0
    %v5468 = vadd.f32 %v5339, %v5467
    %5469 = vdwg.mxu0
    %v5470 = vand.u32 %v1821, 4294901760
    %v5471 = vsub.f32 %v1821, %v5470
    %v5472 = vand.u32 %v5471, 4294901760
    %5473 = vmatpush.msra.mxu0 %v5472
    %v5474 = vand.u32 %v1820, 4294901760
    %v5475 = vsub.f32 %v1820, %v5474
    %v5476 = vand.u32 %v5475, 4294901760
    %5477 = vmatpush.msra.mxu0 %v5476
    %v5478 = vand.u32 %v1819, 4294901760
    %v5479 = vsub.f32 %v1819, %v5478
    %v5480 = vand.u32 %v5479, 4294901760
    %5481 = vmatpush.msra.mxu0 %v5480
    %v5482 = vand.u32 %v1818, 4294901760
    %v5483 = vsub.f32 %v1818, %v5482
    %v5484 = vand.u32 %v5483, 4294901760
    %5485 = vmatpush.msra.mxu0 %v5484
    %v5486 = vand.u32 %v1817, 4294901760
    %v5487 = vsub.f32 %v1817, %v5486
    %v5488 = vand.u32 %v5487, 4294901760
    %5489 = vmatpush.msra.mxu0 %v5488
    %v5490 = vand.u32 %v1816, 4294901760
    %v5491 = vsub.f32 %v1816, %v5490
    %v5492 = vand.u32 %v5491, 4294901760
    %5493 = vmatpush.msra.mxu0 %v5492
    %v5494 = vand.u32 %v1815, 4294901760
    %v5495 = vsub.f32 %v1815, %v5494
    %v5496 = vand.u32 %v5495, 4294901760
    %5497 = vmatpush.msra.mxu0 %v5496
    %v5498 = vand.u32 %v1814, 4294901760
    %v5499 = vsub.f32 %v1814, %v5498
    %v5500 = vand.u32 %v5499, 4294901760
    %5501 = vmatpush.msra.mxu0 %v5500
    %v5502 = vand.u32 %v1813, 4294901760
    %v5503 = vsub.f32 %v1813, %v5502
    %v5504 = vand.u32 %v5503, 4294901760
    %5505 = vmatpush.msra.mxu0 %v5504
    %v5506 = vand.u32 %v1812, 4294901760
    %v5507 = vsub.f32 %v1812, %v5506
    %v5508 = vand.u32 %v5507, 4294901760
    %5509 = vmatpush.msra.mxu0 %v5508
    %v5510 = vand.u32 %v1811, 4294901760
    %v5511 = vsub.f32 %v1811, %v5510
    %v5512 = vand.u32 %v5511, 4294901760
    %5513 = vmatpush.msra.mxu0 %v5512
    %v5514 = vand.u32 %v1810, 4294901760
    %v5515 = vsub.f32 %v1810, %v5514
    %v5516 = vand.u32 %v5515, 4294901760
    %5517 = vmatpush.msra.mxu0 %v5516
    %v5518 = vand.u32 %v1809, 4294901760
    %v5519 = vsub.f32 %v1809, %v5518
    %v5520 = vand.u32 %v5519, 4294901760
    %5521 = vmatpush.msra.mxu0 %v5520
    %v5522 = vand.u32 %v1808, 4294901760
    %v5523 = vsub.f32 %v1808, %v5522
    %v5524 = vand.u32 %v5523, 4294901760
    %5525 = vmatpush.msra.mxu0 %v5524
    %v5526 = vand.u32 %v1807, 4294901760
    %v5527 = vsub.f32 %v1807, %v5526
    %v5528 = vand.u32 %v5527, 4294901760
    %5529 = vmatpush.msra.mxu0 %v5528
    %v5530 = vand.u32 %v1806, 4294901760
    %v5531 = vsub.f32 %v1806, %v5530
    %v5532 = vand.u32 %v5531, 4294901760
    %5533 = vmatpush.msra.mxu0 %v5532
    %v5534 = vand.u32 %v4843, 4294901760
    %5535 = vmatmul.f32.gmra.mxu0 %v5534
    %v5536 = vpop.f32.mrf.mxu0
    %v5537 = vadd.f32 %v5378, %v5536
    %v5538 = vand.u32 %v4846, 4294901760
    %5539 = vmatmul.f32.gmra.mxu0 %v5538
    %v5540 = vpop.f32.mrf.mxu0
    %v5541 = vadd.f32 %v5384, %v5540
    %v5542 = vand.u32 %v4849, 4294901760
    %5543 = vmatmul.f32.gmra.mxu0 %v5542
    %v5544 = vpop.f32.mrf.mxu0
    %v5545 = vadd.f32 %v5390, %v5544
    %v5546 = vand.u32 %v4852, 4294901760
    %5547 = vmatmul.f32.gmra.mxu0 %v5546
    %v5548 = vpop.f32.mrf.mxu0
    %v5549 = vadd.f32 %v5396, %v5548
    %v5550 = vand.u32 %v4855, 4294901760
    %5551 = vmatmul.f32.gmra.mxu0 %v5550
    %v5552 = vpop.f32.mrf.mxu0
    %v5553 = vadd.f32 %v5402, %v5552
    %v5554 = vand.u32 %v4858, 4294901760
    %5555 = vmatmul.f32.gmra.mxu0 %v5554
    %v5556 = vpop.f32.mrf.mxu0
    %v5557 = vadd.f32 %v5408, %v5556
    %v5558 = vand.u32 %v4861, 4294901760
    %5559 = vmatmul.f32.gmra.mxu0 %v5558
    %v5560 = vpop.f32.mrf.mxu0
    %v5561 = vadd.f32 %v5414, %v5560
    %v5562 = vand.u32 %v4864, 4294901760
    %5563 = vmatmul.f32.gmra.mxu0 %v5562
    %v5564 = vpop.f32.mrf.mxu0
    %v5565 = vadd.f32 %v5420, %v5564
    %v5566 = vand.u32 %v4867, 4294901760
    %5567 = vmatmul.f32.gmra.mxu0 %v5566
    %v5568 = vpop.f32.mrf.mxu0
    %v5569 = vadd.f32 %v5426, %v5568
    %v5570 = vand.u32 %v4870, 4294901760
    %5571 = vmatmul.f32.gmra.mxu0 %v5570
    %v5572 = vpop.f32.mrf.mxu0
    %v5573 = vadd.f32 %v5432, %v5572
    %v5574 = vand.u32 %v4873, 4294901760
    %5575 = vmatmul.f32.gmra.mxu0 %v5574
    %v5576 = vpop.f32.mrf.mxu0
    %v5577 = vadd.f32 %v5438, %v5576
    %v5578 = vand.u32 %v4876, 4294901760
    %5579 = vmatmul.f32.gmra.mxu0 %v5578
    %v5580 = vpop.f32.mrf.mxu0
    %v5581 = vadd.f32 %v5444, %v5580
    %v5582 = vand.u32 %v4879, 4294901760
    %5583 = vmatmul.f32.gmra.mxu0 %v5582
    %v5584 = vpop.f32.mrf.mxu0
    %v5585 = vadd.f32 %v5450, %v5584
    %v5586 = vand.u32 %v4882, 4294901760
    %5587 = vmatmul.f32.gmra.mxu0 %v5586
    %v5588 = vpop.f32.mrf.mxu0
    %v5589 = vadd.f32 %v5456, %v5588
    %v5590 = vand.u32 %v4885, 4294901760
    %5591 = vmatmul.f32.gmra.mxu0 %v5590
    %v5592 = vpop.f32.mrf.mxu0
    %v5593 = vadd.f32 %v5462, %v5592
    %v5594 = vand.u32 %v4888, 4294901760
    %5595 = vmatmul.f32.gmra.mxu0 %v5594
    %v5596 = vpop.f32.mrf.mxu0
    %v5597 = vadd.f32 %v5468, %v5596
    %5598 = vdwg.mxu0
    %v5599 = vand.u32 %v1821, 4294901760
    %5600 = vmatpush.msra.mxu0 %v5599
    %v5601 = vand.u32 %v1820, 4294901760
    %5602 = vmatpush.msra.mxu0 %v5601
    %v5603 = vand.u32 %v1819, 4294901760
    %5604 = vmatpush.msra.mxu0 %v5603
    %v5605 = vand.u32 %v1818, 4294901760
    %5606 = vmatpush.msra.mxu0 %v5605
    %v5607 = vand.u32 %v1817, 4294901760
    %5608 = vmatpush.msra.mxu0 %v5607
    %v5609 = vand.u32 %v1816, 4294901760
    %5610 = vmatpush.msra.mxu0 %v5609
    %v5611 = vand.u32 %v1815, 4294901760
    %5612 = vmatpush.msra.mxu0 %v5611
    %v5613 = vand.u32 %v1814, 4294901760
    %5614 = vmatpush.msra.mxu0 %v5613
    %v5615 = vand.u32 %v1813, 4294901760
    %5616 = vmatpush.msra.mxu0 %v5615
    %v5617 = vand.u32 %v1812, 4294901760
    %5618 = vmatpush.msra.mxu0 %v5617
    %v5619 = vand.u32 %v1811, 4294901760
    %5620 = vmatpush.msra.mxu0 %v5619
    %v5621 = vand.u32 %v1810, 4294901760
    %5622 = vmatpush.msra.mxu0 %v5621
    %v5623 = vand.u32 %v1809, 4294901760
    %5624 = vmatpush.msra.mxu0 %v5623
    %v5625 = vand.u32 %v1808, 4294901760
    %5626 = vmatpush.msra.mxu0 %v5625
    %v5627 = vand.u32 %v1807, 4294901760
    %5628 = vmatpush.msra.mxu0 %v5627
    %v5629 = vand.u32 %v1806, 4294901760
    %5630 = vmatpush.msra.mxu0 %v5629
    %v5631 = vand.u32 %v4843, 4294901760
    %5632 = vmatmul.f32.gmra.mxu0 %v5631
    %v5633 = vpop.f32.mrf.mxu0
    %v5634 = vadd.f32 %v5537, %v5633
    %v5635 = vand.u32 %v4846, 4294901760
    %5636 = vmatmul.f32.gmra.mxu0 %v5635
    %v5637 = vpop.f32.mrf.mxu0
    %v5638 = vadd.f32 %v5541, %v5637
    %v5639 = vand.u32 %v4849, 4294901760
    %5640 = vmatmul.f32.gmra.mxu0 %v5639
    %v5641 = vpop.f32.mrf.mxu0
    %v5642 = vadd.f32 %v5545, %v5641
    %v5643 = vand.u32 %v4852, 4294901760
    %5644 = vmatmul.f32.gmra.mxu0 %v5643
    %v5645 = vpop.f32.mrf.mxu0
    %v5646 = vadd.f32 %v5549, %v5645
    %v5647 = vand.u32 %v4855, 4294901760
    %5648 = vmatmul.f32.gmra.mxu0 %v5647
    %v5649 = vpop.f32.mrf.mxu0
    %v5650 = vadd.f32 %v5553, %v5649
    %v5651 = vand.u32 %v4858, 4294901760
    %5652 = vmatmul.f32.gmra.mxu0 %v5651
    %v5653 = vpop.f32.mrf.mxu0
    %v5654 = vadd.f32 %v5557, %v5653
    %v5655 = vand.u32 %v4861, 4294901760
    %5656 = vmatmul.f32.gmra.mxu0 %v5655
    %v5657 = vpop.f32.mrf.mxu0
    %v5658 = vadd.f32 %v5561, %v5657
    %v5659 = vand.u32 %v4864, 4294901760
    %5660 = vmatmul.f32.gmra.mxu0 %v5659
    %v5661 = vpop.f32.mrf.mxu0
    %v5662 = vadd.f32 %v5565, %v5661
    %v5663 = vand.u32 %v4867, 4294901760
    %5664 = vmatmul.f32.gmra.mxu0 %v5663
    %v5665 = vpop.f32.mrf.mxu0
    %v5666 = vadd.f32 %v5569, %v5665
    %v5667 = vand.u32 %v4870, 4294901760
    %5668 = vmatmul.f32.gmra.mxu0 %v5667
    %v5669 = vpop.f32.mrf.mxu0
    %v5670 = vadd.f32 %v5573, %v5669
    %v5671 = vand.u32 %v4873, 4294901760
    %5672 = vmatmul.f32.gmra.mxu0 %v5671
    %v5673 = vpop.f32.mrf.mxu0
    %v5674 = vadd.f32 %v5577, %v5673
    %v5675 = vand.u32 %v4876, 4294901760
    %5676 = vmatmul.f32.gmra.mxu0 %v5675
    %v5677 = vpop.f32.mrf.mxu0
    %v5678 = vadd.f32 %v5581, %v5677
    %v5679 = vand.u32 %v4879, 4294901760
    %5680 = vmatmul.f32.gmra.mxu0 %v5679
    %v5681 = vpop.f32.mrf.mxu0
    %v5682 = vadd.f32 %v5585, %v5681
    %v5683 = vand.u32 %v4882, 4294901760
    %5684 = vmatmul.f32.gmra.mxu0 %v5683
    %v5685 = vpop.f32.mrf.mxu0
    %v5686 = vadd.f32 %v5589, %v5685
    %v5687 = vand.u32 %v4885, 4294901760
    %5688 = vmatmul.f32.gmra.mxu0 %v5687
    %v5689 = vpop.f32.mrf.mxu0
    %v5690 = vadd.f32 %v5593, %v5689
    %v5691 = vand.u32 %v4888, 4294901760
    %5692 = vmatmul.f32.gmra.mxu0 %v5691
    %v5693 = vpop.f32.mrf.mxu0
    %v5694 = vadd.f32 %v5597, %v5693
    %5695 = vdwg.mxu0
    %v5696 = vmax.f32 %v5634, 0.0
    %v5697 = vmax.f32 %v5638, 0.0
    %v5698 = vmax.f32 %v5642, 0.0
    %v5699 = vmax.f32 %v5646, 0.0
    %v5700 = vmax.f32 %v5650, 0.0
    %v5701 = vmax.f32 %v5654, 0.0
    %v5702 = vmax.f32 %v5658, 0.0
    %v5703 = vmax.f32 %v5662, 0.0
    %v5704 = vmax.f32 %v5666, 0.0
    %v5705 = vmax.f32 %v5670, 0.0
    %v5706 = vmax.f32 %v5674, 0.0
    %v5707 = vmax.f32 %v5678, 0.0
    %v5708 = vmax.f32 %v5682, 0.0
    %v5709 = vmax.f32 %v5686, 0.0
    %v5710 = vmax.f32 %v5690, 0.0
    %v5711 = vmax.f32 %v5694, 0.0
    %v5712 = vld [vmem:[#allocation16] sm:$0xff]
    %v5713 = vld [vmem:[#allocation16 + $0x8] sm:$0xff]
    %v5714 = vld [vmem:[#allocation16 + $0x10] sm:$0xff]
    %v5715 = vld [vmem:[#allocation16 + $0x18] sm:$0xff]
    %v5716 = vld [vmem:[#allocation16 + $0x20] sm:$0xff]
    %v5717 = vld [vmem:[#allocation16 + $0x28] sm:$0xff]
    %v5718 = vld [vmem:[#allocation16 + $0x30] sm:$0xff]
    %v5719 = vld [vmem:[#allocation16 + $0x38] sm:$0xff]
    %v5720 = vld [vmem:[#allocation16 + $0x40] sm:$0xff]
    %v5721 = vld [vmem:[#allocation16 + $0x48] sm:$0xff]
    %v5722 = vld [vmem:[#allocation16 + $0x50] sm:$0xff]
    %v5723 = vld [vmem:[#allocation16 + $0x58] sm:$0xff]
    %v5724 = vld [vmem:[#allocation16 + $0x60] sm:$0xff]
    %v5725 = vld [vmem:[#allocation16 + $0x68] sm:$0xff]
    %v5726 = vld [vmem:[#allocation16 + $0x70] sm:$0xff]
    %v5727 = vld [vmem:[#allocation16 + $0x78] sm:$0xff]
    %v5728 = vld [vmem:[%s11] sm:$0x1]
    %v5730 = vperm.slane %v5728, 0
    %v5732 = vand.u32 %v5727, 4294901760
    %5733 = vmatpush.msra.mxu0 %v5732
    %v5734 = vand.u32 %v5726, 4294901760
    %5735 = vmatpush.msra.mxu0 %v5734
    %v5736 = vand.u32 %v5725, 4294901760
    %5737 = vmatpush.msra.mxu0 %v5736
    %v5738 = vand.u32 %v5724, 4294901760
    %5739 = vmatpush.msra.mxu0 %v5738
    %v5740 = vand.u32 %v5723, 4294901760
    %5741 = vmatpush.msra.mxu0 %v5740
    %v5742 = vand.u32 %v5722, 4294901760
    %5743 = vmatpush.msra.mxu0 %v5742
    %v5744 = vand.u32 %v5721, 4294901760
    %5745 = vmatpush.msra.mxu0 %v5744
    %v5746 = vand.u32 %v5720, 4294901760
    %5747 = vmatpush.msra.mxu0 %v5746
    %v5748 = vand.u32 %v5719, 4294901760
    %5749 = vmatpush.msra.mxu0 %v5748
    %v5750 = vand.u32 %v5718, 4294901760
    %5751 = vmatpush.msra.mxu0 %v5750
    %v5752 = vand.u32 %v5717, 4294901760
    %5753 = vmatpush.msra.mxu0 %v5752
    %v5754 = vand.u32 %v5716, 4294901760
    %5755 = vmatpush.msra.mxu0 %v5754
    %v5756 = vand.u32 %v5715, 4294901760
    %5757 = vmatpush.msra.mxu0 %v5756
    %v5758 = vand.u32 %v5714, 4294901760
    %5759 = vmatpush.msra.mxu0 %v5758
    %v5760 = vand.u32 %v5713, 4294901760
    %5761 = vmatpush.msra.mxu0 %v5760
    %v5762 = vand.u32 %v5712, 4294901760
    %5763 = vmatpush.msra.mxu0 %v5762
    %v5764 = vand.u32 %v5696, 4294901760
    %v5765 = vsub.f32 %v5696, %v5764
    %v5766 = vand.u32 %v5765, 4294901760
    %v5767 = vsub.f32 %v5765, %v5766
    %v5768 = vand.u32 %v5767, 4294901760
    %5769 = vmatmul.f32.gmra.mxu0 %v5768
    %v5770 = vpop.f32.mrf.mxu0
    %v5771 = vadd.f32 %v5730, %v5770
    %v5772 = vand.u32 %v5697, 4294901760
    %v5773 = vsub.f32 %v5697, %v5772
    %v5774 = vand.u32 %v5773, 4294901760
    %v5775 = vsub.f32 %v5773, %v5774
    %v5776 = vand.u32 %v5775, 4294901760
    %5777 = vmatmul.f32.gmra.mxu0 %v5776
    %v5778 = vpop.f32.mrf.mxu0
    %v5779 = vadd.f32 %v5730, %v5778
    %v5780 = vand.u32 %v5698, 4294901760
    %v5781 = vsub.f32 %v5698, %v5780
    %v5782 = vand.u32 %v5781, 4294901760
    %v5783 = vsub.f32 %v5781, %v5782
    %v5784 = vand.u32 %v5783, 4294901760
    %5785 = vmatmul.f32.gmra.mxu0 %v5784
    %v5786 = vpop.f32.mrf.mxu0
    %v5787 = vadd.f32 %v5730, %v5786
    %v5788 = vand.u32 %v5699, 4294901760
    %v5789 = vsub.f32 %v5699, %v5788
    %v5790 = vand.u32 %v5789, 4294901760
    %v5791 = vsub.f32 %v5789, %v5790
    %v5792 = vand.u32 %v5791, 4294901760
    %5793 = vmatmul.f32.gmra.mxu0 %v5792
    %v5794 = vpop.f32.mrf.mxu0
    %v5795 = vadd.f32 %v5730, %v5794
    %v5796 = vand.u32 %v5700, 4294901760
    %v5797 = vsub.f32 %v5700, %v5796
    %v5798 = vand.u32 %v5797, 4294901760
    %v5799 = vsub.f32 %v5797, %v5798
    %v5800 = vand.u32 %v5799, 4294901760
    %5801 = vmatmul.f32.gmra.mxu0 %v5800
    %v5802 = vpop.f32.mrf.mxu0
    %v5803 = vadd.f32 %v5730, %v5802
    %v5804 = vand.u32 %v5701, 4294901760
    %v5805 = vsub.f32 %v5701, %v5804
    %v5806 = vand.u32 %v5805, 4294901760
    %v5807 = vsub.f32 %v5805, %v5806
    %v5808 = vand.u32 %v5807, 4294901760
    %5809 = vmatmul.f32.gmra.mxu0 %v5808
    %v5810 = vpop.f32.mrf.mxu0
    %v5811 = vadd.f32 %v5730, %v5810
    %v5812 = vand.u32 %v5702, 4294901760
    %v5813 = vsub.f32 %v5702, %v5812
    %v5814 = vand.u32 %v5813, 4294901760
    %v5815 = vsub.f32 %v5813, %v5814
    %v5816 = vand.u32 %v5815, 4294901760
    %5817 = vmatmul.f32.gmra.mxu0 %v5816
    %v5818 = vpop.f32.mrf.mxu0
    %v5819 = vadd.f32 %v5730, %v5818
    %v5820 = vand.u32 %v5703, 4294901760
    %v5821 = vsub.f32 %v5703, %v5820
    %v5822 = vand.u32 %v5821, 4294901760
    %v5823 = vsub.f32 %v5821, %v5822
    %v5824 = vand.u32 %v5823, 4294901760
    %5825 = vmatmul.f32.gmra.mxu0 %v5824
    %v5826 = vpop.f32.mrf.mxu0
    %v5827 = vadd.f32 %v5730, %v5826
    %v5828 = vand.u32 %v5704, 4294901760
    %v5829 = vsub.f32 %v5704, %v5828
    %v5830 = vand.u32 %v5829, 4294901760
    %v5831 = vsub.f32 %v5829, %v5830
    %v5832 = vand.u32 %v5831, 4294901760
    %5833 = vmatmul.f32.gmra.mxu0 %v5832
    %v5834 = vpop.f32.mrf.mxu0
    %v5835 = vadd.f32 %v5730, %v5834
    %v5836 = vand.u32 %v5705, 4294901760
    %v5837 = vsub.f32 %v5705, %v5836
    %v5838 = vand.u32 %v5837, 4294901760
    %v5839 = vsub.f32 %v5837, %v5838
    %v5840 = vand.u32 %v5839, 4294901760
    %5841 = vmatmul.f32.gmra.mxu0 %v5840
    %v5842 = vpop.f32.mrf.mxu0
    %v5843 = vadd.f32 %v5730, %v5842
    %v5844 = vand.u32 %v5706, 4294901760
    %v5845 = vsub.f32 %v5706, %v5844
    %v5846 = vand.u32 %v5845, 4294901760
    %v5847 = vsub.f32 %v5845, %v5846
    %v5848 = vand.u32 %v5847, 4294901760
    %5849 = vmatmul.f32.gmra.mxu0 %v5848
    %v5850 = vpop.f32.mrf.mxu0
    %v5851 = vadd.f32 %v5730, %v5850
    %v5852 = vand.u32 %v5707, 4294901760
    %v5853 = vsub.f32 %v5707, %v5852
    %v5854 = vand.u32 %v5853, 4294901760
    %v5855 = vsub.f32 %v5853, %v5854
    %v5856 = vand.u32 %v5855, 4294901760
    %5857 = vmatmul.f32.gmra.mxu0 %v5856
    %v5858 = vpop.f32.mrf.mxu0
    %v5859 = vadd.f32 %v5730, %v5858
    %v5860 = vand.u32 %v5708, 4294901760
    %v5861 = vsub.f32 %v5708, %v5860
    %v5862 = vand.u32 %v5861, 4294901760
    %v5863 = vsub.f32 %v5861, %v5862
    %v5864 = vand.u32 %v5863, 4294901760
    %5865 = vmatmul.f32.gmra.mxu0 %v5864
    %v5866 = vpop.f32.mrf.mxu0
    %v5867 = vadd.f32 %v5730, %v5866
    %v5868 = vand.u32 %v5709, 4294901760
    %v5869 = vsub.f32 %v5709, %v5868
    %v5870 = vand.u32 %v5869, 4294901760
    %v5871 = vsub.f32 %v5869, %v5870
    %v5872 = vand.u32 %v5871, 4294901760
    %5873 = vmatmul.f32.gmra.mxu0 %v5872
    %v5874 = vpop.f32.mrf.mxu0
    %v5875 = vadd.f32 %v5730, %v5874
    %v5876 = vand.u32 %v5710, 4294901760
    %v5877 = vsub.f32 %v5710, %v5876
    %v5878 = vand.u32 %v5877, 4294901760
    %v5879 = vsub.f32 %v5877, %v5878
    %v5880 = vand.u32 %v5879, 4294901760
    %5881 = vmatmul.f32.gmra.mxu0 %v5880
    %v5882 = vpop.f32.mrf.mxu0
    %v5883 = vadd.f32 %v5730, %v5882
    %v5884 = vand.u32 %v5711, 4294901760
    %v5885 = vsub.f32 %v5711, %v5884
    %v5886 = vand.u32 %v5885, 4294901760
    %v5887 = vsub.f32 %v5885, %v5886
    %v5888 = vand.u32 %v5887, 4294901760
    %5889 = vmatmul.f32.gmra.mxu0 %v5888
    %v5890 = vpop.f32.mrf.mxu0
    %v5891 = vadd.f32 %v5730, %v5890
    %5892 = vdwg.mxu0
    %v5893 = vand.u32 %v5727, 4294901760
    %v5894 = vsub.f32 %v5727, %v5893
    %v5895 = vand.u32 %v5894, 4294901760
    %v5896 = vsub.f32 %v5894, %v5895
    %v5897 = vand.u32 %v5896, 4294901760
    %5898 = vmatpush.msra.mxu0 %v5897
    %v5899 = vand.u32 %v5726, 4294901760
    %v5900 = vsub.f32 %v5726, %v5899
    %v5901 = vand.u32 %v5900, 4294901760
    %v5902 = vsub.f32 %v5900, %v5901
    %v5903 = vand.u32 %v5902, 4294901760
    %5904 = vmatpush.msra.mxu0 %v5903
    %v5905 = vand.u32 %v5725, 4294901760
    %v5906 = vsub.f32 %v5725, %v5905
    %v5907 = vand.u32 %v5906, 4294901760
    %v5908 = vsub.f32 %v5906, %v5907
    %v5909 = vand.u32 %v5908, 4294901760
    %5910 = vmatpush.msra.mxu0 %v5909
    %v5911 = vand.u32 %v5724, 4294901760
    %v5912 = vsub.f32 %v5724, %v5911
    %v5913 = vand.u32 %v5912, 4294901760
    %v5914 = vsub.f32 %v5912, %v5913
    %v5915 = vand.u32 %v5914, 4294901760
    %5916 = vmatpush.msra.mxu0 %v5915
    %v5917 = vand.u32 %v5723, 4294901760
    %v5918 = vsub.f32 %v5723, %v5917
    %v5919 = vand.u32 %v5918, 4294901760
    %v5920 = vsub.f32 %v5918, %v5919
    %v5921 = vand.u32 %v5920, 4294901760
    %5922 = vmatpush.msra.mxu0 %v5921
    %v5923 = vand.u32 %v5722, 4294901760
    %v5924 = vsub.f32 %v5722, %v5923
    %v5925 = vand.u32 %v5924, 4294901760
    %v5926 = vsub.f32 %v5924, %v5925
    %v5927 = vand.u32 %v5926, 4294901760
    %5928 = vmatpush.msra.mxu0 %v5927
    %v5929 = vand.u32 %v5721, 4294901760
    %v5930 = vsub.f32 %v5721, %v5929
    %v5931 = vand.u32 %v5930, 4294901760
    %v5932 = vsub.f32 %v5930, %v5931
    %v5933 = vand.u32 %v5932, 4294901760
    %5934 = vmatpush.msra.mxu0 %v5933
    %v5935 = vand.u32 %v5720, 4294901760
    %v5936 = vsub.f32 %v5720, %v5935
    %v5937 = vand.u32 %v5936, 4294901760
    %v5938 = vsub.f32 %v5936, %v5937
    %v5939 = vand.u32 %v5938, 4294901760
    %5940 = vmatpush.msra.mxu0 %v5939
    %v5941 = vand.u32 %v5719, 4294901760
    %v5942 = vsub.f32 %v5719, %v5941
    %v5943 = vand.u32 %v5942, 4294901760
    %v5944 = vsub.f32 %v5942, %v5943
    %v5945 = vand.u32 %v5944, 4294901760
    %5946 = vmatpush.msra.mxu0 %v5945
    %v5947 = vand.u32 %v5718, 4294901760
    %v5948 = vsub.f32 %v5718, %v5947
    %v5949 = vand.u32 %v5948, 4294901760
    %v5950 = vsub.f32 %v5948, %v5949
    %v5951 = vand.u32 %v5950, 4294901760
    %5952 = vmatpush.msra.mxu0 %v5951
    %v5953 = vand.u32 %v5717, 4294901760
    %v5954 = vsub.f32 %v5717, %v5953
    %v5955 = vand.u32 %v5954, 4294901760
    %v5956 = vsub.f32 %v5954, %v5955
    %v5957 = vand.u32 %v5956, 4294901760
    %5958 = vmatpush.msra.mxu0 %v5957
    %v5959 = vand.u32 %v5716, 4294901760
    %v5960 = vsub.f32 %v5716, %v5959
    %v5961 = vand.u32 %v5960, 4294901760
    %v5962 = vsub.f32 %v5960, %v5961
    %v5963 = vand.u32 %v5962, 4294901760
    %5964 = vmatpush.msra.mxu0 %v5963
    %v5965 = vand.u32 %v5715, 4294901760
    %v5966 = vsub.f32 %v5715, %v5965
    %v5967 = vand.u32 %v5966, 4294901760
    %v5968 = vsub.f32 %v5966, %v5967
    %v5969 = vand.u32 %v5968, 4294901760
    %5970 = vmatpush.msra.mxu0 %v5969
    %v5971 = vand.u32 %v5714, 4294901760
    %v5972 = vsub.f32 %v5714, %v5971
    %v5973 = vand.u32 %v5972, 4294901760
    %v5974 = vsub.f32 %v5972, %v5973
    %v5975 = vand.u32 %v5974, 4294901760
    %5976 = vmatpush.msra.mxu0 %v5975
    %v5977 = vand.u32 %v5713, 4294901760
    %v5978 = vsub.f32 %v5713, %v5977
    %v5979 = vand.u32 %v5978, 4294901760
    %v5980 = vsub.f32 %v5978, %v5979
    %v5981 = vand.u32 %v5980, 4294901760
    %5982 = vmatpush.msra.mxu0 %v5981
    %v5983 = vand.u32 %v5712, 4294901760
    %v5984 = vsub.f32 %v5712, %v5983
    %v5985 = vand.u32 %v5984, 4294901760
    %v5986 = vsub.f32 %v5984, %v5985
    %v5987 = vand.u32 %v5986, 4294901760
    %5988 = vmatpush.msra.mxu0 %v5987
    %v5989 = vand.u32 %v5696, 4294901760
    %5990 = vmatmul.f32.gmra.mxu0 %v5989
    %v5991 = vpop.f32.mrf.mxu0
    %v5992 = vadd.f32 %v5771, %v5991
    %v5993 = vand.u32 %v5697, 4294901760
    %5994 = vmatmul.f32.gmra.mxu0 %v5993
    %v5995 = vpop.f32.mrf.mxu0
    %v5996 = vadd.f32 %v5779, %v5995
    %v5997 = vand.u32 %v5698, 4294901760
    %5998 = vmatmul.f32.gmra.mxu0 %v5997
    %v5999 = vpop.f32.mrf.mxu0
    %v6000 = vadd.f32 %v5787, %v5999
    %v6001 = vand.u32 %v5699, 4294901760
    %6002 = vmatmul.f32.gmra.mxu0 %v6001
    %v6003 = vpop.f32.mrf.mxu0
    %v6004 = vadd.f32 %v5795, %v6003
    %v6005 = vand.u32 %v5700, 4294901760
    %6006 = vmatmul.f32.gmra.mxu0 %v6005
    %v6007 = vpop.f32.mrf.mxu0
    %v6008 = vadd.f32 %v5803, %v6007
    %v6009 = vand.u32 %v5701, 4294901760
    %6010 = vmatmul.f32.gmra.mxu0 %v6009
    %v6011 = vpop.f32.mrf.mxu0
    %v6012 = vadd.f32 %v5811, %v6011
    %v6013 = vand.u32 %v5702, 4294901760
    %6014 = vmatmul.f32.gmra.mxu0 %v6013
    %v6015 = vpop.f32.mrf.mxu0
    %v6016 = vadd.f32 %v5819, %v6015
    %v6017 = vand.u32 %v5703, 4294901760
    %6018 = vmatmul.f32.gmra.mxu0 %v6017
    %v6019 = vpop.f32.mrf.mxu0
    %v6020 = vadd.f32 %v5827, %v6019
    %v6021 = vand.u32 %v5704, 4294901760
    %6022 = vmatmul.f32.gmra.mxu0 %v6021
    %v6023 = vpop.f32.mrf.mxu0
    %v6024 = vadd.f32 %v5835, %v6023
    %v6025 = vand.u32 %v5705, 4294901760
    %6026 = vmatmul.f32.gmra.mxu0 %v6025
    %v6027 = vpop.f32.mrf.mxu0
    %v6028 = vadd.f32 %v5843, %v6027
    %v6029 = vand.u32 %v5706, 4294901760
    %6030 = vmatmul.f32.gmra.mxu0 %v6029
    %v6031 = vpop.f32.mrf.mxu0
    %v6032 = vadd.f32 %v5851, %v6031
    %v6033 = vand.u32 %v5707, 4294901760
    %6034 = vmatmul.f32.gmra.mxu0 %v6033
    %v6035 = vpop.f32.mrf.mxu0
    %v6036 = vadd.f32 %v5859, %v6035
    %v6037 = vand.u32 %v5708, 4294901760
    %6038 = vmatmul.f32.gmra.mxu0 %v6037
    %v6039 = vpop.f32.mrf.mxu0
    %v6040 = vadd.f32 %v5867, %v6039
    %v6041 = vand.u32 %v5709, 4294901760
    %6042 = vmatmul.f32.gmra.mxu0 %v6041
    %v6043 = vpop.f32.mrf.mxu0
    %v6044 = vadd.f32 %v5875, %v6043
    %v6045 = vand.u32 %v5710, 4294901760
    %6046 = vmatmul.f32.gmra.mxu0 %v6045
    %v6047 = vpop.f32.mrf.mxu0
    %v6048 = vadd.f32 %v5883, %v6047
    %v6049 = vand.u32 %v5711, 4294901760
    %6050 = vmatmul.f32.gmra.mxu0 %v6049
    %v6051 = vpop.f32.mrf.mxu0
    %v6052 = vadd.f32 %v5891, %v6051
    %6053 = vdwg.mxu0
    %v6054 = vand.u32 %v5727, 4294901760
    %v6055 = vsub.f32 %v5727, %v6054
    %6056 = vmatpush.msra.mxu0 %v6055
    %v6057 = vand.u32 %v5726, 4294901760
    %v6058 = vsub.f32 %v5726, %v6057
    %6059 = vmatpush.msra.mxu0 %v6058
    %v6060 = vand.u32 %v5725, 4294901760
    %v6061 = vsub.f32 %v5725, %v6060
    %6062 = vmatpush.msra.mxu0 %v6061
    %v6063 = vand.u32 %v5724, 4294901760
    %v6064 = vsub.f32 %v5724, %v6063
    %6065 = vmatpush.msra.mxu0 %v6064
    %v6066 = vand.u32 %v5723, 4294901760
    %v6067 = vsub.f32 %v5723, %v6066
    %6068 = vmatpush.msra.mxu0 %v6067
    %v6069 = vand.u32 %v5722, 4294901760
    %v6070 = vsub.f32 %v5722, %v6069
    %6071 = vmatpush.msra.mxu0 %v6070
    %v6072 = vand.u32 %v5721, 4294901760
    %v6073 = vsub.f32 %v5721, %v6072
    %6074 = vmatpush.msra.mxu0 %v6073
    %v6075 = vand.u32 %v5720, 4294901760
    %v6076 = vsub.f32 %v5720, %v6075
    %6077 = vmatpush.msra.mxu0 %v6076
    %v6078 = vand.u32 %v5719, 4294901760
    %v6079 = vsub.f32 %v5719, %v6078
    %6080 = vmatpush.msra.mxu0 %v6079
    %v6081 = vand.u32 %v5718, 4294901760
    %v6082 = vsub.f32 %v5718, %v6081
    %6083 = vmatpush.msra.mxu0 %v6082
    %v6084 = vand.u32 %v5717, 4294901760
    %v6085 = vsub.f32 %v5717, %v6084
    %6086 = vmatpush.msra.mxu0 %v6085
    %v6087 = vand.u32 %v5716, 4294901760
    %v6088 = vsub.f32 %v5716, %v6087
    %6089 = vmatpush.msra.mxu0 %v6088
    %v6090 = vand.u32 %v5715, 4294901760
    %v6091 = vsub.f32 %v5715, %v6090
    %6092 = vmatpush.msra.mxu0 %v6091
    %v6093 = vand.u32 %v5714, 4294901760
    %v6094 = vsub.f32 %v5714, %v6093
    %6095 = vmatpush.msra.mxu0 %v6094
    %v6096 = vand.u32 %v5713, 4294901760
    %v6097 = vsub.f32 %v5713, %v6096
    %6098 = vmatpush.msra.mxu0 %v6097
    %v6099 = vand.u32 %v5712, 4294901760
    %v6100 = vsub.f32 %v5712, %v6099
    %6101 = vmatpush.msra.mxu0 %v6100
    %v6102 = vand.u32 %v5696, 4294901760
    %v6103 = vsub.f32 %v5696, %v6102
    %6104 = vmatmul.f32.gmra.mxu0 %v6103
    %v6105 = vpop.f32.mrf.mxu0
    %v6106 = vadd.f32 %v5992, %v6105
    %v6107 = vand.u32 %v5697, 4294901760
    %v6108 = vsub.f32 %v5697, %v6107
    %6109 = vmatmul.f32.gmra.mxu0 %v6108
    %v6110 = vpop.f32.mrf.mxu0
    %v6111 = vadd.f32 %v5996, %v6110
    %v6112 = vand.u32 %v5698, 4294901760
    %v6113 = vsub.f32 %v5698, %v6112
    %6114 = vmatmul.f32.gmra.mxu0 %v6113
    %v6115 = vpop.f32.mrf.mxu0
    %v6116 = vadd.f32 %v6000, %v6115
    %v6117 = vand.u32 %v5699, 4294901760
    %v6118 = vsub.f32 %v5699, %v6117
    %6119 = vmatmul.f32.gmra.mxu0 %v6118
    %v6120 = vpop.f32.mrf.mxu0
    %v6121 = vadd.f32 %v6004, %v6120
    %v6122 = vand.u32 %v5700, 4294901760
    %v6123 = vsub.f32 %v5700, %v6122
    %6124 = vmatmul.f32.gmra.mxu0 %v6123
    %v6125 = vpop.f32.mrf.mxu0
    %v6126 = vadd.f32 %v6008, %v6125
    %v6127 = vand.u32 %v5701, 4294901760
    %v6128 = vsub.f32 %v5701, %v6127
    %6129 = vmatmul.f32.gmra.mxu0 %v6128
    %v6130 = vpop.f32.mrf.mxu0
    %v6131 = vadd.f32 %v6012, %v6130
    %v6132 = vand.u32 %v5702, 4294901760
    %v6133 = vsub.f32 %v5702, %v6132
    %6134 = vmatmul.f32.gmra.mxu0 %v6133
    %v6135 = vpop.f32.mrf.mxu0
    %v6136 = vadd.f32 %v6016, %v6135
    %v6137 = vand.u32 %v5703, 4294901760
    %v6138 = vsub.f32 %v5703, %v6137
    %6139 = vmatmul.f32.gmra.mxu0 %v6138
    %v6140 = vpop.f32.mrf.mxu0
    %v6141 = vadd.f32 %v6020, %v6140
    %v6142 = vand.u32 %v5704, 4294901760
    %v6143 = vsub.f32 %v5704, %v6142
    %6144 = vmatmul.f32.gmra.mxu0 %v6143
    %v6145 = vpop.f32.mrf.mxu0
    %v6146 = vadd.f32 %v6024, %v6145
    %v6147 = vand.u32 %v5705, 4294901760
    %v6148 = vsub.f32 %v5705, %v6147
    %6149 = vmatmul.f32.gmra.mxu0 %v6148
    %v6150 = vpop.f32.mrf.mxu0
    %v6151 = vadd.f32 %v6028, %v6150
    %v6152 = vand.u32 %v5706, 4294901760
    %v6153 = vsub.f32 %v5706, %v6152
    %6154 = vmatmul.f32.gmra.mxu0 %v6153
    %v6155 = vpop.f32.mrf.mxu0
    %v6156 = vadd.f32 %v6032, %v6155
    %v6157 = vand.u32 %v5707, 4294901760
    %v6158 = vsub.f32 %v5707, %v6157
    %6159 = vmatmul.f32.gmra.mxu0 %v6158
    %v6160 = vpop.f32.mrf.mxu0
    %v6161 = vadd.f32 %v6036, %v6160
    %v6162 = vand.u32 %v5708, 4294901760
    %v6163 = vsub.f32 %v5708, %v6162
    %6164 = vmatmul.f32.gmra.mxu0 %v6163
    %v6165 = vpop.f32.mrf.mxu0
    %v6166 = vadd.f32 %v6040, %v6165
    %v6167 = vand.u32 %v5709, 4294901760
    %v6168 = vsub.f32 %v5709, %v6167
    %6169 = vmatmul.f32.gmra.mxu0 %v6168
    %v6170 = vpop.f32.mrf.mxu0
    %v6171 = vadd.f32 %v6044, %v6170
    %v6172 = vand.u32 %v5710, 4294901760
    %v6173 = vsub.f32 %v5710, %v6172
    %6174 = vmatmul.f32.gmra.mxu0 %v6173
    %v6175 = vpop.f32.mrf.mxu0
    %v6176 = vadd.f32 %v6048, %v6175
    %v6177 = vand.u32 %v5711, 4294901760
    %v6178 = vsub.f32 %v5711, %v6177
    %6179 = vmatmul.f32.gmra.mxu0 %v6178
    %v6180 = vpop.f32.mrf.mxu0
    %v6181 = vadd.f32 %v6052, %v6180
    %6182 = vdwg.mxu0
    %v6183 = vand.u32 %v5727, 4294901760
    %6184 = vmatpush.msra.mxu0 %v6183
    %v6185 = vand.u32 %v5726, 4294901760
    %6186 = vmatpush.msra.mxu0 %v6185
    %v6187 = vand.u32 %v5725, 4294901760
    %6188 = vmatpush.msra.mxu0 %v6187
    %v6189 = vand.u32 %v5724, 4294901760
    %6190 = vmatpush.msra.mxu0 %v6189
    %v6191 = vand.u32 %v5723, 4294901760
    %6192 = vmatpush.msra.mxu0 %v6191
    %v6193 = vand.u32 %v5722, 4294901760
    %6194 = vmatpush.msra.mxu0 %v6193
    %v6195 = vand.u32 %v5721, 4294901760
    %6196 = vmatpush.msra.mxu0 %v6195
    %v6197 = vand.u32 %v5720, 4294901760
    %6198 = vmatpush.msra.mxu0 %v6197
    %v6199 = vand.u32 %v5719, 4294901760
    %6200 = vmatpush.msra.mxu0 %v6199
    %v6201 = vand.u32 %v5718, 4294901760
    %6202 = vmatpush.msra.mxu0 %v6201
    %v6203 = vand.u32 %v5717, 4294901760
    %6204 = vmatpush.msra.mxu0 %v6203
    %v6205 = vand.u32 %v5716, 4294901760
    %6206 = vmatpush.msra.mxu0 %v6205
    %v6207 = vand.u32 %v5715, 4294901760
    %6208 = vmatpush.msra.mxu0 %v6207
    %v6209 = vand.u32 %v5714, 4294901760
    %6210 = vmatpush.msra.mxu0 %v6209
    %v6211 = vand.u32 %v5713, 4294901760
    %6212 = vmatpush.msra.mxu0 %v6211
    %v6213 = vand.u32 %v5712, 4294901760
    %6214 = vmatpush.msra.mxu0 %v6213
    %v6215 = vand.u32 %v5696, 4294901760
    %v6216 = vsub.f32 %v5696, %v6215
    %v6217 = vand.u32 %v6216, 4294901760
    %6218 = vmatmul.f32.gmra.mxu0 %v6217
    %v6219 = vpop.f32.mrf.mxu0
    %v6220 = vadd.f32 %v6106, %v6219
    %v6221 = vand.u32 %v5697, 4294901760
    %v6222 = vsub.f32 %v5697, %v6221
    %v6223 = vand.u32 %v6222, 4294901760
    %6224 = vmatmul.f32.gmra.mxu0 %v6223
    %v6225 = vpop.f32.mrf.mxu0
    %v6226 = vadd.f32 %v6111, %v6225
    %v6227 = vand.u32 %v5698, 4294901760
    %v6228 = vsub.f32 %v5698, %v6227
    %v6229 = vand.u32 %v6228, 4294901760
    %6230 = vmatmul.f32.gmra.mxu0 %v6229
    %v6231 = vpop.f32.mrf.mxu0
    %v6232 = vadd.f32 %v6116, %v6231
    %v6233 = vand.u32 %v5699, 4294901760
    %v6234 = vsub.f32 %v5699, %v6233
    %v6235 = vand.u32 %v6234, 4294901760
    %6236 = vmatmul.f32.gmra.mxu0 %v6235
    %v6237 = vpop.f32.mrf.mxu0
    %v6238 = vadd.f32 %v6121, %v6237
    %v6239 = vand.u32 %v5700, 4294901760
    %v6240 = vsub.f32 %v5700, %v6239
    %v6241 = vand.u32 %v6240, 4294901760
    %6242 = vmatmul.f32.gmra.mxu0 %v6241
    %v6243 = vpop.f32.mrf.mxu0
    %v6244 = vadd.f32 %v6126, %v6243
    %v6245 = vand.u32 %v5701, 4294901760
    %v6246 = vsub.f32 %v5701, %v6245
    %v6247 = vand.u32 %v6246, 4294901760
    %6248 = vmatmul.f32.gmra.mxu0 %v6247
    %v6249 = vpop.f32.mrf.mxu0
    %v6250 = vadd.f32 %v6131, %v6249
    %v6251 = vand.u32 %v5702, 4294901760
    %v6252 = vsub.f32 %v5702, %v6251
    %v6253 = vand.u32 %v6252, 4294901760
    %6254 = vmatmul.f32.gmra.mxu0 %v6253
    %v6255 = vpop.f32.mrf.mxu0
    %v6256 = vadd.f32 %v6136, %v6255
    %v6257 = vand.u32 %v5703, 4294901760
    %v6258 = vsub.f32 %v5703, %v6257
    %v6259 = vand.u32 %v6258, 4294901760
    %6260 = vmatmul.f32.gmra.mxu0 %v6259
    %v6261 = vpop.f32.mrf.mxu0
    %v6262 = vadd.f32 %v6141, %v6261
    %v6263 = vand.u32 %v5704, 4294901760
    %v6264 = vsub.f32 %v5704, %v6263
    %v6265 = vand.u32 %v6264, 4294901760
    %6266 = vmatmul.f32.gmra.mxu0 %v6265
    %v6267 = vpop.f32.mrf.mxu0
    %v6268 = vadd.f32 %v6146, %v6267
    %v6269 = vand.u32 %v5705, 4294901760
    %v6270 = vsub.f32 %v5705, %v6269
    %v6271 = vand.u32 %v6270, 4294901760
    %6272 = vmatmul.f32.gmra.mxu0 %v6271
    %v6273 = vpop.f32.mrf.mxu0
    %v6274 = vadd.f32 %v6151, %v6273
    %v6275 = vand.u32 %v5706, 4294901760
    %v6276 = vsub.f32 %v5706, %v6275
    %v6277 = vand.u32 %v6276, 4294901760
    %6278 = vmatmul.f32.gmra.mxu0 %v6277
    %v6279 = vpop.f32.mrf.mxu0
    %v6280 = vadd.f32 %v6156, %v6279
    %v6281 = vand.u32 %v5707, 4294901760
    %v6282 = vsub.f32 %v5707, %v6281
    %v6283 = vand.u32 %v6282, 4294901760
    %6284 = vmatmul.f32.gmra.mxu0 %v6283
    %v6285 = vpop.f32.mrf.mxu0
    %v6286 = vadd.f32 %v6161, %v6285
    %v6287 = vand.u32 %v5708, 4294901760
    %v6288 = vsub.f32 %v5708, %v6287
    %v6289 = vand.u32 %v6288, 4294901760
    %6290 = vmatmul.f32.gmra.mxu0 %v6289
    %v6291 = vpop.f32.mrf.mxu0
    %v6292 = vadd.f32 %v6166, %v6291
    %v6293 = vand.u32 %v5709, 4294901760
    %v6294 = vsub.f32 %v5709, %v6293
    %v6295 = vand.u32 %v6294, 4294901760
    %6296 = vmatmul.f32.gmra.mxu0 %v6295
    %v6297 = vpop.f32.mrf.mxu0
    %v6298 = vadd.f32 %v6171, %v6297
    %v6299 = vand.u32 %v5710, 4294901760
    %v6300 = vsub.f32 %v5710, %v6299
    %v6301 = vand.u32 %v6300, 4294901760
    %6302 = vmatmul.f32.gmra.mxu0 %v6301
    %v6303 = vpop.f32.mrf.mxu0
    %v6304 = vadd.f32 %v6176, %v6303
    %v6305 = vand.u32 %v5711, 4294901760
    %v6306 = vsub.f32 %v5711, %v6305
    %v6307 = vand.u32 %v6306, 4294901760
    %6308 = vmatmul.f32.gmra.mxu0 %v6307
    %v6309 = vpop.f32.mrf.mxu0
    %v6310 = vadd.f32 %v6181, %v6309
    %6311 = vdwg.mxu0
    %v6312 = vand.u32 %v5727, 4294901760
    %v6313 = vsub.f32 %v5727, %v6312
    %v6314 = vand.u32 %v6313, 4294901760
    %6315 = vmatpush.msra.mxu0 %v6314
    %v6316 = vand.u32 %v5726, 4294901760
    %v6317 = vsub.f32 %v5726, %v6316
    %v6318 = vand.u32 %v6317, 4294901760
    %6319 = vmatpush.msra.mxu0 %v6318
    %v6320 = vand.u32 %v5725, 4294901760
    %v6321 = vsub.f32 %v5725, %v6320
    %v6322 = vand.u32 %v6321, 4294901760
    %6323 = vmatpush.msra.mxu0 %v6322
    %v6324 = vand.u32 %v5724, 4294901760
    %v6325 = vsub.f32 %v5724, %v6324
    %v6326 = vand.u32 %v6325, 4294901760
    %6327 = vmatpush.msra.mxu0 %v6326
    %v6328 = vand.u32 %v5723, 4294901760
    %v6329 = vsub.f32 %v5723, %v6328
    %v6330 = vand.u32 %v6329, 4294901760
    %6331 = vmatpush.msra.mxu0 %v6330
    %v6332 = vand.u32 %v5722, 4294901760
    %v6333 = vsub.f32 %v5722, %v6332
    %v6334 = vand.u32 %v6333, 4294901760
    %6335 = vmatpush.msra.mxu0 %v6334
    %v6336 = vand.u32 %v5721, 4294901760
    %v6337 = vsub.f32 %v5721, %v6336
    %v6338 = vand.u32 %v6337, 4294901760
    %6339 = vmatpush.msra.mxu0 %v6338
    %v6340 = vand.u32 %v5720, 4294901760
    %v6341 = vsub.f32 %v5720, %v6340
    %v6342 = vand.u32 %v6341, 4294901760
    %6343 = vmatpush.msra.mxu0 %v6342
    %v6344 = vand.u32 %v5719, 4294901760
    %v6345 = vsub.f32 %v5719, %v6344
    %v6346 = vand.u32 %v6345, 4294901760
    %6347 = vmatpush.msra.mxu0 %v6346
    %v6348 = vand.u32 %v5718, 4294901760
    %v6349 = vsub.f32 %v5718, %v6348
    %v6350 = vand.u32 %v6349, 4294901760
    %6351 = vmatpush.msra.mxu0 %v6350
    %v6352 = vand.u32 %v5717, 4294901760
    %v6353 = vsub.f32 %v5717, %v6352
    %v6354 = vand.u32 %v6353, 4294901760
    %6355 = vmatpush.msra.mxu0 %v6354
    %v6356 = vand.u32 %v5716, 4294901760
    %v6357 = vsub.f32 %v5716, %v6356
    %v6358 = vand.u32 %v6357, 4294901760
    %6359 = vmatpush.msra.mxu0 %v6358
    %v6360 = vand.u32 %v5715, 4294901760
    %v6361 = vsub.f32 %v5715, %v6360
    %v6362 = vand.u32 %v6361, 4294901760
    %6363 = vmatpush.msra.mxu0 %v6362
    %v6364 = vand.u32 %v5714, 4294901760
    %v6365 = vsub.f32 %v5714, %v6364
    %v6366 = vand.u32 %v6365, 4294901760
    %6367 = vmatpush.msra.mxu0 %v6366
    %v6368 = vand.u32 %v5713, 4294901760
    %v6369 = vsub.f32 %v5713, %v6368
    %v6370 = vand.u32 %v6369, 4294901760
    %6371 = vmatpush.msra.mxu0 %v6370
    %v6372 = vand.u32 %v5712, 4294901760
    %v6373 = vsub.f32 %v5712, %v6372
    %v6374 = vand.u32 %v6373, 4294901760
    %6375 = vmatpush.msra.mxu0 %v6374
    %v6376 = vand.u32 %v5696, 4294901760
    %6377 = vmatmul.f32.gmra.mxu0 %v6376
    %v6378 = vpop.f32.mrf.mxu0
    %v6379 = vadd.f32 %v6220, %v6378
    %v6380 = vand.u32 %v5697, 4294901760
    %6381 = vmatmul.f32.gmra.mxu0 %v6380
    %v6382 = vpop.f32.mrf.mxu0
    %v6383 = vadd.f32 %v6226, %v6382
    %v6384 = vand.u32 %v5698, 4294901760
    %6385 = vmatmul.f32.gmra.mxu0 %v6384
    %v6386 = vpop.f32.mrf.mxu0
    %v6387 = vadd.f32 %v6232, %v6386
    %v6388 = vand.u32 %v5699, 4294901760
    %6389 = vmatmul.f32.gmra.mxu0 %v6388
    %v6390 = vpop.f32.mrf.mxu0
    %v6391 = vadd.f32 %v6238, %v6390
    %v6392 = vand.u32 %v5700, 4294901760
    %6393 = vmatmul.f32.gmra.mxu0 %v6392
    %v6394 = vpop.f32.mrf.mxu0
    %v6395 = vadd.f32 %v6244, %v6394
    %v6396 = vand.u32 %v5701, 4294901760
    %6397 = vmatmul.f32.gmra.mxu0 %v6396
    %v6398 = vpop.f32.mrf.mxu0
    %v6399 = vadd.f32 %v6250, %v6398
    %v6400 = vand.u32 %v5702, 4294901760
    %6401 = vmatmul.f32.gmra.mxu0 %v6400
    %v6402 = vpop.f32.mrf.mxu0
    %v6403 = vadd.f32 %v6256, %v6402
    %v6404 = vand.u32 %v5703, 4294901760
    %6405 = vmatmul.f32.gmra.mxu0 %v6404
    %v6406 = vpop.f32.mrf.mxu0
    %v6407 = vadd.f32 %v6262, %v6406
    %v6408 = vand.u32 %v5704, 4294901760
    %6409 = vmatmul.f32.gmra.mxu0 %v6408
    %v6410 = vpop.f32.mrf.mxu0
    %v6411 = vadd.f32 %v6268, %v6410
    %v6412 = vand.u32 %v5705, 4294901760
    %6413 = vmatmul.f32.gmra.mxu0 %v6412
    %v6414 = vpop.f32.mrf.mxu0
    %v6415 = vadd.f32 %v6274, %v6414
    %v6416 = vand.u32 %v5706, 4294901760
    %6417 = vmatmul.f32.gmra.mxu0 %v6416
    %v6418 = vpop.f32.mrf.mxu0
    %v6419 = vadd.f32 %v6280, %v6418
    %v6420 = vand.u32 %v5707, 4294901760
    %6421 = vmatmul.f32.gmra.mxu0 %v6420
    %v6422 = vpop.f32.mrf.mxu0
    %v6423 = vadd.f32 %v6286, %v6422
    %v6424 = vand.u32 %v5708, 4294901760
    %6425 = vmatmul.f32.gmra.mxu0 %v6424
    %v6426 = vpop.f32.mrf.mxu0
    %v6427 = vadd.f32 %v6292, %v6426
    %v6428 = vand.u32 %v5709, 4294901760
    %6429 = vmatmul.f32.gmra.mxu0 %v6428
    %v6430 = vpop.f32.mrf.mxu0
    %v6431 = vadd.f32 %v6298, %v6430
    %v6432 = vand.u32 %v5710, 4294901760
    %6433 = vmatmul.f32.gmra.mxu0 %v6432
    %v6434 = vpop.f32.mrf.mxu0
    %v6435 = vadd.f32 %v6304, %v6434
    %v6436 = vand.u32 %v5711, 4294901760
    %6437 = vmatmul.f32.gmra.mxu0 %v6436
    %v6438 = vpop.f32.mrf.mxu0
    %v6439 = vadd.f32 %v6310, %v6438
    %6440 = vdwg.mxu0
    %v6441 = vand.u32 %v5727, 4294901760
    %6442 = vmatpush.msra.mxu0 %v6441
    %v6443 = vand.u32 %v5726, 4294901760
    %6444 = vmatpush.msra.mxu0 %v6443
    %v6445 = vand.u32 %v5725, 4294901760
    %6446 = vmatpush.msra.mxu0 %v6445
    %v6447 = vand.u32 %v5724, 4294901760
    %6448 = vmatpush.msra.mxu0 %v6447
    %v6449 = vand.u32 %v5723, 4294901760
    %6450 = vmatpush.msra.mxu0 %v6449
    %v6451 = vand.u32 %v5722, 4294901760
    %6452 = vmatpush.msra.mxu0 %v6451
    %v6453 = vand.u32 %v5721, 4294901760
    %6454 = vmatpush.msra.mxu0 %v6453
    %v6455 = vand.u32 %v5720, 4294901760
    %6456 = vmatpush.msra.mxu0 %v6455
    %v6457 = vand.u32 %v5719, 4294901760
    %6458 = vmatpush.msra.mxu0 %v6457
    %v6459 = vand.u32 %v5718, 4294901760
    %6460 = vmatpush.msra.mxu0 %v6459
    %v6461 = vand.u32 %v5717, 4294901760
    %6462 = vmatpush.msra.mxu0 %v6461
    %v6463 = vand.u32 %v5716, 4294901760
    %6464 = vmatpush.msra.mxu0 %v6463
    %v6465 = vand.u32 %v5715, 4294901760
    %6466 = vmatpush.msra.mxu0 %v6465
    %v6467 = vand.u32 %v5714, 4294901760
    %6468 = vmatpush.msra.mxu0 %v6467
    %v6469 = vand.u32 %v5713, 4294901760
    %6470 = vmatpush.msra.mxu0 %v6469
    %v6471 = vand.u32 %v5712, 4294901760
    %6472 = vmatpush.msra.mxu0 %v6471
    %v6473 = vand.u32 %v5696, 4294901760
    %6474 = vmatmul.f32.gmra.mxu0 %v6473
    %v6475 = vpop.f32.mrf.mxu0
    %v6476 = vadd.f32 %v6379, %v6475
    %v6477 = vand.u32 %v5697, 4294901760
    %6478 = vmatmul.f32.gmra.mxu0 %v6477
    %v6479 = vpop.f32.mrf.mxu0
    %v6480 = vadd.f32 %v6383, %v6479
    %v6481 = vand.u32 %v5698, 4294901760
    %6482 = vmatmul.f32.gmra.mxu0 %v6481
    %v6483 = vpop.f32.mrf.mxu0
    %v6484 = vadd.f32 %v6387, %v6483
    %v6485 = vand.u32 %v5699, 4294901760
    %6486 = vmatmul.f32.gmra.mxu0 %v6485
    %v6487 = vpop.f32.mrf.mxu0
    %v6488 = vadd.f32 %v6391, %v6487
    %v6489 = vand.u32 %v5700, 4294901760
    %6490 = vmatmul.f32.gmra.mxu0 %v6489
    %v6491 = vpop.f32.mrf.mxu0
    %v6492 = vadd.f32 %v6395, %v6491
    %v6493 = vand.u32 %v5701, 4294901760
    %6494 = vmatmul.f32.gmra.mxu0 %v6493
    %v6495 = vpop.f32.mrf.mxu0
    %v6496 = vadd.f32 %v6399, %v6495
    %v6497 = vand.u32 %v5702, 4294901760
    %6498 = vmatmul.f32.gmra.mxu0 %v6497
    %v6499 = vpop.f32.mrf.mxu0
    %v6500 = vadd.f32 %v6403, %v6499
    %v6501 = vand.u32 %v5703, 4294901760
    %6502 = vmatmul.f32.gmra.mxu0 %v6501
    %v6503 = vpop.f32.mrf.mxu0
    %v6504 = vadd.f32 %v6407, %v6503
    %v6505 = vand.u32 %v5704, 4294901760
    %6506 = vmatmul.f32.gmra.mxu0 %v6505
    %v6507 = vpop.f32.mrf.mxu0
    %v6508 = vadd.f32 %v6411, %v6507
    %v6509 = vand.u32 %v5705, 4294901760
    %6510 = vmatmul.f32.gmra.mxu0 %v6509
    %v6511 = vpop.f32.mrf.mxu0
    %v6512 = vadd.f32 %v6415, %v6511
    %v6513 = vand.u32 %v5706, 4294901760
    %6514 = vmatmul.f32.gmra.mxu0 %v6513
    %v6515 = vpop.f32.mrf.mxu0
    %v6516 = vadd.f32 %v6419, %v6515
    %v6517 = vand.u32 %v5707, 4294901760
    %6518 = vmatmul.f32.gmra.mxu0 %v6517
    %v6519 = vpop.f32.mrf.mxu0
    %v6520 = vadd.f32 %v6423, %v6519
    %v6521 = vand.u32 %v5708, 4294901760
    %6522 = vmatmul.f32.gmra.mxu0 %v6521
    %v6523 = vpop.f32.mrf.mxu0
    %v6524 = vadd.f32 %v6427, %v6523
    %v6525 = vand.u32 %v5709, 4294901760
    %6526 = vmatmul.f32.gmra.mxu0 %v6525
    %v6527 = vpop.f32.mrf.mxu0
    %v6528 = vadd.f32 %v6431, %v6527
    %v6529 = vand.u32 %v5710, 4294901760
    %6530 = vmatmul.f32.gmra.mxu0 %v6529
    %v6531 = vpop.f32.mrf.mxu0
    %v6532 = vadd.f32 %v6435, %v6531
    %v6533 = vand.u32 %v5711, 4294901760
    %6534 = vmatmul.f32.gmra.mxu0 %v6533
    %v6535 = vpop.f32.mrf.mxu0
    %v6536 = vadd.f32 %v6439, %v6535
    %6537 = vdwg.mxu0
    %v6538 = vld [vmem:[#allocation17] sm:$0xff]
    %v6539 = vld [vmem:[#allocation17 + $0x8] sm:$0xff]
    %v6540 = vld [vmem:[#allocation17 + $0x10] sm:$0xff]
    %v6541 = vld [vmem:[#allocation17 + $0x18] sm:$0xff]
    %v6542 = vld [vmem:[#allocation17 + $0x20] sm:$0xff]
    %v6543 = vld [vmem:[#allocation17 + $0x28] sm:$0xff]
    %v6544 = vld [vmem:[#allocation17 + $0x30] sm:$0xff]
    %v6545 = vld [vmem:[#allocation17 + $0x38] sm:$0xff]
    %v6546 = vld [vmem:[#allocation17 + $0x40] sm:$0xff]
    %v6547 = vld [vmem:[#allocation17 + $0x48] sm:$0xff]
    %v6548 = vld [vmem:[#allocation17 + $0x50] sm:$0xff]
    %v6549 = vld [vmem:[#allocation17 + $0x58] sm:$0xff]
    %v6550 = vld [vmem:[#allocation17 + $0x60] sm:$0xff]
    %v6551 = vld [vmem:[#allocation17 + $0x68] sm:$0xff]
    %v6552 = vld [vmem:[#allocation17 + $0x70] sm:$0xff]
    %v6553 = vld [vmem:[#allocation17 + $0x78] sm:$0xff]
    %v6554 = vld [vmem:[%s13] sm:$0x1]
    %v6556 = vperm.slane %v6554, 0
    %v6558 = vand.u32 %v6553, 4294901760
    %6559 = vmatpush.msra.mxu0 %v6558
    %v6560 = vand.u32 %v6552, 4294901760
    %6561 = vmatpush.msra.mxu0 %v6560
    %v6562 = vand.u32 %v6551, 4294901760
    %6563 = vmatpush.msra.mxu0 %v6562
    %v6564 = vand.u32 %v6550, 4294901760
    %6565 = vmatpush.msra.mxu0 %v6564
    %v6566 = vand.u32 %v6549, 4294901760
    %6567 = vmatpush.msra.mxu0 %v6566
    %v6568 = vand.u32 %v6548, 4294901760
    %6569 = vmatpush.msra.mxu0 %v6568
    %v6570 = vand.u32 %v6547, 4294901760
    %6571 = vmatpush.msra.mxu0 %v6570
    %v6572 = vand.u32 %v6546, 4294901760
    %6573 = vmatpush.msra.mxu0 %v6572
    %v6574 = vand.u32 %v6545, 4294901760
    %6575 = vmatpush.msra.mxu0 %v6574
    %v6576 = vand.u32 %v6544, 4294901760
    %6577 = vmatpush.msra.mxu0 %v6576
    %v6578 = vand.u32 %v6543, 4294901760
    %6579 = vmatpush.msra.mxu0 %v6578
    %v6580 = vand.u32 %v6542, 4294901760
    %6581 = vmatpush.msra.mxu0 %v6580
    %v6582 = vand.u32 %v6541, 4294901760
    %6583 = vmatpush.msra.mxu0 %v6582
    %v6584 = vand.u32 %v6540, 4294901760
    %6585 = vmatpush.msra.mxu0 %v6584
    %v6586 = vand.u32 %v6539, 4294901760
    %6587 = vmatpush.msra.mxu0 %v6586
    %v6588 = vand.u32 %v6538, 4294901760
    %6589 = vmatpush.msra.mxu0 %v6588
    %v6590 = vand.u32 %v5696, 4294901760
    %v6591 = vsub.f32 %v5696, %v6590
    %v6592 = vand.u32 %v6591, 4294901760
    %v6593 = vsub.f32 %v6591, %v6592
    %v6594 = vand.u32 %v6593, 4294901760
    %6595 = vmatmul.f32.gmra.mxu0 %v6594
    %v6596 = vpop.f32.mrf.mxu0
    %v6597 = vadd.f32 %v6556, %v6596
    %v6598 = vand.u32 %v5697, 4294901760
    %v6599 = vsub.f32 %v5697, %v6598
    %v6600 = vand.u32 %v6599, 4294901760
    %v6601 = vsub.f32 %v6599, %v6600
    %v6602 = vand.u32 %v6601, 4294901760
    %6603 = vmatmul.f32.gmra.mxu0 %v6602
    %v6604 = vpop.f32.mrf.mxu0
    %v6605 = vadd.f32 %v6556, %v6604
    %v6606 = vand.u32 %v5698, 4294901760
    %v6607 = vsub.f32 %v5698, %v6606
    %v6608 = vand.u32 %v6607, 4294901760
    %v6609 = vsub.f32 %v6607, %v6608
    %v6610 = vand.u32 %v6609, 4294901760
    %6611 = vmatmul.f32.gmra.mxu0 %v6610
    %v6612 = vpop.f32.mrf.mxu0
    %v6613 = vadd.f32 %v6556, %v6612
    %v6614 = vand.u32 %v5699, 4294901760
    %v6615 = vsub.f32 %v5699, %v6614
    %v6616 = vand.u32 %v6615, 4294901760
    %v6617 = vsub.f32 %v6615, %v6616
    %v6618 = vand.u32 %v6617, 4294901760
    %6619 = vmatmul.f32.gmra.mxu0 %v6618
    %v6620 = vpop.f32.mrf.mxu0
    %v6621 = vadd.f32 %v6556, %v6620
    %v6622 = vand.u32 %v5700, 4294901760
    %v6623 = vsub.f32 %v5700, %v6622
    %v6624 = vand.u32 %v6623, 4294901760
    %v6625 = vsub.f32 %v6623, %v6624
    %v6626 = vand.u32 %v6625, 4294901760
    %6627 = vmatmul.f32.gmra.mxu0 %v6626
    %v6628 = vpop.f32.mrf.mxu0
    %v6629 = vadd.f32 %v6556, %v6628
    %v6630 = vand.u32 %v5701, 4294901760
    %v6631 = vsub.f32 %v5701, %v6630
    %v6632 = vand.u32 %v6631, 4294901760
    %v6633 = vsub.f32 %v6631, %v6632
    %v6634 = vand.u32 %v6633, 4294901760
    %6635 = vmatmul.f32.gmra.mxu0 %v6634
    %v6636 = vpop.f32.mrf.mxu0
    %v6637 = vadd.f32 %v6556, %v6636
    %v6638 = vand.u32 %v5702, 4294901760
    %v6639 = vsub.f32 %v5702, %v6638
    %v6640 = vand.u32 %v6639, 4294901760
    %v6641 = vsub.f32 %v6639, %v6640
    %v6642 = vand.u32 %v6641, 4294901760
    %6643 = vmatmul.f32.gmra.mxu0 %v6642
    %v6644 = vpop.f32.mrf.mxu0
    %v6645 = vadd.f32 %v6556, %v6644
    %v6646 = vand.u32 %v5703, 4294901760
    %v6647 = vsub.f32 %v5703, %v6646
    %v6648 = vand.u32 %v6647, 4294901760
    %v6649 = vsub.f32 %v6647, %v6648
    %v6650 = vand.u32 %v6649, 4294901760
    %6651 = vmatmul.f32.gmra.mxu0 %v6650
    %v6652 = vpop.f32.mrf.mxu0
    %v6653 = vadd.f32 %v6556, %v6652
    %v6654 = vand.u32 %v5704, 4294901760
    %v6655 = vsub.f32 %v5704, %v6654
    %v6656 = vand.u32 %v6655, 4294901760
    %v6657 = vsub.f32 %v6655, %v6656
    %v6658 = vand.u32 %v6657, 4294901760
    %6659 = vmatmul.f32.gmra.mxu0 %v6658
    %v6660 = vpop.f32.mrf.mxu0
    %v6661 = vadd.f32 %v6556, %v6660
    %v6662 = vand.u32 %v5705, 4294901760
    %v6663 = vsub.f32 %v5705, %v6662
    %v6664 = vand.u32 %v6663, 4294901760
    %v6665 = vsub.f32 %v6663, %v6664
    %v6666 = vand.u32 %v6665, 4294901760
    %6667 = vmatmul.f32.gmra.mxu0 %v6666
    %v6668 = vpop.f32.mrf.mxu0
    %v6669 = vadd.f32 %v6556, %v6668
    %v6670 = vand.u32 %v5706, 4294901760
    %v6671 = vsub.f32 %v5706, %v6670
    %v6672 = vand.u32 %v6671, 4294901760
    %v6673 = vsub.f32 %v6671, %v6672
    %v6674 = vand.u32 %v6673, 4294901760
    %6675 = vmatmul.f32.gmra.mxu0 %v6674
    %v6676 = vpop.f32.mrf.mxu0
    %v6677 = vadd.f32 %v6556, %v6676
    %v6678 = vand.u32 %v5707, 4294901760
    %v6679 = vsub.f32 %v5707, %v6678
    %v6680 = vand.u32 %v6679, 4294901760
    %v6681 = vsub.f32 %v6679, %v6680
    %v6682 = vand.u32 %v6681, 4294901760
    %6683 = vmatmul.f32.gmra.mxu0 %v6682
    %v6684 = vpop.f32.mrf.mxu0
    %v6685 = vadd.f32 %v6556, %v6684
    %v6686 = vand.u32 %v5708, 4294901760
    %v6687 = vsub.f32 %v5708, %v6686
    %v6688 = vand.u32 %v6687, 4294901760
    %v6689 = vsub.f32 %v6687, %v6688
    %v6690 = vand.u32 %v6689, 4294901760
    %6691 = vmatmul.f32.gmra.mxu0 %v6690
    %v6692 = vpop.f32.mrf.mxu0
    %v6693 = vadd.f32 %v6556, %v6692
    %v6694 = vand.u32 %v5709, 4294901760
    %v6695 = vsub.f32 %v5709, %v6694
    %v6696 = vand.u32 %v6695, 4294901760
    %v6697 = vsub.f32 %v6695, %v6696
    %v6698 = vand.u32 %v6697, 4294901760
    %6699 = vmatmul.f32.gmra.mxu0 %v6698
    %v6700 = vpop.f32.mrf.mxu0
    %v6701 = vadd.f32 %v6556, %v6700
    %v6702 = vand.u32 %v5710, 4294901760
    %v6703 = vsub.f32 %v5710, %v6702
    %v6704 = vand.u32 %v6703, 4294901760
    %v6705 = vsub.f32 %v6703, %v6704
    %v6706 = vand.u32 %v6705, 4294901760
    %6707 = vmatmul.f32.gmra.mxu0 %v6706
    %v6708 = vpop.f32.mrf.mxu0
    %v6709 = vadd.f32 %v6556, %v6708
    %v6710 = vand.u32 %v5711, 4294901760
    %v6711 = vsub.f32 %v5711, %v6710
    %v6712 = vand.u32 %v6711, 4294901760
    %v6713 = vsub.f32 %v6711, %v6712
    %v6714 = vand.u32 %v6713, 4294901760
    %6715 = vmatmul.f32.gmra.mxu0 %v6714
    %v6716 = vpop.f32.mrf.mxu0
    %v6717 = vadd.f32 %v6556, %v6716
    %6718 = vdwg.mxu0
    %v6719 = vand.u32 %v6553, 4294901760
    %v6720 = vsub.f32 %v6553, %v6719
    %v6721 = vand.u32 %v6720, 4294901760
    %v6722 = vsub.f32 %v6720, %v6721
    %v6723 = vand.u32 %v6722, 4294901760
    %6724 = vmatpush.msra.mxu0 %v6723
    %v6725 = vand.u32 %v6552, 4294901760
    %v6726 = vsub.f32 %v6552, %v6725
    %v6727 = vand.u32 %v6726, 4294901760
    %v6728 = vsub.f32 %v6726, %v6727
    %v6729 = vand.u32 %v6728, 4294901760
    %6730 = vmatpush.msra.mxu0 %v6729
    %v6731 = vand.u32 %v6551, 4294901760
    %v6732 = vsub.f32 %v6551, %v6731
    %v6733 = vand.u32 %v6732, 4294901760
    %v6734 = vsub.f32 %v6732, %v6733
    %v6735 = vand.u32 %v6734, 4294901760
    %6736 = vmatpush.msra.mxu0 %v6735
    %v6737 = vand.u32 %v6550, 4294901760
    %v6738 = vsub.f32 %v6550, %v6737
    %v6739 = vand.u32 %v6738, 4294901760
    %v6740 = vsub.f32 %v6738, %v6739
    %v6741 = vand.u32 %v6740, 4294901760
    %6742 = vmatpush.msra.mxu0 %v6741
    %v6743 = vand.u32 %v6549, 4294901760
    %v6744 = vsub.f32 %v6549, %v6743
    %v6745 = vand.u32 %v6744, 4294901760
    %v6746 = vsub.f32 %v6744, %v6745
    %v6747 = vand.u32 %v6746, 4294901760
    %6748 = vmatpush.msra.mxu0 %v6747
    %v6749 = vand.u32 %v6548, 4294901760
    %v6750 = vsub.f32 %v6548, %v6749
    %v6751 = vand.u32 %v6750, 4294901760
    %v6752 = vsub.f32 %v6750, %v6751
    %v6753 = vand.u32 %v6752, 4294901760
    %6754 = vmatpush.msra.mxu0 %v6753
    %v6755 = vand.u32 %v6547, 4294901760
    %v6756 = vsub.f32 %v6547, %v6755
    %v6757 = vand.u32 %v6756, 4294901760
    %v6758 = vsub.f32 %v6756, %v6757
    %v6759 = vand.u32 %v6758, 4294901760
    %6760 = vmatpush.msra.mxu0 %v6759
    %v6761 = vand.u32 %v6546, 4294901760
    %v6762 = vsub.f32 %v6546, %v6761
    %v6763 = vand.u32 %v6762, 4294901760
    %v6764 = vsub.f32 %v6762, %v6763
    %v6765 = vand.u32 %v6764, 4294901760
    %6766 = vmatpush.msra.mxu0 %v6765
    %v6767 = vand.u32 %v6545, 4294901760
    %v6768 = vsub.f32 %v6545, %v6767
    %v6769 = vand.u32 %v6768, 4294901760
    %v6770 = vsub.f32 %v6768, %v6769
    %v6771 = vand.u32 %v6770, 4294901760
    %6772 = vmatpush.msra.mxu0 %v6771
    %v6773 = vand.u32 %v6544, 4294901760
    %v6774 = vsub.f32 %v6544, %v6773
    %v6775 = vand.u32 %v6774, 4294901760
    %v6776 = vsub.f32 %v6774, %v6775
    %v6777 = vand.u32 %v6776, 4294901760
    %6778 = vmatpush.msra.mxu0 %v6777
    %v6779 = vand.u32 %v6543, 4294901760
    %v6780 = vsub.f32 %v6543, %v6779
    %v6781 = vand.u32 %v6780, 4294901760
    %v6782 = vsub.f32 %v6780, %v6781
    %v6783 = vand.u32 %v6782, 4294901760
    %6784 = vmatpush.msra.mxu0 %v6783
    %v6785 = vand.u32 %v6542, 4294901760
    %v6786 = vsub.f32 %v6542, %v6785
    %v6787 = vand.u32 %v6786, 4294901760
    %v6788 = vsub.f32 %v6786, %v6787
    %v6789 = vand.u32 %v6788, 4294901760
    %6790 = vmatpush.msra.mxu0 %v6789
    %v6791 = vand.u32 %v6541, 4294901760
    %v6792 = vsub.f32 %v6541, %v6791
    %v6793 = vand.u32 %v6792, 4294901760
    %v6794 = vsub.f32 %v6792, %v6793
    %v6795 = vand.u32 %v6794, 4294901760
    %6796 = vmatpush.msra.mxu0 %v6795
    %v6797 = vand.u32 %v6540, 4294901760
    %v6798 = vsub.f32 %v6540, %v6797
    %v6799 = vand.u32 %v6798, 4294901760
    %v6800 = vsub.f32 %v6798, %v6799
    %v6801 = vand.u32 %v6800, 4294901760
    %6802 = vmatpush.msra.mxu0 %v6801
    %v6803 = vand.u32 %v6539, 4294901760
    %v6804 = vsub.f32 %v6539, %v6803
    %v6805 = vand.u32 %v6804, 4294901760
    %v6806 = vsub.f32 %v6804, %v6805
    %v6807 = vand.u32 %v6806, 4294901760
    %6808 = vmatpush.msra.mxu0 %v6807
    %v6809 = vand.u32 %v6538, 4294901760
    %v6810 = vsub.f32 %v6538, %v6809
    %v6811 = vand.u32 %v6810, 4294901760
    %v6812 = vsub.f32 %v6810, %v6811
    %v6813 = vand.u32 %v6812, 4294901760
    %6814 = vmatpush.msra.mxu0 %v6813
    %v6815 = vand.u32 %v5696, 4294901760
    %6816 = vmatmul.f32.gmra.mxu0 %v6815
    %v6817 = vpop.f32.mrf.mxu0
    %v6818 = vadd.f32 %v6597, %v6817
    %v6819 = vand.u32 %v5697, 4294901760
    %6820 = vmatmul.f32.gmra.mxu0 %v6819
    %v6821 = vpop.f32.mrf.mxu0
    %v6822 = vadd.f32 %v6605, %v6821
    %v6823 = vand.u32 %v5698, 4294901760
    %6824 = vmatmul.f32.gmra.mxu0 %v6823
    %v6825 = vpop.f32.mrf.mxu0
    %v6826 = vadd.f32 %v6613, %v6825
    %v6827 = vand.u32 %v5699, 4294901760
    %6828 = vmatmul.f32.gmra.mxu0 %v6827
    %v6829 = vpop.f32.mrf.mxu0
    %v6830 = vadd.f32 %v6621, %v6829
    %v6831 = vand.u32 %v5700, 4294901760
    %6832 = vmatmul.f32.gmra.mxu0 %v6831
    %v6833 = vpop.f32.mrf.mxu0
    %v6834 = vadd.f32 %v6629, %v6833
    %v6835 = vand.u32 %v5701, 4294901760
    %6836 = vmatmul.f32.gmra.mxu0 %v6835
    %v6837 = vpop.f32.mrf.mxu0
    %v6838 = vadd.f32 %v6637, %v6837
    %v6839 = vand.u32 %v5702, 4294901760
    %6840 = vmatmul.f32.gmra.mxu0 %v6839
    %v6841 = vpop.f32.mrf.mxu0
    %v6842 = vadd.f32 %v6645, %v6841
    %v6843 = vand.u32 %v5703, 4294901760
    %6844 = vmatmul.f32.gmra.mxu0 %v6843
    %v6845 = vpop.f32.mrf.mxu0
    %v6846 = vadd.f32 %v6653, %v6845
    %v6847 = vand.u32 %v5704, 4294901760
    %6848 = vmatmul.f32.gmra.mxu0 %v6847
    %v6849 = vpop.f32.mrf.mxu0
    %v6850 = vadd.f32 %v6661, %v6849
    %v6851 = vand.u32 %v5705, 4294901760
    %6852 = vmatmul.f32.gmra.mxu0 %v6851
    %v6853 = vpop.f32.mrf.mxu0
    %v6854 = vadd.f32 %v6669, %v6853
    %v6855 = vand.u32 %v5706, 4294901760
    %6856 = vmatmul.f32.gmra.mxu0 %v6855
    %v6857 = vpop.f32.mrf.mxu0
    %v6858 = vadd.f32 %v6677, %v6857
    %v6859 = vand.u32 %v5707, 4294901760
    %6860 = vmatmul.f32.gmra.mxu0 %v6859
    %v6861 = vpop.f32.mrf.mxu0
    %v6862 = vadd.f32 %v6685, %v6861
    %v6863 = vand.u32 %v5708, 4294901760
    %6864 = vmatmul.f32.gmra.mxu0 %v6863
    %v6865 = vpop.f32.mrf.mxu0
    %v6866 = vadd.f32 %v6693, %v6865
    %v6867 = vand.u32 %v5709, 4294901760
    %6868 = vmatmul.f32.gmra.mxu0 %v6867
    %v6869 = vpop.f32.mrf.mxu0
    %v6870 = vadd.f32 %v6701, %v6869
    %v6871 = vand.u32 %v5710, 4294901760
    %6872 = vmatmul.f32.gmra.mxu0 %v6871
    %v6873 = vpop.f32.mrf.mxu0
    %v6874 = vadd.f32 %v6709, %v6873
    %v6875 = vand.u32 %v5711, 4294901760
    %6876 = vmatmul.f32.gmra.mxu0 %v6875
    %v6877 = vpop.f32.mrf.mxu0
    %v6878 = vadd.f32 %v6717, %v6877
    %6879 = vdwg.mxu0
    %v6880 = vand.u32 %v6553, 4294901760
    %v6881 = vsub.f32 %v6553, %v6880
    %6882 = vmatpush.msra.mxu0 %v6881
    %v6883 = vand.u32 %v6552, 4294901760
    %v6884 = vsub.f32 %v6552, %v6883
    %6885 = vmatpush.msra.mxu0 %v6884
    %v6886 = vand.u32 %v6551, 4294901760
    %v6887 = vsub.f32 %v6551, %v6886
    %6888 = vmatpush.msra.mxu0 %v6887
    %v6889 = vand.u32 %v6550, 4294901760
    %v6890 = vsub.f32 %v6550, %v6889
    %6891 = vmatpush.msra.mxu0 %v6890
    %v6892 = vand.u32 %v6549, 4294901760
    %v6893 = vsub.f32 %v6549, %v6892
    %6894 = vmatpush.msra.mxu0 %v6893
    %v6895 = vand.u32 %v6548, 4294901760
    %v6896 = vsub.f32 %v6548, %v6895
    %6897 = vmatpush.msra.mxu0 %v6896
    %v6898 = vand.u32 %v6547, 4294901760
    %v6899 = vsub.f32 %v6547, %v6898
    %6900 = vmatpush.msra.mxu0 %v6899
    %v6901 = vand.u32 %v6546, 4294901760
    %v6902 = vsub.f32 %v6546, %v6901
    %6903 = vmatpush.msra.mxu0 %v6902
    %v6904 = vand.u32 %v6545, 4294901760
    %v6905 = vsub.f32 %v6545, %v6904
    %6906 = vmatpush.msra.mxu0 %v6905
    %v6907 = vand.u32 %v6544, 4294901760
    %v6908 = vsub.f32 %v6544, %v6907
    %6909 = vmatpush.msra.mxu0 %v6908
    %v6910 = vand.u32 %v6543, 4294901760
    %v6911 = vsub.f32 %v6543, %v6910
    %6912 = vmatpush.msra.mxu0 %v6911
    %v6913 = vand.u32 %v6542, 4294901760
    %v6914 = vsub.f32 %v6542, %v6913
    %6915 = vmatpush.msra.mxu0 %v6914
    %v6916 = vand.u32 %v6541, 4294901760
    %v6917 = vsub.f32 %v6541, %v6916
    %6918 = vmatpush.msra.mxu0 %v6917
    %v6919 = vand.u32 %v6540, 4294901760
    %v6920 = vsub.f32 %v6540, %v6919
    %6921 = vmatpush.msra.mxu0 %v6920
    %v6922 = vand.u32 %v6539, 4294901760
    %v6923 = vsub.f32 %v6539, %v6922
    %6924 = vmatpush.msra.mxu0 %v6923
    %v6925 = vand.u32 %v6538, 4294901760
    %v6926 = vsub.f32 %v6538, %v6925
    %6927 = vmatpush.msra.mxu0 %v6926
    %v6928 = vand.u32 %v5696, 4294901760
    %v6929 = vsub.f32 %v5696, %v6928
    %6930 = vmatmul.f32.gmra.mxu0 %v6929
    %v6931 = vpop.f32.mrf.mxu0
    %v6932 = vadd.f32 %v6818, %v6931
    %v6933 = vand.u32 %v5697, 4294901760
    %v6934 = vsub.f32 %v5697, %v6933
    %6935 = vmatmul.f32.gmra.mxu0 %v6934
    %v6936 = vpop.f32.mrf.mxu0
    %v6937 = vadd.f32 %v6822, %v6936
    %v6938 = vand.u32 %v5698, 4294901760
    %v6939 = vsub.f32 %v5698, %v6938
    %6940 = vmatmul.f32.gmra.mxu0 %v6939
    %v6941 = vpop.f32.mrf.mxu0
    %v6942 = vadd.f32 %v6826, %v6941
    %v6943 = vand.u32 %v5699, 4294901760
    %v6944 = vsub.f32 %v5699, %v6943
    %6945 = vmatmul.f32.gmra.mxu0 %v6944
    %v6946 = vpop.f32.mrf.mxu0
    %v6947 = vadd.f32 %v6830, %v6946
    %v6948 = vand.u32 %v5700, 4294901760
    %v6949 = vsub.f32 %v5700, %v6948
    %6950 = vmatmul.f32.gmra.mxu0 %v6949
    %v6951 = vpop.f32.mrf.mxu0
    %v6952 = vadd.f32 %v6834, %v6951
    %v6953 = vand.u32 %v5701, 4294901760
    %v6954 = vsub.f32 %v5701, %v6953
    %6955 = vmatmul.f32.gmra.mxu0 %v6954
    %v6956 = vpop.f32.mrf.mxu0
    %v6957 = vadd.f32 %v6838, %v6956
    %v6958 = vand.u32 %v5702, 4294901760
    %v6959 = vsub.f32 %v5702, %v6958
    %6960 = vmatmul.f32.gmra.mxu0 %v6959
    %v6961 = vpop.f32.mrf.mxu0
    %v6962 = vadd.f32 %v6842, %v6961
    %v6963 = vand.u32 %v5703, 4294901760
    %v6964 = vsub.f32 %v5703, %v6963
    %6965 = vmatmul.f32.gmra.mxu0 %v6964
    %v6966 = vpop.f32.mrf.mxu0
    %v6967 = vadd.f32 %v6846, %v6966
    %v6968 = vand.u32 %v5704, 4294901760
    %v6969 = vsub.f32 %v5704, %v6968
    %6970 = vmatmul.f32.gmra.mxu0 %v6969
    %v6971 = vpop.f32.mrf.mxu0
    %v6972 = vadd.f32 %v6850, %v6971
    %v6973 = vand.u32 %v5705, 4294901760
    %v6974 = vsub.f32 %v5705, %v6973
    %6975 = vmatmul.f32.gmra.mxu0 %v6974
    %v6976 = vpop.f32.mrf.mxu0
    %v6977 = vadd.f32 %v6854, %v6976
    %v6978 = vand.u32 %v5706, 4294901760
    %v6979 = vsub.f32 %v5706, %v6978
    %6980 = vmatmul.f32.gmra.mxu0 %v6979
    %v6981 = vpop.f32.mrf.mxu0
    %v6982 = vadd.f32 %v6858, %v6981
    %v6983 = vand.u32 %v5707, 4294901760
    %v6984 = vsub.f32 %v5707, %v6983
    %6985 = vmatmul.f32.gmra.mxu0 %v6984
    %v6986 = vpop.f32.mrf.mxu0
    %v6987 = vadd.f32 %v6862, %v6986
    %v6988 = vand.u32 %v5708, 4294901760
    %v6989 = vsub.f32 %v5708, %v6988
    %6990 = vmatmul.f32.gmra.mxu0 %v6989
    %v6991 = vpop.f32.mrf.mxu0
    %v6992 = vadd.f32 %v6866, %v6991
    %v6993 = vand.u32 %v5709, 4294901760
    %v6994 = vsub.f32 %v5709, %v6993
    %6995 = vmatmul.f32.gmra.mxu0 %v6994
    %v6996 = vpop.f32.mrf.mxu0
    %v6997 = vadd.f32 %v6870, %v6996
    %v6998 = vand.u32 %v5710, 4294901760
    %v6999 = vsub.f32 %v5710, %v6998
    %7000 = vmatmul.f32.gmra.mxu0 %v6999
    %v7001 = vpop.f32.mrf.mxu0
    %v7002 = vadd.f32 %v6874, %v7001
    %v7003 = vand.u32 %v5711, 4294901760
    %v7004 = vsub.f32 %v5711, %v7003
    %7005 = vmatmul.f32.gmra.mxu0 %v7004
    %v7006 = vpop.f32.mrf.mxu0
    %v7007 = vadd.f32 %v6878, %v7006
    %7008 = vdwg.mxu0
    %v7009 = vand.u32 %v6553, 4294901760
    %7010 = vmatpush.msra.mxu0 %v7009
    %v7011 = vand.u32 %v6552, 4294901760
    %7012 = vmatpush.msra.mxu0 %v7011
    %v7013 = vand.u32 %v6551, 4294901760
    %7014 = vmatpush.msra.mxu0 %v7013
    %v7015 = vand.u32 %v6550, 4294901760
    %7016 = vmatpush.msra.mxu0 %v7015
    %v7017 = vand.u32 %v6549, 4294901760
    %7018 = vmatpush.msra.mxu0 %v7017
    %v7019 = vand.u32 %v6548, 4294901760
    %7020 = vmatpush.msra.mxu0 %v7019
    %v7021 = vand.u32 %v6547, 4294901760
    %7022 = vmatpush.msra.mxu0 %v7021
    %v7023 = vand.u32 %v6546, 4294901760
    %7024 = vmatpush.msra.mxu0 %v7023
    %v7025 = vand.u32 %v6545, 4294901760
    %7026 = vmatpush.msra.mxu0 %v7025
    %v7027 = vand.u32 %v6544, 4294901760
    %7028 = vmatpush.msra.mxu0 %v7027
    %v7029 = vand.u32 %v6543, 4294901760
    %7030 = vmatpush.msra.mxu0 %v7029
    %v7031 = vand.u32 %v6542, 4294901760
    %7032 = vmatpush.msra.mxu0 %v7031
    %v7033 = vand.u32 %v6541, 4294901760
    %7034 = vmatpush.msra.mxu0 %v7033
    %v7035 = vand.u32 %v6540, 4294901760
    %7036 = vmatpush.msra.mxu0 %v7035
    %v7037 = vand.u32 %v6539, 4294901760
    %7038 = vmatpush.msra.mxu0 %v7037
    %v7039 = vand.u32 %v6538, 4294901760
    %7040 = vmatpush.msra.mxu0 %v7039
    %v7041 = vand.u32 %v5696, 4294901760
    %v7042 = vsub.f32 %v5696, %v7041
    %v7043 = vand.u32 %v7042, 4294901760
    %7044 = vmatmul.f32.gmra.mxu0 %v7043
    %v7045 = vpop.f32.mrf.mxu0
    %v7046 = vadd.f32 %v6932, %v7045
    %v7047 = vand.u32 %v5697, 4294901760
    %v7048 = vsub.f32 %v5697, %v7047
    %v7049 = vand.u32 %v7048, 4294901760
    %7050 = vmatmul.f32.gmra.mxu0 %v7049
    %v7051 = vpop.f32.mrf.mxu0
    %v7052 = vadd.f32 %v6937, %v7051
    %v7053 = vand.u32 %v5698, 4294901760
    %v7054 = vsub.f32 %v5698, %v7053
    %v7055 = vand.u32 %v7054, 4294901760
    %7056 = vmatmul.f32.gmra.mxu0 %v7055
    %v7057 = vpop.f32.mrf.mxu0
    %v7058 = vadd.f32 %v6942, %v7057
    %v7059 = vand.u32 %v5699, 4294901760
    %v7060 = vsub.f32 %v5699, %v7059
    %v7061 = vand.u32 %v7060, 4294901760
    %7062 = vmatmul.f32.gmra.mxu0 %v7061
    %v7063 = vpop.f32.mrf.mxu0
    %v7064 = vadd.f32 %v6947, %v7063
    %v7065 = vand.u32 %v5700, 4294901760
    %v7066 = vsub.f32 %v5700, %v7065
    %v7067 = vand.u32 %v7066, 4294901760
    %7068 = vmatmul.f32.gmra.mxu0 %v7067
    %v7069 = vpop.f32.mrf.mxu0
    %v7070 = vadd.f32 %v6952, %v7069
    %v7071 = vand.u32 %v5701, 4294901760
    %v7072 = vsub.f32 %v5701, %v7071
    %v7073 = vand.u32 %v7072, 4294901760
    %7074 = vmatmul.f32.gmra.mxu0 %v7073
    %v7075 = vpop.f32.mrf.mxu0
    %v7076 = vadd.f32 %v6957, %v7075
    %v7077 = vand.u32 %v5702, 4294901760
    %v7078 = vsub.f32 %v5702, %v7077
    %v7079 = vand.u32 %v7078, 4294901760
    %7080 = vmatmul.f32.gmra.mxu0 %v7079
    %v7081 = vpop.f32.mrf.mxu0
    %v7082 = vadd.f32 %v6962, %v7081
    %v7083 = vand.u32 %v5703, 4294901760
    %v7084 = vsub.f32 %v5703, %v7083
    %v7085 = vand.u32 %v7084, 4294901760
    %7086 = vmatmul.f32.gmra.mxu0 %v7085
    %v7087 = vpop.f32.mrf.mxu0
    %v7088 = vadd.f32 %v6967, %v7087
    %v7089 = vand.u32 %v5704, 4294901760
    %v7090 = vsub.f32 %v5704, %v7089
    %v7091 = vand.u32 %v7090, 4294901760
    %7092 = vmatmul.f32.gmra.mxu0 %v7091
    %v7093 = vpop.f32.mrf.mxu0
    %v7094 = vadd.f32 %v6972, %v7093
    %v7095 = vand.u32 %v5705, 4294901760
    %v7096 = vsub.f32 %v5705, %v7095
    %v7097 = vand.u32 %v7096, 4294901760
    %7098 = vmatmul.f32.gmra.mxu0 %v7097
    %v7099 = vpop.f32.mrf.mxu0
    %v7100 = vadd.f32 %v6977, %v7099
    %v7101 = vand.u32 %v5706, 4294901760
    %v7102 = vsub.f32 %v5706, %v7101
    %v7103 = vand.u32 %v7102, 4294901760
    %7104 = vmatmul.f32.gmra.mxu0 %v7103
    %v7105 = vpop.f32.mrf.mxu0
    %v7106 = vadd.f32 %v6982, %v7105
    %v7107 = vand.u32 %v5707, 4294901760
    %v7108 = vsub.f32 %v5707, %v7107
    %v7109 = vand.u32 %v7108, 4294901760
    %7110 = vmatmul.f32.gmra.mxu0 %v7109
    %v7111 = vpop.f32.mrf.mxu0
    %v7112 = vadd.f32 %v6987, %v7111
    %v7113 = vand.u32 %v5708, 4294901760
    %v7114 = vsub.f32 %v5708, %v7113
    %v7115 = vand.u32 %v7114, 4294901760
    %7116 = vmatmul.f32.gmra.mxu0 %v7115
    %v7117 = vpop.f32.mrf.mxu0
    %v7118 = vadd.f32 %v6992, %v7117
    %v7119 = vand.u32 %v5709, 4294901760
    %v7120 = vsub.f32 %v5709, %v7119
    %v7121 = vand.u32 %v7120, 4294901760
    %7122 = vmatmul.f32.gmra.mxu0 %v7121
    %v7123 = vpop.f32.mrf.mxu0
    %v7124 = vadd.f32 %v6997, %v7123
    %v7125 = vand.u32 %v5710, 4294901760
    %v7126 = vsub.f32 %v5710, %v7125
    %v7127 = vand.u32 %v7126, 4294901760
    %7128 = vmatmul.f32.gmra.mxu0 %v7127
    %v7129 = vpop.f32.mrf.mxu0
    %v7130 = vadd.f32 %v7002, %v7129
    %v7131 = vand.u32 %v5711, 4294901760
    %v7132 = vsub.f32 %v5711, %v7131
    %v7133 = vand.u32 %v7132, 4294901760
    %7134 = vmatmul.f32.gmra.mxu0 %v7133
    %v7135 = vpop.f32.mrf.mxu0
    %v7136 = vadd.f32 %v7007, %v7135
    %7137 = vdwg.mxu0
    %v7138 = vand.u32 %v6553, 4294901760
    %v7139 = vsub.f32 %v6553, %v7138
    %v7140 = vand.u32 %v7139, 4294901760
    %7141 = vmatpush.msra.mxu0 %v7140
    %v7142 = vand.u32 %v6552, 4294901760
    %v7143 = vsub.f32 %v6552, %v7142
    %v7144 = vand.u32 %v7143, 4294901760
    %7145 = vmatpush.msra.mxu0 %v7144
    %v7146 = vand.u32 %v6551, 4294901760
    %v7147 = vsub.f32 %v6551, %v7146
    %v7148 = vand.u32 %v7147, 4294901760
    %7149 = vmatpush.msra.mxu0 %v7148
    %v7150 = vand.u32 %v6550, 4294901760
    %v7151 = vsub.f32 %v6550, %v7150
    %v7152 = vand.u32 %v7151, 4294901760
    %7153 = vmatpush.msra.mxu0 %v7152
    %v7154 = vand.u32 %v6549, 4294901760
    %v7155 = vsub.f32 %v6549, %v7154
    %v7156 = vand.u32 %v7155, 4294901760
    %7157 = vmatpush.msra.mxu0 %v7156
    %v7158 = vand.u32 %v6548, 4294901760
    %v7159 = vsub.f32 %v6548, %v7158
    %v7160 = vand.u32 %v7159, 4294901760
    %7161 = vmatpush.msra.mxu0 %v7160
    %v7162 = vand.u32 %v6547, 4294901760
    %v7163 = vsub.f32 %v6547, %v7162
    %v7164 = vand.u32 %v7163, 4294901760
    %7165 = vmatpush.msra.mxu0 %v7164
    %v7166 = vand.u32 %v6546, 4294901760
    %v7167 = vsub.f32 %v6546, %v7166
    %v7168 = vand.u32 %v7167, 4294901760
    %7169 = vmatpush.msra.mxu0 %v7168
    %v7170 = vand.u32 %v6545, 4294901760
    %v7171 = vsub.f32 %v6545, %v7170
    %v7172 = vand.u32 %v7171, 4294901760
    %7173 = vmatpush.msra.mxu0 %v7172
    %v7174 = vand.u32 %v6544, 4294901760
    %v7175 = vsub.f32 %v6544, %v7174
    %v7176 = vand.u32 %v7175, 4294901760
    %7177 = vmatpush.msra.mxu0 %v7176
    %v7178 = vand.u32 %v6543, 4294901760
    %v7179 = vsub.f32 %v6543, %v7178
    %v7180 = vand.u32 %v7179, 4294901760
    %7181 = vmatpush.msra.mxu0 %v7180
    %v7182 = vand.u32 %v6542, 4294901760
    %v7183 = vsub.f32 %v6542, %v7182
    %v7184 = vand.u32 %v7183, 4294901760
    %7185 = vmatpush.msra.mxu0 %v7184
    %v7186 = vand.u32 %v6541, 4294901760
    %v7187 = vsub.f32 %v6541, %v7186
    %v7188 = vand.u32 %v7187, 4294901760
    %7189 = vmatpush.msra.mxu0 %v7188
    %v7190 = vand.u32 %v6540, 4294901760
    %v7191 = vsub.f32 %v6540, %v7190
    %v7192 = vand.u32 %v7191, 4294901760
    %7193 = vmatpush.msra.mxu0 %v7192
    %v7194 = vand.u32 %v6539, 4294901760
    %v7195 = vsub.f32 %v6539, %v7194
    %v7196 = vand.u32 %v7195, 4294901760
    %7197 = vmatpush.msra.mxu0 %v7196
    %v7198 = vand.u32 %v6538, 4294901760
    %v7199 = vsub.f32 %v6538, %v7198
    %v7200 = vand.u32 %v7199, 4294901760
    %7201 = vmatpush.msra.mxu0 %v7200
    %v7202 = vand.u32 %v5696, 4294901760
    %7203 = vmatmul.f32.gmra.mxu0 %v7202
    %v7204 = vpop.f32.mrf.mxu0
    %v7205 = vadd.f32 %v7046, %v7204
    %v7206 = vand.u32 %v5697, 4294901760
    %7207 = vmatmul.f32.gmra.mxu0 %v7206
    %v7208 = vpop.f32.mrf.mxu0
    %v7209 = vadd.f32 %v7052, %v7208
    %v7210 = vand.u32 %v5698, 4294901760
    %7211 = vmatmul.f32.gmra.mxu0 %v7210
    %v7212 = vpop.f32.mrf.mxu0
    %v7213 = vadd.f32 %v7058, %v7212
    %v7214 = vand.u32 %v5699, 4294901760
    %7215 = vmatmul.f32.gmra.mxu0 %v7214
    %v7216 = vpop.f32.mrf.mxu0
    %v7217 = vadd.f32 %v7064, %v7216
    %v7218 = vand.u32 %v5700, 4294901760
    %7219 = vmatmul.f32.gmra.mxu0 %v7218
    %v7220 = vpop.f32.mrf.mxu0
    %v7221 = vadd.f32 %v7070, %v7220
    %v7222 = vand.u32 %v5701, 4294901760
    %7223 = vmatmul.f32.gmra.mxu0 %v7222
    %v7224 = vpop.f32.mrf.mxu0
    %v7225 = vadd.f32 %v7076, %v7224
    %v7226 = vand.u32 %v5702, 4294901760
    %7227 = vmatmul.f32.gmra.mxu0 %v7226
    %v7228 = vpop.f32.mrf.mxu0
    %v7229 = vadd.f32 %v7082, %v7228
    %v7230 = vand.u32 %v5703, 4294901760
    %7231 = vmatmul.f32.gmra.mxu0 %v7230
    %v7232 = vpop.f32.mrf.mxu0
    %v7233 = vadd.f32 %v7088, %v7232
    %v7234 = vand.u32 %v5704, 4294901760
    %7235 = vmatmul.f32.gmra.mxu0 %v7234
    %v7236 = vpop.f32.mrf.mxu0
    %v7237 = vadd.f32 %v7094, %v7236
    %v7238 = vand.u32 %v5705, 4294901760
    %7239 = vmatmul.f32.gmra.mxu0 %v7238
    %v7240 = vpop.f32.mrf.mxu0
    %v7241 = vadd.f32 %v7100, %v7240
    %v7242 = vand.u32 %v5706, 4294901760
    %7243 = vmatmul.f32.gmra.mxu0 %v7242
    %v7244 = vpop.f32.mrf.mxu0
    %v7245 = vadd.f32 %v7106, %v7244
    %v7246 = vand.u32 %v5707, 4294901760
    %7247 = vmatmul.f32.gmra.mxu0 %v7246
    %v7248 = vpop.f32.mrf.mxu0
    %v7249 = vadd.f32 %v7112, %v7248
    %v7250 = vand.u32 %v5708, 4294901760
    %7251 = vmatmul.f32.gmra.mxu0 %v7250
    %v7252 = vpop.f32.mrf.mxu0
    %v7253 = vadd.f32 %v7118, %v7252
    %v7254 = vand.u32 %v5709, 4294901760
    %7255 = vmatmul.f32.gmra.mxu0 %v7254
    %v7256 = vpop.f32.mrf.mxu0
    %v7257 = vadd.f32 %v7124, %v7256
    %v7258 = vand.u32 %v5710, 4294901760
    %7259 = vmatmul.f32.gmra.mxu0 %v7258
    %v7260 = vpop.f32.mrf.mxu0
    %v7261 = vadd.f32 %v7130, %v7260
    %v7262 = vand.u32 %v5711, 4294901760
    %7263 = vmatmul.f32.gmra.mxu0 %v7262
    %v7264 = vpop.f32.mrf.mxu0
    %v7265 = vadd.f32 %v7136, %v7264
    %7266 = vdwg.mxu0
    %v7267 = vand.u32 %v6553, 4294901760
    %7268 = vmatpush.msra.mxu0 %v7267
    %v7269 = vand.u32 %v6552, 4294901760
    %7270 = vmatpush.msra.mxu0 %v7269
    %v7271 = vand.u32 %v6551, 4294901760
    %7272 = vmatpush.msra.mxu0 %v7271
    %v7273 = vand.u32 %v6550, 4294901760
    %7274 = vmatpush.msra.mxu0 %v7273
    %v7275 = vand.u32 %v6549, 4294901760
    %7276 = vmatpush.msra.mxu0 %v7275
    %v7277 = vand.u32 %v6548, 4294901760
    %7278 = vmatpush.msra.mxu0 %v7277
    %v7279 = vand.u32 %v6547, 4294901760
    %7280 = vmatpush.msra.mxu0 %v7279
    %v7281 = vand.u32 %v6546, 4294901760
    %7282 = vmatpush.msra.mxu0 %v7281
    %v7283 = vand.u32 %v6545, 4294901760
    %7284 = vmatpush.msra.mxu0 %v7283
    %v7285 = vand.u32 %v6544, 4294901760
    %7286 = vmatpush.msra.mxu0 %v7285
    %v7287 = vand.u32 %v6543, 4294901760
    %7288 = vmatpush.msra.mxu0 %v7287
    %v7289 = vand.u32 %v6542, 4294901760
    %7290 = vmatpush.msra.mxu0 %v7289
    %v7291 = vand.u32 %v6541, 4294901760
    %7292 = vmatpush.msra.mxu0 %v7291
    %v7293 = vand.u32 %v6540, 4294901760
    %7294 = vmatpush.msra.mxu0 %v7293
    %v7295 = vand.u32 %v6539, 4294901760
    %7296 = vmatpush.msra.mxu0 %v7295
    %v7297 = vand.u32 %v6538, 4294901760
    %7298 = vmatpush.msra.mxu0 %v7297
    %v7299 = vand.u32 %v5696, 4294901760
    %7300 = vmatmul.f32.gmra.mxu0 %v7299
    %v7301 = vpop.f32.mrf.mxu0
    %v7302 = vadd.f32 %v7205, %v7301
    %v7303 = vand.u32 %v5697, 4294901760
    %7304 = vmatmul.f32.gmra.mxu0 %v7303
    %v7305 = vpop.f32.mrf.mxu0
    %v7306 = vadd.f32 %v7209, %v7305
    %v7307 = vand.u32 %v5698, 4294901760
    %7308 = vmatmul.f32.gmra.mxu0 %v7307
    %v7309 = vpop.f32.mrf.mxu0
    %v7310 = vadd.f32 %v7213, %v7309
    %v7311 = vand.u32 %v5699, 4294901760
    %7312 = vmatmul.f32.gmra.mxu0 %v7311
    %v7313 = vpop.f32.mrf.mxu0
    %v7314 = vadd.f32 %v7217, %v7313
    %v7315 = vand.u32 %v5700, 4294901760
    %7316 = vmatmul.f32.gmra.mxu0 %v7315
    %v7317 = vpop.f32.mrf.mxu0
    %v7318 = vadd.f32 %v7221, %v7317
    %v7319 = vand.u32 %v5701, 4294901760
    %7320 = vmatmul.f32.gmra.mxu0 %v7319
    %v7321 = vpop.f32.mrf.mxu0
    %v7322 = vadd.f32 %v7225, %v7321
    %v7323 = vand.u32 %v5702, 4294901760
    %7324 = vmatmul.f32.gmra.mxu0 %v7323
    %v7325 = vpop.f32.mrf.mxu0
    %v7326 = vadd.f32 %v7229, %v7325
    %v7327 = vand.u32 %v5703, 4294901760
    %7328 = vmatmul.f32.gmra.mxu0 %v7327
    %v7329 = vpop.f32.mrf.mxu0
    %v7330 = vadd.f32 %v7233, %v7329
    %v7331 = vand.u32 %v5704, 4294901760
    %7332 = vmatmul.f32.gmra.mxu0 %v7331
    %v7333 = vpop.f32.mrf.mxu0
    %v7334 = vadd.f32 %v7237, %v7333
    %v7335 = vand.u32 %v5705, 4294901760
    %7336 = vmatmul.f32.gmra.mxu0 %v7335
    %v7337 = vpop.f32.mrf.mxu0
    %v7338 = vadd.f32 %v7241, %v7337
    %v7339 = vand.u32 %v5706, 4294901760
    %7340 = vmatmul.f32.gmra.mxu0 %v7339
    %v7341 = vpop.f32.mrf.mxu0
    %v7342 = vadd.f32 %v7245, %v7341
    %v7343 = vand.u32 %v5707, 4294901760
    %7344 = vmatmul.f32.gmra.mxu0 %v7343
    %v7345 = vpop.f32.mrf.mxu0
    %v7346 = vadd.f32 %v7249, %v7345
    %v7347 = vand.u32 %v5708, 4294901760
    %7348 = vmatmul.f32.gmra.mxu0 %v7347
    %v7349 = vpop.f32.mrf.mxu0
    %v7350 = vadd.f32 %v7253, %v7349
    %v7351 = vand.u32 %v5709, 4294901760
    %7352 = vmatmul.f32.gmra.mxu0 %v7351
    %v7353 = vpop.f32.mrf.mxu0
    %v7354 = vadd.f32 %v7257, %v7353
    %v7355 = vand.u32 %v5710, 4294901760
    %7356 = vmatmul.f32.gmra.mxu0 %v7355
    %v7357 = vpop.f32.mrf.mxu0
    %v7358 = vadd.f32 %v7261, %v7357
    %v7359 = vand.u32 %v5711, 4294901760
    %7360 = vmatmul.f32.gmra.mxu0 %v7359
    %v7361 = vpop.f32.mrf.mxu0
    %v7362 = vadd.f32 %v7265, %v7361
    %7363 = vdwg.mxu0
    %v7364 = vmul.f32 %v7302, 1.442695
    %v7365 = vpow.pop %v7364
    %v7366 = vmul.f32 %v7306, 1.442695
    %v7367 = vpow.pop %v7366
    %v7368 = vmul.f32 %v7310, 1.442695
    %v7369 = vpow.pop %v7368
    %v7370 = vmul.f32 %v7314, 1.442695
    %v7371 = vpow.pop %v7370
    %v7372 = vmul.f32 %v7318, 1.442695
    %v7373 = vpow.pop %v7372
    %v7374 = vmul.f32 %v7322, 1.442695
    %v7375 = vpow.pop %v7374
    %v7376 = vmul.f32 %v7326, 1.442695
    %v7377 = vpow.pop %v7376
    %v7378 = vmul.f32 %v7330, 1.442695
    %v7379 = vpow.pop %v7378
    %v7380 = vmul.f32 %v7334, 1.442695
    %v7381 = vpow.pop %v7380
    %v7382 = vmul.f32 %v7338, 1.442695
    %v7383 = vpow.pop %v7382
    %v7384 = vmul.f32 %v7342, 1.442695
    %v7385 = vpow.pop %v7384
    %v7386 = vmul.f32 %v7346, 1.442695
    %v7387 = vpow.pop %v7386
    %v7388 = vmul.f32 %v7350, 1.442695
    %v7389 = vpow.pop %v7388
    %v7390 = vmul.f32 %v7354, 1.442695
    %v7391 = vpow.pop %v7390
    %v7392 = vmul.f32 %v7358, 1.442695
    %v7393 = vpow.pop %v7392
    %v7394 = vmul.f32 %v7362, 1.442695
    %v7395 = vpow.pop %v7394
    %v7396 = vmul.f32 %v238, %v7365
    %v7397 = vmul.f32 %v239, %v7367
    %v7398 = vmul.f32 %v240, %v7369
    %v7399 = vmul.f32 %v241, %v7371
    %v7400 = vmul.f32 %v242, %v7373
    %v7401 = vmul.f32 %v243, %v7375
    %v7402 = vmul.f32 %v244, %v7377
    %v7403 = vmul.f32 %v245, %v7379
    %v7404 = vmul.f32 %v246, %v7381
    %v7405 = vmul.f32 %v247, %v7383
    %v7406 = vmul.f32 %v248, %v7385
    %v7407 = vmul.f32 %v249, %v7387
    %v7408 = vmul.f32 %v250, %v7389
    %v7409 = vmul.f32 %v251, %v7391
    %v7410 = vmul.f32 %v252, %v7393
    %v7411 = vmul.f32 %v253, %v7395
    %v7412 = vadd.f32 %v6476, %v7396
    %v7413 = vadd.f32 %v6480, %v7397
    %v7414 = vadd.f32 %v6484, %v7398
    %v7415 = vadd.f32 %v6488, %v7399
    %v7416 = vadd.f32 %v6492, %v7400
    %v7417 = vadd.f32 %v6496, %v7401
    %v7418 = vadd.f32 %v6500, %v7402
    %v7419 = vadd.f32 %v6504, %v7403
    %v7420 = vadd.f32 %v6508, %v7404
    %v7421 = vadd.f32 %v6512, %v7405
    %v7422 = vadd.f32 %v6516, %v7406
    %v7423 = vadd.f32 %v6520, %v7407
    %v7424 = vadd.f32 %v6524, %v7408
    %v7425 = vadd.f32 %v6528, %v7409
    %v7426 = vadd.f32 %v6532, %v7410
    %v7427 = vadd.f32 %v6536, %v7411
    %s7428 = sld [smem:[#allocation3]]
    %s7429 = sld [smem:[#allocation3 + $0x1]]
    %s7430 = sld [smem:[#allocation3 + $0x2]]
    %v7431 = vld [vmem:[%s14] sm:$0x1]
    %v7433 = vperm.slane %v7431, 0
    %v7435 = vmul.f32 %v7412, %v7433
    %v7436 = vmul.f32 %v7413, %v7433
    %v7437 = vmul.f32 %v7414, %v7433
    %v7438 = vmul.f32 %v7415, %v7433
    %v7439 = vmul.f32 %v7416, %v7433
    %v7440 = vmul.f32 %v7417, %v7433
    %v7441 = vmul.f32 %v7418, %v7433
    %v7442 = vmul.f32 %v7419, %v7433
    %v7443 = vmul.f32 %v7420, %v7433
    %v7444 = vmul.f32 %v7421, %v7433
    %v7445 = vmul.f32 %v7422, %v7433
    %v7446 = vmul.f32 %v7423, %v7433
    %v7447 = vmul.f32 %v7424, %v7433
    %v7448 = vmul.f32 %v7425, %v7433
    %v7449 = vmul.f32 %v7426, %v7433
    %v7450 = vmul.f32 %v7427, %v7433
    %v7451 = vstv %s7430
    %v7452 = vand.u32 %v7427, 4294901760
    %7453 = vmatpush.xpose.msra.mxu0 %v7452
    %v7454 = vand.u32 %v7426, 4294901760
    %7455 = vmatpush.xpose.msra.mxu0 %v7454
    %v7456 = vand.u32 %v7425, 4294901760
    %7457 = vmatpush.xpose.msra.mxu0 %v7456
    %v7458 = vand.u32 %v7424, 4294901760
    %7459 = vmatpush.xpose.msra.mxu0 %v7458
    %v7460 = vand.u32 %v7423, 4294901760
    %7461 = vmatpush.xpose.msra.mxu0 %v7460
    %v7462 = vand.u32 %v7422, 4294901760
    %7463 = vmatpush.xpose.msra.mxu0 %v7462
    %v7464 = vand.u32 %v7421, 4294901760
    %7465 = vmatpush.xpose.msra.mxu0 %v7464
    %v7466 = vand.u32 %v7420, 4294901760
    %7467 = vmatpush.xpose.msra.mxu0 %v7466
    %v7468 = vand.u32 %v7419, 4294901760
    %7469 = vmatpush.xpose.msra.mxu0 %v7468
    %v7470 = vand.u32 %v7418, 4294901760
    %7471 = vmatpush.xpose.msra.mxu0 %v7470
    %v7472 = vand.u32 %v7417, 4294901760
    %7473 = vmatpush.xpose.msra.mxu0 %v7472
    %v7474 = vand.u32 %v7416, 4294901760
    %7475 = vmatpush.xpose.msra.mxu0 %v7474
    %v7476 = vand.u32 %v7415, 4294901760
    %7477 = vmatpush.xpose.msra.mxu0 %v7476
    %v7478 = vand.u32 %v7414, 4294901760
    %7479 = vmatpush.xpose.msra.mxu0 %v7478
    %v7480 = vand.u32 %v7413, 4294901760
    %7481 = vmatpush.xpose.msra.mxu0 %v7480
    %v7482 = vand.u32 %v7412, 4294901760
    %7483 = vmatpush.xpose.msra.mxu0 %v7482
    %v7484 = vand.u32 %v7435, 4294901760
    %v7485 = vsub.f32 %v7435, %v7484
    %v7486 = vand.u32 %v7485, 4294901760
    %v7487 = vsub.f32 %v7485, %v7486
    %v7488 = vand.u32 %v7487, 4294901760
    %7489 = vmatmul.f32.gmra.mxu0 %v7488
    %v7490 = vpop.f32.mrf.mxu0
    %v7491 = vadd.f32 %v7451, %v7490
    %v7492 = vand.u32 %v7436, 4294901760
    %v7493 = vsub.f32 %v7436, %v7492
    %v7494 = vand.u32 %v7493, 4294901760
    %v7495 = vsub.f32 %v7493, %v7494
    %v7496 = vand.u32 %v7495, 4294901760
    %7497 = vmatmul.f32.gmra.mxu0 %v7496
    %v7498 = vpop.f32.mrf.mxu0
    %v7499 = vadd.f32 %v7451, %v7498
    %v7500 = vand.u32 %v7437, 4294901760
    %v7501 = vsub.f32 %v7437, %v7500
    %v7502 = vand.u32 %v7501, 4294901760
    %v7503 = vsub.f32 %v7501, %v7502
    %v7504 = vand.u32 %v7503, 4294901760
    %7505 = vmatmul.f32.gmra.mxu0 %v7504
    %v7506 = vpop.f32.mrf.mxu0
    %v7507 = vadd.f32 %v7451, %v7506
    %v7508 = vand.u32 %v7438, 4294901760
    %v7509 = vsub.f32 %v7438, %v7508
    %v7510 = vand.u32 %v7509, 4294901760
    %v7511 = vsub.f32 %v7509, %v7510
    %v7512 = vand.u32 %v7511, 4294901760
    %7513 = vmatmul.f32.gmra.mxu0 %v7512
    %v7514 = vpop.f32.mrf.mxu0
    %v7515 = vadd.f32 %v7451, %v7514
    %v7516 = vand.u32 %v7439, 4294901760
    %v7517 = vsub.f32 %v7439, %v7516
    %v7518 = vand.u32 %v7517, 4294901760
    %v7519 = vsub.f32 %v7517, %v7518
    %v7520 = vand.u32 %v7519, 4294901760
    %7521 = vmatmul.f32.gmra.mxu0 %v7520
    %v7522 = vpop.f32.mrf.mxu0
    %v7523 = vadd.f32 %v7451, %v7522
    %v7524 = vand.u32 %v7440, 4294901760
    %v7525 = vsub.f32 %v7440, %v7524
    %v7526 = vand.u32 %v7525, 4294901760
    %v7527 = vsub.f32 %v7525, %v7526
    %v7528 = vand.u32 %v7527, 4294901760
    %7529 = vmatmul.f32.gmra.mxu0 %v7528
    %v7530 = vpop.f32.mrf.mxu0
    %v7531 = vadd.f32 %v7451, %v7530
    %v7532 = vand.u32 %v7441, 4294901760
    %v7533 = vsub.f32 %v7441, %v7532
    %v7534 = vand.u32 %v7533, 4294901760
    %v7535 = vsub.f32 %v7533, %v7534
    %v7536 = vand.u32 %v7535, 4294901760
    %7537 = vmatmul.f32.gmra.mxu0 %v7536
    %v7538 = vpop.f32.mrf.mxu0
    %v7539 = vadd.f32 %v7451, %v7538
    %v7540 = vand.u32 %v7442, 4294901760
    %v7541 = vsub.f32 %v7442, %v7540
    %v7542 = vand.u32 %v7541, 4294901760
    %v7543 = vsub.f32 %v7541, %v7542
    %v7544 = vand.u32 %v7543, 4294901760
    %7545 = vmatmul.f32.gmra.mxu0 %v7544
    %v7546 = vpop.f32.mrf.mxu0
    %v7547 = vadd.f32 %v7451, %v7546
    %v7548 = vand.u32 %v7443, 4294901760
    %v7549 = vsub.f32 %v7443, %v7548
    %v7550 = vand.u32 %v7549, 4294901760
    %v7551 = vsub.f32 %v7549, %v7550
    %v7552 = vand.u32 %v7551, 4294901760
    %7553 = vmatmul.f32.gmra.mxu0 %v7552
    %v7554 = vpop.f32.mrf.mxu0
    %v7555 = vadd.f32 %v7451, %v7554
    %v7556 = vand.u32 %v7444, 4294901760
    %v7557 = vsub.f32 %v7444, %v7556
    %v7558 = vand.u32 %v7557, 4294901760
    %v7559 = vsub.f32 %v7557, %v7558
    %v7560 = vand.u32 %v7559, 4294901760
    %7561 = vmatmul.f32.gmra.mxu0 %v7560
    %v7562 = vpop.f32.mrf.mxu0
    %v7563 = vadd.f32 %v7451, %v7562
    %v7564 = vand.u32 %v7445, 4294901760
    %v7565 = vsub.f32 %v7445, %v7564
    %v7566 = vand.u32 %v7565, 4294901760
    %v7567 = vsub.f32 %v7565, %v7566
    %v7568 = vand.u32 %v7567, 4294901760
    %7569 = vmatmul.f32.gmra.mxu0 %v7568
    %v7570 = vpop.f32.mrf.mxu0
    %v7571 = vadd.f32 %v7451, %v7570
    %v7572 = vand.u32 %v7446, 4294901760
    %v7573 = vsub.f32 %v7446, %v7572
    %v7574 = vand.u32 %v7573, 4294901760
    %v7575 = vsub.f32 %v7573, %v7574
    %v7576 = vand.u32 %v7575, 4294901760
    %7577 = vmatmul.f32.gmra.mxu0 %v7576
    %v7578 = vpop.f32.mrf.mxu0
    %v7579 = vadd.f32 %v7451, %v7578
    %v7580 = vand.u32 %v7447, 4294901760
    %v7581 = vsub.f32 %v7447, %v7580
    %v7582 = vand.u32 %v7581, 4294901760
    %v7583 = vsub.f32 %v7581, %v7582
    %v7584 = vand.u32 %v7583, 4294901760
    %7585 = vmatmul.f32.gmra.mxu0 %v7584
    %v7586 = vpop.f32.mrf.mxu0
    %v7587 = vadd.f32 %v7451, %v7586
    %v7588 = vand.u32 %v7448, 4294901760
    %v7589 = vsub.f32 %v7448, %v7588
    %v7590 = vand.u32 %v7589, 4294901760
    %v7591 = vsub.f32 %v7589, %v7590
    %v7592 = vand.u32 %v7591, 4294901760
    %7593 = vmatmul.f32.gmra.mxu0 %v7592
    %v7594 = vpop.f32.mrf.mxu0
    %v7595 = vadd.f32 %v7451, %v7594
    %v7596 = vand.u32 %v7449, 4294901760
    %v7597 = vsub.f32 %v7449, %v7596
    %v7598 = vand.u32 %v7597, 4294901760
    %v7599 = vsub.f32 %v7597, %v7598
    %v7600 = vand.u32 %v7599, 4294901760
    %7601 = vmatmul.f32.gmra.mxu0 %v7600
    %v7602 = vpop.f32.mrf.mxu0
    %v7603 = vadd.f32 %v7451, %v7602
    %v7604 = vand.u32 %v7450, 4294901760
    %v7605 = vsub.f32 %v7450, %v7604
    %v7606 = vand.u32 %v7605, 4294901760
    %v7607 = vsub.f32 %v7605, %v7606
    %v7608 = vand.u32 %v7607, 4294901760
    %7609 = vmatmul.f32.gmra.mxu0 %v7608
    %v7610 = vpop.f32.mrf.mxu0
    %v7611 = vadd.f32 %v7451, %v7610
    %7612 = vdwg.mxu0
    %v7613 = vand.u32 %v7427, 4294901760
    %v7614 = vsub.f32 %v7427, %v7613
    %v7615 = vand.u32 %v7614, 4294901760
    %v7616 = vsub.f32 %v7614, %v7615
    %v7617 = vand.u32 %v7616, 4294901760
    %7618 = vmatpush.xpose.msra.mxu0 %v7617
    %v7619 = vand.u32 %v7426, 4294901760
    %v7620 = vsub.f32 %v7426, %v7619
    %v7621 = vand.u32 %v7620, 4294901760
    %v7622 = vsub.f32 %v7620, %v7621
    %v7623 = vand.u32 %v7622, 4294901760
    %7624 = vmatpush.xpose.msra.mxu0 %v7623
    %v7625 = vand.u32 %v7425, 4294901760
    %v7626 = vsub.f32 %v7425, %v7625
    %v7627 = vand.u32 %v7626, 4294901760
    %v7628 = vsub.f32 %v7626, %v7627
    %v7629 = vand.u32 %v7628, 4294901760
    %7630 = vmatpush.xpose.msra.mxu0 %v7629
    %v7631 = vand.u32 %v7424, 4294901760
    %v7632 = vsub.f32 %v7424, %v7631
    %v7633 = vand.u32 %v7632, 4294901760
    %v7634 = vsub.f32 %v7632, %v7633
    %v7635 = vand.u32 %v7634, 4294901760
    %7636 = vmatpush.xpose.msra.mxu0 %v7635
    %v7637 = vand.u32 %v7423, 4294901760
    %v7638 = vsub.f32 %v7423, %v7637
    %v7639 = vand.u32 %v7638, 4294901760
    %v7640 = vsub.f32 %v7638, %v7639
    %v7641 = vand.u32 %v7640, 4294901760
    %7642 = vmatpush.xpose.msra.mxu0 %v7641
    %v7643 = vand.u32 %v7422, 4294901760
    %v7644 = vsub.f32 %v7422, %v7643
    %v7645 = vand.u32 %v7644, 4294901760
    %v7646 = vsub.f32 %v7644, %v7645
    %v7647 = vand.u32 %v7646, 4294901760
    %7648 = vmatpush.xpose.msra.mxu0 %v7647
    %v7649 = vand.u32 %v7421, 4294901760
    %v7650 = vsub.f32 %v7421, %v7649
    %v7651 = vand.u32 %v7650, 4294901760
    %v7652 = vsub.f32 %v7650, %v7651
    %v7653 = vand.u32 %v7652, 4294901760
    %7654 = vmatpush.xpose.msra.mxu0 %v7653
    %v7655 = vand.u32 %v7420, 4294901760
    %v7656 = vsub.f32 %v7420, %v7655
    %v7657 = vand.u32 %v7656, 4294901760
    %v7658 = vsub.f32 %v7656, %v7657
    %v7659 = vand.u32 %v7658, 4294901760
    %7660 = vmatpush.xpose.msra.mxu0 %v7659
    %v7661 = vand.u32 %v7419, 4294901760
    %v7662 = vsub.f32 %v7419, %v7661
    %v7663 = vand.u32 %v7662, 4294901760
    %v7664 = vsub.f32 %v7662, %v7663
    %v7665 = vand.u32 %v7664, 4294901760
    %7666 = vmatpush.xpose.msra.mxu0 %v7665
    %v7667 = vand.u32 %v7418, 4294901760
    %v7668 = vsub.f32 %v7418, %v7667
    %v7669 = vand.u32 %v7668, 4294901760
    %v7670 = vsub.f32 %v7668, %v7669
    %v7671 = vand.u32 %v7670, 4294901760
    %7672 = vmatpush.xpose.msra.mxu0 %v7671
    %v7673 = vand.u32 %v7417, 4294901760
    %v7674 = vsub.f32 %v7417, %v7673
    %v7675 = vand.u32 %v7674, 4294901760
    %v7676 = vsub.f32 %v7674, %v7675
    %v7677 = vand.u32 %v7676, 4294901760
    %7678 = vmatpush.xpose.msra.mxu0 %v7677
    %v7679 = vand.u32 %v7416, 4294901760
    %v7680 = vsub.f32 %v7416, %v7679
    %v7681 = vand.u32 %v7680, 4294901760
    %v7682 = vsub.f32 %v7680, %v7681
    %v7683 = vand.u32 %v7682, 4294901760
    %7684 = vmatpush.xpose.msra.mxu0 %v7683
    %v7685 = vand.u32 %v7415, 4294901760
    %v7686 = vsub.f32 %v7415, %v7685
    %v7687 = vand.u32 %v7686, 4294901760
    %v7688 = vsub.f32 %v7686, %v7687
    %v7689 = vand.u32 %v7688, 4294901760
    %7690 = vmatpush.xpose.msra.mxu0 %v7689
    %v7691 = vand.u32 %v7414, 4294901760
    %v7692 = vsub.f32 %v7414, %v7691
    %v7693 = vand.u32 %v7692, 4294901760
    %v7694 = vsub.f32 %v7692, %v7693
    %v7695 = vand.u32 %v7694, 4294901760
    %7696 = vmatpush.xpose.msra.mxu0 %v7695
    %v7697 = vand.u32 %v7413, 4294901760
    %v7698 = vsub.f32 %v7413, %v7697
    %v7699 = vand.u32 %v7698, 4294901760
    %v7700 = vsub.f32 %v7698, %v7699
    %v7701 = vand.u32 %v7700, 4294901760
    %7702 = vmatpush.xpose.msra.mxu0 %v7701
    %v7703 = vand.u32 %v7412, 4294901760
    %v7704 = vsub.f32 %v7412, %v7703
    %v7705 = vand.u32 %v7704, 4294901760
    %v7706 = vsub.f32 %v7704, %v7705
    %v7707 = vand.u32 %v7706, 4294901760
    %7708 = vmatpush.xpose.msra.mxu0 %v7707
    %v7709 = vand.u32 %v7435, 4294901760
    %7710 = vmatmul.f32.gmra.mxu0 %v7709
    %v7711 = vpop.f32.mrf.mxu0
    %v7712 = vadd.f32 %v7491, %v7711
    %v7713 = vand.u32 %v7436, 4294901760
    %7714 = vmatmul.f32.gmra.mxu0 %v7713
    %v7715 = vpop.f32.mrf.mxu0
    %v7716 = vadd.f32 %v7499, %v7715
    %v7717 = vand.u32 %v7437, 4294901760
    %7718 = vmatmul.f32.gmra.mxu0 %v7717
    %v7719 = vpop.f32.mrf.mxu0
    %v7720 = vadd.f32 %v7507, %v7719
    %v7721 = vand.u32 %v7438, 4294901760
    %7722 = vmatmul.f32.gmra.mxu0 %v7721
    %v7723 = vpop.f32.mrf.mxu0
    %v7724 = vadd.f32 %v7515, %v7723
    %v7725 = vand.u32 %v7439, 4294901760
    %7726 = vmatmul.f32.gmra.mxu0 %v7725
    %v7727 = vpop.f32.mrf.mxu0
    %v7728 = vadd.f32 %v7523, %v7727
    %v7729 = vand.u32 %v7440, 4294901760
    %7730 = vmatmul.f32.gmra.mxu0 %v7729
    %v7731 = vpop.f32.mrf.mxu0
    %v7732 = vadd.f32 %v7531, %v7731
    %v7733 = vand.u32 %v7441, 4294901760
    %7734 = vmatmul.f32.gmra.mxu0 %v7733
    %v7735 = vpop.f32.mrf.mxu0
    %v7736 = vadd.f32 %v7539, %v7735
    %v7737 = vand.u32 %v7442, 4294901760
    %7738 = vmatmul.f32.gmra.mxu0 %v7737
    %v7739 = vpop.f32.mrf.mxu0
    %v7740 = vadd.f32 %v7547, %v7739
    %v7741 = vand.u32 %v7443, 4294901760
    %7742 = vmatmul.f32.gmra.mxu0 %v7741
    %v7743 = vpop.f32.mrf.mxu0
    %v7744 = vadd.f32 %v7555, %v7743
    %v7745 = vand.u32 %v7444, 4294901760
    %7746 = vmatmul.f32.gmra.mxu0 %v7745
    %v7747 = vpop.f32.mrf.mxu0
    %v7748 = vadd.f32 %v7563, %v7747
    %v7749 = vand.u32 %v7445, 4294901760
    %7750 = vmatmul.f32.gmra.mxu0 %v7749
    %v7751 = vpop.f32.mrf.mxu0
    %v7752 = vadd.f32 %v7571, %v7751
    %v7753 = vand.u32 %v7446, 4294901760
    %7754 = vmatmul.f32.gmra.mxu0 %v7753
    %v7755 = vpop.f32.mrf.mxu0
    %v7756 = vadd.f32 %v7579, %v7755
    %v7757 = vand.u32 %v7447, 4294901760
    %7758 = vmatmul.f32.gmra.mxu0 %v7757
    %v7759 = vpop.f32.mrf.mxu0
    %v7760 = vadd.f32 %v7587, %v7759
    %v7761 = vand.u32 %v7448, 4294901760
    %7762 = vmatmul.f32.gmra.mxu0 %v7761
    %v7763 = vpop.f32.mrf.mxu0
    %v7764 = vadd.f32 %v7595, %v7763
    %v7765 = vand.u32 %v7449, 4294901760
    %7766 = vmatmul.f32.gmra.mxu0 %v7765
    %v7767 = vpop.f32.mrf.mxu0
    %v7768 = vadd.f32 %v7603, %v7767
    %v7769 = vand.u32 %v7450, 4294901760
    %7770 = vmatmul.f32.gmra.mxu0 %v7769
    %v7771 = vpop.f32.mrf.mxu0
    %v7772 = vadd.f32 %v7611, %v7771
    %7773 = vdwg.mxu0
    %v7774 = vand.u32 %v7427, 4294901760
    %v7775 = vsub.f32 %v7427, %v7774
    %7776 = vmatpush.xpose.msra.mxu0 %v7775
    %v7777 = vand.u32 %v7426, 4294901760
    %v7778 = vsub.f32 %v7426, %v7777
    %7779 = vmatpush.xpose.msra.mxu0 %v7778
    %v7780 = vand.u32 %v7425, 4294901760
    %v7781 = vsub.f32 %v7425, %v7780
    %7782 = vmatpush.xpose.msra.mxu0 %v7781
    %v7783 = vand.u32 %v7424, 4294901760
    %v7784 = vsub.f32 %v7424, %v7783
    %7785 = vmatpush.xpose.msra.mxu0 %v7784
    %v7786 = vand.u32 %v7423, 4294901760
    %v7787 = vsub.f32 %v7423, %v7786
    %7788 = vmatpush.xpose.msra.mxu0 %v7787
    %v7789 = vand.u32 %v7422, 4294901760
    %v7790 = vsub.f32 %v7422, %v7789
    %7791 = vmatpush.xpose.msra.mxu0 %v7790
    %v7792 = vand.u32 %v7421, 4294901760
    %v7793 = vsub.f32 %v7421, %v7792
    %7794 = vmatpush.xpose.msra.mxu0 %v7793
    %v7795 = vand.u32 %v7420, 4294901760
    %v7796 = vsub.f32 %v7420, %v7795
    %7797 = vmatpush.xpose.msra.mxu0 %v7796
    %v7798 = vand.u32 %v7419, 4294901760
    %v7799 = vsub.f32 %v7419, %v7798
    %7800 = vmatpush.xpose.msra.mxu0 %v7799
    %v7801 = vand.u32 %v7418, 4294901760
    %v7802 = vsub.f32 %v7418, %v7801
    %7803 = vmatpush.xpose.msra.mxu0 %v7802
    %v7804 = vand.u32 %v7417, 4294901760
    %v7805 = vsub.f32 %v7417, %v7804
    %7806 = vmatpush.xpose.msra.mxu0 %v7805
    %v7807 = vand.u32 %v7416, 4294901760
    %v7808 = vsub.f32 %v7416, %v7807
    %7809 = vmatpush.xpose.msra.mxu0 %v7808
    %v7810 = vand.u32 %v7415, 4294901760
    %v7811 = vsub.f32 %v7415, %v7810
    %7812 = vmatpush.xpose.msra.mxu0 %v7811
    %v7813 = vand.u32 %v7414, 4294901760
    %v7814 = vsub.f32 %v7414, %v7813
    %7815 = vmatpush.xpose.msra.mxu0 %v7814
    %v7816 = vand.u32 %v7413, 4294901760
    %v7817 = vsub.f32 %v7413, %v7816
    %7818 = vmatpush.xpose.msra.mxu0 %v7817
    %v7819 = vand.u32 %v7412, 4294901760
    %v7820 = vsub.f32 %v7412, %v7819
    %7821 = vmatpush.xpose.msra.mxu0 %v7820
    %v7822 = vand.u32 %v7435, 4294901760
    %v7823 = vsub.f32 %v7435, %v7822
    %7824 = vmatmul.f32.gmra.mxu0 %v7823
    %v7825 = vpop.f32.mrf.mxu0
    %v7826 = vadd.f32 %v7712, %v7825
    %v7827 = vand.u32 %v7436, 4294901760
    %v7828 = vsub.f32 %v7436, %v7827
    %7829 = vmatmul.f32.gmra.mxu0 %v7828
    %v7830 = vpop.f32.mrf.mxu0
    %v7831 = vadd.f32 %v7716, %v7830
    %v7832 = vand.u32 %v7437, 4294901760
    %v7833 = vsub.f32 %v7437, %v7832
    %7834 = vmatmul.f32.gmra.mxu0 %v7833
    %v7835 = vpop.f32.mrf.mxu0
    %v7836 = vadd.f32 %v7720, %v7835
    %v7837 = vand.u32 %v7438, 4294901760
    %v7838 = vsub.f32 %v7438, %v7837
    %7839 = vmatmul.f32.gmra.mxu0 %v7838
    %v7840 = vpop.f32.mrf.mxu0
    %v7841 = vadd.f32 %v7724, %v7840
    %v7842 = vand.u32 %v7439, 4294901760
    %v7843 = vsub.f32 %v7439, %v7842
    %7844 = vmatmul.f32.gmra.mxu0 %v7843
    %v7845 = vpop.f32.mrf.mxu0
    %v7846 = vadd.f32 %v7728, %v7845
    %v7847 = vand.u32 %v7440, 4294901760
    %v7848 = vsub.f32 %v7440, %v7847
    %7849 = vmatmul.f32.gmra.mxu0 %v7848
    %v7850 = vpop.f32.mrf.mxu0
    %v7851 = vadd.f32 %v7732, %v7850
    %v7852 = vand.u32 %v7441, 4294901760
    %v7853 = vsub.f32 %v7441, %v7852
    %7854 = vmatmul.f32.gmra.mxu0 %v7853
    %v7855 = vpop.f32.mrf.mxu0
    %v7856 = vadd.f32 %v7736, %v7855
    %v7857 = vand.u32 %v7442, 4294901760
    %v7858 = vsub.f32 %v7442, %v7857
    %7859 = vmatmul.f32.gmra.mxu0 %v7858
    %v7860 = vpop.f32.mrf.mxu0
    %v7861 = vadd.f32 %v7740, %v7860
    %v7862 = vand.u32 %v7443, 4294901760
    %v7863 = vsub.f32 %v7443, %v7862
    %7864 = vmatmul.f32.gmra.mxu0 %v7863
    %v7865 = vpop.f32.mrf.mxu0
    %v7866 = vadd.f32 %v7744, %v7865
    %v7867 = vand.u32 %v7444, 4294901760
    %v7868 = vsub.f32 %v7444, %v7867
    %7869 = vmatmul.f32.gmra.mxu0 %v7868
    %v7870 = vpop.f32.mrf.mxu0
    %v7871 = vadd.f32 %v7748, %v7870
    %v7872 = vand.u32 %v7445, 4294901760
    %v7873 = vsub.f32 %v7445, %v7872
    %7874 = vmatmul.f32.gmra.mxu0 %v7873
    %v7875 = vpop.f32.mrf.mxu0
    %v7876 = vadd.f32 %v7752, %v7875
    %v7877 = vand.u32 %v7446, 4294901760
    %v7878 = vsub.f32 %v7446, %v7877
    %7879 = vmatmul.f32.gmra.mxu0 %v7878
    %v7880 = vpop.f32.mrf.mxu0
    %v7881 = vadd.f32 %v7756, %v7880
    %v7882 = vand.u32 %v7447, 4294901760
    %v7883 = vsub.f32 %v7447, %v7882
    %7884 = vmatmul.f32.gmra.mxu0 %v7883
    %v7885 = vpop.f32.mrf.mxu0
    %v7886 = vadd.f32 %v7760, %v7885
    %v7887 = vand.u32 %v7448, 4294901760
    %v7888 = vsub.f32 %v7448, %v7887
    %7889 = vmatmul.f32.gmra.mxu0 %v7888
    %v7890 = vpop.f32.mrf.mxu0
    %v7891 = vadd.f32 %v7764, %v7890
    %v7892 = vand.u32 %v7449, 4294901760
    %v7893 = vsub.f32 %v7449, %v7892
    %7894 = vmatmul.f32.gmra.mxu0 %v7893
    %v7895 = vpop.f32.mrf.mxu0
    %v7896 = vadd.f32 %v7768, %v7895
    %v7897 = vand.u32 %v7450, 4294901760
    %v7898 = vsub.f32 %v7450, %v7897
    %7899 = vmatmul.f32.gmra.mxu0 %v7898
    %v7900 = vpop.f32.mrf.mxu0
    %v7901 = vadd.f32 %v7772, %v7900
    %7902 = vdwg.mxu0
    %v7903 = vand.u32 %v7427, 4294901760
    %7904 = vmatpush.xpose.msra.mxu0 %v7903
    %v7905 = vand.u32 %v7426, 4294901760
    %7906 = vmatpush.xpose.msra.mxu0 %v7905
    %v7907 = vand.u32 %v7425, 4294901760
    %7908 = vmatpush.xpose.msra.mxu0 %v7907
    %v7909 = vand.u32 %v7424, 4294901760
    %7910 = vmatpush.xpose.msra.mxu0 %v7909
    %v7911 = vand.u32 %v7423, 4294901760
    %7912 = vmatpush.xpose.msra.mxu0 %v7911
    %v7913 = vand.u32 %v7422, 4294901760
    %7914 = vmatpush.xpose.msra.mxu0 %v7913
    %v7915 = vand.u32 %v7421, 4294901760
    %7916 = vmatpush.xpose.msra.mxu0 %v7915
    %v7917 = vand.u32 %v7420, 4294901760
    %7918 = vmatpush.xpose.msra.mxu0 %v7917
    %v7919 = vand.u32 %v7419, 4294901760
    %7920 = vmatpush.xpose.msra.mxu0 %v7919
    %v7921 = vand.u32 %v7418, 4294901760
    %7922 = vmatpush.xpose.msra.mxu0 %v7921
    %v7923 = vand.u32 %v7417, 4294901760
    %7924 = vmatpush.xpose.msra.mxu0 %v7923
    %v7925 = vand.u32 %v7416, 4294901760
    %7926 = vmatpush.xpose.msra.mxu0 %v7925
    %v7927 = vand.u32 %v7415, 4294901760
    %7928 = vmatpush.xpose.msra.mxu0 %v7927
    %v7929 = vand.u32 %v7414, 4294901760
    %7930 = vmatpush.xpose.msra.mxu0 %v7929
    %v7931 = vand.u32 %v7413, 4294901760
    %7932 = vmatpush.xpose.msra.mxu0 %v7931
    %v7933 = vand.u32 %v7412, 4294901760
    %7934 = vmatpush.xpose.msra.mxu0 %v7933
    %v7935 = vand.u32 %v7435, 4294901760
    %v7936 = vsub.f32 %v7435, %v7935
    %v7937 = vand.u32 %v7936, 4294901760
    %7938 = vmatmul.f32.gmra.mxu0 %v7937
    %v7939 = vpop.f32.mrf.mxu0
    %v7940 = vadd.f32 %v7826, %v7939
    %v7941 = vand.u32 %v7436, 4294901760
    %v7942 = vsub.f32 %v7436, %v7941
    %v7943 = vand.u32 %v7942, 4294901760
    %7944 = vmatmul.f32.gmra.mxu0 %v7943
    %v7945 = vpop.f32.mrf.mxu0
    %v7946 = vadd.f32 %v7831, %v7945
    %v7947 = vand.u32 %v7437, 4294901760
    %v7948 = vsub.f32 %v7437, %v7947
    %v7949 = vand.u32 %v7948, 4294901760
    %7950 = vmatmul.f32.gmra.mxu0 %v7949
    %v7951 = vpop.f32.mrf.mxu0
    %v7952 = vadd.f32 %v7836, %v7951
    %v7953 = vand.u32 %v7438, 4294901760
    %v7954 = vsub.f32 %v7438, %v7953
    %v7955 = vand.u32 %v7954, 4294901760
    %7956 = vmatmul.f32.gmra.mxu0 %v7955
    %v7957 = vpop.f32.mrf.mxu0
    %v7958 = vadd.f32 %v7841, %v7957
    %v7959 = vand.u32 %v7439, 4294901760
    %v7960 = vsub.f32 %v7439, %v7959
    %v7961 = vand.u32 %v7960, 4294901760
    %7962 = vmatmul.f32.gmra.mxu0 %v7961
    %v7963 = vpop.f32.mrf.mxu0
    %v7964 = vadd.f32 %v7846, %v7963
    %v7965 = vand.u32 %v7440, 4294901760
    %v7966 = vsub.f32 %v7440, %v7965
    %v7967 = vand.u32 %v7966, 4294901760
    %7968 = vmatmul.f32.gmra.mxu0 %v7967
    %v7969 = vpop.f32.mrf.mxu0
    %v7970 = vadd.f32 %v7851, %v7969
    %v7971 = vand.u32 %v7441, 4294901760
    %v7972 = vsub.f32 %v7441, %v7971
    %v7973 = vand.u32 %v7972, 4294901760
    %7974 = vmatmul.f32.gmra.mxu0 %v7973
    %v7975 = vpop.f32.mrf.mxu0
    %v7976 = vadd.f32 %v7856, %v7975
    %v7977 = vand.u32 %v7442, 4294901760
    %v7978 = vsub.f32 %v7442, %v7977
    %v7979 = vand.u32 %v7978, 4294901760
    %7980 = vmatmul.f32.gmra.mxu0 %v7979
    %v7981 = vpop.f32.mrf.mxu0
    %v7982 = vadd.f32 %v7861, %v7981
    %v7983 = vand.u32 %v7443, 4294901760
    %v7984 = vsub.f32 %v7443, %v7983
    %v7985 = vand.u32 %v7984, 4294901760
    %7986 = vmatmul.f32.gmra.mxu0 %v7985
    %v7987 = vpop.f32.mrf.mxu0
    %v7988 = vadd.f32 %v7866, %v7987
    %v7989 = vand.u32 %v7444, 4294901760
    %v7990 = vsub.f32 %v7444, %v7989
    %v7991 = vand.u32 %v7990, 4294901760
    %7992 = vmatmul.f32.gmra.mxu0 %v7991
    %v7993 = vpop.f32.mrf.mxu0
    %v7994 = vadd.f32 %v7871, %v7993
    %v7995 = vand.u32 %v7445, 4294901760
    %v7996 = vsub.f32 %v7445, %v7995
    %v7997 = vand.u32 %v7996, 4294901760
    %7998 = vmatmul.f32.gmra.mxu0 %v7997
    %v7999 = vpop.f32.mrf.mxu0
    %v8000 = vadd.f32 %v7876, %v7999
    %v8001 = vand.u32 %v7446, 4294901760
    %v8002 = vsub.f32 %v7446, %v8001
    %v8003 = vand.u32 %v8002, 4294901760
    %8004 = vmatmul.f32.gmra.mxu0 %v8003
    %v8005 = vpop.f32.mrf.mxu0
    %v8006 = vadd.f32 %v7881, %v8005
    %v8007 = vand.u32 %v7447, 4294901760
    %v8008 = vsub.f32 %v7447, %v8007
    %v8009 = vand.u32 %v8008, 4294901760
    %8010 = vmatmul.f32.gmra.mxu0 %v8009
    %v8011 = vpop.f32.mrf.mxu0
    %v8012 = vadd.f32 %v7886, %v8011
    %v8013 = vand.u32 %v7448, 4294901760
    %v8014 = vsub.f32 %v7448, %v8013
    %v8015 = vand.u32 %v8014, 4294901760
    %8016 = vmatmul.f32.gmra.mxu0 %v8015
    %v8017 = vpop.f32.mrf.mxu0
    %v8018 = vadd.f32 %v7891, %v8017
    %v8019 = vand.u32 %v7449, 4294901760
    %v8020 = vsub.f32 %v7449, %v8019
    %v8021 = vand.u32 %v8020, 4294901760
    %8022 = vmatmul.f32.gmra.mxu0 %v8021
    %v8023 = vpop.f32.mrf.mxu0
    %v8024 = vadd.f32 %v7896, %v8023
    %v8025 = vand.u32 %v7450, 4294901760
    %v8026 = vsub.f32 %v7450, %v8025
    %v8027 = vand.u32 %v8026, 4294901760
    %8028 = vmatmul.f32.gmra.mxu0 %v8027
    %v8029 = vpop.f32.mrf.mxu0
    %v8030 = vadd.f32 %v7901, %v8029
    %8031 = vdwg.mxu0
    %v8032 = vand.u32 %v7427, 4294901760
    %v8033 = vsub.f32 %v7427, %v8032
    %v8034 = vand.u32 %v8033, 4294901760
    %8035 = vmatpush.xpose.msra.mxu0 %v8034
    %v8036 = vand.u32 %v7426, 4294901760
    %v8037 = vsub.f32 %v7426, %v8036
    %v8038 = vand.u32 %v8037, 4294901760
    %8039 = vmatpush.xpose.msra.mxu0 %v8038
    %v8040 = vand.u32 %v7425, 4294901760
    %v8041 = vsub.f32 %v7425, %v8040
    %v8042 = vand.u32 %v8041, 4294901760
    %8043 = vmatpush.xpose.msra.mxu0 %v8042
    %v8044 = vand.u32 %v7424, 4294901760
    %v8045 = vsub.f32 %v7424, %v8044
    %v8046 = vand.u32 %v8045, 4294901760
    %8047 = vmatpush.xpose.msra.mxu0 %v8046
    %v8048 = vand.u32 %v7423, 4294901760
    %v8049 = vsub.f32 %v7423, %v8048
    %v8050 = vand.u32 %v8049, 4294901760
    %8051 = vmatpush.xpose.msra.mxu0 %v8050
    %v8052 = vand.u32 %v7422, 4294901760
    %v8053 = vsub.f32 %v7422, %v8052
    %v8054 = vand.u32 %v8053, 4294901760
    %8055 = vmatpush.xpose.msra.mxu0 %v8054
    %v8056 = vand.u32 %v7421, 4294901760
    %v8057 = vsub.f32 %v7421, %v8056
    %v8058 = vand.u32 %v8057, 4294901760
    %8059 = vmatpush.xpose.msra.mxu0 %v8058
    %v8060 = vand.u32 %v7420, 4294901760
    %v8061 = vsub.f32 %v7420, %v8060
    %v8062 = vand.u32 %v8061, 4294901760
    %8063 = vmatpush.xpose.msra.mxu0 %v8062
    %v8064 = vand.u32 %v7419, 4294901760
    %v8065 = vsub.f32 %v7419, %v8064
    %v8066 = vand.u32 %v8065, 4294901760
    %8067 = vmatpush.xpose.msra.mxu0 %v8066
    %v8068 = vand.u32 %v7418, 4294901760
    %v8069 = vsub.f32 %v7418, %v8068
    %v8070 = vand.u32 %v8069, 4294901760
    %8071 = vmatpush.xpose.msra.mxu0 %v8070
    %v8072 = vand.u32 %v7417, 4294901760
    %v8073 = vsub.f32 %v7417, %v8072
    %v8074 = vand.u32 %v8073, 4294901760
    %8075 = vmatpush.xpose.msra.mxu0 %v8074
    %v8076 = vand.u32 %v7416, 4294901760
    %v8077 = vsub.f32 %v7416, %v8076
    %v8078 = vand.u32 %v8077, 4294901760
    %8079 = vmatpush.xpose.msra.mxu0 %v8078
    %v8080 = vand.u32 %v7415, 4294901760
    %v8081 = vsub.f32 %v7415, %v8080
    %v8082 = vand.u32 %v8081, 4294901760
    %8083 = vmatpush.xpose.msra.mxu0 %v8082
    %v8084 = vand.u32 %v7414, 4294901760
    %v8085 = vsub.f32 %v7414, %v8084
    %v8086 = vand.u32 %v8085, 4294901760
    %8087 = vmatpush.xpose.msra.mxu0 %v8086
    %v8088 = vand.u32 %v7413, 4294901760
    %v8089 = vsub.f32 %v7413, %v8088
    %v8090 = vand.u32 %v8089, 4294901760
    %8091 = vmatpush.xpose.msra.mxu0 %v8090
    %v8092 = vand.u32 %v7412, 4294901760
    %v8093 = vsub.f32 %v7412, %v8092
    %v8094 = vand.u32 %v8093, 4294901760
    %8095 = vmatpush.xpose.msra.mxu0 %v8094
    %v8096 = vand.u32 %v7435, 4294901760
    %8097 = vmatmul.f32.gmra.mxu0 %v8096
    %v8098 = vpop.f32.mrf.mxu0
    %v8099 = vadd.f32 %v7940, %v8098
    %v8100 = vand.u32 %v7436, 4294901760
    %8101 = vmatmul.f32.gmra.mxu0 %v8100
    %v8102 = vpop.f32.mrf.mxu0
    %v8103 = vadd.f32 %v7946, %v8102
    %v8104 = vand.u32 %v7437, 4294901760
    %8105 = vmatmul.f32.gmra.mxu0 %v8104
    %v8106 = vpop.f32.mrf.mxu0
    %v8107 = vadd.f32 %v7952, %v8106
    %v8108 = vand.u32 %v7438, 4294901760
    %8109 = vmatmul.f32.gmra.mxu0 %v8108
    %v8110 = vpop.f32.mrf.mxu0
    %v8111 = vadd.f32 %v7958, %v8110
    %v8112 = vand.u32 %v7439, 4294901760
    %8113 = vmatmul.f32.gmra.mxu0 %v8112
    %v8114 = vpop.f32.mrf.mxu0
    %v8115 = vadd.f32 %v7964, %v8114
    %v8116 = vand.u32 %v7440, 4294901760
    %8117 = vmatmul.f32.gmra.mxu0 %v8116
    %v8118 = vpop.f32.mrf.mxu0
    %v8119 = vadd.f32 %v7970, %v8118
    %v8120 = vand.u32 %v7441, 4294901760
    %8121 = vmatmul.f32.gmra.mxu0 %v8120
    %v8122 = vpop.f32.mrf.mxu0
    %v8123 = vadd.f32 %v7976, %v8122
    %v8124 = vand.u32 %v7442, 4294901760
    %8125 = vmatmul.f32.gmra.mxu0 %v8124
    %v8126 = vpop.f32.mrf.mxu0
    %v8127 = vadd.f32 %v7982, %v8126
    %v8128 = vand.u32 %v7443, 4294901760
    %8129 = vmatmul.f32.gmra.mxu0 %v8128
    %v8130 = vpop.f32.mrf.mxu0
    %v8131 = vadd.f32 %v7988, %v8130
    %v8132 = vand.u32 %v7444, 4294901760
    %8133 = vmatmul.f32.gmra.mxu0 %v8132
    %v8134 = vpop.f32.mrf.mxu0
    %v8135 = vadd.f32 %v7994, %v8134
    %v8136 = vand.u32 %v7445, 4294901760
    %8137 = vmatmul.f32.gmra.mxu0 %v8136
    %v8138 = vpop.f32.mrf.mxu0
    %v8139 = vadd.f32 %v8000, %v8138
    %v8140 = vand.u32 %v7446, 4294901760
    %8141 = vmatmul.f32.gmra.mxu0 %v8140
    %v8142 = vpop.f32.mrf.mxu0
    %v8143 = vadd.f32 %v8006, %v8142
    %v8144 = vand.u32 %v7447, 4294901760
    %8145 = vmatmul.f32.gmra.mxu0 %v8144
    %v8146 = vpop.f32.mrf.mxu0
    %v8147 = vadd.f32 %v8012, %v8146
    %v8148 = vand.u32 %v7448, 4294901760
    %8149 = vmatmul.f32.gmra.mxu0 %v8148
    %v8150 = vpop.f32.mrf.mxu0
    %v8151 = vadd.f32 %v8018, %v8150
    %v8152 = vand.u32 %v7449, 4294901760
    %8153 = vmatmul.f32.gmra.mxu0 %v8152
    %v8154 = vpop.f32.mrf.mxu0
    %v8155 = vadd.f32 %v8024, %v8154
    %v8156 = vand.u32 %v7450, 4294901760
    %8157 = vmatmul.f32.gmra.mxu0 %v8156
    %v8158 = vpop.f32.mrf.mxu0
    %v8159 = vadd.f32 %v8030, %v8158
    %8160 = vdwg.mxu0
    %v8161 = vand.u32 %v7427, 4294901760
    %8162 = vmatpush.xpose.msra.mxu0 %v8161
    %v8163 = vand.u32 %v7426, 4294901760
    %8164 = vmatpush.xpose.msra.mxu0 %v8163
    %v8165 = vand.u32 %v7425, 4294901760
    %8166 = vmatpush.xpose.msra.mxu0 %v8165
    %v8167 = vand.u32 %v7424, 4294901760
    %8168 = vmatpush.xpose.msra.mxu0 %v8167
    %v8169 = vand.u32 %v7423, 4294901760
    %8170 = vmatpush.xpose.msra.mxu0 %v8169
    %v8171 = vand.u32 %v7422, 4294901760
    %8172 = vmatpush.xpose.msra.mxu0 %v8171
    %v8173 = vand.u32 %v7421, 4294901760
    %8174 = vmatpush.xpose.msra.mxu0 %v8173
    %v8175 = vand.u32 %v7420, 4294901760
    %8176 = vmatpush.xpose.msra.mxu0 %v8175
    %v8177 = vand.u32 %v7419, 4294901760
    %8178 = vmatpush.xpose.msra.mxu0 %v8177
    %v8179 = vand.u32 %v7418, 4294901760
    %8180 = vmatpush.xpose.msra.mxu0 %v8179
    %v8181 = vand.u32 %v7417, 4294901760
    %8182 = vmatpush.xpose.msra.mxu0 %v8181
    %v8183 = vand.u32 %v7416, 4294901760
    %8184 = vmatpush.xpose.msra.mxu0 %v8183
    %v8185 = vand.u32 %v7415, 4294901760
    %8186 = vmatpush.xpose.msra.mxu0 %v8185
    %v8187 = vand.u32 %v7414, 4294901760
    %8188 = vmatpush.xpose.msra.mxu0 %v8187
    %v8189 = vand.u32 %v7413, 4294901760
    %8190 = vmatpush.xpose.msra.mxu0 %v8189
    %v8191 = vand.u32 %v7412, 4294901760
    %8192 = vmatpush.xpose.msra.mxu0 %v8191
    %v8193 = vand.u32 %v7435, 4294901760
    %8194 = vmatmul.f32.gmra.mxu0 %v8193
    %v8195 = vpop.f32.mrf.mxu0
    %v8196 = vadd.f32 %v8099, %v8195
    %v8197 = vand.u32 %v7436, 4294901760
    %8198 = vmatmul.f32.gmra.mxu0 %v8197
    %v8199 = vpop.f32.mrf.mxu0
    %v8200 = vadd.f32 %v8103, %v8199
    %v8201 = vand.u32 %v7437, 4294901760
    %8202 = vmatmul.f32.gmra.mxu0 %v8201
    %v8203 = vpop.f32.mrf.mxu0
    %v8204 = vadd.f32 %v8107, %v8203
    %v8205 = vand.u32 %v7438, 4294901760
    %8206 = vmatmul.f32.gmra.mxu0 %v8205
    %v8207 = vpop.f32.mrf.mxu0
    %v8208 = vadd.f32 %v8111, %v8207
    %v8209 = vand.u32 %v7439, 4294901760
    %8210 = vmatmul.f32.gmra.mxu0 %v8209
    %v8211 = vpop.f32.mrf.mxu0
    %v8212 = vadd.f32 %v8115, %v8211
    %v8213 = vand.u32 %v7440, 4294901760
    %8214 = vmatmul.f32.gmra.mxu0 %v8213
    %v8215 = vpop.f32.mrf.mxu0
    %v8216 = vadd.f32 %v8119, %v8215
    %v8217 = vand.u32 %v7441, 4294901760
    %8218 = vmatmul.f32.gmra.mxu0 %v8217
    %v8219 = vpop.f32.mrf.mxu0
    %v8220 = vadd.f32 %v8123, %v8219
    %v8221 = vand.u32 %v7442, 4294901760
    %8222 = vmatmul.f32.gmra.mxu0 %v8221
    %v8223 = vpop.f32.mrf.mxu0
    %v8224 = vadd.f32 %v8127, %v8223
    %v8225 = vand.u32 %v7443, 4294901760
    %8226 = vmatmul.f32.gmra.mxu0 %v8225
    %v8227 = vpop.f32.mrf.mxu0
    %v8228 = vadd.f32 %v8131, %v8227
    %v8229 = vand.u32 %v7444, 4294901760
    %8230 = vmatmul.f32.gmra.mxu0 %v8229
    %v8231 = vpop.f32.mrf.mxu0
    %v8232 = vadd.f32 %v8135, %v8231
    %v8233 = vand.u32 %v7445, 4294901760
    %8234 = vmatmul.f32.gmra.mxu0 %v8233
    %v8235 = vpop.f32.mrf.mxu0
    %v8236 = vadd.f32 %v8139, %v8235
    %v8237 = vand.u32 %v7446, 4294901760
    %8238 = vmatmul.f32.gmra.mxu0 %v8237
    %v8239 = vpop.f32.mrf.mxu0
    %v8240 = vadd.f32 %v8143, %v8239
    %v8241 = vand.u32 %v7447, 4294901760
    %8242 = vmatmul.f32.gmra.mxu0 %v8241
    %v8243 = vpop.f32.mrf.mxu0
    %v8244 = vadd.f32 %v8147, %v8243
    %v8245 = vand.u32 %v7448, 4294901760
    %8246 = vmatmul.f32.gmra.mxu0 %v8245
    %v8247 = vpop.f32.mrf.mxu0
    %v8248 = vadd.f32 %v8151, %v8247
    %v8249 = vand.u32 %v7449, 4294901760
    %8250 = vmatmul.f32.gmra.mxu0 %v8249
    %v8251 = vpop.f32.mrf.mxu0
    %v8252 = vadd.f32 %v8155, %v8251
    %v8253 = vand.u32 %v7450, 4294901760
    %8254 = vmatmul.f32.gmra.mxu0 %v8253
    %v8255 = vpop.f32.mrf.mxu0
    %v8256 = vadd.f32 %v8159, %v8255
    %8257 = vdwg.mxu0
    %v8258 = vmax.f32 %v8196, 0.0
    %v8259 = vmax.f32 %v8200, 0.0
    %v8260 = vmax.f32 %v8204, 0.0
    %v8261 = vmax.f32 %v8208, 0.0
    %v8262 = vmax.f32 %v8212, 0.0
    %v8263 = vmax.f32 %v8216, 0.0
    %v8264 = vmax.f32 %v8220, 0.0
    %v8265 = vmax.f32 %v8224, 0.0
    %v8266 = vmax.f32 %v8228, 0.0
    %v8267 = vmax.f32 %v8232, 0.0
    %v8268 = vmax.f32 %v8236, 0.0
    %v8269 = vmax.f32 %v8240, 0.0
    %v8270 = vmax.f32 %v8244, 0.0
    %v8271 = vmax.f32 %v8248, 0.0
    %v8272 = vmax.f32 %v8252, 0.0
    %v8273 = vmax.f32 %v8256, 0.0
    %v8274 = vand.u32 2147483647, %v8196
    %v8275 = vand.u32 2147483647, %v8200
    %v8276 = vand.u32 2147483647, %v8204
    %v8277 = vand.u32 2147483647, %v8208
    %v8278 = vand.u32 2147483647, %v8212
    %v8279 = vand.u32 2147483647, %v8216
    %v8280 = vand.u32 2147483647, %v8220
    %v8281 = vand.u32 2147483647, %v8224
    %v8282 = vand.u32 2147483647, %v8228
    %v8283 = vand.u32 2147483647, %v8232
    %v8284 = vand.u32 2147483647, %v8236
    %v8285 = vand.u32 2147483647, %v8240
    %v8286 = vand.u32 2147483647, %v8244
    %v8287 = vand.u32 2147483647, %v8248
    %v8288 = vand.u32 2147483647, %v8252
    %v8289 = vand.u32 2147483647, %v8256
    %v8290 = vsub.f32 0.0, %v8274
    %v8291 = vsub.f32 0.0, %v8275
    %v8292 = vsub.f32 0.0, %v8276
    %v8293 = vsub.f32 0.0, %v8277
    %v8294 = vsub.f32 0.0, %v8278
    %v8295 = vsub.f32 0.0, %v8279
    %v8296 = vsub.f32 0.0, %v8280
    %v8297 = vsub.f32 0.0, %v8281
    %v8298 = vsub.f32 0.0, %v8282
    %v8299 = vsub.f32 0.0, %v8283
    %v8300 = vsub.f32 0.0, %v8284
    %v8301 = vsub.f32 0.0, %v8285
    %v8302 = vsub.f32 0.0, %v8286
    %v8303 = vsub.f32 0.0, %v8287
    %v8304 = vsub.f32 0.0, %v8288
    %v8305 = vsub.f32 0.0, %v8289
    %v8306 = vmul.f32 %v8290, 1.442695
    %v8307 = vpow.pop %v8306
    %v8308 = vmul.f32 %v8291, 1.442695
    %v8309 = vpow.pop %v8308
    %v8310 = vmul.f32 %v8292, 1.442695
    %v8311 = vpow.pop %v8310
    %v8312 = vmul.f32 %v8293, 1.442695
    %v8313 = vpow.pop %v8312
    %v8314 = vmul.f32 %v8294, 1.442695
    %v8315 = vpow.pop %v8314
    %v8316 = vmul.f32 %v8295, 1.442695
    %v8317 = vpow.pop %v8316
    %v8318 = vmul.f32 %v8296, 1.442695
    %v8319 = vpow.pop %v8318
    %v8320 = vmul.f32 %v8297, 1.442695
    %v8321 = vpow.pop %v8320
    %v8322 = vmul.f32 %v8298, 1.442695
    %v8323 = vpow.pop %v8322
    %v8324 = vmul.f32 %v8299, 1.442695
    %v8325 = vpow.pop %v8324
    %v8326 = vmul.f32 %v8300, 1.442695
    %v8327 = vpow.pop %v8326
    %v8328 = vmul.f32 %v8301, 1.442695
    %v8329 = vpow.pop %v8328
    %v8330 = vmul.f32 %v8302, 1.442695
    %v8331 = vpow.pop %v8330
    %v8332 = vmul.f32 %v8303, 1.442695
    %v8333 = vpow.pop %v8332
    %v8334 = vmul.f32 %v8304, 1.442695
    %v8335 = vpow.pop %v8334
    %v8336 = vmul.f32 %v8305, 1.442695
    %v8337 = vpow.pop %v8336
    %v8338 = vadd.f32 %v8307, 1.0
    %v8339 = vlog2.pop %v8338
    %v8340 = vmul.f32 %v8339, 0.6931472
    %v8341 = vmul.f32 -0.5, %v8307
    %v8342 = vadd.f32 %v8341, 1.0
    %v8343 = vmul.f32 %v8342, %v8307
    %v8344 = vand.u32 2147483647, %v8307
    %vm8345 = vcmp.lt.f32.partialorder %v8344, 0.0004427343
    %v8346 = vsel %vm8345, %v8343, %v8340
    %v8347 = vadd.f32 %v8309, 1.0
    %v8348 = vlog2.pop %v8347
    %v8349 = vmul.f32 %v8348, 0.6931472
    %v8350 = vmul.f32 -0.5, %v8309
    %v8351 = vadd.f32 %v8350, 1.0
    %v8352 = vmul.f32 %v8351, %v8309
    %v8353 = vand.u32 2147483647, %v8309
    %vm8354 = vcmp.lt.f32.partialorder %v8353, 0.0004427343
    %v8355 = vsel %vm8354, %v8352, %v8349
    %v8356 = vadd.f32 %v8311, 1.0
    %v8357 = vlog2.pop %v8356
    %v8358 = vmul.f32 %v8357, 0.6931472
    %v8359 = vmul.f32 -0.5, %v8311
    %v8360 = vadd.f32 %v8359, 1.0
    %v8361 = vmul.f32 %v8360, %v8311
    %v8362 = vand.u32 2147483647, %v8311
    %vm8363 = vcmp.lt.f32.partialorder %v8362, 0.0004427343
    %v8364 = vsel %vm8363, %v8361, %v8358
    %v8365 = vadd.f32 %v8313, 1.0
    %v8366 = vlog2.pop %v8365
    %v8367 = vmul.f32 %v8366, 0.6931472
    %v8368 = vmul.f32 -0.5, %v8313
    %v8369 = vadd.f32 %v8368, 1.0
    %v8370 = vmul.f32 %v8369, %v8313
    %v8371 = vand.u32 2147483647, %v8313
    %vm8372 = vcmp.lt.f32.partialorder %v8371, 0.0004427343
    %v8373 = vsel %vm8372, %v8370, %v8367
    %v8374 = vadd.f32 %v8315, 1.0
    %v8375 = vlog2.pop %v8374
    %v8376 = vmul.f32 %v8375, 0.6931472
    %v8377 = vmul.f32 -0.5, %v8315
    %v8378 = vadd.f32 %v8377, 1.0
    %v8379 = vmul.f32 %v8378, %v8315
    %v8380 = vand.u32 2147483647, %v8315
    %vm8381 = vcmp.lt.f32.partialorder %v8380, 0.0004427343
    %v8382 = vsel %vm8381, %v8379, %v8376
    %v8383 = vadd.f32 %v8317, 1.0
    %v8384 = vlog2.pop %v8383
    %v8385 = vmul.f32 %v8384, 0.6931472
    %v8386 = vmul.f32 -0.5, %v8317
    %v8387 = vadd.f32 %v8386, 1.0
    %v8388 = vmul.f32 %v8387, %v8317
    %v8389 = vand.u32 2147483647, %v8317
    %vm8390 = vcmp.lt.f32.partialorder %v8389, 0.0004427343
    %v8391 = vsel %vm8390, %v8388, %v8385
    %v8392 = vadd.f32 %v8319, 1.0
    %v8393 = vlog2.pop %v8392
    %v8394 = vmul.f32 %v8393, 0.6931472
    %v8395 = vmul.f32 -0.5, %v8319
    %v8396 = vadd.f32 %v8395, 1.0
    %v8397 = vmul.f32 %v8396, %v8319
    %v8398 = vand.u32 2147483647, %v8319
    %vm8399 = vcmp.lt.f32.partialorder %v8398, 0.0004427343
    %v8400 = vsel %vm8399, %v8397, %v8394
    %v8401 = vadd.f32 %v8321, 1.0
    %v8402 = vlog2.pop %v8401
    %v8403 = vmul.f32 %v8402, 0.6931472
    %v8404 = vmul.f32 -0.5, %v8321
    %v8405 = vadd.f32 %v8404, 1.0
    %v8406 = vmul.f32 %v8405, %v8321
    %v8407 = vand.u32 2147483647, %v8321
    %vm8408 = vcmp.lt.f32.partialorder %v8407, 0.0004427343
    %v8409 = vsel %vm8408, %v8406, %v8403
    %v8410 = vadd.f32 %v8323, 1.0
    %v8411 = vlog2.pop %v8410
    %v8412 = vmul.f32 %v8411, 0.6931472
    %v8413 = vmul.f32 -0.5, %v8323
    %v8414 = vadd.f32 %v8413, 1.0
    %v8415 = vmul.f32 %v8414, %v8323
    %v8416 = vand.u32 2147483647, %v8323
    %vm8417 = vcmp.lt.f32.partialorder %v8416, 0.0004427343
    %v8418 = vsel %vm8417, %v8415, %v8412
    %v8419 = vadd.f32 %v8325, 1.0
    %v8420 = vlog2.pop %v8419
    %v8421 = vmul.f32 %v8420, 0.6931472
    %v8422 = vmul.f32 -0.5, %v8325
    %v8423 = vadd.f32 %v8422, 1.0
    %v8424 = vmul.f32 %v8423, %v8325
    %v8425 = vand.u32 2147483647, %v8325
    %vm8426 = vcmp.lt.f32.partialorder %v8425, 0.0004427343
    %v8427 = vsel %vm8426, %v8424, %v8421
    %v8428 = vadd.f32 %v8327, 1.0
    %v8429 = vlog2.pop %v8428
    %v8430 = vmul.f32 %v8429, 0.6931472
    %v8431 = vmul.f32 -0.5, %v8327
    %v8432 = vadd.f32 %v8431, 1.0
    %v8433 = vmul.f32 %v8432, %v8327
    %v8434 = vand.u32 2147483647, %v8327
    %vm8435 = vcmp.lt.f32.partialorder %v8434, 0.0004427343
    %v8436 = vsel %vm8435, %v8433, %v8430
    %v8437 = vadd.f32 %v8329, 1.0
    %v8438 = vlog2.pop %v8437
    %v8439 = vmul.f32 %v8438, 0.6931472
    %v8440 = vmul.f32 -0.5, %v8329
    %v8441 = vadd.f32 %v8440, 1.0
    %v8442 = vmul.f32 %v8441, %v8329
    %v8443 = vand.u32 2147483647, %v8329
    %vm8444 = vcmp.lt.f32.partialorder %v8443, 0.0004427343
    %v8445 = vsel %vm8444, %v8442, %v8439
    %v8446 = vadd.f32 %v8331, 1.0
    %v8447 = vlog2.pop %v8446
    %v8448 = vmul.f32 %v8447, 0.6931472
    %v8449 = vmul.f32 -0.5, %v8331
    %v8450 = vadd.f32 %v8449, 1.0
    %v8451 = vmul.f32 %v8450, %v8331
    %v8452 = vand.u32 2147483647, %v8331
    %vm8453 = vcmp.lt.f32.partialorder %v8452, 0.0004427343
    %v8454 = vsel %vm8453, %v8451, %v8448
    %v8455 = vadd.f32 %v8333, 1.0
    %v8456 = vlog2.pop %v8455
    %v8457 = vmul.f32 %v8456, 0.6931472
    %v8458 = vmul.f32 -0.5, %v8333
    %v8459 = vadd.f32 %v8458, 1.0
    %v8460 = vmul.f32 %v8459, %v8333
    %v8461 = vand.u32 2147483647, %v8333
    %vm8462 = vcmp.lt.f32.partialorder %v8461, 0.0004427343
    %v8463 = vsel %vm8462, %v8460, %v8457
    %v8464 = vadd.f32 %v8335, 1.0
    %v8465 = vlog2.pop %v8464
    %v8466 = vmul.f32 %v8465, 0.6931472
    %v8467 = vmul.f32 -0.5, %v8335
    %v8468 = vadd.f32 %v8467, 1.0
    %v8469 = vmul.f32 %v8468, %v8335
    %v8470 = vand.u32 2147483647, %v8335
    %vm8471 = vcmp.lt.f32.partialorder %v8470, 0.0004427343
    %v8472 = vsel %vm8471, %v8469, %v8466
    %v8473 = vadd.f32 %v8337, 1.0
    %v8474 = vlog2.pop %v8473
    %v8475 = vmul.f32 %v8474, 0.6931472
    %v8476 = vmul.f32 -0.5, %v8337
    %v8477 = vadd.f32 %v8476, 1.0
    %v8478 = vmul.f32 %v8477, %v8337
    %v8479 = vand.u32 2147483647, %v8337
    %vm8480 = vcmp.lt.f32.partialorder %v8479, 0.0004427343
    %v8481 = vsel %vm8480, %v8478, %v8475
    %v8482 = vadd.f32 %v8258, %v8346
    %v8483 = vadd.f32 %v8259, %v8355
    %v8484 = vadd.f32 %v8260, %v8364
    %v8485 = vadd.f32 %v8261, %v8373
    %v8486 = vadd.f32 %v8262, %v8382
    %v8487 = vadd.f32 %v8263, %v8391
    %v8488 = vadd.f32 %v8264, %v8400
    %v8489 = vadd.f32 %v8265, %v8409
    %v8490 = vadd.f32 %v8266, %v8418
    %v8491 = vadd.f32 %v8267, %v8427
    %v8492 = vadd.f32 %v8268, %v8436
    %v8493 = vadd.f32 %v8269, %v8445
    %v8494 = vadd.f32 %v8270, %v8454
    %v8495 = vadd.f32 %v8271, %v8463
    %v8496 = vadd.f32 %v8272, %v8472
    %v8497 = vadd.f32 %v8273, %v8481
    %v8498 = vand.u32 %v7427, 4294901760
    %8499 = vmatpush.msra.mxu0 %v8498
    %v8500 = vand.u32 %v7426, 4294901760
    %8501 = vmatpush.msra.mxu0 %v8500
    %v8502 = vand.u32 %v7425, 4294901760
    %8503 = vmatpush.msra.mxu0 %v8502
    %v8504 = vand.u32 %v7424, 4294901760
    %8505 = vmatpush.msra.mxu0 %v8504
    %v8506 = vand.u32 %v7423, 4294901760
    %8507 = vmatpush.msra.mxu0 %v8506
    %v8508 = vand.u32 %v7422, 4294901760
    %8509 = vmatpush.msra.mxu0 %v8508
    %v8510 = vand.u32 %v7421, 4294901760
    %8511 = vmatpush.msra.mxu0 %v8510
    %v8512 = vand.u32 %v7420, 4294901760
    %8513 = vmatpush.msra.mxu0 %v8512
    %v8514 = vand.u32 %v7419, 4294901760
    %8515 = vmatpush.msra.mxu0 %v8514
    %v8516 = vand.u32 %v7418, 4294901760
    %8517 = vmatpush.msra.mxu0 %v8516
    %v8518 = vand.u32 %v7417, 4294901760
    %8519 = vmatpush.msra.mxu0 %v8518
    %v8520 = vand.u32 %v7416, 4294901760
    %8521 = vmatpush.msra.mxu0 %v8520
    %v8522 = vand.u32 %v7415, 4294901760
    %8523 = vmatpush.msra.mxu0 %v8522
    %v8524 = vand.u32 %v7414, 4294901760
    %8525 = vmatpush.msra.mxu0 %v8524
    %v8526 = vand.u32 %v7413, 4294901760
    %8527 = vmatpush.msra.mxu0 %v8526
    %v8528 = vand.u32 %v7412, 4294901760
    %8529 = vmatpush.msra.mxu0 %v8528
    %v8530 = vsub.f32 %v222, %v222
    %v8531 = vand.u32 %v8530, 4294901760
    %v8532 = vsub.f32 %v8530, %v8531
    %v8533 = vand.u32 %v8532, 4294901760
    %8534 = vmatmul.f32.gmra.mxu0 %v8533
    %v8535 = vpop.f32.mrf.mxu0
    %v8536 = vadd.f32 0.0, %v8535
    %v8537 = vsub.f32 %v223, %v223
    %v8538 = vand.u32 %v8537, 4294901760
    %v8539 = vsub.f32 %v8537, %v8538
    %v8540 = vand.u32 %v8539, 4294901760
    %8541 = vmatmul.f32.gmra.mxu0 %v8540
    %v8542 = vpop.f32.mrf.mxu0
    %v8543 = vadd.f32 0.0, %v8542
    %v8544 = vsub.f32 %v224, %v224
    %v8545 = vand.u32 %v8544, 4294901760
    %v8546 = vsub.f32 %v8544, %v8545
    %v8547 = vand.u32 %v8546, 4294901760
    %8548 = vmatmul.f32.gmra.mxu0 %v8547
    %v8549 = vpop.f32.mrf.mxu0
    %v8550 = vadd.f32 0.0, %v8549
    %v8551 = vsub.f32 %v225, %v225
    %v8552 = vand.u32 %v8551, 4294901760
    %v8553 = vsub.f32 %v8551, %v8552
    %v8554 = vand.u32 %v8553, 4294901760
    %8555 = vmatmul.f32.gmra.mxu0 %v8554
    %v8556 = vpop.f32.mrf.mxu0
    %v8557 = vadd.f32 0.0, %v8556
    %v8558 = vsub.f32 %v226, %v226
    %v8559 = vand.u32 %v8558, 4294901760
    %v8560 = vsub.f32 %v8558, %v8559
    %v8561 = vand.u32 %v8560, 4294901760
    %8562 = vmatmul.f32.gmra.mxu0 %v8561
    %v8563 = vpop.f32.mrf.mxu0
    %v8564 = vadd.f32 0.0, %v8563
    %v8565 = vsub.f32 %v227, %v227
    %v8566 = vand.u32 %v8565, 4294901760
    %v8567 = vsub.f32 %v8565, %v8566
    %v8568 = vand.u32 %v8567, 4294901760
    %8569 = vmatmul.f32.gmra.mxu0 %v8568
    %v8570 = vpop.f32.mrf.mxu0
    %v8571 = vadd.f32 0.0, %v8570
    %v8572 = vsub.f32 %v228, %v228
    %v8573 = vand.u32 %v8572, 4294901760
    %v8574 = vsub.f32 %v8572, %v8573
    %v8575 = vand.u32 %v8574, 4294901760
    %8576 = vmatmul.f32.gmra.mxu0 %v8575
    %v8577 = vpop.f32.mrf.mxu0
    %v8578 = vadd.f32 0.0, %v8577
    %v8579 = vsub.f32 %v229, %v229
    %v8580 = vand.u32 %v8579, 4294901760
    %v8581 = vsub.f32 %v8579, %v8580
    %v8582 = vand.u32 %v8581, 4294901760
    %8583 = vmatmul.f32.gmra.mxu0 %v8582
    %v8584 = vpop.f32.mrf.mxu0
    %v8585 = vadd.f32 0.0, %v8584
    %v8586 = vsub.f32 %v230, %v230
    %v8587 = vand.u32 %v8586, 4294901760
    %v8588 = vsub.f32 %v8586, %v8587
    %v8589 = vand.u32 %v8588, 4294901760
    %8590 = vmatmul.f32.gmra.mxu0 %v8589
    %v8591 = vpop.f32.mrf.mxu0
    %v8592 = vadd.f32 0.0, %v8591
    %v8593 = vsub.f32 %v231, %v231
    %v8594 = vand.u32 %v8593, 4294901760
    %v8595 = vsub.f32 %v8593, %v8594
    %v8596 = vand.u32 %v8595, 4294901760
    %8597 = vmatmul.f32.gmra.mxu0 %v8596
    %v8598 = vpop.f32.mrf.mxu0
    %v8599 = vadd.f32 0.0, %v8598
    %v8600 = vsub.f32 %v232, %v232
    %v8601 = vand.u32 %v8600, 4294901760
    %v8602 = vsub.f32 %v8600, %v8601
    %v8603 = vand.u32 %v8602, 4294901760
    %8604 = vmatmul.f32.gmra.mxu0 %v8603
    %v8605 = vpop.f32.mrf.mxu0
    %v8606 = vadd.f32 0.0, %v8605
    %v8607 = vsub.f32 %v233, %v233
    %v8608 = vand.u32 %v8607, 4294901760
    %v8609 = vsub.f32 %v8607, %v8608
    %v8610 = vand.u32 %v8609, 4294901760
    %8611 = vmatmul.f32.gmra.mxu0 %v8610
    %v8612 = vpop.f32.mrf.mxu0
    %v8613 = vadd.f32 0.0, %v8612
    %v8614 = vsub.f32 %v234, %v234
    %v8615 = vand.u32 %v8614, 4294901760
    %v8616 = vsub.f32 %v8614, %v8615
    %v8617 = vand.u32 %v8616, 4294901760
    %8618 = vmatmul.f32.gmra.mxu0 %v8617
    %v8619 = vpop.f32.mrf.mxu0
    %v8620 = vadd.f32 0.0, %v8619
    %v8621 = vsub.f32 %v235, %v235
    %v8622 = vand.u32 %v8621, 4294901760
    %v8623 = vsub.f32 %v8621, %v8622
    %v8624 = vand.u32 %v8623, 4294901760
    %8625 = vmatmul.f32.gmra.mxu0 %v8624
    %v8626 = vpop.f32.mrf.mxu0
    %v8627 = vadd.f32 0.0, %v8626
    %v8628 = vsub.f32 %v236, %v236
    %v8629 = vand.u32 %v8628, 4294901760
    %v8630 = vsub.f32 %v8628, %v8629
    %v8631 = vand.u32 %v8630, 4294901760
    %8632 = vmatmul.f32.gmra.mxu0 %v8631
    %v8633 = vpop.f32.mrf.mxu0
    %v8634 = vadd.f32 0.0, %v8633
    %v8635 = vsub.f32 %v237, %v237
    %v8636 = vand.u32 %v8635, 4294901760
    %v8637 = vsub.f32 %v8635, %v8636
    %v8638 = vand.u32 %v8637, 4294901760
    %8639 = vmatmul.f32.gmra.mxu0 %v8638
    %v8640 = vpop.f32.mrf.mxu0
    %v8641 = vadd.f32 0.0, %v8640
    %8642 = vdwg.mxu0
    %v8643 = vand.u32 %v7427, 4294901760
    %v8644 = vsub.f32 %v7427, %v8643
    %v8645 = vand.u32 %v8644, 4294901760
    %v8646 = vsub.f32 %v8644, %v8645
    %v8647 = vand.u32 %v8646, 4294901760
    %8648 = vmatpush.msra.mxu0 %v8647
    %v8649 = vand.u32 %v7426, 4294901760
    %v8650 = vsub.f32 %v7426, %v8649
    %v8651 = vand.u32 %v8650, 4294901760
    %v8652 = vsub.f32 %v8650, %v8651
    %v8653 = vand.u32 %v8652, 4294901760
    %8654 = vmatpush.msra.mxu0 %v8653
    %v8655 = vand.u32 %v7425, 4294901760
    %v8656 = vsub.f32 %v7425, %v8655
    %v8657 = vand.u32 %v8656, 4294901760
    %v8658 = vsub.f32 %v8656, %v8657
    %v8659 = vand.u32 %v8658, 4294901760
    %8660 = vmatpush.msra.mxu0 %v8659
    %v8661 = vand.u32 %v7424, 4294901760
    %v8662 = vsub.f32 %v7424, %v8661
    %v8663 = vand.u32 %v8662, 4294901760
    %v8664 = vsub.f32 %v8662, %v8663
    %v8665 = vand.u32 %v8664, 4294901760
    %8666 = vmatpush.msra.mxu0 %v8665
    %v8667 = vand.u32 %v7423, 4294901760
    %v8668 = vsub.f32 %v7423, %v8667
    %v8669 = vand.u32 %v8668, 4294901760
    %v8670 = vsub.f32 %v8668, %v8669
    %v8671 = vand.u32 %v8670, 4294901760
    %8672 = vmatpush.msra.mxu0 %v8671
    %v8673 = vand.u32 %v7422, 4294901760
    %v8674 = vsub.f32 %v7422, %v8673
    %v8675 = vand.u32 %v8674, 4294901760
    %v8676 = vsub.f32 %v8674, %v8675
    %v8677 = vand.u32 %v8676, 4294901760
    %8678 = vmatpush.msra.mxu0 %v8677
    %v8679 = vand.u32 %v7421, 4294901760
    %v8680 = vsub.f32 %v7421, %v8679
    %v8681 = vand.u32 %v8680, 4294901760
    %v8682 = vsub.f32 %v8680, %v8681
    %v8683 = vand.u32 %v8682, 4294901760
    %8684 = vmatpush.msra.mxu0 %v8683
    %v8685 = vand.u32 %v7420, 4294901760
    %v8686 = vsub.f32 %v7420, %v8685
    %v8687 = vand.u32 %v8686, 4294901760
    %v8688 = vsub.f32 %v8686, %v8687
    %v8689 = vand.u32 %v8688, 4294901760
    %8690 = vmatpush.msra.mxu0 %v8689
    %v8691 = vand.u32 %v7419, 4294901760
    %v8692 = vsub.f32 %v7419, %v8691
    %v8693 = vand.u32 %v8692, 4294901760
    %v8694 = vsub.f32 %v8692, %v8693
    %v8695 = vand.u32 %v8694, 4294901760
    %8696 = vmatpush.msra.mxu0 %v8695
    %v8697 = vand.u32 %v7418, 4294901760
    %v8698 = vsub.f32 %v7418, %v8697
    %v8699 = vand.u32 %v8698, 4294901760
    %v8700 = vsub.f32 %v8698, %v8699
    %v8701 = vand.u32 %v8700, 4294901760
    %8702 = vmatpush.msra.mxu0 %v8701
    %v8703 = vand.u32 %v7417, 4294901760
    %v8704 = vsub.f32 %v7417, %v8703
    %v8705 = vand.u32 %v8704, 4294901760
    %v8706 = vsub.f32 %v8704, %v8705
    %v8707 = vand.u32 %v8706, 4294901760
    %8708 = vmatpush.msra.mxu0 %v8707
    %v8709 = vand.u32 %v7416, 4294901760
    %v8710 = vsub.f32 %v7416, %v8709
    %v8711 = vand.u32 %v8710, 4294901760
    %v8712 = vsub.f32 %v8710, %v8711
    %v8713 = vand.u32 %v8712, 4294901760
    %8714 = vmatpush.msra.mxu0 %v8713
    %v8715 = vand.u32 %v7415, 4294901760
    %v8716 = vsub.f32 %v7415, %v8715
    %v8717 = vand.u32 %v8716, 4294901760
    %v8718 = vsub.f32 %v8716, %v8717
    %v8719 = vand.u32 %v8718, 4294901760
    %8720 = vmatpush.msra.mxu0 %v8719
    %v8721 = vand.u32 %v7414, 4294901760
    %v8722 = vsub.f32 %v7414, %v8721
    %v8723 = vand.u32 %v8722, 4294901760
    %v8724 = vsub.f32 %v8722, %v8723
    %v8725 = vand.u32 %v8724, 4294901760
    %8726 = vmatpush.msra.mxu0 %v8725
    %v8727 = vand.u32 %v7413, 4294901760
    %v8728 = vsub.f32 %v7413, %v8727
    %v8729 = vand.u32 %v8728, 4294901760
    %v8730 = vsub.f32 %v8728, %v8729
    %v8731 = vand.u32 %v8730, 4294901760
    %8732 = vmatpush.msra.mxu0 %v8731
    %v8733 = vand.u32 %v7412, 4294901760
    %v8734 = vsub.f32 %v7412, %v8733
    %v8735 = vand.u32 %v8734, 4294901760
    %v8736 = vsub.f32 %v8734, %v8735
    %v8737 = vand.u32 %v8736, 4294901760
    %8738 = vmatpush.msra.mxu0 %v8737
    %8739 = vmatmul.f32.gmra.mxu0 %v222
    %v8740 = vpop.f32.mrf.mxu0
    %v8741 = vadd.f32 %v8536, %v8740
    %8742 = vmatmul.f32.gmra.mxu0 %v223
    %v8743 = vpop.f32.mrf.mxu0
    %v8744 = vadd.f32 %v8543, %v8743
    %8745 = vmatmul.f32.gmra.mxu0 %v224
    %v8746 = vpop.f32.mrf.mxu0
    %v8747 = vadd.f32 %v8550, %v8746
    %8748 = vmatmul.f32.gmra.mxu0 %v225
    %v8749 = vpop.f32.mrf.mxu0
    %v8750 = vadd.f32 %v8557, %v8749
    %8751 = vmatmul.f32.gmra.mxu0 %v226
    %v8752 = vpop.f32.mrf.mxu0
    %v8753 = vadd.f32 %v8564, %v8752
    %8754 = vmatmul.f32.gmra.mxu0 %v227
    %v8755 = vpop.f32.mrf.mxu0
    %v8756 = vadd.f32 %v8571, %v8755
    %8757 = vmatmul.f32.gmra.mxu0 %v228
    %v8758 = vpop.f32.mrf.mxu0
    %v8759 = vadd.f32 %v8578, %v8758
    %8760 = vmatmul.f32.gmra.mxu0 %v229
    %v8761 = vpop.f32.mrf.mxu0
    %v8762 = vadd.f32 %v8585, %v8761
    %8763 = vmatmul.f32.gmra.mxu0 %v230
    %v8764 = vpop.f32.mrf.mxu0
    %v8765 = vadd.f32 %v8592, %v8764
    %8766 = vmatmul.f32.gmra.mxu0 %v231
    %v8767 = vpop.f32.mrf.mxu0
    %v8768 = vadd.f32 %v8599, %v8767
    %8769 = vmatmul.f32.gmra.mxu0 %v232
    %v8770 = vpop.f32.mrf.mxu0
    %v8771 = vadd.f32 %v8606, %v8770
    %8772 = vmatmul.f32.gmra.mxu0 %v233
    %v8773 = vpop.f32.mrf.mxu0
    %v8774 = vadd.f32 %v8613, %v8773
    %8775 = vmatmul.f32.gmra.mxu0 %v234
    %v8776 = vpop.f32.mrf.mxu0
    %v8777 = vadd.f32 %v8620, %v8776
    %8778 = vmatmul.f32.gmra.mxu0 %v235
    %v8779 = vpop.f32.mrf.mxu0
    %v8780 = vadd.f32 %v8627, %v8779
    %8781 = vmatmul.f32.gmra.mxu0 %v236
    %v8782 = vpop.f32.mrf.mxu0
    %v8783 = vadd.f32 %v8634, %v8782
    %8784 = vmatmul.f32.gmra.mxu0 %v237
    %v8785 = vpop.f32.mrf.mxu0
    %v8786 = vadd.f32 %v8641, %v8785
    %8787 = vdwg.mxu0
    %v8788 = vand.u32 %v7427, 4294901760
    %v8789 = vsub.f32 %v7427, %v8788
    %8790 = vmatpush.msra.mxu0 %v8789
    %v8791 = vand.u32 %v7426, 4294901760
    %v8792 = vsub.f32 %v7426, %v8791
    %8793 = vmatpush.msra.mxu0 %v8792
    %v8794 = vand.u32 %v7425, 4294901760
    %v8795 = vsub.f32 %v7425, %v8794
    %8796 = vmatpush.msra.mxu0 %v8795
    %v8797 = vand.u32 %v7424, 4294901760
    %v8798 = vsub.f32 %v7424, %v8797
    %8799 = vmatpush.msra.mxu0 %v8798
    %v8800 = vand.u32 %v7423, 4294901760
    %v8801 = vsub.f32 %v7423, %v8800
    %8802 = vmatpush.msra.mxu0 %v8801
    %v8803 = vand.u32 %v7422, 4294901760
    %v8804 = vsub.f32 %v7422, %v8803
    %8805 = vmatpush.msra.mxu0 %v8804
    %v8806 = vand.u32 %v7421, 4294901760
    %v8807 = vsub.f32 %v7421, %v8806
    %8808 = vmatpush.msra.mxu0 %v8807
    %v8809 = vand.u32 %v7420, 4294901760
    %v8810 = vsub.f32 %v7420, %v8809
    %8811 = vmatpush.msra.mxu0 %v8810
    %v8812 = vand.u32 %v7419, 4294901760
    %v8813 = vsub.f32 %v7419, %v8812
    %8814 = vmatpush.msra.mxu0 %v8813
    %v8815 = vand.u32 %v7418, 4294901760
    %v8816 = vsub.f32 %v7418, %v8815
    %8817 = vmatpush.msra.mxu0 %v8816
    %v8818 = vand.u32 %v7417, 4294901760
    %v8819 = vsub.f32 %v7417, %v8818
    %8820 = vmatpush.msra.mxu0 %v8819
    %v8821 = vand.u32 %v7416, 4294901760
    %v8822 = vsub.f32 %v7416, %v8821
    %8823 = vmatpush.msra.mxu0 %v8822
    %v8824 = vand.u32 %v7415, 4294901760
    %v8825 = vsub.f32 %v7415, %v8824
    %8826 = vmatpush.msra.mxu0 %v8825
    %v8827 = vand.u32 %v7414, 4294901760
    %v8828 = vsub.f32 %v7414, %v8827
    %8829 = vmatpush.msra.mxu0 %v8828
    %v8830 = vand.u32 %v7413, 4294901760
    %v8831 = vsub.f32 %v7413, %v8830
    %8832 = vmatpush.msra.mxu0 %v8831
    %v8833 = vand.u32 %v7412, 4294901760
    %v8834 = vsub.f32 %v7412, %v8833
    %8835 = vmatpush.msra.mxu0 %v8834
    %v8836 = vsub.f32 %v222, %v222
    %8837 = vmatmul.f32.gmra.mxu0 %v8836
    %v8838 = vpop.f32.mrf.mxu0
    %v8839 = vadd.f32 %v8741, %v8838
    %v8840 = vsub.f32 %v223, %v223
    %8841 = vmatmul.f32.gmra.mxu0 %v8840
    %v8842 = vpop.f32.mrf.mxu0
    %v8843 = vadd.f32 %v8744, %v8842
    %v8844 = vsub.f32 %v224, %v224
    %8845 = vmatmul.f32.gmra.mxu0 %v8844
    %v8846 = vpop.f32.mrf.mxu0
    %v8847 = vadd.f32 %v8747, %v8846
    %v8848 = vsub.f32 %v225, %v225
    %8849 = vmatmul.f32.gmra.mxu0 %v8848
    %v8850 = vpop.f32.mrf.mxu0
    %v8851 = vadd.f32 %v8750, %v8850
    %v8852 = vsub.f32 %v226, %v226
    %8853 = vmatmul.f32.gmra.mxu0 %v8852
    %v8854 = vpop.f32.mrf.mxu0
    %v8855 = vadd.f32 %v8753, %v8854
    %v8856 = vsub.f32 %v227, %v227
    %8857 = vmatmul.f32.gmra.mxu0 %v8856
    %v8858 = vpop.f32.mrf.mxu0
    %v8859 = vadd.f32 %v8756, %v8858
    %v8860 = vsub.f32 %v228, %v228
    %8861 = vmatmul.f32.gmra.mxu0 %v8860
    %v8862 = vpop.f32.mrf.mxu0
    %v8863 = vadd.f32 %v8759, %v8862
    %v8864 = vsub.f32 %v229, %v229
    %8865 = vmatmul.f32.gmra.mxu0 %v8864
    %v8866 = vpop.f32.mrf.mxu0
    %v8867 = vadd.f32 %v8762, %v8866
    %v8868 = vsub.f32 %v230, %v230
    %8869 = vmatmul.f32.gmra.mxu0 %v8868
    %v8870 = vpop.f32.mrf.mxu0
    %v8871 = vadd.f32 %v8765, %v8870
    %v8872 = vsub.f32 %v231, %v231
    %8873 = vmatmul.f32.gmra.mxu0 %v8872
    %v8874 = vpop.f32.mrf.mxu0
    %v8875 = vadd.f32 %v8768, %v8874
    %v8876 = vsub.f32 %v232, %v232
    %8877 = vmatmul.f32.gmra.mxu0 %v8876
    %v8878 = vpop.f32.mrf.mxu0
    %v8879 = vadd.f32 %v8771, %v8878
    %v8880 = vsub.f32 %v233, %v233
    %8881 = vmatmul.f32.gmra.mxu0 %v8880
    %v8882 = vpop.f32.mrf.mxu0
    %v8883 = vadd.f32 %v8774, %v8882
    %v8884 = vsub.f32 %v234, %v234
    %8885 = vmatmul.f32.gmra.mxu0 %v8884
    %v8886 = vpop.f32.mrf.mxu0
    %v8887 = vadd.f32 %v8777, %v8886
    %v8888 = vsub.f32 %v235, %v235
    %8889 = vmatmul.f32.gmra.mxu0 %v8888
    %v8890 = vpop.f32.mrf.mxu0
    %v8891 = vadd.f32 %v8780, %v8890
    %v8892 = vsub.f32 %v236, %v236
    %8893 = vmatmul.f32.gmra.mxu0 %v8892
    %v8894 = vpop.f32.mrf.mxu0
    %v8895 = vadd.f32 %v8783, %v8894
    %v8896 = vsub.f32 %v237, %v237
    %8897 = vmatmul.f32.gmra.mxu0 %v8896
    %v8898 = vpop.f32.mrf.mxu0
    %v8899 = vadd.f32 %v8786, %v8898
    %8900 = vdwg.mxu0
    %v8901 = vand.u32 %v7427, 4294901760
    %8902 = vmatpush.msra.mxu0 %v8901
    %v8903 = vand.u32 %v7426, 4294901760
    %8904 = vmatpush.msra.mxu0 %v8903
    %v8905 = vand.u32 %v7425, 4294901760
    %8906 = vmatpush.msra.mxu0 %v8905
    %v8907 = vand.u32 %v7424, 4294901760
    %8908 = vmatpush.msra.mxu0 %v8907
    %v8909 = vand.u32 %v7423, 4294901760
    %8910 = vmatpush.msra.mxu0 %v8909
    %v8911 = vand.u32 %v7422, 4294901760
    %8912 = vmatpush.msra.mxu0 %v8911
    %v8913 = vand.u32 %v7421, 4294901760
    %8914 = vmatpush.msra.mxu0 %v8913
    %v8915 = vand.u32 %v7420, 4294901760
    %8916 = vmatpush.msra.mxu0 %v8915
    %v8917 = vand.u32 %v7419, 4294901760
    %8918 = vmatpush.msra.mxu0 %v8917
    %v8919 = vand.u32 %v7418, 4294901760
    %8920 = vmatpush.msra.mxu0 %v8919
    %v8921 = vand.u32 %v7417, 4294901760
    %8922 = vmatpush.msra.mxu0 %v8921
    %v8923 = vand.u32 %v7416, 4294901760
    %8924 = vmatpush.msra.mxu0 %v8923
    %v8925 = vand.u32 %v7415, 4294901760
    %8926 = vmatpush.msra.mxu0 %v8925
    %v8927 = vand.u32 %v7414, 4294901760
    %8928 = vmatpush.msra.mxu0 %v8927
    %v8929 = vand.u32 %v7413, 4294901760
    %8930 = vmatpush.msra.mxu0 %v8929
    %v8931 = vand.u32 %v7412, 4294901760
    %8932 = vmatpush.msra.mxu0 %v8931
    %v8933 = vsub.f32 %v222, %v222
    %v8934 = vand.u32 %v8933, 4294901760
    %8935 = vmatmul.f32.gmra.mxu0 %v8934
    %v8936 = vpop.f32.mrf.mxu0
    %v8937 = vadd.f32 %v8839, %v8936
    %v8938 = vsub.f32 %v223, %v223
    %v8939 = vand.u32 %v8938, 4294901760
    %8940 = vmatmul.f32.gmra.mxu0 %v8939
    %v8941 = vpop.f32.mrf.mxu0
    %v8942 = vadd.f32 %v8843, %v8941
    %v8943 = vsub.f32 %v224, %v224
    %v8944 = vand.u32 %v8943, 4294901760
    %8945 = vmatmul.f32.gmra.mxu0 %v8944
    %v8946 = vpop.f32.mrf.mxu0
    %v8947 = vadd.f32 %v8847, %v8946
    %v8948 = vsub.f32 %v225, %v225
    %v8949 = vand.u32 %v8948, 4294901760
    %8950 = vmatmul.f32.gmra.mxu0 %v8949
    %v8951 = vpop.f32.mrf.mxu0
    %v8952 = vadd.f32 %v8851, %v8951
    %v8953 = vsub.f32 %v226, %v226
    %v8954 = vand.u32 %v8953, 4294901760
    %8955 = vmatmul.f32.gmra.mxu0 %v8954
    %v8956 = vpop.f32.mrf.mxu0
    %v8957 = vadd.f32 %v8855, %v8956
    %v8958 = vsub.f32 %v227, %v227
    %v8959 = vand.u32 %v8958, 4294901760
    %8960 = vmatmul.f32.gmra.mxu0 %v8959
    %v8961 = vpop.f32.mrf.mxu0
    %v8962 = vadd.f32 %v8859, %v8961
    %v8963 = vsub.f32 %v228, %v228
    %v8964 = vand.u32 %v8963, 4294901760
    %8965 = vmatmul.f32.gmra.mxu0 %v8964
    %v8966 = vpop.f32.mrf.mxu0
    %v8967 = vadd.f32 %v8863, %v8966
    %v8968 = vsub.f32 %v229, %v229
    %v8969 = vand.u32 %v8968, 4294901760
    %8970 = vmatmul.f32.gmra.mxu0 %v8969
    %v8971 = vpop.f32.mrf.mxu0
    %v8972 = vadd.f32 %v8867, %v8971
    %v8973 = vsub.f32 %v230, %v230
    %v8974 = vand.u32 %v8973, 4294901760
    %8975 = vmatmul.f32.gmra.mxu0 %v8974
    %v8976 = vpop.f32.mrf.mxu0
    %v8977 = vadd.f32 %v8871, %v8976
    %v8978 = vsub.f32 %v231, %v231
    %v8979 = vand.u32 %v8978, 4294901760
    %8980 = vmatmul.f32.gmra.mxu0 %v8979
    %v8981 = vpop.f32.mrf.mxu0
    %v8982 = vadd.f32 %v8875, %v8981
    %v8983 = vsub.f32 %v232, %v232
    %v8984 = vand.u32 %v8983, 4294901760
    %8985 = vmatmul.f32.gmra.mxu0 %v8984
    %v8986 = vpop.f32.mrf.mxu0
    %v8987 = vadd.f32 %v8879, %v8986
    %v8988 = vsub.f32 %v233, %v233
    %v8989 = vand.u32 %v8988, 4294901760
    %8990 = vmatmul.f32.gmra.mxu0 %v8989
    %v8991 = vpop.f32.mrf.mxu0
    %v8992 = vadd.f32 %v8883, %v8991
    %v8993 = vsub.f32 %v234, %v234
    %v8994 = vand.u32 %v8993, 4294901760
    %8995 = vmatmul.f32.gmra.mxu0 %v8994
    %v8996 = vpop.f32.mrf.mxu0
    %v8997 = vadd.f32 %v8887, %v8996
    %v8998 = vsub.f32 %v235, %v235
    %v8999 = vand.u32 %v8998, 4294901760
    %9000 = vmatmul.f32.gmra.mxu0 %v8999
    %v9001 = vpop.f32.mrf.mxu0
    %v9002 = vadd.f32 %v8891, %v9001
    %v9003 = vsub.f32 %v236, %v236
    %v9004 = vand.u32 %v9003, 4294901760
    %9005 = vmatmul.f32.gmra.mxu0 %v9004
    %v9006 = vpop.f32.mrf.mxu0
    %v9007 = vadd.f32 %v8895, %v9006
    %v9008 = vsub.f32 %v237, %v237
    %v9009 = vand.u32 %v9008, 4294901760
    %9010 = vmatmul.f32.gmra.mxu0 %v9009
    %v9011 = vpop.f32.mrf.mxu0
    %v9012 = vadd.f32 %v8899, %v9011
    %9013 = vdwg.mxu0
    %v9014 = vand.u32 %v7427, 4294901760
    %v9015 = vsub.f32 %v7427, %v9014
    %v9016 = vand.u32 %v9015, 4294901760
    %9017 = vmatpush.msra.mxu0 %v9016
    %v9018 = vand.u32 %v7426, 4294901760
    %v9019 = vsub.f32 %v7426, %v9018
    %v9020 = vand.u32 %v9019, 4294901760
    %9021 = vmatpush.msra.mxu0 %v9020
    %v9022 = vand.u32 %v7425, 4294901760
    %v9023 = vsub.f32 %v7425, %v9022
    %v9024 = vand.u32 %v9023, 4294901760
    %9025 = vmatpush.msra.mxu0 %v9024
    %v9026 = vand.u32 %v7424, 4294901760
    %v9027 = vsub.f32 %v7424, %v9026
    %v9028 = vand.u32 %v9027, 4294901760
    %9029 = vmatpush.msra.mxu0 %v9028
    %v9030 = vand.u32 %v7423, 4294901760
    %v9031 = vsub.f32 %v7423, %v9030
    %v9032 = vand.u32 %v9031, 4294901760
    %9033 = vmatpush.msra.mxu0 %v9032
    %v9034 = vand.u32 %v7422, 4294901760
    %v9035 = vsub.f32 %v7422, %v9034
    %v9036 = vand.u32 %v9035, 4294901760
    %9037 = vmatpush.msra.mxu0 %v9036
    %v9038 = vand.u32 %v7421, 4294901760
    %v9039 = vsub.f32 %v7421, %v9038
    %v9040 = vand.u32 %v9039, 4294901760
    %9041 = vmatpush.msra.mxu0 %v9040
    %v9042 = vand.u32 %v7420, 4294901760
    %v9043 = vsub.f32 %v7420, %v9042
    %v9044 = vand.u32 %v9043, 4294901760
    %9045 = vmatpush.msra.mxu0 %v9044
    %v9046 = vand.u32 %v7419, 4294901760
    %v9047 = vsub.f32 %v7419, %v9046
    %v9048 = vand.u32 %v9047, 4294901760
    %9049 = vmatpush.msra.mxu0 %v9048
    %v9050 = vand.u32 %v7418, 4294901760
    %v9051 = vsub.f32 %v7418, %v9050
    %v9052 = vand.u32 %v9051, 4294901760
    %9053 = vmatpush.msra.mxu0 %v9052
    %v9054 = vand.u32 %v7417, 4294901760
    %v9055 = vsub.f32 %v7417, %v9054
    %v9056 = vand.u32 %v9055, 4294901760
    %9057 = vmatpush.msra.mxu0 %v9056
    %v9058 = vand.u32 %v7416, 4294901760
    %v9059 = vsub.f32 %v7416, %v9058
    %v9060 = vand.u32 %v9059, 4294901760
    %9061 = vmatpush.msra.mxu0 %v9060
    %v9062 = vand.u32 %v7415, 4294901760
    %v9063 = vsub.f32 %v7415, %v9062
    %v9064 = vand.u32 %v9063, 4294901760
    %9065 = vmatpush.msra.mxu0 %v9064
    %v9066 = vand.u32 %v7414, 4294901760
    %v9067 = vsub.f32 %v7414, %v9066
    %v9068 = vand.u32 %v9067, 4294901760
    %9069 = vmatpush.msra.mxu0 %v9068
    %v9070 = vand.u32 %v7413, 4294901760
    %v9071 = vsub.f32 %v7413, %v9070
    %v9072 = vand.u32 %v9071, 4294901760
    %9073 = vmatpush.msra.mxu0 %v9072
    %v9074 = vand.u32 %v7412, 4294901760
    %v9075 = vsub.f32 %v7412, %v9074
    %v9076 = vand.u32 %v9075, 4294901760
    %9077 = vmatpush.msra.mxu0 %v9076
    %9078 = vmatmul.f32.gmra.mxu0 %v222
    %v9079 = vpop.f32.mrf.mxu0
    %v9080 = vadd.f32 %v8937, %v9079
    %9081 = vmatmul.f32.gmra.mxu0 %v223
    %v9082 = vpop.f32.mrf.mxu0
    %v9083 = vadd.f32 %v8942, %v9082
    %9084 = vmatmul.f32.gmra.mxu0 %v224
    %v9085 = vpop.f32.mrf.mxu0
    %v9086 = vadd.f32 %v8947, %v9085
    %9087 = vmatmul.f32.gmra.mxu0 %v225
    %v9088 = vpop.f32.mrf.mxu0
    %v9089 = vadd.f32 %v8952, %v9088
    %9090 = vmatmul.f32.gmra.mxu0 %v226
    %v9091 = vpop.f32.mrf.mxu0
    %v9092 = vadd.f32 %v8957, %v9091
    %9093 = vmatmul.f32.gmra.mxu0 %v227
    %v9094 = vpop.f32.mrf.mxu0
    %v9095 = vadd.f32 %v8962, %v9094
    %9096 = vmatmul.f32.gmra.mxu0 %v228
    %v9097 = vpop.f32.mrf.mxu0
    %v9098 = vadd.f32 %v8967, %v9097
    %9099 = vmatmul.f32.gmra.mxu0 %v229
    %v9100 = vpop.f32.mrf.mxu0
    %v9101 = vadd.f32 %v8972, %v9100
    %9102 = vmatmul.f32.gmra.mxu0 %v230
    %v9103 = vpop.f32.mrf.mxu0
    %v9104 = vadd.f32 %v8977, %v9103
    %9105 = vmatmul.f32.gmra.mxu0 %v231
    %v9106 = vpop.f32.mrf.mxu0
    %v9107 = vadd.f32 %v8982, %v9106
    %9108 = vmatmul.f32.gmra.mxu0 %v232
    %v9109 = vpop.f32.mrf.mxu0
    %v9110 = vadd.f32 %v8987, %v9109
    %9111 = vmatmul.f32.gmra.mxu0 %v233
    %v9112 = vpop.f32.mrf.mxu0
    %v9113 = vadd.f32 %v8992, %v9112
    %9114 = vmatmul.f32.gmra.mxu0 %v234
    %v9115 = vpop.f32.mrf.mxu0
    %v9116 = vadd.f32 %v8997, %v9115
    %9117 = vmatmul.f32.gmra.mxu0 %v235
    %v9118 = vpop.f32.mrf.mxu0
    %v9119 = vadd.f32 %v9002, %v9118
    %9120 = vmatmul.f32.gmra.mxu0 %v236
    %v9121 = vpop.f32.mrf.mxu0
    %v9122 = vadd.f32 %v9007, %v9121
    %9123 = vmatmul.f32.gmra.mxu0 %v237
    %v9124 = vpop.f32.mrf.mxu0
    %v9125 = vadd.f32 %v9012, %v9124
    %9126 = vdwg.mxu0
    %v9127 = vand.u32 %v7427, 4294901760
    %9128 = vmatpush.msra.mxu0 %v9127
    %v9129 = vand.u32 %v7426, 4294901760
    %9130 = vmatpush.msra.mxu0 %v9129
    %v9131 = vand.u32 %v7425, 4294901760
    %9132 = vmatpush.msra.mxu0 %v9131
    %v9133 = vand.u32 %v7424, 4294901760
    %9134 = vmatpush.msra.mxu0 %v9133
    %v9135 = vand.u32 %v7423, 4294901760
    %9136 = vmatpush.msra.mxu0 %v9135
    %v9137 = vand.u32 %v7422, 4294901760
    %9138 = vmatpush.msra.mxu0 %v9137
    %v9139 = vand.u32 %v7421, 4294901760
    %9140 = vmatpush.msra.mxu0 %v9139
    %v9141 = vand.u32 %v7420, 4294901760
    %9142 = vmatpush.msra.mxu0 %v9141
    %v9143 = vand.u32 %v7419, 4294901760
    %9144 = vmatpush.msra.mxu0 %v9143
    %v9145 = vand.u32 %v7418, 4294901760
    %9146 = vmatpush.msra.mxu0 %v9145
    %v9147 = vand.u32 %v7417, 4294901760
    %9148 = vmatpush.msra.mxu0 %v9147
    %v9149 = vand.u32 %v7416, 4294901760
    %9150 = vmatpush.msra.mxu0 %v9149
    %v9151 = vand.u32 %v7415, 4294901760
    %9152 = vmatpush.msra.mxu0 %v9151
    %v9153 = vand.u32 %v7414, 4294901760
    %9154 = vmatpush.msra.mxu0 %v9153
    %v9155 = vand.u32 %v7413, 4294901760
    %9156 = vmatpush.msra.mxu0 %v9155
    %v9157 = vand.u32 %v7412, 4294901760
    %9158 = vmatpush.msra.mxu0 %v9157
    %9159 = vmatmul.f32.gmra.mxu0 %v222
    %v9160 = vpop.f32.mrf.mxu0
    %v9161 = vadd.f32 %v9080, %v9160
    %9162 = vmatmul.f32.gmra.mxu0 %v223
    %v9163 = vpop.f32.mrf.mxu0
    %v9164 = vadd.f32 %v9083, %v9163
    %9165 = vmatmul.f32.gmra.mxu0 %v224
    %v9166 = vpop.f32.mrf.mxu0
    %v9167 = vadd.f32 %v9086, %v9166
    %9168 = vmatmul.f32.gmra.mxu0 %v225
    %v9169 = vpop.f32.mrf.mxu0
    %v9170 = vadd.f32 %v9089, %v9169
    %9171 = vmatmul.f32.gmra.mxu0 %v226
    %v9172 = vpop.f32.mrf.mxu0
    %v9173 = vadd.f32 %v9092, %v9172
    %9174 = vmatmul.f32.gmra.mxu0 %v227
    %v9175 = vpop.f32.mrf.mxu0
    %v9176 = vadd.f32 %v9095, %v9175
    %9177 = vmatmul.f32.gmra.mxu0 %v228
    %v9178 = vpop.f32.mrf.mxu0
    %v9179 = vadd.f32 %v9098, %v9178
    %9180 = vmatmul.f32.gmra.mxu0 %v229
    %v9181 = vpop.f32.mrf.mxu0
    %v9182 = vadd.f32 %v9101, %v9181
    %9183 = vmatmul.f32.gmra.mxu0 %v230
    %v9184 = vpop.f32.mrf.mxu0
    %v9185 = vadd.f32 %v9104, %v9184
    %9186 = vmatmul.f32.gmra.mxu0 %v231
    %v9187 = vpop.f32.mrf.mxu0
    %v9188 = vadd.f32 %v9107, %v9187
    %9189 = vmatmul.f32.gmra.mxu0 %v232
    %v9190 = vpop.f32.mrf.mxu0
    %v9191 = vadd.f32 %v9110, %v9190
    %9192 = vmatmul.f32.gmra.mxu0 %v233
    %v9193 = vpop.f32.mrf.mxu0
    %v9194 = vadd.f32 %v9113, %v9193
    %9195 = vmatmul.f32.gmra.mxu0 %v234
    %v9196 = vpop.f32.mrf.mxu0
    %v9197 = vadd.f32 %v9116, %v9196
    %9198 = vmatmul.f32.gmra.mxu0 %v235
    %v9199 = vpop.f32.mrf.mxu0
    %v9200 = vadd.f32 %v9119, %v9199
    %9201 = vmatmul.f32.gmra.mxu0 %v236
    %v9202 = vpop.f32.mrf.mxu0
    %v9203 = vadd.f32 %v9122, %v9202
    %9204 = vmatmul.f32.gmra.mxu0 %v237
    %v9205 = vpop.f32.mrf.mxu0
    %v9206 = vadd.f32 %v9125, %v9205
    %9207 = vdwg.mxu0
    %v9208 = vmul.f32 %v7435, %v9161
    %v9209 = vmul.f32 %v7436, %v9164
    %v9210 = vmul.f32 %v7437, %v9167
    %v9211 = vmul.f32 %v7438, %v9170
    %v9212 = vmul.f32 %v7439, %v9173
    %v9213 = vmul.f32 %v7440, %v9176
    %v9214 = vmul.f32 %v7441, %v9179
    %v9215 = vmul.f32 %v7442, %v9182
    %v9216 = vmul.f32 %v7443, %v9185
    %v9217 = vmul.f32 %v7444, %v9188
    %v9218 = vmul.f32 %v7445, %v9191
    %v9219 = vmul.f32 %v7446, %v9194
    %v9220 = vmul.f32 %v7447, %v9197
    %v9221 = vmul.f32 %v7448, %v9200
    %v9222 = vmul.f32 %v7449, %v9203
    %v9223 = vmul.f32 %v7450, %v9206
    %v9224 = vadd.f32 %v9208, %v9209
    %v9225 = vadd.f32 %v9224, %v9210
    %v9226 = vadd.f32 %v9225, %v9211
    %v9227 = vadd.f32 %v9226, %v9212
    %v9228 = vadd.f32 %v9227, %v9213
    %v9229 = vadd.f32 %v9228, %v9214
    %v9230 = vadd.f32 %v9229, %v9215
    %v9231 = vadd.f32 %v9230, %v9216
    %v9232 = vadd.f32 %v9231, %v9217
    %v9233 = vadd.f32 %v9232, %v9218
    %v9234 = vadd.f32 %v9233, %v9219
    %v9235 = vadd.f32 %v9234, %v9220
    %v9236 = vadd.f32 %v9235, %v9221
    %v9237 = vadd.f32 %v9236, %v9222
    %v9238 = vadd.f32 %v9237, %v9223
    %9239 = vadd.xlane.f32.xlu0 %v9238
    %v9240 = vpop.xlane.xlu0 %9239
    %v9241 = vrot.slane %v9240, 4
    %v9242 = vadd.f32 %v9240, %v9241
    %v9243 = vrot.slane %v9242, 2
    %v9244 = vadd.f32 %v9242, %v9243
    %v9245 = vrot.slane %v9244, 1
    %v9246 = vadd.f32 %v9244, %v9245
    %s9247 = vtos %v9246
    %s9248 = smul.f32 %s7430, %s7429
    %s9249 = sadd.f32 %s9247, %s9248
    %v9250 = vld [vmem:[#allocation11] sm:$0xf]
    %v9251 = vld [vmem:[#allocation11 + $0x4] sm:$0xf]
    %v9252 = vld [vmem:[#allocation11 + $0x8] sm:$0xf]
    %v9253 = vld [vmem:[#allocation11 + $0xc] sm:$0xf]
    %v9254 = vld [vmem:[#allocation11 + $0x10] sm:$0xf]
    %v9255 = vld [vmem:[#allocation11 + $0x14] sm:$0xf]
    %v9256 = vld [vmem:[#allocation11 + $0x18] sm:$0xf]
    %v9257 = vld [vmem:[#allocation11 + $0x1c] sm:$0xf]
    %v9258 = vld [vmem:[#allocation11 + $0x20] sm:$0xf]
    %v9259 = vld [vmem:[#allocation11 + $0x24] sm:$0xf]
    %v9260 = vld [vmem:[#allocation11 + $0x28] sm:$0xf]
    %v9261 = vld [vmem:[#allocation11 + $0x2c] sm:$0xf]
    %v9262 = vld [vmem:[#allocation11 + $0x30] sm:$0xf]
    %v9263 = vld [vmem:[#allocation11 + $0x34] sm:$0xf]
    %v9264 = vld [vmem:[#allocation11 + $0x38] sm:$0xf]
    %v9265 = vld [vmem:[#allocation11 + $0x3c] sm:$0xf]
    %v9266 = vunpack.c.l.bf16 %v9250
    %v9267 = vunpack.c.l.bf16 %v9251
    %v9268 = vunpack.c.l.bf16 %v9252
    %v9269 = vunpack.c.l.bf16 %v9253
    %v9270 = vunpack.c.l.bf16 %v9254
    %v9271 = vunpack.c.l.bf16 %v9255
    %v9272 = vunpack.c.l.bf16 %v9256
    %v9273 = vunpack.c.l.bf16 %v9257
    %v9274 = vunpack.c.l.bf16 %v9258
    %v9275 = vunpack.c.l.bf16 %v9259
    %v9276 = vunpack.c.l.bf16 %v9260
    %v9277 = vunpack.c.l.bf16 %v9261
    %v9278 = vunpack.c.l.bf16 %v9262
    %v9279 = vunpack.c.l.bf16 %v9263
    %v9280 = vunpack.c.l.bf16 %v9264
    %v9281 = vunpack.c.l.bf16 %v9265
    %v9282 = vmul.f32 %v9266, %v8482
    %v9283 = vmul.f32 %v9267, %v8483
    %v9284 = vmul.f32 %v9268, %v8484
    %v9285 = vmul.f32 %v9269, %v8485
    %v9286 = vmul.f32 %v9270, %v8486
    %v9287 = vmul.f32 %v9271, %v8487
    %v9288 = vmul.f32 %v9272, %v8488
    %v9289 = vmul.f32 %v9273, %v8489
    %v9290 = vmul.f32 %v9274, %v8490
    %v9291 = vmul.f32 %v9275, %v8491
    %v9292 = vmul.f32 %v9276, %v8492
    %v9293 = vmul.f32 %v9277, %v8493
    %v9294 = vmul.f32 %v9278, %v8494
    %v9295 = vmul.f32 %v9279, %v8495
    %v9296 = vmul.f32 %v9280, %v8496
    %v9297 = vmul.f32 %v9281, %v8497
    %v9298 = vadd.f32 %v9282, %v9283
    %v9299 = vadd.f32 %v9298, %v9284
    %v9300 = vadd.f32 %v9299, %v9285
    %v9301 = vadd.f32 %v9300, %v9286
    %v9302 = vadd.f32 %v9301, %v9287
    %v9303 = vadd.f32 %v9302, %v9288
    %v9304 = vadd.f32 %v9303, %v9289
    %v9305 = vadd.f32 %v9304, %v9290
    %v9306 = vadd.f32 %v9305, %v9291
    %v9307 = vadd.f32 %v9306, %v9292
    %v9308 = vadd.f32 %v9307, %v9293
    %v9309 = vadd.f32 %v9308, %v9294
    %v9310 = vadd.f32 %v9309, %v9295
    %v9311 = vadd.f32 %v9310, %v9296
    %v9312 = vadd.f32 %v9311, %v9297
    %9313 = vadd.xlane.f32.xlu0 %v9312
    %v9314 = vpop.xlane.xlu0 %9313
    %v9315 = vrot.slane %v9314, 4
    %v9316 = vadd.f32 %v9314, %v9315
    %v9317 = vrot.slane %v9316, 2
    %v9318 = vadd.f32 %v9316, %v9317
    %v9319 = vrot.slane %v9318, 1
    %v9320 = vadd.f32 %v9318, %v9319
    %s9321 = vtos %v9320
    %s9322 = ssub.f32 %s9249, %s9321
    %v9323 = vstv %s7428
    %v9324 = vrcp.pop %v9323
    %v9325 = vmul.f32 %v9323, %v9324
    %v9326 = vsub.f32 1.0, %v9325
    %v9327 = vmul.f32 %v9324, %v9326
    %v9328 = vadd.f32 %v9324, %v9327
    %vm9329 = vweird.f32 %v9323
    %vm9330 = vweird.f32 %v9324
    %vm9331 = vmor %vm9329, %vm9330
    %v9332 = vsel %vm9331, %v9324, %v9328
    %v9333 = vand.u32 2147483647, %v9323
    %vm9334 = vcmp.eq.f32.partialorder %v9333, 8.507059e+37
    %v9335 = vand.u32 %v9323, 2147483648
    %v9336 = vor.u32 1.1754944e-38, %v9335
    %v9337 = vsel %vm9334, %v9336, %v9332
    %s9338 = vtos %v9337
    %s9339 = smul.f32 %s9322, %s9338
    %v9340 = vsub.f32 0.0, %v7302
    %v9341 = vsub.f32 0.0, %v7306
    %v9342 = vsub.f32 0.0, %v7310
    %v9343 = vsub.f32 0.0, %v7314
    %v9344 = vsub.f32 0.0, %v7318
    %v9345 = vsub.f32 0.0, %v7322
    %v9346 = vsub.f32 0.0, %v7326
    %v9347 = vsub.f32 0.0, %v7330
    %v9348 = vsub.f32 0.0, %v7334
    %v9349 = vsub.f32 0.0, %v7338
    %v9350 = vsub.f32 0.0, %v7342
    %v9351 = vsub.f32 0.0, %v7346
    %v9352 = vsub.f32 0.0, %v7350
    %v9353 = vsub.f32 0.0, %v7354
    %v9354 = vsub.f32 0.0, %v7358
    %v9355 = vsub.f32 0.0, %v7362
    %v9356 = vmul.f32 %v7365, %v7365
    %v9357 = vmul.f32 %v7367, %v7367
    %v9358 = vmul.f32 %v7369, %v7369
    %v9359 = vmul.f32 %v7371, %v7371
    %v9360 = vmul.f32 %v7373, %v7373
    %v9361 = vmul.f32 %v7375, %v7375
    %v9362 = vmul.f32 %v7377, %v7377
    %v9363 = vmul.f32 %v7379, %v7379
    %v9364 = vmul.f32 %v7381, %v7381
    %v9365 = vmul.f32 %v7383, %v7383
    %v9366 = vmul.f32 %v7385, %v7385
    %v9367 = vmul.f32 %v7387, %v7387
    %v9368 = vmul.f32 %v7389, %v7389
    %v9369 = vmul.f32 %v7391, %v7391
    %v9370 = vmul.f32 %v7393, %v7393
    %v9371 = vmul.f32 %v7395, %v7395
    %v9372 = vmul.f32 %v6476, %v6476
    %v9373 = vmul.f32 %v6480, %v6480
    %v9374 = vmul.f32 %v6484, %v6484
    %v9375 = vmul.f32 %v6488, %v6488
    %v9376 = vmul.f32 %v6492, %v6492
    %v9377 = vmul.f32 %v6496, %v6496
    %v9378 = vmul.f32 %v6500, %v6500
    %v9379 = vmul.f32 %v6504, %v6504
    %v9380 = vmul.f32 %v6508, %v6508
    %v9381 = vmul.f32 %v6512, %v6512
    %v9382 = vmul.f32 %v6516, %v6516
    %v9383 = vmul.f32 %v6520, %v6520
    %v9384 = vmul.f32 %v6524, %v6524
    %v9385 = vmul.f32 %v6528, %v6528
    %v9386 = vmul.f32 %v6532, %v6532
    %v9387 = vmul.f32 %v6536, %v6536
    %v9388 = vadd.f32 %v9356, %v9372
    %v9389 = vadd.f32 %v9357, %v9373
    %v9390 = vadd.f32 %v9358, %v9374
    %v9391 = vadd.f32 %v9359, %v9375
    %v9392 = vadd.f32 %v9360, %v9376
    %v9393 = vadd.f32 %v9361, %v9377
    %v9394 = vadd.f32 %v9362, %v9378
    %v9395 = vadd.f32 %v9363, %v9379
    %v9396 = vadd.f32 %v9364, %v9380
    %v9397 = vadd.f32 %v9365, %v9381
    %v9398 = vadd.f32 %v9366, %v9382
    %v9399 = vadd.f32 %v9367, %v9383
    %v9400 = vadd.f32 %v9368, %v9384
    %v9401 = vadd.f32 %v9369, %v9385
    %v9402 = vadd.f32 %v9370, %v9386
    %v9403 = vadd.f32 %v9371, %v9387
    %v9404 = vmul.f32 %v9388, 0.5
    %v9405 = vmul.f32 %v9389, 0.5
    %v9406 = vmul.f32 %v9390, 0.5
    %v9407 = vmul.f32 %v9391, 0.5
    %v9408 = vmul.f32 %v9392, 0.5
    %v9409 = vmul.f32 %v9393, 0.5
    %v9410 = vmul.f32 %v9394, 0.5
    %v9411 = vmul.f32 %v9395, 0.5
    %v9412 = vmul.f32 %v9396, 0.5
    %v9413 = vmul.f32 %v9397, 0.5
    %v9414 = vmul.f32 %v9398, 0.5
    %v9415 = vmul.f32 %v9399, 0.5
    %v9416 = vmul.f32 %v9400, 0.5
    %v9417 = vmul.f32 %v9401, 0.5
    %v9418 = vmul.f32 %v9402, 0.5
    %v9419 = vmul.f32 %v9403, 0.5
    %v9420 = vadd.f32 %v9340, %v9404
    %v9421 = vadd.f32 %v9341, %v9405
    %v9422 = vadd.f32 %v9342, %v9406
    %v9423 = vadd.f32 %v9343, %v9407
    %v9424 = vadd.f32 %v9344, %v9408
    %v9425 = vadd.f32 %v9345, %v9409
    %v9426 = vadd.f32 %v9346, %v9410
    %v9427 = vadd.f32 %v9347, %v9411
    %v9428 = vadd.f32 %v9348, %v9412
    %v9429 = vadd.f32 %v9349, %v9413
    %v9430 = vadd.f32 %v9350, %v9414
    %v9431 = vadd.f32 %v9351, %v9415
    %v9432 = vadd.f32 %v9352, %v9416
    %v9433 = vadd.f32 %v9353, %v9417
    %v9434 = vadd.f32 %v9354, %v9418
    %v9435 = vadd.f32 %v9355, %v9419
    %v9436 = vsub.f32 %v9420, 0.5
    %v9437 = vsub.f32 %v9421, 0.5
    %v9438 = vsub.f32 %v9422, 0.5
    %v9439 = vsub.f32 %v9423, 0.5
    %v9440 = vsub.f32 %v9424, 0.5
    %v9441 = vsub.f32 %v9425, 0.5
    %v9442 = vsub.f32 %v9426, 0.5
    %v9443 = vsub.f32 %v9427, 0.5
    %v9444 = vsub.f32 %v9428, 0.5
    %v9445 = vsub.f32 %v9429, 0.5
    %v9446 = vsub.f32 %v9430, 0.5
    %v9447 = vsub.f32 %v9431, 0.5
    %v9448 = vsub.f32 %v9432, 0.5
    %v9449 = vsub.f32 %v9433, 0.5
    %v9450 = vsub.f32 %v9434, 0.5
    %v9451 = vsub.f32 %v9435, 0.5
    %v9452 = vlaneseq
    %v9453 = vshrl.u32 %v9452, 7
    %v9454 = vadd.s32 %v9453, 8
    %v9455 = vadd.s32 %v9453, 16
    %v9456 = vadd.s32 %v9453, 24
    %v9457 = vadd.s32 %v9453, 32
    %v9458 = vadd.s32 %v9453, 40
    %v9459 = vadd.s32 %v9453, 48
    %v9460 = vadd.s32 %v9453, 56
    %v9461 = vadd.s32 %v9453, 64
    %v9462 = vadd.s32 %v9453, 72
    %v9463 = vadd.s32 %v9453, 80
    %v9464 = vadd.s32 %v9453, 88
    %v9465 = vadd.s32 %v9453, 96
    %v9466 = vadd.s32 %v9453, 104
    %v9467 = vadd.s32 %v9453, 112
    %v9468 = vadd.s32 %v9453, 120
    %s9469 = sld [smem:[#allocation2]]
    %v9470 = vstv %s9469
    %vm9471 = vcmp.lt.s32.totalorder %v9453, %v9470
    %vm9472 = vcmp.lt.s32.totalorder %v9454, %v9470
    %vm9473 = vcmp.lt.s32.totalorder %v9455, %v9470
    %vm9474 = vcmp.lt.s32.totalorder %v9456, %v9470
    %vm9475 = vcmp.lt.s32.totalorder %v9457, %v9470
    %vm9476 = vcmp.lt.s32.totalorder %v9458, %v9470
    %vm9477 = vcmp.lt.s32.totalorder %v9459, %v9470
    %vm9478 = vcmp.lt.s32.totalorder %v9460, %v9470
    %vm9479 = vcmp.lt.s32.totalorder %v9461, %v9470
    %vm9480 = vcmp.lt.s32.totalorder %v9462, %v9470
    %vm9481 = vcmp.lt.s32.totalorder %v9463, %v9470
    %vm9482 = vcmp.lt.s32.totalorder %v9464, %v9470
    %vm9483 = vcmp.lt.s32.totalorder %v9465, %v9470
    %vm9484 = vcmp.lt.s32.totalorder %v9466, %v9470
    %vm9485 = vcmp.lt.s32.totalorder %v9467, %v9470
    %vm9486 = vcmp.lt.s32.totalorder %v9468, %v9470
    %v9487 = vsel %vm9471, 1, 0
    %v9488 = vsel %vm9472, 1, 0
    %v9489 = vsel %vm9473, 1, 0
    %v9490 = vsel %vm9474, 1, 0
    %v9491 = vsel %vm9475, 1, 0
    %v9492 = vsel %vm9476, 1, 0
    %v9493 = vsel %vm9477, 1, 0
    %v9494 = vsel %vm9478, 1, 0
    %v9495 = vsel %vm9479, 1, 0
    %v9496 = vsel %vm9480, 1, 0
    %v9497 = vsel %vm9481, 1, 0
    %v9498 = vsel %vm9482, 1, 0
    %v9499 = vsel %vm9483, 1, 0
    %v9500 = vsel %vm9484, 1, 0
    %v9501 = vsel %vm9485, 1, 0
    %v9502 = vsel %vm9486, 1, 0
    %v9503 = vcvt.s32.f32 %v9487
    %v9504 = vcvt.s32.f32 %v9488
    %v9505 = vcvt.s32.f32 %v9489
    %v9506 = vcvt.s32.f32 %v9490
    %v9507 = vcvt.s32.f32 %v9491
    %v9508 = vcvt.s32.f32 %v9492
    %v9509 = vcvt.s32.f32 %v9493
    %v9510 = vcvt.s32.f32 %v9494
    %v9511 = vcvt.s32.f32 %v9495
    %v9512 = vcvt.s32.f32 %v9496
    %v9513 = vcvt.s32.f32 %v9497
    %v9514 = vcvt.s32.f32 %v9498
    %v9515 = vcvt.s32.f32 %v9499
    %v9516 = vcvt.s32.f32 %v9500
    %v9517 = vcvt.s32.f32 %v9501
    %v9518 = vcvt.s32.f32 %v9502
    %v9519 = vmul.f32 %v9503, %v9436
    %v9520 = vmul.f32 %v9504, %v9437
    %v9521 = vmul.f32 %v9505, %v9438
    %v9522 = vmul.f32 %v9506, %v9439
    %v9523 = vmul.f32 %v9507, %v9440
    %v9524 = vmul.f32 %v9508, %v9441
    %v9525 = vmul.f32 %v9509, %v9442
    %v9526 = vmul.f32 %v9510, %v9443
    %v9527 = vmul.f32 %v9511, %v9444
    %v9528 = vmul.f32 %v9512, %v9445
    %v9529 = vmul.f32 %v9513, %v9446
    %v9530 = vmul.f32 %v9514, %v9447
    %v9531 = vmul.f32 %v9515, %v9448
    %v9532 = vmul.f32 %v9516, %v9449
    %v9533 = vmul.f32 %v9517, %v9450
    %v9534 = vmul.f32 %v9518, %v9451
    %v9535 = vadd.f32 %v9519, %v9520
    %v9536 = vadd.f32 %v9535, %v9521
    %v9537 = vadd.f32 %v9536, %v9522
    %v9538 = vadd.f32 %v9537, %v9523
    %v9539 = vadd.f32 %v9538, %v9524
    %v9540 = vadd.f32 %v9539, %v9525
    %v9541 = vadd.f32 %v9540, %v9526
    %v9542 = vadd.f32 %v9541, %v9527
    %v9543 = vadd.f32 %v9542, %v9528
    %v9544 = vadd.f32 %v9543, %v9529
    %v9545 = vadd.f32 %v9544, %v9530
    %v9546 = vadd.f32 %v9545, %v9531
    %v9547 = vadd.f32 %v9546, %v9532
    %v9548 = vadd.f32 %v9547, %v9533
    %v9549 = vadd.f32 %v9548, %v9534
    %9550 = vadd.xlane.f32.xlu0 %v9549
    %v9551 = vpop.xlane.xlu0 %9550
    %v9552 = vrot.slane %v9551, 4
    %v9553 = vadd.f32 %v9551, %v9552
    %v9554 = vrot.slane %v9553, 2
    %v9555 = vadd.f32 %v9553, %v9554
    %v9556 = vrot.slane %v9555, 1
    %v9557 = vadd.f32 %v9555, %v9556
    %s9558 = vtos %v9557
    %s9559 = scvt.s32.f32 %s9469
    %v9560 = vstv %s9559
    %v9561 = vrcp.pop %v9560
    %v9562 = vmul.f32 %v9560, %v9561
    %v9563 = vsub.f32 1.0, %v9562
    %v9564 = vmul.f32 %v9561, %v9563
    %v9565 = vadd.f32 %v9561, %v9564
    %vm9566 = vweird.f32 %v9560
    %vm9567 = vweird.f32 %v9561
    %vm9568 = vmor %vm9566, %vm9567
    %v9569 = vsel %vm9568, %v9561, %v9565
    %v9570 = vand.u32 2147483647, %v9560
    %vm9571 = vcmp.eq.f32.partialorder %v9570, 8.507059e+37
    %v9572 = vand.u32 %v9560, 2147483648
    %v9573 = vor.u32 1.1754944e-38, %v9572
    %v9574 = vsel %vm9571, %v9573, %v9569
    %s9575 = vtos %v9574
    %s9576 = smul.f32 %s9558, %s9575
    %s9577 = ssub.f32 %s9339, %s9576
    %s9578 = ssub.f32 0.0, %s9577
    %s9579 = scalar_lea.smem [#allocation19], 0
    %9580 = sst [smem:[%s9579]] %s9578
    // Predicated region
    $region98: #{tpu_custom_call.1} parent=1 // pred_check
      _
    $region99: #{tpu_custom_call.1} parent=1 // pred_check_branch
      %9582 = sbr.rel (0) target = $region101
    $region100: #{tpu_custom_call.1} parent=1 // pred_region
      %9584 = vsyncadd [#allocation5], 0
      %s9586 = sshll.u32 %s15, 4
      %s9587 = int_to_ptr.hbm [resolvable:$true] %s9586
      %9589 = dma.smem_to_hbm [#allocation19], 16, %s9587, [#allocation5]
    $region101: #{tpu_custom_call.1} parent=1 // pred_fallthru
      _
    // Predicated region
    $region102: #{tpu_custom_call.1} parent=1 // pred_check
      _
    $region103: #{tpu_custom_call.1} parent=1 // pred_check_branch
      %9591 = sbr.rel (0) target = $region105
    $region104: #{tpu_custom_call.1} parent=1 // pred_region
      %9593 = dma.done [#allocation5], 16
    $region105: #{tpu_custom_call.1} parent=1 // pred_fallthru
      _
    %9594 = sfence
    %9595 = vsyncpa [#allocation4], 1
    %9596 = vsyncpa [#allocation9], 1
    %9597 = vsyncpa [#allocation12], 1
    %9598 = vsyncpa [#allocation15], 1
    %9599 = vsyncpa [#allocation18], 1
    %9600 = vsyncpa [#allocation5], 1
    %9601 = vsyncpa [#allocation6], 1

</llo_original>
